<compile_context>
chip_gen: v6e
topology: v6e:2x2x1
jax: 0.10.0
libtpu: 0.0.40
codegen_flags: <defaults>
</compile_context>

<pallas_src>
import functools

import jax
import jax.numpy as jnp
from jax.experimental import pallas as pl
from jax.experimental.pallas import tpu as pltpu


# ----------------------------------------------------------------------------
# Fused forward kernel: 6 convs back-to-back, activations resident in VMEM.
# ----------------------------------------------------------------------------
def _fused_forward_kernel(x_ref, ws1_ref, ws2_ref, bs_ref, wo_ref, bo_ref,
                          o_ref, pad_ref, res_ref, *, N, H, W, C, AK):
    R = N * (H + 2)          # rows of the padded activation slab
    Rv = R - 2               # rows of a conv output slab (incl. N-1 junk rows)
    cdt = ws2_ref.dtype      # MXU input dtype (bf16 in production, f32 to verify)

    def conv3(src_ref, wget):
        # 3x3 "same" conv == 3 matmuls with block-banded per-row weights.
        acc = None
        for dy in range(3):
            term = jnp.dot(src_ref[pl.ds(dy, Rv), :].astype(cdt), wget(dy),
                           preferred_element_type=jnp.float32)
            acc = term if acc is None else acc + term
        return acc

    def finish(acc, b, *, relu, residual=None):
        acc = acc + b
        if residual is not None:
            acc = acc + residual
        if relu:
            acc = jnp.maximum(acc, 0.0)
        return acc

    def store_pad(val):
        # Write conv output into the interior rows of the padded slab, then
        # re-zero the inter-batch halo rows that received junk.
        pad_ref[pl.ds(1, Rv), :] = val
        for n in range(1, N):
            pad_ref[pl.ds(n * (H + 2) - 1, 2), :] = jnp.zeros((2, W * C),
                                                              jnp.float32)

    # Zero once: top/bottom halo rows of every image stay zero for all layers.
    pad_ref[...] = jnp.zeros_like(pad_ref)

    # ---- DoubleConv 1 (in_channels != out_channels -> conv shortcut) ----
    h = finish(conv3(x_ref, lambda dy: ws1_ref[0, dy]), bs_ref[0], relu=True)
    res_ref[...] = finish(conv3(x_ref, lambda dy: ws1_ref[1, dy]),
                          bs_ref[1], relu=False)                 # shortcut(x)
    store_pad(h)                                                 # relu(bn(conv1 x))
    o1 = finish(conv3(pad_ref, lambda dy: ws2_ref[0, dy]), bs_ref[2],
                relu=True, residual=res_ref[...])                # relu(conv2 + short)
    store_pad(o1)
    res_ref[...] = o1                                            # identity for block 2

    # ---- DoubleConv 2 (identity shortcut) ----
    store_pad(finish(conv3(pad_ref, lambda dy: ws2_ref[1, dy]),
                     bs_ref[3], relu=True))
    store_pad(finish(conv3(pad_ref, lambda dy: ws2_ref[2, dy]),
                     bs_ref[4], relu=True, residual=res_ref[...]))

    # ---- output head: 3x3 conv + bias, no BN / no ReLU ----
    head = finish(conv3(pad_ref, lambda dy: wo_ref[dy]), bo_ref[...],
                  relu=False)                                    # (Rv, W*AK)
    for n in range(N):                                           # drop junk rows
        r0 = n * (H + 2)
        o_ref[n, :, :] = head[r0:r0 + H, :]


def classification_model_fused(x_nchw, packed, *, num_classes, feat):
    """Fused forward. x_nchw: (N, Cin, H, W) f32. Returns (N, H*W*A, num_classes)."""
    ws1, ws2, bs, wo, bo = packed
    N, c_in, H, W = x_nchw.shape
    AK = wo.shape[-1] // W                  # num_anchor_points * num_classes
    R = N * (H + 2)

    # NCHW -> (N*(H+2), W*Cin): NHWC row-major flatten + 1-row vertical halo.
    x = jnp.transpose(x_nchw, (0, 2, 3, 1)).reshape(N, H, W * c_in)
    xp = jnp.pad(x, ((0, 0), (1, 1), (0, 0))).reshape(R, W * c_in)

    kernel = functools.partial(_fused_forward_kernel,
                               N=N, H=H, W=W, C=feat, AK=AK)
    out = pl.pallas_call(
        kernel,
        out_shape=jax.ShapeDtypeStruct((N, H, W * AK), jnp.float32),
        grid=(1,),
        in_specs=[
            pl.BlockSpec(xp.shape, lambda i: (0, 0)),
            pl.BlockSpec(ws1.shape, lambda i: (0, 0, 0, 0)),
            pl.BlockSpec(ws2.shape, lambda i: (0, 0, 0, 0)),
            pl.BlockSpec(bs.shape, lambda i: (0, 0, 0)),
            pl.BlockSpec(wo.shape, lambda i: (0, 0, 0)),
            pl.BlockSpec(bo.shape, lambda i: (0, 0)),
        ],
        out_specs=pl.BlockSpec((N, H, W * AK), lambda i: (0, 0, 0)),
        scratch_shapes=[
            pltpu.VMEM((R, W * feat), jnp.float32),       # padded activation slab
            pltpu.VMEM((R - 2, W * feat), jnp.float32),   # residual branch
        ],
        compiler_params=pltpu.CompilerParams(
            dimension_semantics=("arbitrary",),
            vmem_limit_bytes=32 * 1024 * 1024),
    )(xp, ws1, ws2, bs, wo, bo)

    # (N, H, W*A*K) -> (N, H*W*A, K): identical row-major element order as
    # torch's permute(0, 2, 3, 1).contiguous().view(N, -1, num_classes).
    return out.reshape(N, H * W * (AK // num_classes), num_classes)


# ----------------------------------------------------------------------------
# Parameters: deterministic init + eval-mode BatchNorm folding + banded packing.
# ----------------------------------------------------------------------------
def fold_bn(w, gamma, beta, mean, var, eps=1e-5):
    scale = gamma / jnp.sqrt(var + eps)
    return w * scale[None, None, None, :], beta - mean * scale


def init_params(key, c_in, feat, num_anchor_points, num_classes):
    keys = iter(jax.random.split(key, 32))

    def conv_w(cin, cout):
        return (jax.random.normal(next(keys), (3, 3, cin, cout), jnp.float32)
                * (1.0 / jnp.sqrt(9.0 * cin)))

    def bn_params(c):
        gamma = 1.0 + 0.1 * jax.random.normal(next(keys), (c,), jnp.float32)
        beta = 0.1 * jax.random.normal(next(keys), (c,), jnp.float32)
        mean = 0.1 * jax.random.normal(next(keys), (c,), jnp.float32)
        var = 1.0 + 0.1 * jnp.abs(jax.random.normal(next(keys), (c,), jnp.float32))
        return gamma, beta, mean, var

    def conv_bn(cin, cout):
        return fold_bn(conv_w(cin, cout), *bn_params(cout))

    return {
        "conv1": {"short": conv_bn(c_in, feat),
                  "dc1": conv_bn(c_in, feat),
                  "dc2": conv_bn(feat, feat)},
        "conv2": {"dc1": conv_bn(feat, feat),
                  "dc2": conv_bn(feat, feat)},
        "output": (conv_w(feat, num_anchor_points * num_classes),
                   0.1 * jax.random.normal(
                       next(keys), (num_anchor_points * num_classes,), jnp.float32)),
    }


def _band_from_hwio(w, W):
    """(3,3,Ci,Co) HWIO -> (3, W*Ci, W*Co) block-banded per-kernel-row matrices.

    band[dy][xin*Ci+ci, xout*Co+co] = w[dy, dx, ci, co]  where xin = xout+dx-1,
    with out-of-range taps dropped (== horizontal 'same' zero padding).
    """
    S = jnp.stack([jnp.eye(W, k=1 - dx, dtype=w.dtype) for dx in range(3)])
    Ci, Co = w.shape[2], w.shape[3]
    return jnp.einsum("ydio,dpq->ypiqo", w, S).reshape(3, W * Ci, W * Co)


def pack_params(p, W, compute_dtype):
    def band(w):
        return _band_from_hwio(w, W).astype(compute_dtype)

    def tile_bias(b):
        return jnp.tile(b, (W,)).reshape(1, -1).astype(jnp.float32)

    ws1 = jnp.stack([band(p["conv1"]["dc1"][0]),          # Cin -> feat convs
                     band(p["conv1"]["short"][0])])        # (2, 3, W*Cin, W*feat)
    ws2 = jnp.stack([band(p["conv1"]["dc2"][0]),           # feat -> feat convs
                     band(p["conv2"]["dc1"][0]),
                     band(p["conv2"]["dc2"][0])])          # (3, 3, W*feat, W*feat)
    bs = jnp.stack([tile_bias(b) for b in
                    (p["conv1"]["dc1"][1], p["conv1"]["short"][1],
                     p["conv1"]["dc2"][1], p["conv2"]["dc1"][1],
                     p["conv2"]["dc2"][1])])               # (5, 1, W*feat)
    wo = band(p["output"][0])                              # (3, W*feat, W*A*K)
    bo = tile_bias(p["output"][1])                         # (1, W*A*K)
    return ws1, ws2, bs, wo, bo


# ----------------------------------------------------------------------------
# Pure-JAX reference (same folded-BN math) for correctness checking.
# ----------------------------------------------------------------------------
def reference_forward(x_nchw, p, num_classes):
    x = jnp.transpose(x_nchw, (0, 2, 3, 1))

    def conv(h, wb, relu=False, residual=None):
        w, b = wb
        y = jax.lax.conv_general_dilated(
            h, w, (1, 1), "SAME",
            dimension_numbers=("NHWC", "HWIO", "NHWC"),
            precision=jax.lax.Precision.HIGHEST) + b
        if residual is not None:
            y = y + residual
        return jnp.maximum(y, 0.0) if relu else y

    h = conv(x, p["conv1"]["dc1"], relu=True)
    idn = conv(x, p["conv1"]["short"])
    o1 = conv(h, p["conv1"]["dc2"], relu=True, residual=idn)
    h = conv(o1, p["conv2"]["dc1"], relu=True)
    o2 = conv(h, p["conv2"]["dc2"], relu=True, residual=o1)
    y = conv(o2, p["output"])
    n, hh, ww, c = y.shape
    return y.reshape(n, hh * ww * (c // num_classes), num_classes)


if __name__ == "__main__":
    N, C_in, H, W = 2, 4, 16, 16
    num_anchor_points, num_classes, feature_size = 4, 2, 32

    key = jax.random.PRNGKey(0)
    kx, kp = jax.random.split(key)
    x = jax.random.normal(kx, (N, C_in, H, W), jnp.float32)
    folded = init_params(kp, C_in, feature_size, num_anchor_points, num_classes)

    fwd = jax.jit(functools.partial(classification_model_fused,
                                    num_classes=num_classes, feat=feature_size))

    # Production config: bf16 MXU inputs, f32 accumulation / elementwise.
    packed_bf16 = pack_params(folded, W, jnp.bfloat16)
    out = fwd(x, packed_bf16)
    jax.block_until_ready(out)
    assert out.shape == (N, H * W * num_anchor_points, num_classes), out.shape
    assert bool(jnp.all(jnp.isfinite(out)))

    # Correctness check: f32 variant of the same kernel vs. pure-JAX reference.
    packed_f32 = pack_params(folded, W, jnp.float32)
    out_f32 = fwd(x, packed_f32)
    ref = reference_forward(x, folded, num_classes)
    jax.block_until_ready((out_f32, ref))
    assert float(jnp.max(jnp.abs(out_f32 - ref))) < 5e-2
    assert float(jnp.max(jnp.abs(out - ref))) < 1.0   # bf16 matmul-input tolerance

    print("KERNEL_OK")
</pallas_src>

<mosaic_0001>
module attributes {stable_mosaic.version = 11 : i64} {
  func.func @_fused_forward_kernel(%arg0: i32, %arg1: memref<36x64xf32, #tpu.memory_space<vmem>>, %arg2: memref<2x3x64x512xbf16, #tpu.memory_space<vmem>>, %arg3: memref<3x3x512x512xbf16, #tpu.memory_space<vmem>>, %arg4: memref<5x1x512xf32, #tpu.memory_space<vmem>>, %arg5: memref<3x512x128xbf16, #tpu.memory_space<vmem>>, %arg6: memref<1x128xf32, #tpu.memory_space<vmem>>, %arg7: memref<2x16x128xf32, #tpu.memory_space<vmem>>, %arg8: memref<36x512xf32, #tpu.memory_space<vmem>>, %arg9: memref<34x512xf32, #tpu.memory_space<vmem>>) attributes {dimension_semantics = [#tpu.dimension_semantics<arbitrary>], iteration_bounds = array<i64: 1>, scalar_prefetch = 0 : i64, scratch_operands = 2 : i64, tpu.core_type = #tpu.core_type<tc>, window_params = [{pipeline_mode = #tpu.pipeline_mode<synchronous>, transform_indices = @transform_0, window_bounds = array<i64: 36, 64>}, {pipeline_mode = #tpu.pipeline_mode<synchronous>, transform_indices = @transform_1, window_bounds = array<i64: 2, 3, 64, 512>}, {pipeline_mode = #tpu.pipeline_mode<synchronous>, transform_indices = @transform_2, window_bounds = array<i64: 3, 3, 512, 512>}, {pipeline_mode = #tpu.pipeline_mode<synchronous>, transform_indices = @transform_3, window_bounds = array<i64: 5, 1, 512>}, {pipeline_mode = #tpu.pipeline_mode<synchronous>, transform_indices = @transform_4, window_bounds = array<i64: 3, 512, 128>}, {pipeline_mode = #tpu.pipeline_mode<synchronous>, transform_indices = @transform_5, window_bounds = array<i64: 1, 128>}, {pipeline_mode = #tpu.pipeline_mode<synchronous>, transform_indices = @transform_6, window_bounds = array<i64: 2, 16, 128>}]} {
    %cst = arith.constant 0.000000e+00 : f32
    %0 = vector.broadcast %cst : f32 to vector<36x512xf32>
    %c0 = arith.constant 0 : index
    %c0_0 = arith.constant 0 : index
    %1 = vector.load %arg8[%c0, %c0_0] : memref<36x512xf32, #tpu.memory_space<vmem>>, vector<36x512xf32>
    tpu.vector_store %arg8[%c0, %c0_0], %0 {strides = array<i32>} : memref<36x512xf32, #tpu.memory_space<vmem>>, vector<36x512xf32>,
    %c0_1 = arith.constant 0 : index
    %c0_2 = arith.constant 0 : index
    %2 = vector.load %arg1[%c0_1, %c0_2] : memref<36x64xf32, #tpu.memory_space<vmem>>, vector<34x64xf32>
    %3 = arith.truncf %2 : vector<34x64xf32> to vector<34x64xbf16>
    %c0_3 = arith.constant 0 : index
    %c0_4 = arith.constant 0 : index
    %c0_5 = arith.constant 0 : index
    %c0_6 = arith.constant 0 : index
    %4 = vector.load %arg2[%c0_3, %c0_4, %c0_5, %c0_6] : memref<2x3x64x512xbf16, #tpu.memory_space<vmem>>, vector<1x1x64x512xbf16>
    %5 = vector.shape_cast %4 : vector<1x1x64x512xbf16> to vector<64x512xbf16>
    %cst_7 = arith.constant dense<0.000000e+00> : vector<34x512xf32>
    %6 = tpu.matmul %3, %5, %cst_7 {dimension_numbers = #tpu.dot_dimension_numbers<[1], [0], [0], [1], [0, 0, 1, 1], [], []>} : vector<34x64xbf16>, vector<64x512xbf16>, vector<34x512xf32> -> vector<34x512xf32>
    %c1 = arith.constant 1 : index
    %c0_8 = arith.constant 0 : index
    %7 = vector.load %arg1[%c1, %c0_8] : memref<36x64xf32, #tpu.memory_space<vmem>>, vector<34x64xf32>
    %8 = arith.truncf %7 : vector<34x64xf32> to vector<34x64xbf16>
    %c0_9 = arith.constant 0 : index
    %c1_10 = arith.constant 1 : index
    %c0_11 = arith.constant 0 : index
    %c0_12 = arith.constant 0 : index
    %9 = vector.load %arg2[%c0_9, %c1_10, %c0_11, %c0_12] : memref<2x3x64x512xbf16, #tpu.memory_space<vmem>>, vector<1x1x64x512xbf16>
    %10 = vector.shape_cast %9 : vector<1x1x64x512xbf16> to vector<64x512xbf16>
    %cst_13 = arith.constant dense<0.000000e+00> : vector<34x512xf32>
    %11 = tpu.matmul %8, %10, %cst_13 {dimension_numbers = #tpu.dot_dimension_numbers<[1], [0], [0], [1], [0, 0, 1, 1], [], []>} : vector<34x64xbf16>, vector<64x512xbf16>, vector<34x512xf32> -> vector<34x512xf32>
    %12 = arith.addf %6, %11 : vector<34x512xf32>
    %c2 = arith.constant 2 : index
    %c0_14 = arith.constant 0 : index
    %13 = vector.load %arg1[%c2, %c0_14] : memref<36x64xf32, #tpu.memory_space<vmem>>, vector<34x64xf32>
    %14 = arith.truncf %13 : vector<34x64xf32> to vector<34x64xbf16>
    %c0_15 = arith.constant 0 : index
    %c2_16 = arith.constant 2 : index
    %c0_17 = arith.constant 0 : index
    %c0_18 = arith.constant 0 : index
    %15 = vector.load %arg2[%c0_15, %c2_16, %c0_17, %c0_18] : memref<2x3x64x512xbf16, #tpu.memory_space<vmem>>, vector<1x1x64x512xbf16>
    %16 = vector.shape_cast %15 : vector<1x1x64x512xbf16> to vector<64x512xbf16>
    %cst_19 = arith.constant dense<0.000000e+00> : vector<34x512xf32>
    %17 = tpu.matmul %14, %16, %cst_19 {dimension_numbers = #tpu.dot_dimension_numbers<[1], [0], [0], [1], [0, 0, 1, 1], [], []>} : vector<34x64xbf16>, vector<64x512xbf16>, vector<34x512xf32> -> vector<34x512xf32>
    %18 = arith.addf %12, %17 : vector<34x512xf32>
    %c0_20 = arith.constant 0 : index
    %c0_21 = arith.constant 0 : index
    %c0_22 = arith.constant 0 : index
    %19 = vector.load %arg4[%c0_20, %c0_21, %c0_22] : memref<5x1x512xf32, #tpu.memory_space<vmem>>, vector<1x1x512xf32>
    %20 = vector.shape_cast %19 : vector<1x1x512xf32> to vector<1x512xf32>
    %21 = vector.broadcast %20 : vector<1x512xf32> to vector<34x512xf32>
    %22 = arith.addf %18, %21 : vector<34x512xf32>
    %cst_23 = arith.constant 0.000000e+00 : f32
    %23 = vector.broadcast %cst_23 : f32 to vector<34x512xf32>
    %24 = arith.maximumf %22, %23 : vector<34x512xf32>
    %c0_24 = arith.constant 0 : index
    %c0_25 = arith.constant 0 : index
    %25 = vector.load %arg1[%c0_24, %c0_25] : memref<36x64xf32, #tpu.memory_space<vmem>>, vector<34x64xf32>
    %26 = arith.truncf %25 : vector<34x64xf32> to vector<34x64xbf16>
    %c1_26 = arith.constant 1 : index
    %c0_27 = arith.constant 0 : index
    %c0_28 = arith.constant 0 : index
    %c0_29 = arith.constant 0 : index
    %27 = vector.load %arg2[%c1_26, %c0_27, %c0_28, %c0_29] : memref<2x3x64x512xbf16, #tpu.memory_space<vmem>>, vector<1x1x64x512xbf16>
    %28 = vector.shape_cast %27 : vector<1x1x64x512xbf16> to vector<64x512xbf16>
    %cst_30 = arith.constant dense<0.000000e+00> : vector<34x512xf32>
    %29 = tpu.matmul %26, %28, %cst_30 {dimension_numbers = #tpu.dot_dimension_numbers<[1], [0], [0], [1], [0, 0, 1, 1], [], []>} : vector<34x64xbf16>, vector<64x512xbf16>, vector<34x512xf32> -> vector<34x512xf32>
    %c1_31 = arith.constant 1 : index
    %c0_32 = arith.constant 0 : index
    %30 = vector.load %arg1[%c1_31, %c0_32] : memref<36x64xf32, #tpu.memory_space<vmem>>, vector<34x64xf32>
    %31 = arith.truncf %30 : vector<34x64xf32> to vector<34x64xbf16>
    %c1_33 = arith.constant 1 : index
    %c1_34 = arith.constant 1 : index
    %c0_35 = arith.constant 0 : index
    %c0_36 = arith.constant 0 : index
    %32 = vector.load %arg2[%c1_33, %c1_34, %c0_35, %c0_36] : memref<2x3x64x512xbf16, #tpu.memory_space<vmem>>, vector<1x1x64x512xbf16>
    %33 = vector.shape_cast %32 : vector<1x1x64x512xbf16> to vector<64x512xbf16>
    %cst_37 = arith.constant dense<0.000000e+00> : vector<34x512xf32>
    %34 = tpu.matmul %31, %33, %cst_37 {dimension_numbers = #tpu.dot_dimension_numbers<[1], [0], [0], [1], [0, 0, 1, 1], [], []>} : vector<34x64xbf16>, vector<64x512xbf16>, vector<34x512xf32> -> vector<34x512xf32>
    %35 = arith.addf %29, %34 : vector<34x512xf32>
    %c2_38 = arith.constant 2 : index
    %c0_39 = arith.constant 0 : index
    %36 = vector.load %arg1[%c2_38, %c0_39] : memref<36x64xf32, #tpu.memory_space<vmem>>, vector<34x64xf32>
    %37 = arith.truncf %36 : vector<34x64xf32> to vector<34x64xbf16>
    %c1_40 = arith.constant 1 : index
    %c2_41 = arith.constant 2 : index
    %c0_42 = arith.constant 0 : index
    %c0_43 = arith.constant 0 : index
    %38 = vector.load %arg2[%c1_40, %c2_41, %c0_42, %c0_43] : memref<2x3x64x512xbf16, #tpu.memory_space<vmem>>, vector<1x1x64x512xbf16>
    %39 = vector.shape_cast %38 : vector<1x1x64x512xbf16> to vector<64x512xbf16>
    %cst_44 = arith.constant dense<0.000000e+00> : vector<34x512xf32>
    %40 = tpu.matmul %37, %39, %cst_44 {dimension_numbers = #tpu.dot_dimension_numbers<[1], [0], [0], [1], [0, 0, 1, 1], [], []>} : vector<34x64xbf16>, vector<64x512xbf16>, vector<34x512xf32> -> vector<34x512xf32>
    %41 = arith.addf %35, %40 : vector<34x512xf32>
    %c1_45 = arith.constant 1 : index
    %c0_46 = arith.constant 0 : index
    %c0_47 = arith.constant 0 : index
    %42 = vector.load %arg4[%c1_45, %c0_46, %c0_47] : memref<5x1x512xf32, #tpu.memory_space<vmem>>, vector<1x1x512xf32>
    %43 = vector.shape_cast %42 : vector<1x1x512xf32> to vector<1x512xf32>
    %44 = vector.broadcast %43 : vector<1x512xf32> to vector<34x512xf32>
    %45 = arith.addf %41, %44 : vector<34x512xf32>
    %c0_48 = arith.constant 0 : index
    %c0_49 = arith.constant 0 : index
    %46 = vector.load %arg9[%c0_48, %c0_49] : memref<34x512xf32, #tpu.memory_space<vmem>>, vector<34x512xf32>
    tpu.vector_store %arg9[%c0_48, %c0_49], %45 {strides = array<i32>} : memref<34x512xf32, #tpu.memory_space<vmem>>, vector<34x512xf32>,
    %c1_50 = arith.constant 1 : index
    %c0_51 = arith.constant 0 : index
    %47 = vector.load %arg8[%c1_50, %c0_51] : memref<36x512xf32, #tpu.memory_space<vmem>>, vector<34x512xf32>
    tpu.vector_store %arg8[%c1_50, %c0_51], %24 {strides = array<i32>} : memref<36x512xf32, #tpu.memory_space<vmem>>, vector<34x512xf32>,
    %cst_52 = arith.constant 0.000000e+00 : f32
    %48 = vector.broadcast %cst_52 : f32 to vector<2x512xf32>
    %c17 = arith.constant 17 : index
    %c0_53 = arith.constant 0 : index
    %49 = vector.load %arg8[%c17, %c0_53] : memref<36x512xf32, #tpu.memory_space<vmem>>, vector<2x512xf32>
    tpu.vector_store %arg8[%c17, %c0_53], %48 {strides = array<i32>} : memref<36x512xf32, #tpu.memory_space<vmem>>, vector<2x512xf32>,
    %c0_54 = arith.constant 0 : index
    %c0_55 = arith.constant 0 : index
    %50 = vector.load %arg8[%c0_54, %c0_55] : memref<36x512xf32, #tpu.memory_space<vmem>>, vector<34x512xf32>
    %51 = arith.truncf %50 : vector<34x512xf32> to vector<34x512xbf16>
    %c0_56 = arith.constant 0 : index
    %c0_57 = arith.constant 0 : index
    %c0_58 = arith.constant 0 : index
    %c0_59 = arith.constant 0 : index
    %52 = vector.load %arg3[%c0_56, %c0_57, %c0_58, %c0_59] : memref<3x3x512x512xbf16, #tpu.memory_space<vmem>>, vector<1x1x512x512xbf16>
    %53 = vector.shape_cast %52 : vector<1x1x512x512xbf16> to vector<512x512xbf16>
    %cst_60 = arith.constant dense<0.000000e+00> : vector<34x512xf32>
    %54 = tpu.matmul %51, %53, %cst_60 {dimension_numbers = #tpu.dot_dimension_numbers<[1], [0], [0], [1], [0, 0, 1, 1], [], []>} : vector<34x512xbf16>, vector<512x512xbf16>, vector<34x512xf32> -> vector<34x512xf32>
    %c1_61 = arith.constant 1 : index
    %c0_62 = arith.constant 0 : index
    %55 = vector.load %arg8[%c1_61, %c0_62] : memref<36x512xf32, #tpu.memory_space<vmem>>, vector<34x512xf32>
    %56 = arith.truncf %55 : vector<34x512xf32> to vector<34x512xbf16>
    %c0_63 = arith.constant 0 : index
    %c1_64 = arith.constant 1 : index
    %c0_65 = arith.constant 0 : index
    %c0_66 = arith.constant 0 : index
    %57 = vector.load %arg3[%c0_63, %c1_64, %c0_65, %c0_66] : memref<3x3x512x512xbf16, #tpu.memory_space<vmem>>, vector<1x1x512x512xbf16>
    %58 = vector.shape_cast %57 : vector<1x1x512x512xbf16> to vector<512x512xbf16>
    %cst_67 = arith.constant dense<0.000000e+00> : vector<34x512xf32>
    %59 = tpu.matmul %56, %58, %cst_67 {dimension_numbers = #tpu.dot_dimension_numbers<[1], [0], [0], [1], [0, 0, 1, 1], [], []>} : vector<34x512xbf16>, vector<512x512xbf16>, vector<34x512xf32> -> vector<34x512xf32>
    %60 = arith.addf %54, %59 : vector<34x512xf32>
    %c2_68 = arith.constant 2 : index
    %c0_69 = arith.constant 0 : index
    %61 = vector.load %arg8[%c2_68, %c0_69] : memref<36x512xf32, #tpu.memory_space<vmem>>, vector<34x512xf32>
    %62 = arith.truncf %61 : vector<34x512xf32> to vector<34x512xbf16>
    %c0_70 = arith.constant 0 : index
    %c2_71 = arith.constant 2 : index
    %c0_72 = arith.constant 0 : index
    %c0_73 = arith.constant 0 : index
    %63 = vector.load %arg3[%c0_70, %c2_71, %c0_72, %c0_73] : memref<3x3x512x512xbf16, #tpu.memory_space<vmem>>, vector<1x1x512x512xbf16>
    %64 = vector.shape_cast %63 : vector<1x1x512x512xbf16> to vector<512x512xbf16>
    %cst_74 = arith.constant dense<0.000000e+00> : vector<34x512xf32>
    %65 = tpu.matmul %62, %64, %cst_74 {dimension_numbers = #tpu.dot_dimension_numbers<[1], [0], [0], [1], [0, 0, 1, 1], [], []>} : vector<34x512xbf16>, vector<512x512xbf16>, vector<34x512xf32> -> vector<34x512xf32>
    %66 = arith.addf %60, %65 : vector<34x512xf32>
    %c2_75 = arith.constant 2 : index
    %c0_76 = arith.constant 0 : index
    %c0_77 = arith.constant 0 : index
    %67 = vector.load %arg4[%c2_75, %c0_76, %c0_77] : memref<5x1x512xf32, #tpu.memory_space<vmem>>, vector<1x1x512xf32>
    %68 = vector.shape_cast %67 : vector<1x1x512xf32> to vector<1x512xf32>
    %c0_78 = arith.constant 0 : index
    %c0_79 = arith.constant 0 : index
    %69 = vector.load %arg9[%c0_78, %c0_79] : memref<34x512xf32, #tpu.memory_space<vmem>>, vector<34x512xf32>
    %70 = vector.broadcast %68 : vector<1x512xf32> to vector<34x512xf32>
    %71 = arith.addf %66, %70 : vector<34x512xf32>
    %72 = arith.addf %71, %69 : vector<34x512xf32>
    %cst_80 = arith.constant 0.000000e+00 : f32
    %73 = vector.broadcast %cst_80 : f32 to vector<34x512xf32>
    %74 = arith.maximumf %72, %73 : vector<34x512xf32>
    %c1_81 = arith.constant 1 : index
    %c0_82 = arith.constant 0 : index
    %75 = vector.load %arg8[%c1_81, %c0_82] : memref<36x512xf32, #tpu.memory_space<vmem>>, vector<34x512xf32>
    tpu.vector_store %arg8[%c1_81, %c0_82], %74 {strides = array<i32>} : memref<36x512xf32, #tpu.memory_space<vmem>>, vector<34x512xf32>,
    %cst_83 = arith.constant 0.000000e+00 : f32
    %76 = vector.broadcast %cst_83 : f32 to vector<2x512xf32>
    %c17_84 = arith.constant 17 : index
    %c0_85 = arith.constant 0 : index
    %77 = vector.load %arg8[%c17_84, %c0_85] : memref<36x512xf32, #tpu.memory_space<vmem>>, vector<2x512xf32>
    tpu.vector_store %arg8[%c17_84, %c0_85], %76 {strides = array<i32>} : memref<36x512xf32, #tpu.memory_space<vmem>>, vector<2x512xf32>,
    %c0_86 = arith.constant 0 : index
    %c0_87 = arith.constant 0 : index
    %78 = vector.load %arg9[%c0_86, %c0_87] : memref<34x512xf32, #tpu.memory_space<vmem>>, vector<34x512xf32>
    tpu.vector_store %arg9[%c0_86, %c0_87], %74 {strides = array<i32>} : memref<34x512xf32, #tpu.memory_space<vmem>>, vector<34x512xf32>,
    %c0_88 = arith.constant 0 : index
    %c0_89 = arith.constant 0 : index
    %79 = vector.load %arg8[%c0_88, %c0_89] : memref<36x512xf32, #tpu.memory_space<vmem>>, vector<34x512xf32>
    %80 = arith.truncf %79 : vector<34x512xf32> to vector<34x512xbf16>
    %c1_90 = arith.constant 1 : index
    %c0_91 = arith.constant 0 : index
    %c0_92 = arith.constant 0 : index
    %c0_93 = arith.constant 0 : index
    %81 = vector.load %arg3[%c1_90, %c0_91, %c0_92, %c0_93] : memref<3x3x512x512xbf16, #tpu.memory_space<vmem>>, vector<1x1x512x512xbf16>
    %82 = vector.shape_cast %81 : vector<1x1x512x512xbf16> to vector<512x512xbf16>
    %cst_94 = arith.constant dense<0.000000e+00> : vector<34x512xf32>
    %83 = tpu.matmul %80, %82, %cst_94 {dimension_numbers = #tpu.dot_dimension_numbers<[1], [0], [0], [1], [0, 0, 1, 1], [], []>} : vector<34x512xbf16>, vector<512x512xbf16>, vector<34x512xf32> -> vector<34x512xf32>
    %c1_95 = arith.constant 1 : index
    %c0_96 = arith.constant 0 : index
    %84 = vector.load %arg8[%c1_95, %c0_96] : memref<36x512xf32, #tpu.memory_space<vmem>>, vector<34x512xf32>
    %85 = arith.truncf %84 : vector<34x512xf32> to vector<34x512xbf16>
    %c1_97 = arith.constant 1 : index
    %c1_98 = arith.constant 1 : index
    %c0_99 = arith.constant 0 : index
    %c0_100 = arith.constant 0 : index
    %86 = vector.load %arg3[%c1_97, %c1_98, %c0_99, %c0_100] : memref<3x3x512x512xbf16, #tpu.memory_space<vmem>>, vector<1x1x512x512xbf16>
    %87 = vector.shape_cast %86 : vector<1x1x512x512xbf16> to vector<512x512xbf16>
    %cst_101 = arith.constant dense<0.000000e+00> : vector<34x512xf32>
    %88 = tpu.matmul %85, %87, %cst_101 {dimension_numbers = #tpu.dot_dimension_numbers<[1], [0], [0], [1], [0, 0, 1, 1], [], []>} : vector<34x512xbf16>, vector<512x512xbf16>, vector<34x512xf32> -> vector<34x512xf32>
    %89 = arith.addf %83, %88 : vector<34x512xf32>
    %c2_102 = arith.constant 2 : index
    %c0_103 = arith.constant 0 : index
    %90 = vector.load %arg8[%c2_102, %c0_103] : memref<36x512xf32, #tpu.memory_space<vmem>>, vector<34x512xf32>
    %91 = arith.truncf %90 : vector<34x512xf32> to vector<34x512xbf16>
    %c1_104 = arith.constant 1 : index
    %c2_105 = arith.constant 2 : index
    %c0_106 = arith.constant 0 : index
    %c0_107 = arith.constant 0 : index
    %92 = vector.load %arg3[%c1_104, %c2_105, %c0_106, %c0_107] : memref<3x3x512x512xbf16, #tpu.memory_space<vmem>>, vector<1x1x512x512xbf16>
    %93 = vector.shape_cast %92 : vector<1x1x512x512xbf16> to vector<512x512xbf16>
    %cst_108 = arith.constant dense<0.000000e+00> : vector<34x512xf32>
    %94 = tpu.matmul %91, %93, %cst_108 {dimension_numbers = #tpu.dot_dimension_numbers<[1], [0], [0], [1], [0, 0, 1, 1], [], []>} : vector<34x512xbf16>, vector<512x512xbf16>, vector<34x512xf32> -> vector<34x512xf32>
    %95 = arith.addf %89, %94 : vector<34x512xf32>
    %c3 = arith.constant 3 : index
    %c0_109 = arith.constant 0 : index
    %c0_110 = arith.constant 0 : index
    %96 = vector.load %arg4[%c3, %c0_109, %c0_110] : memref<5x1x512xf32, #tpu.memory_space<vmem>>, vector<1x1x512xf32>
    %97 = vector.shape_cast %96 : vector<1x1x512xf32> to vector<1x512xf32>
    %98 = vector.broadcast %97 : vector<1x512xf32> to vector<34x512xf32>
    %99 = arith.addf %95, %98 : vector<34x512xf32>
    %cst_111 = arith.constant 0.000000e+00 : f32
    %100 = vector.broadcast %cst_111 : f32 to vector<34x512xf32>
    %101 = arith.maximumf %99, %100 : vector<34x512xf32>
    %c1_112 = arith.constant 1 : index
    %c0_113 = arith.constant 0 : index
    %102 = vector.load %arg8[%c1_112, %c0_113] : memref<36x512xf32, #tpu.memory_space<vmem>>, vector<34x512xf32>
    tpu.vector_store %arg8[%c1_112, %c0_113], %101 {strides = array<i32>} : memref<36x512xf32, #tpu.memory_space<vmem>>, vector<34x512xf32>,
    %cst_114 = arith.constant 0.000000e+00 : f32
    %103 = vector.broadcast %cst_114 : f32 to vector<2x512xf32>
    %c17_115 = arith.constant 17 : index
    %c0_116 = arith.constant 0 : index
    %104 = vector.load %arg8[%c17_115, %c0_116] : memref<36x512xf32, #tpu.memory_space<vmem>>, vector<2x512xf32>
    tpu.vector_store %arg8[%c17_115, %c0_116], %103 {strides = array<i32>} : memref<36x512xf32, #tpu.memory_space<vmem>>, vector<2x512xf32>,
    %c0_117 = arith.constant 0 : index
    %c0_118 = arith.constant 0 : index
    %105 = vector.load %arg8[%c0_117, %c0_118] : memref<36x512xf32, #tpu.memory_space<vmem>>, vector<34x512xf32>
    %106 = arith.truncf %105 : vector<34x512xf32> to vector<34x512xbf16>
    %c2_119 = arith.constant 2 : index
    %c0_120 = arith.constant 0 : index
    %c0_121 = arith.constant 0 : index
    %c0_122 = arith.constant 0 : index
    %107 = vector.load %arg3[%c2_119, %c0_120, %c0_121, %c0_122] : memref<3x3x512x512xbf16, #tpu.memory_space<vmem>>, vector<1x1x512x512xbf16>
    %108 = vector.shape_cast %107 : vector<1x1x512x512xbf16> to vector<512x512xbf16>
    %cst_123 = arith.constant dense<0.000000e+00> : vector<34x512xf32>
    %109 = tpu.matmul %106, %108, %cst_123 {dimension_numbers = #tpu.dot_dimension_numbers<[1], [0], [0], [1], [0, 0, 1, 1], [], []>} : vector<34x512xbf16>, vector<512x512xbf16>, vector<34x512xf32> -> vector<34x512xf32>
    %c1_124 = arith.constant 1 : index
    %c0_125 = arith.constant 0 : index
    %110 = vector.load %arg8[%c1_124, %c0_125] : memref<36x512xf32, #tpu.memory_space<vmem>>, vector<34x512xf32>
    %111 = arith.truncf %110 : vector<34x512xf32> to vector<34x512xbf16>
    %c2_126 = arith.constant 2 : index
    %c1_127 = arith.constant 1 : index
    %c0_128 = arith.constant 0 : index
    %c0_129 = arith.constant 0 : index
    %112 = vector.load %arg3[%c2_126, %c1_127, %c0_128, %c0_129] : memref<3x3x512x512xbf16, #tpu.memory_space<vmem>>, vector<1x1x512x512xbf16>
    %113 = vector.shape_cast %112 : vector<1x1x512x512xbf16> to vector<512x512xbf16>
    %cst_130 = arith.constant dense<0.000000e+00> : vector<34x512xf32>
    %114 = tpu.matmul %111, %113, %cst_130 {dimension_numbers = #tpu.dot_dimension_numbers<[1], [0], [0], [1], [0, 0, 1, 1], [], []>} : vector<34x512xbf16>, vector<512x512xbf16>, vector<34x512xf32> -> vector<34x512xf32>
    %115 = arith.addf %109, %114 : vector<34x512xf32>
    %c2_131 = arith.constant 2 : index
    %c0_132 = arith.constant 0 : index
    %116 = vector.load %arg8[%c2_131, %c0_132] : memref<36x512xf32, #tpu.memory_space<vmem>>, vector<34x512xf32>
    %117 = arith.truncf %116 : vector<34x512xf32> to vector<34x512xbf16>
    %c2_133 = arith.constant 2 : index
    %c2_134 = arith.constant 2 : index
    %c0_135 = arith.constant 0 : index
    %c0_136 = arith.constant 0 : index
    %118 = vector.load %arg3[%c2_133, %c2_134, %c0_135, %c0_136] : memref<3x3x512x512xbf16, #tpu.memory_space<vmem>>, vector<1x1x512x512xbf16>
    %119 = vector.shape_cast %118 : vector<1x1x512x512xbf16> to vector<512x512xbf16>
    %cst_137 = arith.constant dense<0.000000e+00> : vector<34x512xf32>
    %120 = tpu.matmul %117, %119, %cst_137 {dimension_numbers = #tpu.dot_dimension_numbers<[1], [0], [0], [1], [0, 0, 1, 1], [], []>} : vector<34x512xbf16>, vector<512x512xbf16>, vector<34x512xf32> -> vector<34x512xf32>
    %121 = arith.addf %115, %120 : vector<34x512xf32>
    %c4 = arith.constant 4 : index
    %c0_138 = arith.constant 0 : index
    %c0_139 = arith.constant 0 : index
    %122 = vector.load %arg4[%c4, %c0_138, %c0_139] : memref<5x1x512xf32, #tpu.memory_space<vmem>>, vector<1x1x512xf32>
    %123 = vector.shape_cast %122 : vector<1x1x512xf32> to vector<1x512xf32>
    %c0_140 = arith.constant 0 : index
    %c0_141 = arith.constant 0 : index
    %124 = vector.load %arg9[%c0_140, %c0_141] : memref<34x512xf32, #tpu.memory_space<vmem>>, vector<34x512xf32>
    %125 = vector.broadcast %123 : vector<1x512xf32> to vector<34x512xf32>
    %126 = arith.addf %121, %125 : vector<34x512xf32>
    %127 = arith.addf %126, %124 : vector<34x512xf32>
    %cst_142 = arith.constant 0.000000e+00 : f32
    %128 = vector.broadcast %cst_142 : f32 to vector<34x512xf32>
    %129 = arith.maximumf %127, %128 : vector<34x512xf32>
    %c1_143 = arith.constant 1 : index
    %c0_144 = arith.constant 0 : index
    %130 = vector.load %arg8[%c1_143, %c0_144] : memref<36x512xf32, #tpu.memory_space<vmem>>, vector<34x512xf32>
    tpu.vector_store %arg8[%c1_143, %c0_144], %129 {strides = array<i32>} : memref<36x512xf32, #tpu.memory_space<vmem>>, vector<34x512xf32>,
    %cst_145 = arith.constant 0.000000e+00 : f32
    %131 = vector.broadcast %cst_145 : f32 to vector<2x512xf32>
    %c17_146 = arith.constant 17 : index
    %c0_147 = arith.constant 0 : index
    %132 = vector.load %arg8[%c17_146, %c0_147] : memref<36x512xf32, #tpu.memory_space<vmem>>, vector<2x512xf32>
    tpu.vector_store %arg8[%c17_146, %c0_147], %131 {strides = array<i32>} : memref<36x512xf32, #tpu.memory_space<vmem>>, vector<2x512xf32>,
    %c0_148 = arith.constant 0 : index
    %c0_149 = arith.constant 0 : index
    %133 = vector.load %arg8[%c0_148, %c0_149] : memref<36x512xf32, #tpu.memory_space<vmem>>, vector<34x512xf32>
    %134 = arith.truncf %133 : vector<34x512xf32> to vector<34x512xbf16>
    %c0_150 = arith.constant 0 : index
    %c0_151 = arith.constant 0 : index
    %c0_152 = arith.constant 0 : index
    %135 = vector.load %arg5[%c0_150, %c0_151, %c0_152] : memref<3x512x128xbf16, #tpu.memory_space<vmem>>, vector<1x512x128xbf16>
    %136 = vector.shape_cast %135 : vector<1x512x128xbf16> to vector<512x128xbf16>
    %cst_153 = arith.constant dense<0.000000e+00> : vector<34x128xf32>
    %137 = tpu.matmul %134, %136, %cst_153 {dimension_numbers = #tpu.dot_dimension_numbers<[1], [0], [0], [1], [0, 0, 1, 1], [], []>} : vector<34x512xbf16>, vector<512x128xbf16>, vector<34x128xf32> -> vector<34x128xf32>
    %c1_154 = arith.constant 1 : index
    %c0_155 = arith.constant 0 : index
    %138 = vector.load %arg8[%c1_154, %c0_155] : memref<36x512xf32, #tpu.memory_space<vmem>>, vector<34x512xf32>
    %139 = arith.truncf %138 : vector<34x512xf32> to vector<34x512xbf16>
    %c1_156 = arith.constant 1 : index
    %c0_157 = arith.constant 0 : index
    %c0_158 = arith.constant 0 : index
    %140 = vector.load %arg5[%c1_156, %c0_157, %c0_158] : memref<3x512x128xbf16, #tpu.memory_space<vmem>>, vector<1x512x128xbf16>
    %141 = vector.shape_cast %140 : vector<1x512x128xbf16> to vector<512x128xbf16>
    %cst_159 = arith.constant dense<0.000000e+00> : vector<34x128xf32>
    %142 = tpu.matmul %139, %141, %cst_159 {dimension_numbers = #tpu.dot_dimension_numbers<[1], [0], [0], [1], [0, 0, 1, 1], [], []>} : vector<34x512xbf16>, vector<512x128xbf16>, vector<34x128xf32> -> vector<34x128xf32>
    %143 = arith.addf %137, %142 : vector<34x128xf32>
    %c2_160 = arith.constant 2 : index
    %c0_161 = arith.constant 0 : index
    %144 = vector.load %arg8[%c2_160, %c0_161] : memref<36x512xf32, #tpu.memory_space<vmem>>, vector<34x512xf32>
    %145 = arith.truncf %144 : vector<34x512xf32> to vector<34x512xbf16>
    %c2_162 = arith.constant 2 : index
    %c0_163 = arith.constant 0 : index
    %c0_164 = arith.constant 0 : index
    %146 = vector.load %arg5[%c2_162, %c0_163, %c0_164] : memref<3x512x128xbf16, #tpu.memory_space<vmem>>, vector<1x512x128xbf16>
    %147 = vector.shape_cast %146 : vector<1x512x128xbf16> to vector<512x128xbf16>
    %cst_165 = arith.constant dense<0.000000e+00> : vector<34x128xf32>
    %148 = tpu.matmul %145, %147, %cst_165 {dimension_numbers = #tpu.dot_dimension_numbers<[1], [0], [0], [1], [0, 0, 1, 1], [], []>} : vector<34x512xbf16>, vector<512x128xbf16>, vector<34x128xf32> -> vector<34x128xf32>
    %149 = arith.addf %143, %148 : vector<34x128xf32>
    %c0_166 = arith.constant 0 : index
    %c0_167 = arith.constant 0 : index
    %150 = vector.load %arg6[%c0_166, %c0_167] : memref<1x128xf32, #tpu.memory_space<vmem>>, vector<1x128xf32>
    %151 = vector.broadcast %150 : vector<1x128xf32> to vector<34x128xf32>
    %152 = arith.addf %149, %151 : vector<34x128xf32>
    %153 = vector.extract_strided_slice %152 {offsets = [0, 0], sizes = [16, 128], strides = [1, 1]} : vector<34x128xf32> to vector<16x128xf32>
    %c0_168 = arith.constant 0 : index
    %c0_169 = arith.constant 0 : index
    %c0_170 = arith.constant 0 : index
    %154 = vector.load %arg7[%c0_168, %c0_169, %c0_170] : memref<2x16x128xf32, #tpu.memory_space<vmem>>, vector<1x16x128xf32>
    %155 = vector.shape_cast %154 : vector<1x16x128xf32> to vector<16x128xf32>
    %156 = vector.shape_cast %153 : vector<16x128xf32> to vector<1x16x128xf32>
    tpu.vector_store %arg7[%c0_168, %c0_169, %c0_170], %156 {strides = array<i32>} : memref<2x16x128xf32, #tpu.memory_space<vmem>>, vector<1x16x128xf32>,
    %157 = vector.extract_strided_slice %152 {offsets = [18, 0], sizes = [16, 128], strides = [1, 1]} : vector<34x128xf32> to vector<16x128xf32>
    %c1_171 = arith.constant 1 : index
    %c0_172 = arith.constant 0 : index
    %c0_173 = arith.constant 0 : index
    %158 = vector.load %arg7[%c1_171, %c0_172, %c0_173] : memref<2x16x128xf32, #tpu.memory_space<vmem>>, vector<1x16x128xf32>
    %159 = vector.shape_cast %158 : vector<1x16x128xf32> to vector<16x128xf32>
    %160 = vector.shape_cast %157 : vector<16x128xf32> to vector<1x16x128xf32>
    tpu.vector_store %arg7[%c1_171, %c0_172, %c0_173], %160 {strides = array<i32>} : memref<2x16x128xf32, #tpu.memory_space<vmem>>, vector<1x16x128xf32>,
    return
  }
  func.func @transform_0(%arg0: i32) -> (i32, i32) {
    %c0_i32 = arith.constant 0 : i32
    %c0_i32_0 = arith.constant 0 : i32
    %c0_i32_1 = arith.constant 0 : i32
    return %c0_i32, %c0_i32_0 : i32, i32
  }
  func.func @transform_1(%arg0: i32) -> (i32, i32, i32, i32) {
    %c0_i32 = arith.constant 0 : i32
    %c0_i32_0 = arith.constant 0 : i32
    %c0_i32_1 = arith.constant 0 : i32
    %c0_i32_2 = arith.constant 0 : i32
    %c0_i32_3 = arith.constant 0 : i32
    return %c0_i32, %c0_i32_0, %c0_i32_1, %c0_i32_2 : i32, i32, i32, i32
  }
  func.func @transform_2(%arg0: i32) -> (i32, i32, i32, i32) {
    %c0_i32 = arith.constant 0 : i32
    %c0_i32_0 = arith.constant 0 : i32
    %c0_i32_1 = arith.constant 0 : i32
    %c0_i32_2 = arith.constant 0 : i32
    %c0_i32_3 = arith.constant 0 : i32
    return %c0_i32, %c0_i32_0, %c0_i32_1, %c0_i32_2 : i32, i32, i32, i32
  }
  func.func @transform_3(%arg0: i32) -> (i32, i32, i32) {
    %c0_i32 = arith.constant 0 : i32
    %c0_i32_0 = arith.constant 0 : i32
    %c0_i32_1 = arith.constant 0 : i32
    %c0_i32_2 = arith.constant 0 : i32
    return %c0_i32, %c0_i32_0, %c0_i32_1 : i32, i32, i32
  }
  func.func @transform_4(%arg0: i32) -> (i32, i32, i32) {
    %c0_i32 = arith.constant 0 : i32
    %c0_i32_0 = arith.constant 0 : i32
    %c0_i32_1 = arith.constant 0 : i32
    %c0_i32_2 = arith.constant 0 : i32
    return %c0_i32, %c0_i32_0, %c0_i32_1 : i32, i32, i32
  }
  func.func @transform_5(%arg0: i32) -> (i32, i32) {
    %c0_i32 = arith.constant 0 : i32
    %c0_i32_0 = arith.constant 0 : i32
    %c0_i32_1 = arith.constant 0 : i32
    return %c0_i32, %c0_i32_0 : i32, i32
  }
  func.func @transform_6(%arg0: i32) -> (i32, i32, i32) {
    %c0_i32 = arith.constant 0 : i32
    %c0_i32_0 = arith.constant 0 : i32
    %c0_i32_1 = arith.constant 0 : i32
    %c0_i32_2 = arith.constant 0 : i32
    return %c0_i32, %c0_i32_0, %c0_i32_1 : i32, i32, i32
  }
}

</mosaic_0001>

<llo_original>
// kernel: classification_model_fused.1
$region0: #{classification_model_fused.1}
  #allocation0 [shape = 'u32[]', space=smem, size = 0x4, offset = 0x4, fixed_abs, tag = 'smem constant byte address 0x4 - core index']
  #allocation1 [shape = 'u32[144,128]{1,0:T(1,128)}', space=vmem, size = 0x12000, scoped, tag = 'internal scratch']
  #allocation2 [shape = 'f32[36,512]{1,0:T(8,128)}', space=vmem, size = 0x14000, scoped, tag = 'scratch operand']
  #allocation3 [shape = 'f32[34,512]{1,0:T(8,128)}', space=vmem, size = 0x14000, scoped, tag = 'scratch operand']
  %s0 = inlined_call_operand.vmem [shape: f32[36,64], index: 0, kind: input, shape index: {}]
  %s1 = inlined_call_operand.hbm [shape: bf16[2,3,64,512], index: 1, kind: input, shape index: {}]
  %s2 = inlined_call_operand.hbm [shape: bf16[3,3,512,512], index: 2, kind: input, shape index: {}]
  %s3 = inlined_call_operand.hbm [shape: f32[5,1,512], index: 3, kind: input, shape index: {}]
  %s4 = inlined_call_operand.hbm [shape: bf16[3,512,128], index: 4, kind: input, shape index: {}]
  %s5 = inlined_call_operand.hbm [shape: f32[1,128], index: 5, kind: input, shape index: {}]
  %s6 = inlined_call_operand.vmem [shape: f32[2,16,128], index: 6, kind: output, shape index: {}]
  %s7 = sld [smem:[#allocation0]]
  $region54: #{classification_model_fused.1} parent=0
    _
  %s9 = ssub.s32 1, %s7
  %s10 = scalar_select 0, %s9, %s7
  $region1: #{classification_model_fused.1} parent=0
    #allocation4 [shape = 'u8[393216]{0}', space=vmem, size = 0x60000, scoped, tag = 'input window, operand 1, single buffered']
    #allocation5 [shape = 's32[1]{0}', space=sflag, size = 0x4, scoped, tag = 'scoped memory for classification_model_fused.1']
    #allocation6 [shape = 'u8[4718592]{0}', space=vmem, size = 0x480000, scoped, tag = 'input window, operand 2, single buffered']
    #allocation7 [shape = 's32[1]{0}', space=sflag, size = 0x4, scoped, tag = 'scoped memory for classification_model_fused.1']
    #allocation8 [shape = 'u8[10240]{0}', space=vmem, size = 0x2800, scoped, tag = 'input window, operand 3, single buffered']
    #allocation9 [shape = 'u8[393216]{0}', space=vmem, size = 0x60000, scoped, tag = 'input window, operand 4, single buffered']
    #allocation10 [shape = 's32[1]{0}', space=sflag, size = 0x4, scoped, tag = 'scoped memory for classification_model_fused.1']
    #allocation11 [shape = 'u8[512]{0}', space=vmem, size = 0x400, scoped, tag = 'input window, operand 5, single buffered']
    %11 = vsyncpa [#allocation5], 0
    %12 = vsyncpa [#allocation7], 0
    %13 = vsyncpa [#allocation10], 0
    // Predicated region
    $region2: #{classification_model_fused.1} parent=1 // pred_check
      _
    $region3: #{classification_model_fused.1} parent=1 // pred_check_branch
      %15 = sbr.rel (0) target = $region5
    $region4: #{classification_model_fused.1} parent=1 // pred_region
      _
    $region5: #{classification_model_fused.1} parent=1 // pred_fallthru
      _
    // Predicated region
    $region6: #{classification_model_fused.1} parent=1 // pred_check
      _
    $region7: #{classification_model_fused.1} parent=1 // pred_check_branch
      %17 = sbr.rel (0) target = $region9
    $region8: #{classification_model_fused.1} parent=1 // pred_region
      %s19 = ssub.s32 12288, 12288
      %20 = vsyncadd [#allocation5], %s19
      %s21 = sshll.u32 [#allocation4], 4
      %s22 = int_to_ptr.vmem [resolvable:$true] %s21
      %27 = dma.hbm_to_vmem [thread:$0]  %s1, 12288, %s22, [#allocation5], 256, 256, 16
    $region9: #{classification_model_fused.1} parent=1 // pred_fallthru
      _
    // Predicated region
    $region10: #{classification_model_fused.1} parent=1 // pred_check
      _
    $region11: #{classification_model_fused.1} parent=1 // pred_check_branch
      %29 = sbr.rel (0) target = $region13
    $region12: #{classification_model_fused.1} parent=1 // pred_region
      %s31 = ssub.s32 147456, 147456
      %32 = vsyncadd [#allocation7], %s31
      %s33 = sshll.u32 [#allocation6], 4
      %s34 = int_to_ptr.vmem [resolvable:$true] %s33
      %39 = dma.hbm_to_vmem [thread:$0]  %s2, 147456, %s34, [#allocation7], 256, 256, 16
    $region13: #{classification_model_fused.1} parent=1 // pred_fallthru
      _
    // Predicated region
    $region14: #{classification_model_fused.1} parent=1 // pred_check
      _
    $region15: #{classification_model_fused.1} parent=1 // pred_check_branch
      %41 = sbr.rel (0) target = $region17
    $region16: #{classification_model_fused.1} parent=1 // pred_region
      %s43 = ssub.s32 320, 320
      %44 = vsyncadd [#allocation7], %s43
      %s45 = sshll.u32 [#allocation8], 4
      %s46 = int_to_ptr.vmem [resolvable:$true] %s45
      %51 = dma.hbm_to_vmem [thread:$0]  %s3, 320, %s46, [#allocation7], 64, 64, 4
    $region17: #{classification_model_fused.1} parent=1 // pred_fallthru
      _
    // Predicated region
    $region18: #{classification_model_fused.1} parent=1 // pred_check
      _
    $region19: #{classification_model_fused.1} parent=1 // pred_check_branch
      %53 = sbr.rel (0) target = $region21
    $region20: #{classification_model_fused.1} parent=1 // pred_region
      %s55 = ssub.s32 12288, 12288
      %56 = vsyncadd [#allocation10], %s55
      %s57 = sshll.u32 [#allocation9], 4
      %s58 = int_to_ptr.vmem [resolvable:$true] %s57
      %63 = dma.hbm_to_vmem [thread:$0]  %s4, 12288, %s58, [#allocation10], 64, 64, 4
    $region21: #{classification_model_fused.1} parent=1 // pred_fallthru
      _
    // Predicated region
    $region22: #{classification_model_fused.1} parent=1 // pred_check
      _
    $region23: #{classification_model_fused.1} parent=1 // pred_check_branch
      %65 = sbr.rel (0) target = $region25
    $region24: #{classification_model_fused.1} parent=1 // pred_region
      %s67 = ssub.s32 16, 16
      %68 = vsyncadd [#allocation10], %s67
      %s70 = sshll.u32 [#allocation11], 4
      %s71 = int_to_ptr.vmem [resolvable:$true] %s70
      %73 = dma.hbm_to_vmem [thread:$0]  %s5, 16, %s71, [#allocation10]
    $region25: #{classification_model_fused.1} parent=1 // pred_fallthru
      _
    // Predicated region
    $region26: #{classification_model_fused.1} parent=1 // pred_check
      _
    $region27: #{classification_model_fused.1} parent=1 // pred_check_branch
      %75 = sbr.rel (0) target = $region29
    $region28: #{classification_model_fused.1} parent=1 // pred_region
      %76 = dma.done [#allocation5], 12288
    $region29: #{classification_model_fused.1} parent=1 // pred_fallthru
      _
    // Predicated region
    $region30: #{classification_model_fused.1} parent=1 // pred_check
      _
    $region31: #{classification_model_fused.1} parent=1 // pred_check_branch
      %78 = sbr.rel (0) target = $region33
    $region32: #{classification_model_fused.1} parent=1 // pred_region
      %79 = dma.done [#allocation7], 147456
    $region33: #{classification_model_fused.1} parent=1 // pred_fallthru
      _
    // Predicated region
    $region34: #{classification_model_fused.1} parent=1 // pred_check
      _
    $region35: #{classification_model_fused.1} parent=1 // pred_check_branch
      %81 = sbr.rel (0) target = $region37
    $region36: #{classification_model_fused.1} parent=1 // pred_region
      %82 = dma.done [#allocation7], 320
    $region37: #{classification_model_fused.1} parent=1 // pred_fallthru
      _
    // Predicated region
    $region38: #{classification_model_fused.1} parent=1 // pred_check
      _
    $region39: #{classification_model_fused.1} parent=1 // pred_check_branch
      %84 = sbr.rel (0) target = $region41
    $region40: #{classification_model_fused.1} parent=1 // pred_region
      %85 = dma.done [#allocation10], 12288
    $region41: #{classification_model_fused.1} parent=1 // pred_fallthru
      _
    // Predicated region
    $region42: #{classification_model_fused.1} parent=1 // pred_check
      _
    $region43: #{classification_model_fused.1} parent=1 // pred_check_branch
      %87 = sbr.rel (0) target = $region45
    $region44: #{classification_model_fused.1} parent=1 // pred_region
      %88 = dma.done [#allocation10], 16
    $region45: #{classification_model_fused.1} parent=1 // pred_fallthru
      _
    %90 = vst [vmem:[#allocation2] sm:$0xff] 0.0
    %91 = vst [vmem:[#allocation2 + $0x8] sm:$0xff] 0.0
    %92 = vst [vmem:[#allocation2 + $0x10] sm:$0xff] 0.0
    %93 = vst [vmem:[#allocation2 + $0x18] sm:$0xff] 0.0
    %94 = vst [vmem:[#allocation2 + $0x20] sm:$0xff] 0.0
    %95 = vst [vmem:[#allocation2 + $0x28] sm:$0xff] 0.0
    %96 = vst [vmem:[#allocation2 + $0x30] sm:$0xff] 0.0
    %97 = vst [vmem:[#allocation2 + $0x38] sm:$0xff] 0.0
    %98 = vst [vmem:[#allocation2 + $0x40] sm:$0xff] 0.0
    %99 = vst [vmem:[#allocation2 + $0x48] sm:$0xff] 0.0
    %100 = vst [vmem:[#allocation2 + $0x50] sm:$0xff] 0.0
    %101 = vst [vmem:[#allocation2 + $0x58] sm:$0xff] 0.0
    %102 = vst [vmem:[#allocation2 + $0x60] sm:$0xff] 0.0
    %103 = vst [vmem:[#allocation2 + $0x68] sm:$0xff] 0.0
    %104 = vst [vmem:[#allocation2 + $0x70] sm:$0xff] 0.0
    %105 = vst [vmem:[#allocation2 + $0x78] sm:$0xff] 0.0
    %106 = vst [vmem:[#allocation2 + $0x80] sm:$0xf] 0.0
    %107 = vst [vmem:[#allocation2 + $0x88] sm:$0xf] 0.0
    %108 = vst [vmem:[#allocation2 + $0x90] sm:$0xf] 0.0
    %109 = vst [vmem:[#allocation2 + $0x98] sm:$0xf] 0.0
    %v110 = vld [vmem:[%s0] sm:$0xff]
    %v111 = vld [vmem:[%s0 + $0x8] sm:$0xff]
    %v112 = vld [vmem:[%s0 + $0x10] sm:$0xff]
    %v113 = vld [vmem:[%s0 + $0x18] sm:$0xff]
    %v114 = vld [vmem:[%s0 + $0x20] sm:$0x3]
    %v115 = vpack.c.bf16 %v111, %v110
    %v116 = vpack.c.bf16 %v113, %v112
    %v117 = vpack.c.bf16 %v114, %v114
    %v118 = vld [vmem:[#allocation4] sm:$0xff]
    %v119 = vld [vmem:[#allocation4 + $0x8] sm:$0xff]
    %v120 = vld [vmem:[#allocation4 + $0x10] sm:$0xff]
    %v121 = vld [vmem:[#allocation4 + $0x18] sm:$0xff]
    %v122 = vld [vmem:[#allocation4 + $0x20] sm:$0xff]
    %v123 = vld [vmem:[#allocation4 + $0x28] sm:$0xff]
    %v124 = vld [vmem:[#allocation4 + $0x30] sm:$0xff]
    %v125 = vld [vmem:[#allocation4 + $0x38] sm:$0xff]
    %v126 = vld [vmem:[#allocation4 + $0x40] sm:$0xff]
    %v127 = vld [vmem:[#allocation4 + $0x48] sm:$0xff]
    %v128 = vld [vmem:[#allocation4 + $0x50] sm:$0xff]
    %v129 = vld [vmem:[#allocation4 + $0x58] sm:$0xff]
    %v130 = vld [vmem:[#allocation4 + $0x60] sm:$0xff]
    %v131 = vld [vmem:[#allocation4 + $0x68] sm:$0xff]
    %v132 = vld [vmem:[#allocation4 + $0x70] sm:$0xff]
    %v133 = vld [vmem:[#allocation4 + $0x78] sm:$0xff]
    %v134 = vld [vmem:[%s0 + $0x1] sm:$0xff]
    %v135 = vld [vmem:[%s0 + $0x9] sm:$0xff]
    %v136 = vld [vmem:[%s0 + $0x11] sm:$0xff]
    %v137 = vld [vmem:[%s0 + $0x19] sm:$0xff]
    %v138 = vld [vmem:[%s0 + $0x21] sm:$0x3]
    %v139 = vpack.c.bf16 %v135, %v134
    %v140 = vpack.c.bf16 %v137, %v136
    %v141 = vpack.c.bf16 %v138, %v138
    %s142 = scalar_lea.vmem [#allocation4], 128
    %v143 = vld [vmem:[%s142] sm:$0xff]
    %v144 = vld [vmem:[%s142 + $0x8] sm:$0xff]
    %v145 = vld [vmem:[%s142 + $0x10] sm:$0xff]
    %v146 = vld [vmem:[%s142 + $0x18] sm:$0xff]
    %v147 = vld [vmem:[%s142 + $0x20] sm:$0xff]
    %v148 = vld [vmem:[%s142 + $0x28] sm:$0xff]
    %v149 = vld [vmem:[%s142 + $0x30] sm:$0xff]
    %v150 = vld [vmem:[%s142 + $0x38] sm:$0xff]
    %v151 = vld [vmem:[%s142 + $0x40] sm:$0xff]
    %v152 = vld [vmem:[%s142 + $0x48] sm:$0xff]
    %v153 = vld [vmem:[%s142 + $0x50] sm:$0xff]
    %v154 = vld [vmem:[%s142 + $0x58] sm:$0xff]
    %v155 = vld [vmem:[%s142 + $0x60] sm:$0xff]
    %v156 = vld [vmem:[%s142 + $0x68] sm:$0xff]
    %v157 = vld [vmem:[%s142 + $0x70] sm:$0xff]
    %v158 = vld [vmem:[%s142 + $0x78] sm:$0xff]
    %v175 = vunpack.c.l.b16 %v143
    %v176 = vunpack.c.h.b16 %v143
    %v177 = vunpack.c.l.b16 %v144
    %v178 = vunpack.c.h.b16 %v144
    %v179 = vunpack.c.l.b16 %v145
    %v180 = vunpack.c.h.b16 %v145
    %v181 = vunpack.c.l.b16 %v146
    %v182 = vunpack.c.h.b16 %v146
    %v183 = vunpack.c.l.b16 %v147
    %v184 = vunpack.c.h.b16 %v147
    %v185 = vunpack.c.l.b16 %v148
    %v186 = vunpack.c.h.b16 %v148
    %v187 = vunpack.c.l.b16 %v149
    %v188 = vunpack.c.h.b16 %v149
    %v189 = vunpack.c.l.b16 %v150
    %v190 = vunpack.c.h.b16 %v150
    %v191 = vunpack.c.l.b16 %v151
    %v192 = vunpack.c.h.b16 %v151
    %v193 = vunpack.c.l.b16 %v152
    %v194 = vunpack.c.h.b16 %v152
    %v195 = vunpack.c.l.b16 %v153
    %v196 = vunpack.c.h.b16 %v153
    %v197 = vunpack.c.l.b16 %v154
    %v198 = vunpack.c.h.b16 %v154
    %v199 = vunpack.c.l.b16 %v155
    %v200 = vunpack.c.h.b16 %v155
    %v201 = vunpack.c.l.b16 %v156
    %v202 = vunpack.c.h.b16 %v156
    %v203 = vunpack.c.l.b16 %v157
    %v204 = vunpack.c.h.b16 %v157
    %v205 = vunpack.c.l.b16 %v158
    %v206 = vunpack.c.h.b16 %v158
    %v207 = vpack.c.b16 %v179, %v175
    %v208 = vpack.c.b16 %v180, %v176
    %v209 = vpack.c.b16 %v181, %v177
    %v210 = vpack.c.b16 %v182, %v178
    %v211 = vpack.c.b16 %v187, %v183
    %v212 = vpack.c.b16 %v188, %v184
    %v213 = vpack.c.b16 %v189, %v185
    %v214 = vpack.c.b16 %v190, %v186
    %v215 = vpack.c.b16 %v195, %v191
    %v216 = vpack.c.b16 %v196, %v192
    %v217 = vpack.c.b16 %v197, %v193
    %v218 = vpack.c.b16 %v198, %v194
    %v219 = vpack.c.b16 %v203, %v199
    %v220 = vpack.c.b16 %v204, %v200
    %v221 = vpack.c.b16 %v205, %v201
    %v222 = vpack.c.b16 %v206, %v202
    %vm239 = vcmask 523264
    %v241 = vsel %vm239, %v139, 0
    %v244 = vsel %vm239, %v140, 0
    %v247 = vsel %vm239, %v141, 0
    %249 = vmatprep.subr.bf16.mxu0 0
    %250 = vmatpush1.bf16.msra.mxu0 0
    %251 = vmatprep.subr.bf16.mxu0 0
    %252 = vmatpush1.bf16.msra.mxu0 0
    %253 = vmatprep.subr.bf16.mxu0 0
    %254 = vmatpush1.bf16.msra.mxu0 0
    %255 = vmatprep.subr.bf16.mxu0 0
    %256 = vmatpush1.bf16.msra.mxu0 0
    %257 = vmatprep.subr.bf16.mxu0 %v220
    %258 = vmatpush1.bf16.msra.mxu0 %v219
    %259 = vmatprep.subr.bf16.mxu0 %v216
    %260 = vmatpush1.bf16.msra.mxu0 %v215
    %261 = vmatprep.subr.bf16.mxu0 %v212
    %262 = vmatpush1.bf16.msra.mxu0 %v211
    %263 = vmatprep.subr.bf16.mxu0 %v208
    %264 = vmatpush1.bf16.msra.mxu0 %v207
    %265 = vmatprep.subr.bf16.mxu0 0
    %266 = vmatpush2.bf16.msra.mxu0 0
    %267 = vmatprep.subr.bf16.mxu0 0
    %268 = vmatpush2.bf16.msra.mxu0 0
    %269 = vmatprep.subr.bf16.mxu0 0
    %270 = vmatpush2.bf16.msra.mxu0 0
    %271 = vmatprep.subr.bf16.mxu0 0
    %272 = vmatpush2.bf16.msra.mxu0 0
    %273 = vmatprep.subr.bf16.mxu0 0
    %274 = vmatpush2.bf16.msra.mxu0 0
    %275 = vmatprep.subr.bf16.mxu0 0
    %276 = vmatpush2.bf16.msra.mxu0 0
    %277 = vmatprep.subr.bf16.mxu0 0
    %278 = vmatpush2.bf16.msra.mxu0 0
    %279 = vmatprep.subr.bf16.mxu0 0
    %280 = vmatpush2.bf16.msra.mxu0 0
    %281 = vmatprep.mubr.bf16.mxu0 0
    %282 = vmatmul.mubr.bf16.gmra.mxu0 %v241
    %v283 = vpop.f32.mrf.mxu0
    %v284 = vadd.f32 0.0, %v283
    %v285 = vpop.f32.mrf.mxu0
    %v286 = vadd.f32 0.0, %v285
    %v287 = vpop.f32.mrf.mxu0
    %v288 = vadd.f32 0.0, %v287
    %v289 = vpop.f32.mrf.mxu0
    %v290 = vadd.f32 0.0, %v289
    %291 = vmatprep.mubr.bf16.mxu0 0
    %292 = vmatmul.mubr.bf16.gmra.mxu0 %v244
    %v293 = vpop.f32.mrf.mxu0
    %v294 = vadd.f32 0.0, %v293
    %v295 = vpop.f32.mrf.mxu0
    %v296 = vadd.f32 0.0, %v295
    %v297 = vpop.f32.mrf.mxu0
    %v298 = vadd.f32 0.0, %v297
    %v299 = vpop.f32.mrf.mxu0
    %v300 = vadd.f32 0.0, %v299
    %301 = vmatprep.mubr.bf16.mxu0 0
    %302 = vmatmul.mubr.bf16.gmra.mxu0 %v247
    %v303 = vpop.f32.mrf.mxu0
    %v304 = vadd.f32 0.0, %v303
    %v305 = vpop.f32.mrf.mxu0
    %v306 = vadd.f32 0.0, %v305
    %v307 = vpop.f32.mrf.mxu0
    %v308 = vpop.f32.mrf.mxu0
    %309 = vdwg.mxu0
    %310 = vmatprep.subr.bf16.mxu0 0
    %311 = vmatpush1.bf16.msra.mxu0 0
    %312 = vmatprep.subr.bf16.mxu0 0
    %313 = vmatpush1.bf16.msra.mxu0 0
    %314 = vmatprep.subr.bf16.mxu0 0
    %315 = vmatpush1.bf16.msra.mxu0 0
    %316 = vmatprep.subr.bf16.mxu0 0
    %317 = vmatpush1.bf16.msra.mxu0 0
    %318 = vmatprep.subr.bf16.mxu0 %v222
    %319 = vmatpush1.bf16.msra.mxu0 %v221
    %320 = vmatprep.subr.bf16.mxu0 %v218
    %321 = vmatpush1.bf16.msra.mxu0 %v217
    %322 = vmatprep.subr.bf16.mxu0 %v214
    %323 = vmatpush1.bf16.msra.mxu0 %v213
    %324 = vmatprep.subr.bf16.mxu0 %v210
    %325 = vmatpush1.bf16.msra.mxu0 %v209
    %326 = vmatprep.subr.bf16.mxu0 0
    %327 = vmatpush2.bf16.msra.mxu0 0
    %328 = vmatprep.subr.bf16.mxu0 0
    %329 = vmatpush2.bf16.msra.mxu0 0
    %330 = vmatprep.subr.bf16.mxu0 0
    %331 = vmatpush2.bf16.msra.mxu0 0
    %332 = vmatprep.subr.bf16.mxu0 0
    %333 = vmatpush2.bf16.msra.mxu0 0
    %334 = vmatprep.subr.bf16.mxu0 0
    %335 = vmatpush2.bf16.msra.mxu0 0
    %336 = vmatprep.subr.bf16.mxu0 0
    %337 = vmatpush2.bf16.msra.mxu0 0
    %338 = vmatprep.subr.bf16.mxu0 0
    %339 = vmatpush2.bf16.msra.mxu0 0
    %340 = vmatprep.subr.bf16.mxu0 0
    %341 = vmatpush2.bf16.msra.mxu0 0
    %342 = vmatprep.mubr.bf16.mxu0 0
    %343 = vmatmul.mubr.bf16.gmra.mxu0 %v241
    %v344 = vpop.f32.mrf.mxu0
    %v345 = vadd.f32 0.0, %v344
    %v346 = vpop.f32.mrf.mxu0
    %v347 = vadd.f32 0.0, %v346
    %v348 = vpop.f32.mrf.mxu0
    %v349 = vadd.f32 0.0, %v348
    %v350 = vpop.f32.mrf.mxu0
    %v351 = vadd.f32 0.0, %v350
    %352 = vmatprep.mubr.bf16.mxu0 0
    %353 = vmatmul.mubr.bf16.gmra.mxu0 %v244
    %v354 = vpop.f32.mrf.mxu0
    %v355 = vadd.f32 0.0, %v354
    %v356 = vpop.f32.mrf.mxu0
    %v357 = vadd.f32 0.0, %v356
    %v358 = vpop.f32.mrf.mxu0
    %v359 = vadd.f32 0.0, %v358
    %v360 = vpop.f32.mrf.mxu0
    %v361 = vadd.f32 0.0, %v360
    %362 = vmatprep.mubr.bf16.mxu0 0
    %363 = vmatmul.mubr.bf16.gmra.mxu0 %v247
    %v364 = vpop.f32.mrf.mxu0
    %v365 = vadd.f32 0.0, %v364
    %v366 = vpop.f32.mrf.mxu0
    %v367 = vadd.f32 0.0, %v366
    %v368 = vpop.f32.mrf.mxu0
    %v369 = vpop.f32.mrf.mxu0
    %370 = vdwg.mxu0
    %v387 = vunpack.c.l.b16 %v118
    %v388 = vunpack.c.h.b16 %v118
    %v389 = vunpack.c.l.b16 %v119
    %v390 = vunpack.c.h.b16 %v119
    %v391 = vunpack.c.l.b16 %v120
    %v392 = vunpack.c.h.b16 %v120
    %v393 = vunpack.c.l.b16 %v121
    %v394 = vunpack.c.h.b16 %v121
    %v395 = vunpack.c.l.b16 %v122
    %v396 = vunpack.c.h.b16 %v122
    %v397 = vunpack.c.l.b16 %v123
    %v398 = vunpack.c.h.b16 %v123
    %v399 = vunpack.c.l.b16 %v124
    %v400 = vunpack.c.h.b16 %v124
    %v401 = vunpack.c.l.b16 %v125
    %v402 = vunpack.c.h.b16 %v125
    %v403 = vunpack.c.l.b16 %v126
    %v404 = vunpack.c.h.b16 %v126
    %v405 = vunpack.c.l.b16 %v127
    %v406 = vunpack.c.h.b16 %v127
    %v407 = vunpack.c.l.b16 %v128
    %v408 = vunpack.c.h.b16 %v128
    %v409 = vunpack.c.l.b16 %v129
    %v410 = vunpack.c.h.b16 %v129
    %v411 = vunpack.c.l.b16 %v130
    %v412 = vunpack.c.h.b16 %v130
    %v413 = vunpack.c.l.b16 %v131
    %v414 = vunpack.c.h.b16 %v131
    %v415 = vunpack.c.l.b16 %v132
    %v416 = vunpack.c.h.b16 %v132
    %v417 = vunpack.c.l.b16 %v133
    %v418 = vunpack.c.h.b16 %v133
    %v419 = vpack.c.b16 %v391, %v387
    %v420 = vpack.c.b16 %v392, %v388
    %v421 = vpack.c.b16 %v393, %v389
    %v422 = vpack.c.b16 %v394, %v390
    %v423 = vpack.c.b16 %v399, %v395
    %v424 = vpack.c.b16 %v400, %v396
    %v425 = vpack.c.b16 %v401, %v397
    %v426 = vpack.c.b16 %v402, %v398
    %v427 = vpack.c.b16 %v407, %v403
    %v428 = vpack.c.b16 %v408, %v404
    %v429 = vpack.c.b16 %v409, %v405
    %v430 = vpack.c.b16 %v410, %v406
    %v431 = vpack.c.b16 %v415, %v411
    %v432 = vpack.c.b16 %v416, %v412
    %v433 = vpack.c.b16 %v417, %v413
    %v434 = vpack.c.b16 %v418, %v414
    %v452 = vsel %vm239, %v115, 0
    %v455 = vsel %vm239, %v116, 0
    %v458 = vsel %vm239, %v117, 0
    %460 = vmatprep.subr.bf16.mxu0 0
    %461 = vmatpush1.bf16.msra.mxu0 0
    %462 = vmatprep.subr.bf16.mxu0 0
    %463 = vmatpush1.bf16.msra.mxu0 0
    %464 = vmatprep.subr.bf16.mxu0 0
    %465 = vmatpush1.bf16.msra.mxu0 0
    %466 = vmatprep.subr.bf16.mxu0 0
    %467 = vmatpush1.bf16.msra.mxu0 0
    %468 = vmatprep.subr.bf16.mxu0 %v432
    %469 = vmatpush1.bf16.msra.mxu0 %v431
    %470 = vmatprep.subr.bf16.mxu0 %v428
    %471 = vmatpush1.bf16.msra.mxu0 %v427
    %472 = vmatprep.subr.bf16.mxu0 %v424
    %473 = vmatpush1.bf16.msra.mxu0 %v423
    %474 = vmatprep.subr.bf16.mxu0 %v420
    %475 = vmatpush1.bf16.msra.mxu0 %v419
    %476 = vmatprep.subr.bf16.mxu0 0
    %477 = vmatpush2.bf16.msra.mxu0 0
    %478 = vmatprep.subr.bf16.mxu0 0
    %479 = vmatpush2.bf16.msra.mxu0 0
    %480 = vmatprep.subr.bf16.mxu0 0
    %481 = vmatpush2.bf16.msra.mxu0 0
    %482 = vmatprep.subr.bf16.mxu0 0
    %483 = vmatpush2.bf16.msra.mxu0 0
    %484 = vmatprep.subr.bf16.mxu0 0
    %485 = vmatpush2.bf16.msra.mxu0 0
    %486 = vmatprep.subr.bf16.mxu0 0
    %487 = vmatpush2.bf16.msra.mxu0 0
    %488 = vmatprep.subr.bf16.mxu0 0
    %489 = vmatpush2.bf16.msra.mxu0 0
    %490 = vmatprep.subr.bf16.mxu0 0
    %491 = vmatpush2.bf16.msra.mxu0 0
    %492 = vmatprep.mubr.bf16.mxu0 0
    %493 = vmatmul.mubr.bf16.gmra.mxu0 %v452
    %v494 = vpop.f32.mrf.mxu0
    %v495 = vadd.f32 %v284, %v494
    %v496 = vpop.f32.mrf.mxu0
    %v497 = vadd.f32 %v286, %v496
    %v498 = vpop.f32.mrf.mxu0
    %v499 = vadd.f32 %v288, %v498
    %v500 = vpop.f32.mrf.mxu0
    %v501 = vadd.f32 %v290, %v500
    %502 = vmatprep.mubr.bf16.mxu0 0
    %503 = vmatmul.mubr.bf16.gmra.mxu0 %v455
    %v504 = vpop.f32.mrf.mxu0
    %v505 = vadd.f32 %v294, %v504
    %v506 = vpop.f32.mrf.mxu0
    %v507 = vadd.f32 %v296, %v506
    %v508 = vpop.f32.mrf.mxu0
    %v509 = vadd.f32 %v298, %v508
    %v510 = vpop.f32.mrf.mxu0
    %v511 = vadd.f32 %v300, %v510
    %512 = vmatprep.mubr.bf16.mxu0 0
    %513 = vmatmul.mubr.bf16.gmra.mxu0 %v458
    %v514 = vpop.f32.mrf.mxu0
    %v515 = vadd.f32 %v304, %v514
    %v516 = vpop.f32.mrf.mxu0
    %v517 = vadd.f32 %v306, %v516
    %v518 = vpop.f32.mrf.mxu0
    %v519 = vpop.f32.mrf.mxu0
    %520 = vdwg.mxu0
    %521 = vmatprep.subr.bf16.mxu0 0
    %522 = vmatpush1.bf16.msra.mxu0 0
    %523 = vmatprep.subr.bf16.mxu0 0
    %524 = vmatpush1.bf16.msra.mxu0 0
    %525 = vmatprep.subr.bf16.mxu0 0
    %526 = vmatpush1.bf16.msra.mxu0 0
    %527 = vmatprep.subr.bf16.mxu0 0
    %528 = vmatpush1.bf16.msra.mxu0 0
    %529 = vmatprep.subr.bf16.mxu0 %v434
    %530 = vmatpush1.bf16.msra.mxu0 %v433
    %531 = vmatprep.subr.bf16.mxu0 %v430
    %532 = vmatpush1.bf16.msra.mxu0 %v429
    %533 = vmatprep.subr.bf16.mxu0 %v426
    %534 = vmatpush1.bf16.msra.mxu0 %v425
    %535 = vmatprep.subr.bf16.mxu0 %v422
    %536 = vmatpush1.bf16.msra.mxu0 %v421
    %537 = vmatprep.subr.bf16.mxu0 0
    %538 = vmatpush2.bf16.msra.mxu0 0
    %539 = vmatprep.subr.bf16.mxu0 0
    %540 = vmatpush2.bf16.msra.mxu0 0
    %541 = vmatprep.subr.bf16.mxu0 0
    %542 = vmatpush2.bf16.msra.mxu0 0
    %543 = vmatprep.subr.bf16.mxu0 0
    %544 = vmatpush2.bf16.msra.mxu0 0
    %545 = vmatprep.subr.bf16.mxu0 0
    %546 = vmatpush2.bf16.msra.mxu0 0
    %547 = vmatprep.subr.bf16.mxu0 0
    %548 = vmatpush2.bf16.msra.mxu0 0
    %549 = vmatprep.subr.bf16.mxu0 0
    %550 = vmatpush2.bf16.msra.mxu0 0
    %551 = vmatprep.subr.bf16.mxu0 0
    %552 = vmatpush2.bf16.msra.mxu0 0
    %553 = vmatprep.mubr.bf16.mxu0 0
    %554 = vmatmul.mubr.bf16.gmra.mxu0 %v452
    %v555 = vpop.f32.mrf.mxu0
    %v556 = vadd.f32 %v345, %v555
    %v557 = vpop.f32.mrf.mxu0
    %v558 = vadd.f32 %v347, %v557
    %v559 = vpop.f32.mrf.mxu0
    %v560 = vadd.f32 %v349, %v559
    %v561 = vpop.f32.mrf.mxu0
    %v562 = vadd.f32 %v351, %v561
    %563 = vmatprep.mubr.bf16.mxu0 0
    %564 = vmatmul.mubr.bf16.gmra.mxu0 %v455
    %v565 = vpop.f32.mrf.mxu0
    %v566 = vadd.f32 %v355, %v565
    %v567 = vpop.f32.mrf.mxu0
    %v568 = vadd.f32 %v357, %v567
    %v569 = vpop.f32.mrf.mxu0
    %v570 = vadd.f32 %v359, %v569
    %v571 = vpop.f32.mrf.mxu0
    %v572 = vadd.f32 %v361, %v571
    %573 = vmatprep.mubr.bf16.mxu0 0
    %574 = vmatmul.mubr.bf16.gmra.mxu0 %v458
    %v575 = vpop.f32.mrf.mxu0
    %v576 = vadd.f32 %v365, %v575
    %v577 = vpop.f32.mrf.mxu0
    %v578 = vadd.f32 %v367, %v577
    %v579 = vpop.f32.mrf.mxu0
    %v580 = vpop.f32.mrf.mxu0
    %581 = vdwg.mxu0
    %v582 = vld [vmem:[%s0 + $0x2] sm:$0xff]
    %v583 = vld [vmem:[%s0 + $0xa] sm:$0xff]
    %v584 = vld [vmem:[%s0 + $0x12] sm:$0xff]
    %v585 = vld [vmem:[%s0 + $0x1a] sm:$0xff]
    %v586 = vld [vmem:[%s0 + $0x22] sm:$0x3]
    %v587 = vpack.c.bf16 %v583, %v582
    %v588 = vpack.c.bf16 %v585, %v584
    %v589 = vpack.c.bf16 %v586, %v586
    %s590 = scalar_lea.vmem [#allocation4], 256
    %v591 = vld [vmem:[%s590] sm:$0xff]
    %v592 = vld [vmem:[%s590 + $0x8] sm:$0xff]
    %v593 = vld [vmem:[%s590 + $0x10] sm:$0xff]
    %v594 = vld [vmem:[%s590 + $0x18] sm:$0xff]
    %v595 = vld [vmem:[%s590 + $0x20] sm:$0xff]
    %v596 = vld [vmem:[%s590 + $0x28] sm:$0xff]
    %v597 = vld [vmem:[%s590 + $0x30] sm:$0xff]
    %v598 = vld [vmem:[%s590 + $0x38] sm:$0xff]
    %v599 = vld [vmem:[%s590 + $0x40] sm:$0xff]
    %v600 = vld [vmem:[%s590 + $0x48] sm:$0xff]
    %v601 = vld [vmem:[%s590 + $0x50] sm:$0xff]
    %v602 = vld [vmem:[%s590 + $0x58] sm:$0xff]
    %v603 = vld [vmem:[%s590 + $0x60] sm:$0xff]
    %v604 = vld [vmem:[%s590 + $0x68] sm:$0xff]
    %v605 = vld [vmem:[%s590 + $0x70] sm:$0xff]
    %v606 = vld [vmem:[%s590 + $0x78] sm:$0xff]
    %v623 = vunpack.c.l.b16 %v591
    %v624 = vunpack.c.h.b16 %v591
    %v625 = vunpack.c.l.b16 %v592
    %v626 = vunpack.c.h.b16 %v592
    %v627 = vunpack.c.l.b16 %v593
    %v628 = vunpack.c.h.b16 %v593
    %v629 = vunpack.c.l.b16 %v594
    %v630 = vunpack.c.h.b16 %v594
    %v631 = vunpack.c.l.b16 %v595
    %v632 = vunpack.c.h.b16 %v595
    %v633 = vunpack.c.l.b16 %v596
    %v634 = vunpack.c.h.b16 %v596
    %v635 = vunpack.c.l.b16 %v597
    %v636 = vunpack.c.h.b16 %v597
    %v637 = vunpack.c.l.b16 %v598
    %v638 = vunpack.c.h.b16 %v598
    %v639 = vunpack.c.l.b16 %v599
    %v640 = vunpack.c.h.b16 %v599
    %v641 = vunpack.c.l.b16 %v600
    %v642 = vunpack.c.h.b16 %v600
    %v643 = vunpack.c.l.b16 %v601
    %v644 = vunpack.c.h.b16 %v601
    %v645 = vunpack.c.l.b16 %v602
    %v646 = vunpack.c.h.b16 %v602
    %v647 = vunpack.c.l.b16 %v603
    %v648 = vunpack.c.h.b16 %v603
    %v649 = vunpack.c.l.b16 %v604
    %v650 = vunpack.c.h.b16 %v604
    %v651 = vunpack.c.l.b16 %v605
    %v652 = vunpack.c.h.b16 %v605
    %v653 = vunpack.c.l.b16 %v606
    %v654 = vunpack.c.h.b16 %v606
    %v655 = vpack.c.b16 %v627, %v623
    %v656 = vpack.c.b16 %v628, %v624
    %v657 = vpack.c.b16 %v629, %v625
    %v658 = vpack.c.b16 %v630, %v626
    %v659 = vpack.c.b16 %v635, %v631
    %v660 = vpack.c.b16 %v636, %v632
    %v661 = vpack.c.b16 %v637, %v633
    %v662 = vpack.c.b16 %v638, %v634
    %v663 = vpack.c.b16 %v643, %v639
    %v664 = vpack.c.b16 %v644, %v640
    %v665 = vpack.c.b16 %v645, %v641
    %v666 = vpack.c.b16 %v646, %v642
    %v667 = vpack.c.b16 %v651, %v647
    %v668 = vpack.c.b16 %v652, %v648
    %v669 = vpack.c.b16 %v653, %v649
    %v670 = vpack.c.b16 %v654, %v650
    %v688 = vsel %vm239, %v587, 0
    %v691 = vsel %vm239, %v588, 0
    %v694 = vsel %vm239, %v589, 0
    %696 = vmatprep.subr.bf16.mxu0 0
    %697 = vmatpush1.bf16.msra.mxu0 0
    %698 = vmatprep.subr.bf16.mxu0 0
    %699 = vmatpush1.bf16.msra.mxu0 0
    %700 = vmatprep.subr.bf16.mxu0 0
    %701 = vmatpush1.bf16.msra.mxu0 0
    %702 = vmatprep.subr.bf16.mxu0 0
    %703 = vmatpush1.bf16.msra.mxu0 0
    %704 = vmatprep.subr.bf16.mxu0 %v668
    %705 = vmatpush1.bf16.msra.mxu0 %v667
    %706 = vmatprep.subr.bf16.mxu0 %v664
    %707 = vmatpush1.bf16.msra.mxu0 %v663
    %708 = vmatprep.subr.bf16.mxu0 %v660
    %709 = vmatpush1.bf16.msra.mxu0 %v659
    %710 = vmatprep.subr.bf16.mxu0 %v656
    %711 = vmatpush1.bf16.msra.mxu0 %v655
    %712 = vmatprep.subr.bf16.mxu0 0
    %713 = vmatpush2.bf16.msra.mxu0 0
    %714 = vmatprep.subr.bf16.mxu0 0
    %715 = vmatpush2.bf16.msra.mxu0 0
    %716 = vmatprep.subr.bf16.mxu0 0
    %717 = vmatpush2.bf16.msra.mxu0 0
    %718 = vmatprep.subr.bf16.mxu0 0
    %719 = vmatpush2.bf16.msra.mxu0 0
    %720 = vmatprep.subr.bf16.mxu0 0
    %721 = vmatpush2.bf16.msra.mxu0 0
    %722 = vmatprep.subr.bf16.mxu0 0
    %723 = vmatpush2.bf16.msra.mxu0 0
    %724 = vmatprep.subr.bf16.mxu0 0
    %725 = vmatpush2.bf16.msra.mxu0 0
    %726 = vmatprep.subr.bf16.mxu0 0
    %727 = vmatpush2.bf16.msra.mxu0 0
    %728 = vmatprep.mubr.bf16.mxu0 0
    %729 = vmatmul.mubr.bf16.gmra.mxu0 %v688
    %v730 = vpop.f32.mrf.mxu0
    %v731 = vadd.f32 0.0, %v730
    %v732 = vpop.f32.mrf.mxu0
    %v733 = vadd.f32 0.0, %v732
    %v734 = vpop.f32.mrf.mxu0
    %v735 = vadd.f32 0.0, %v734
    %v736 = vpop.f32.mrf.mxu0
    %v737 = vadd.f32 0.0, %v736
    %738 = vmatprep.mubr.bf16.mxu0 0
    %739 = vmatmul.mubr.bf16.gmra.mxu0 %v691
    %v740 = vpop.f32.mrf.mxu0
    %v741 = vadd.f32 0.0, %v740
    %v742 = vpop.f32.mrf.mxu0
    %v743 = vadd.f32 0.0, %v742
    %v744 = vpop.f32.mrf.mxu0
    %v745 = vadd.f32 0.0, %v744
    %v746 = vpop.f32.mrf.mxu0
    %v747 = vadd.f32 0.0, %v746
    %748 = vmatprep.mubr.bf16.mxu0 0
    %749 = vmatmul.mubr.bf16.gmra.mxu0 %v694
    %v750 = vpop.f32.mrf.mxu0
    %v751 = vadd.f32 0.0, %v750
    %v752 = vpop.f32.mrf.mxu0
    %v753 = vadd.f32 0.0, %v752
    %v754 = vpop.f32.mrf.mxu0
    %v755 = vpop.f32.mrf.mxu0
    %756 = vdwg.mxu0
    %757 = vmatprep.subr.bf16.mxu0 0
    %758 = vmatpush1.bf16.msra.mxu0 0
    %759 = vmatprep.subr.bf16.mxu0 0
    %760 = vmatpush1.bf16.msra.mxu0 0
    %761 = vmatprep.subr.bf16.mxu0 0
    %762 = vmatpush1.bf16.msra.mxu0 0
    %763 = vmatprep.subr.bf16.mxu0 0
    %764 = vmatpush1.bf16.msra.mxu0 0
    %765 = vmatprep.subr.bf16.mxu0 %v670
    %766 = vmatpush1.bf16.msra.mxu0 %v669
    %767 = vmatprep.subr.bf16.mxu0 %v666
    %768 = vmatpush1.bf16.msra.mxu0 %v665
    %769 = vmatprep.subr.bf16.mxu0 %v662
    %770 = vmatpush1.bf16.msra.mxu0 %v661
    %771 = vmatprep.subr.bf16.mxu0 %v658
    %772 = vmatpush1.bf16.msra.mxu0 %v657
    %773 = vmatprep.subr.bf16.mxu0 0
    %774 = vmatpush2.bf16.msra.mxu0 0
    %775 = vmatprep.subr.bf16.mxu0 0
    %776 = vmatpush2.bf16.msra.mxu0 0
    %777 = vmatprep.subr.bf16.mxu0 0
    %778 = vmatpush2.bf16.msra.mxu0 0
    %779 = vmatprep.subr.bf16.mxu0 0
    %780 = vmatpush2.bf16.msra.mxu0 0
    %781 = vmatprep.subr.bf16.mxu0 0
    %782 = vmatpush2.bf16.msra.mxu0 0
    %783 = vmatprep.subr.bf16.mxu0 0
    %784 = vmatpush2.bf16.msra.mxu0 0
    %785 = vmatprep.subr.bf16.mxu0 0
    %786 = vmatpush2.bf16.msra.mxu0 0
    %787 = vmatprep.subr.bf16.mxu0 0
    %788 = vmatpush2.bf16.msra.mxu0 0
    %789 = vmatprep.mubr.bf16.mxu0 0
    %790 = vmatmul.mubr.bf16.gmra.mxu0 %v688
    %v791 = vpop.f32.mrf.mxu0
    %v792 = vadd.f32 0.0, %v791
    %v793 = vpop.f32.mrf.mxu0
    %v794 = vadd.f32 0.0, %v793
    %v795 = vpop.f32.mrf.mxu0
    %v796 = vadd.f32 0.0, %v795
    %v797 = vpop.f32.mrf.mxu0
    %v798 = vadd.f32 0.0, %v797
    %799 = vmatprep.mubr.bf16.mxu0 0
    %800 = vmatmul.mubr.bf16.gmra.mxu0 %v691
    %v801 = vpop.f32.mrf.mxu0
    %v802 = vadd.f32 0.0, %v801
    %v803 = vpop.f32.mrf.mxu0
    %v804 = vadd.f32 0.0, %v803
    %v805 = vpop.f32.mrf.mxu0
    %v806 = vadd.f32 0.0, %v805
    %v807 = vpop.f32.mrf.mxu0
    %v808 = vadd.f32 0.0, %v807
    %809 = vmatprep.mubr.bf16.mxu0 0
    %810 = vmatmul.mubr.bf16.gmra.mxu0 %v694
    %v811 = vpop.f32.mrf.mxu0
    %v812 = vadd.f32 0.0, %v811
    %v813 = vpop.f32.mrf.mxu0
    %v814 = vadd.f32 0.0, %v813
    %v815 = vpop.f32.mrf.mxu0
    %v816 = vpop.f32.mrf.mxu0
    %817 = vdwg.mxu0
    %v818 = vadd.f32 %v495, %v731
    %v819 = vadd.f32 %v497, %v733
    %v820 = vadd.f32 %v556, %v792
    %v821 = vadd.f32 %v558, %v794
    %v822 = vadd.f32 %v499, %v735
    %v823 = vadd.f32 %v501, %v737
    %v824 = vadd.f32 %v560, %v796
    %v825 = vadd.f32 %v562, %v798
    %v826 = vadd.f32 %v505, %v741
    %v827 = vadd.f32 %v507, %v743
    %v828 = vadd.f32 %v566, %v802
    %v829 = vadd.f32 %v568, %v804
    %v830 = vadd.f32 %v509, %v745
    %v831 = vadd.f32 %v511, %v747
    %v832 = vadd.f32 %v570, %v806
    %v833 = vadd.f32 %v572, %v808
    %v834 = vadd.f32 %v515, %v751
    %v835 = vadd.f32 %v517, %v753
    %v836 = vadd.f32 %v576, %v812
    %v837 = vadd.f32 %v578, %v814
    %v838 = vld [vmem:[#allocation8] sm:$0xf]
    %v840 = vlaneseq
    %v841 = vshrl.u32 %v840, 7
    %v842 = vsub.s32 0, %v841
    %v843 = vrot.slane %v838, %v842
    %v844 = vlaneseq
    %v845 = vshrl.u32 %v844, 7
    %v846 = vsub.s32 1, %v845
    %v847 = vrot.slane %v838, %v846
    %v848 = vlaneseq
    %v849 = vshrl.u32 %v848, 7
    %v850 = vsub.s32 2, %v849
    %v851 = vrot.slane %v838, %v850
    %v852 = vlaneseq
    %v853 = vshrl.u32 %v852, 7
    %v854 = vsub.s32 3, %v853
    %v855 = vrot.slane %v838, %v854
    %v860 = vadd.f32 %v818, %v843
    %v861 = vadd.f32 %v819, %v847
    %v862 = vadd.f32 %v820, %v851
    %v863 = vadd.f32 %v821, %v855
    %v864 = vadd.f32 %v822, %v843
    %v865 = vadd.f32 %v823, %v847
    %v866 = vadd.f32 %v824, %v851
    %v867 = vadd.f32 %v825, %v855
    %v868 = vadd.f32 %v826, %v843
    %v869 = vadd.f32 %v827, %v847
    %v870 = vadd.f32 %v828, %v851
    %v871 = vadd.f32 %v829, %v855
    %v872 = vadd.f32 %v830, %v843
    %v873 = vadd.f32 %v831, %v847
    %v874 = vadd.f32 %v832, %v851
    %v875 = vadd.f32 %v833, %v855
    %v876 = vadd.f32 %v834, %v843
    %v877 = vadd.f32 %v835, %v847
    %v878 = vadd.f32 %v836, %v851
    %v879 = vadd.f32 %v837, %v855
    %v880 = vmax.f32 %v860, 0.0
    %v881 = vmax.f32 %v861, 0.0
    %v882 = vmax.f32 %v862, 0.0
    %v883 = vmax.f32 %v863, 0.0
    %v884 = vmax.f32 %v864, 0.0
    %v885 = vmax.f32 %v865, 0.0
    %v886 = vmax.f32 %v866, 0.0
    %v887 = vmax.f32 %v867, 0.0
    %v888 = vmax.f32 %v868, 0.0
    %v889 = vmax.f32 %v869, 0.0
    %v890 = vmax.f32 %v870, 0.0
    %v891 = vmax.f32 %v871, 0.0
    %v892 = vmax.f32 %v872, 0.0
    %v893 = vmax.f32 %v873, 0.0
    %v894 = vmax.f32 %v874, 0.0
    %v895 = vmax.f32 %v875, 0.0
    %v896 = vmax.f32 %v876, 0.0
    %v897 = vmax.f32 %v877, 0.0
    %v898 = vmax.f32 %v878, 0.0
    %v899 = vmax.f32 %v879, 0.0
    %s900 = scalar_lea.vmem [#allocation4], 384
    %v901 = vld [vmem:[%s900] sm:$0xff]
    %v902 = vld [vmem:[%s900 + $0x8] sm:$0xff]
    %v903 = vld [vmem:[%s900 + $0x10] sm:$0xff]
    %v904 = vld [vmem:[%s900 + $0x18] sm:$0xff]
    %v905 = vld [vmem:[%s900 + $0x20] sm:$0xff]
    %v906 = vld [vmem:[%s900 + $0x28] sm:$0xff]
    %v907 = vld [vmem:[%s900 + $0x30] sm:$0xff]
    %v908 = vld [vmem:[%s900 + $0x38] sm:$0xff]
    %v909 = vld [vmem:[%s900 + $0x40] sm:$0xff]
    %v910 = vld [vmem:[%s900 + $0x48] sm:$0xff]
    %v911 = vld [vmem:[%s900 + $0x50] sm:$0xff]
    %v912 = vld [vmem:[%s900 + $0x58] sm:$0xff]
    %v913 = vld [vmem:[%s900 + $0x60] sm:$0xff]
    %v914 = vld [vmem:[%s900 + $0x68] sm:$0xff]
    %v915 = vld [vmem:[%s900 + $0x70] sm:$0xff]
    %v916 = vld [vmem:[%s900 + $0x78] sm:$0xff]
    %s917 = scalar_lea.vmem [#allocation4], 512
    %v918 = vld [vmem:[%s917] sm:$0xff]
    %v919 = vld [vmem:[%s917 + $0x8] sm:$0xff]
    %v920 = vld [vmem:[%s917 + $0x10] sm:$0xff]
    %v921 = vld [vmem:[%s917 + $0x18] sm:$0xff]
    %v922 = vld [vmem:[%s917 + $0x20] sm:$0xff]
    %v923 = vld [vmem:[%s917 + $0x28] sm:$0xff]
    %v924 = vld [vmem:[%s917 + $0x30] sm:$0xff]
    %v925 = vld [vmem:[%s917 + $0x38] sm:$0xff]
    %v926 = vld [vmem:[%s917 + $0x40] sm:$0xff]
    %v927 = vld [vmem:[%s917 + $0x48] sm:$0xff]
    %v928 = vld [vmem:[%s917 + $0x50] sm:$0xff]
    %v929 = vld [vmem:[%s917 + $0x58] sm:$0xff]
    %v930 = vld [vmem:[%s917 + $0x60] sm:$0xff]
    %v931 = vld [vmem:[%s917 + $0x68] sm:$0xff]
    %v932 = vld [vmem:[%s917 + $0x70] sm:$0xff]
    %v933 = vld [vmem:[%s917 + $0x78] sm:$0xff]
    %v950 = vunpack.c.l.b16 %v918
    %v951 = vunpack.c.h.b16 %v918
    %v952 = vunpack.c.l.b16 %v919
    %v953 = vunpack.c.h.b16 %v919
    %v954 = vunpack.c.l.b16 %v920
    %v955 = vunpack.c.h.b16 %v920
    %v956 = vunpack.c.l.b16 %v921
    %v957 = vunpack.c.h.b16 %v921
    %v958 = vunpack.c.l.b16 %v922
    %v959 = vunpack.c.h.b16 %v922
    %v960 = vunpack.c.l.b16 %v923
    %v961 = vunpack.c.h.b16 %v923
    %v962 = vunpack.c.l.b16 %v924
    %v963 = vunpack.c.h.b16 %v924
    %v964 = vunpack.c.l.b16 %v925
    %v965 = vunpack.c.h.b16 %v925
    %v966 = vunpack.c.l.b16 %v926
    %v967 = vunpack.c.h.b16 %v926
    %v968 = vunpack.c.l.b16 %v927
    %v969 = vunpack.c.h.b16 %v927
    %v970 = vunpack.c.l.b16 %v928
    %v971 = vunpack.c.h.b16 %v928
    %v972 = vunpack.c.l.b16 %v929
    %v973 = vunpack.c.h.b16 %v929
    %v974 = vunpack.c.l.b16 %v930
    %v975 = vunpack.c.h.b16 %v930
    %v976 = vunpack.c.l.b16 %v931
    %v977 = vunpack.c.h.b16 %v931
    %v978 = vunpack.c.l.b16 %v932
    %v979 = vunpack.c.h.b16 %v932
    %v980 = vunpack.c.l.b16 %v933
    %v981 = vunpack.c.h.b16 %v933
    %v982 = vpack.c.b16 %v954, %v950
    %v983 = vpack.c.b16 %v955, %v951
    %v984 = vpack.c.b16 %v956, %v952
    %v985 = vpack.c.b16 %v957, %v953
    %v986 = vpack.c.b16 %v962, %v958
    %v987 = vpack.c.b16 %v963, %v959
    %v988 = vpack.c.b16 %v964, %v960
    %v989 = vpack.c.b16 %v965, %v961
    %v990 = vpack.c.b16 %v970, %v966
    %v991 = vpack.c.b16 %v971, %v967
    %v992 = vpack.c.b16 %v972, %v968
    %v993 = vpack.c.b16 %v973, %v969
    %v994 = vpack.c.b16 %v978, %v974
    %v995 = vpack.c.b16 %v979, %v975
    %v996 = vpack.c.b16 %v980, %v976
    %v997 = vpack.c.b16 %v981, %v977
    %1014 = vmatprep.subr.bf16.mxu0 0
    %1015 = vmatpush1.bf16.msra.mxu0 0
    %1016 = vmatprep.subr.bf16.mxu0 0
    %1017 = vmatpush1.bf16.msra.mxu0 0
    %1018 = vmatprep.subr.bf16.mxu0 0
    %1019 = vmatpush1.bf16.msra.mxu0 0
    %1020 = vmatprep.subr.bf16.mxu0 0
    %1021 = vmatpush1.bf16.msra.mxu0 0
    %1022 = vmatprep.subr.bf16.mxu0 %v995
    %1023 = vmatpush1.bf16.msra.mxu0 %v994
    %1024 = vmatprep.subr.bf16.mxu0 %v991
    %1025 = vmatpush1.bf16.msra.mxu0 %v990
    %1026 = vmatprep.subr.bf16.mxu0 %v987
    %1027 = vmatpush1.bf16.msra.mxu0 %v986
    %1028 = vmatprep.subr.bf16.mxu0 %v983
    %1029 = vmatpush1.bf16.msra.mxu0 %v982
    %1030 = vmatprep.subr.bf16.mxu0 0
    %1031 = vmatpush2.bf16.msra.mxu0 0
    %1032 = vmatprep.subr.bf16.mxu0 0
    %1033 = vmatpush2.bf16.msra.mxu0 0
    %1034 = vmatprep.subr.bf16.mxu0 0
    %1035 = vmatpush2.bf16.msra.mxu0 0
    %1036 = vmatprep.subr.bf16.mxu0 0
    %1037 = vmatpush2.bf16.msra.mxu0 0
    %1038 = vmatprep.subr.bf16.mxu0 0
    %1039 = vmatpush2.bf16.msra.mxu0 0
    %1040 = vmatprep.subr.bf16.mxu0 0
    %1041 = vmatpush2.bf16.msra.mxu0 0
    %1042 = vmatprep.subr.bf16.mxu0 0
    %1043 = vmatpush2.bf16.msra.mxu0 0
    %1044 = vmatprep.subr.bf16.mxu0 0
    %1045 = vmatpush2.bf16.msra.mxu0 0
    %1046 = vmatprep.mubr.bf16.mxu0 0
    %1047 = vmatmul.mubr.bf16.gmra.mxu0 %v241
    %v1048 = vpop.f32.mrf.mxu0
    %v1049 = vadd.f32 0.0, %v1048
    %v1050 = vpop.f32.mrf.mxu0
    %v1051 = vadd.f32 0.0, %v1050
    %v1052 = vpop.f32.mrf.mxu0
    %v1053 = vadd.f32 0.0, %v1052
    %v1054 = vpop.f32.mrf.mxu0
    %v1055 = vadd.f32 0.0, %v1054
    %1056 = vmatprep.mubr.bf16.mxu0 0
    %1057 = vmatmul.mubr.bf16.gmra.mxu0 %v244
    %v1058 = vpop.f32.mrf.mxu0
    %v1059 = vadd.f32 0.0, %v1058
    %v1060 = vpop.f32.mrf.mxu0
    %v1061 = vadd.f32 0.0, %v1060
    %v1062 = vpop.f32.mrf.mxu0
    %v1063 = vadd.f32 0.0, %v1062
    %v1064 = vpop.f32.mrf.mxu0
    %v1065 = vadd.f32 0.0, %v1064
    %1066 = vmatprep.mubr.bf16.mxu0 0
    %1067 = vmatmul.mubr.bf16.gmra.mxu0 %v247
    %v1068 = vpop.f32.mrf.mxu0
    %v1069 = vadd.f32 0.0, %v1068
    %v1070 = vpop.f32.mrf.mxu0
    %v1071 = vadd.f32 0.0, %v1070
    %v1072 = vpop.f32.mrf.mxu0
    %v1073 = vpop.f32.mrf.mxu0
    %1074 = vdwg.mxu0
    %1075 = vmatprep.subr.bf16.mxu0 0
    %1076 = vmatpush1.bf16.msra.mxu0 0
    %1077 = vmatprep.subr.bf16.mxu0 0
    %1078 = vmatpush1.bf16.msra.mxu0 0
    %1079 = vmatprep.subr.bf16.mxu0 0
    %1080 = vmatpush1.bf16.msra.mxu0 0
    %1081 = vmatprep.subr.bf16.mxu0 0
    %1082 = vmatpush1.bf16.msra.mxu0 0
    %1083 = vmatprep.subr.bf16.mxu0 %v997
    %1084 = vmatpush1.bf16.msra.mxu0 %v996
    %1085 = vmatprep.subr.bf16.mxu0 %v993
    %1086 = vmatpush1.bf16.msra.mxu0 %v992
    %1087 = vmatprep.subr.bf16.mxu0 %v989
    %1088 = vmatpush1.bf16.msra.mxu0 %v988
    %1089 = vmatprep.subr.bf16.mxu0 %v985
    %1090 = vmatpush1.bf16.msra.mxu0 %v984
    %1091 = vmatprep.subr.bf16.mxu0 0
    %1092 = vmatpush2.bf16.msra.mxu0 0
    %1093 = vmatprep.subr.bf16.mxu0 0
    %1094 = vmatpush2.bf16.msra.mxu0 0
    %1095 = vmatprep.subr.bf16.mxu0 0
    %1096 = vmatpush2.bf16.msra.mxu0 0
    %1097 = vmatprep.subr.bf16.mxu0 0
    %1098 = vmatpush2.bf16.msra.mxu0 0
    %1099 = vmatprep.subr.bf16.mxu0 0
    %1100 = vmatpush2.bf16.msra.mxu0 0
    %1101 = vmatprep.subr.bf16.mxu0 0
    %1102 = vmatpush2.bf16.msra.mxu0 0
    %1103 = vmatprep.subr.bf16.mxu0 0
    %1104 = vmatpush2.bf16.msra.mxu0 0
    %1105 = vmatprep.subr.bf16.mxu0 0
    %1106 = vmatpush2.bf16.msra.mxu0 0
    %1107 = vmatprep.mubr.bf16.mxu0 0
    %1108 = vmatmul.mubr.bf16.gmra.mxu0 %v241
    %v1109 = vpop.f32.mrf.mxu0
    %v1110 = vadd.f32 0.0, %v1109
    %v1111 = vpop.f32.mrf.mxu0
    %v1112 = vadd.f32 0.0, %v1111
    %v1113 = vpop.f32.mrf.mxu0
    %v1114 = vadd.f32 0.0, %v1113
    %v1115 = vpop.f32.mrf.mxu0
    %v1116 = vadd.f32 0.0, %v1115
    %1117 = vmatprep.mubr.bf16.mxu0 0
    %1118 = vmatmul.mubr.bf16.gmra.mxu0 %v244
    %v1119 = vpop.f32.mrf.mxu0
    %v1120 = vadd.f32 0.0, %v1119
    %v1121 = vpop.f32.mrf.mxu0
    %v1122 = vadd.f32 0.0, %v1121
    %v1123 = vpop.f32.mrf.mxu0
    %v1124 = vadd.f32 0.0, %v1123
    %v1125 = vpop.f32.mrf.mxu0
    %v1126 = vadd.f32 0.0, %v1125
    %1127 = vmatprep.mubr.bf16.mxu0 0
    %1128 = vmatmul.mubr.bf16.gmra.mxu0 %v247
    %v1129 = vpop.f32.mrf.mxu0
    %v1130 = vadd.f32 0.0, %v1129
    %v1131 = vpop.f32.mrf.mxu0
    %v1132 = vadd.f32 0.0, %v1131
    %v1133 = vpop.f32.mrf.mxu0
    %v1134 = vpop.f32.mrf.mxu0
    %1135 = vdwg.mxu0
    %v1152 = vunpack.c.l.b16 %v901
    %v1153 = vunpack.c.h.b16 %v901
    %v1154 = vunpack.c.l.b16 %v902
    %v1155 = vunpack.c.h.b16 %v902
    %v1156 = vunpack.c.l.b16 %v903
    %v1157 = vunpack.c.h.b16 %v903
    %v1158 = vunpack.c.l.b16 %v904
    %v1159 = vunpack.c.h.b16 %v904
    %v1160 = vunpack.c.l.b16 %v905
    %v1161 = vunpack.c.h.b16 %v905
    %v1162 = vunpack.c.l.b16 %v906
    %v1163 = vunpack.c.h.b16 %v906
    %v1164 = vunpack.c.l.b16 %v907
    %v1165 = vunpack.c.h.b16 %v907
    %v1166 = vunpack.c.l.b16 %v908
    %v1167 = vunpack.c.h.b16 %v908
    %v1168 = vunpack.c.l.b16 %v909
    %v1169 = vunpack.c.h.b16 %v909
    %v1170 = vunpack.c.l.b16 %v910
    %v1171 = vunpack.c.h.b16 %v910
    %v1172 = vunpack.c.l.b16 %v911
    %v1173 = vunpack.c.h.b16 %v911
    %v1174 = vunpack.c.l.b16 %v912
    %v1175 = vunpack.c.h.b16 %v912
    %v1176 = vunpack.c.l.b16 %v913
    %v1177 = vunpack.c.h.b16 %v913
    %v1178 = vunpack.c.l.b16 %v914
    %v1179 = vunpack.c.h.b16 %v914
    %v1180 = vunpack.c.l.b16 %v915
    %v1181 = vunpack.c.h.b16 %v915
    %v1182 = vunpack.c.l.b16 %v916
    %v1183 = vunpack.c.h.b16 %v916
    %v1184 = vpack.c.b16 %v1156, %v1152
    %v1185 = vpack.c.b16 %v1157, %v1153
    %v1186 = vpack.c.b16 %v1158, %v1154
    %v1187 = vpack.c.b16 %v1159, %v1155
    %v1188 = vpack.c.b16 %v1164, %v1160
    %v1189 = vpack.c.b16 %v1165, %v1161
    %v1190 = vpack.c.b16 %v1166, %v1162
    %v1191 = vpack.c.b16 %v1167, %v1163
    %v1192 = vpack.c.b16 %v1172, %v1168
    %v1193 = vpack.c.b16 %v1173, %v1169
    %v1194 = vpack.c.b16 %v1174, %v1170
    %v1195 = vpack.c.b16 %v1175, %v1171
    %v1196 = vpack.c.b16 %v1180, %v1176
    %v1197 = vpack.c.b16 %v1181, %v1177
    %v1198 = vpack.c.b16 %v1182, %v1178
    %v1199 = vpack.c.b16 %v1183, %v1179
    %1216 = vmatprep.subr.bf16.mxu0 0
    %1217 = vmatpush1.bf16.msra.mxu0 0
    %1218 = vmatprep.subr.bf16.mxu0 0
    %1219 = vmatpush1.bf16.msra.mxu0 0
    %1220 = vmatprep.subr.bf16.mxu0 0
    %1221 = vmatpush1.bf16.msra.mxu0 0
    %1222 = vmatprep.subr.bf16.mxu0 0
    %1223 = vmatpush1.bf16.msra.mxu0 0
    %1224 = vmatprep.subr.bf16.mxu0 %v1197
    %1225 = vmatpush1.bf16.msra.mxu0 %v1196
    %1226 = vmatprep.subr.bf16.mxu0 %v1193
    %1227 = vmatpush1.bf16.msra.mxu0 %v1192
    %1228 = vmatprep.subr.bf16.mxu0 %v1189
    %1229 = vmatpush1.bf16.msra.mxu0 %v1188
    %1230 = vmatprep.subr.bf16.mxu0 %v1185
    %1231 = vmatpush1.bf16.msra.mxu0 %v1184
    %1232 = vmatprep.subr.bf16.mxu0 0
    %1233 = vmatpush2.bf16.msra.mxu0 0
    %1234 = vmatprep.subr.bf16.mxu0 0
    %1235 = vmatpush2.bf16.msra.mxu0 0
    %1236 = vmatprep.subr.bf16.mxu0 0
    %1237 = vmatpush2.bf16.msra.mxu0 0
    %1238 = vmatprep.subr.bf16.mxu0 0
    %1239 = vmatpush2.bf16.msra.mxu0 0
    %1240 = vmatprep.subr.bf16.mxu0 0
    %1241 = vmatpush2.bf16.msra.mxu0 0
    %1242 = vmatprep.subr.bf16.mxu0 0
    %1243 = vmatpush2.bf16.msra.mxu0 0
    %1244 = vmatprep.subr.bf16.mxu0 0
    %1245 = vmatpush2.bf16.msra.mxu0 0
    %1246 = vmatprep.subr.bf16.mxu0 0
    %1247 = vmatpush2.bf16.msra.mxu0 0
    %1248 = vmatprep.mubr.bf16.mxu0 0
    %1249 = vmatmul.mubr.bf16.gmra.mxu0 %v452
    %v1250 = vpop.f32.mrf.mxu0
    %v1251 = vadd.f32 %v1049, %v1250
    %v1252 = vpop.f32.mrf.mxu0
    %v1253 = vadd.f32 %v1051, %v1252
    %v1254 = vpop.f32.mrf.mxu0
    %v1255 = vadd.f32 %v1053, %v1254
    %v1256 = vpop.f32.mrf.mxu0
    %v1257 = vadd.f32 %v1055, %v1256
    %1258 = vmatprep.mubr.bf16.mxu0 0
    %1259 = vmatmul.mubr.bf16.gmra.mxu0 %v455
    %v1260 = vpop.f32.mrf.mxu0
    %v1261 = vadd.f32 %v1059, %v1260
    %v1262 = vpop.f32.mrf.mxu0
    %v1263 = vadd.f32 %v1061, %v1262
    %v1264 = vpop.f32.mrf.mxu0
    %v1265 = vadd.f32 %v1063, %v1264
    %v1266 = vpop.f32.mrf.mxu0
    %v1267 = vadd.f32 %v1065, %v1266
    %1268 = vmatprep.mubr.bf16.mxu0 0
    %1269 = vmatmul.mubr.bf16.gmra.mxu0 %v458
    %v1270 = vpop.f32.mrf.mxu0
    %v1271 = vadd.f32 %v1069, %v1270
    %v1272 = vpop.f32.mrf.mxu0
    %v1273 = vadd.f32 %v1071, %v1272
    %v1274 = vpop.f32.mrf.mxu0
    %v1275 = vpop.f32.mrf.mxu0
    %1276 = vdwg.mxu0
    %1277 = vmatprep.subr.bf16.mxu0 0
    %1278 = vmatpush1.bf16.msra.mxu0 0
    %1279 = vmatprep.subr.bf16.mxu0 0
    %1280 = vmatpush1.bf16.msra.mxu0 0
    %1281 = vmatprep.subr.bf16.mxu0 0
    %1282 = vmatpush1.bf16.msra.mxu0 0
    %1283 = vmatprep.subr.bf16.mxu0 0
    %1284 = vmatpush1.bf16.msra.mxu0 0
    %1285 = vmatprep.subr.bf16.mxu0 %v1199
    %1286 = vmatpush1.bf16.msra.mxu0 %v1198
    %1287 = vmatprep.subr.bf16.mxu0 %v1195
    %1288 = vmatpush1.bf16.msra.mxu0 %v1194
    %1289 = vmatprep.subr.bf16.mxu0 %v1191
    %1290 = vmatpush1.bf16.msra.mxu0 %v1190
    %1291 = vmatprep.subr.bf16.mxu0 %v1187
    %1292 = vmatpush1.bf16.msra.mxu0 %v1186
    %1293 = vmatprep.subr.bf16.mxu0 0
    %1294 = vmatpush2.bf16.msra.mxu0 0
    %1295 = vmatprep.subr.bf16.mxu0 0
    %1296 = vmatpush2.bf16.msra.mxu0 0
    %1297 = vmatprep.subr.bf16.mxu0 0
    %1298 = vmatpush2.bf16.msra.mxu0 0
    %1299 = vmatprep.subr.bf16.mxu0 0
    %1300 = vmatpush2.bf16.msra.mxu0 0
    %1301 = vmatprep.subr.bf16.mxu0 0
    %1302 = vmatpush2.bf16.msra.mxu0 0
    %1303 = vmatprep.subr.bf16.mxu0 0
    %1304 = vmatpush2.bf16.msra.mxu0 0
    %1305 = vmatprep.subr.bf16.mxu0 0
    %1306 = vmatpush2.bf16.msra.mxu0 0
    %1307 = vmatprep.subr.bf16.mxu0 0
    %1308 = vmatpush2.bf16.msra.mxu0 0
    %1309 = vmatprep.mubr.bf16.mxu0 0
    %1310 = vmatmul.mubr.bf16.gmra.mxu0 %v452
    %v1311 = vpop.f32.mrf.mxu0
    %v1312 = vadd.f32 %v1110, %v1311
    %v1313 = vpop.f32.mrf.mxu0
    %v1314 = vadd.f32 %v1112, %v1313
    %v1315 = vpop.f32.mrf.mxu0
    %v1316 = vadd.f32 %v1114, %v1315
    %v1317 = vpop.f32.mrf.mxu0
    %v1318 = vadd.f32 %v1116, %v1317
    %1319 = vmatprep.mubr.bf16.mxu0 0
    %1320 = vmatmul.mubr.bf16.gmra.mxu0 %v455
    %v1321 = vpop.f32.mrf.mxu0
    %v1322 = vadd.f32 %v1120, %v1321
    %v1323 = vpop.f32.mrf.mxu0
    %v1324 = vadd.f32 %v1122, %v1323
    %v1325 = vpop.f32.mrf.mxu0
    %v1326 = vadd.f32 %v1124, %v1325
    %v1327 = vpop.f32.mrf.mxu0
    %v1328 = vadd.f32 %v1126, %v1327
    %1329 = vmatprep.mubr.bf16.mxu0 0
    %1330 = vmatmul.mubr.bf16.gmra.mxu0 %v458
    %v1331 = vpop.f32.mrf.mxu0
    %v1332 = vadd.f32 %v1130, %v1331
    %v1333 = vpop.f32.mrf.mxu0
    %v1334 = vadd.f32 %v1132, %v1333
    %v1335 = vpop.f32.mrf.mxu0
    %v1336 = vpop.f32.mrf.mxu0
    %1337 = vdwg.mxu0
    %s1338 = scalar_lea.vmem [#allocation4], 640
    %v1339 = vld [vmem:[%s1338] sm:$0xff]
    %v1340 = vld [vmem:[%s1338 + $0x8] sm:$0xff]
    %v1341 = vld [vmem:[%s1338 + $0x10] sm:$0xff]
    %v1342 = vld [vmem:[%s1338 + $0x18] sm:$0xff]
    %v1343 = vld [vmem:[%s1338 + $0x20] sm:$0xff]
    %v1344 = vld [vmem:[%s1338 + $0x28] sm:$0xff]
    %v1345 = vld [vmem:[%s1338 + $0x30] sm:$0xff]
    %v1346 = vld [vmem:[%s1338 + $0x38] sm:$0xff]
    %v1347 = vld [vmem:[%s1338 + $0x40] sm:$0xff]
    %v1348 = vld [vmem:[%s1338 + $0x48] sm:$0xff]
    %v1349 = vld [vmem:[%s1338 + $0x50] sm:$0xff]
    %v1350 = vld [vmem:[%s1338 + $0x58] sm:$0xff]
    %v1351 = vld [vmem:[%s1338 + $0x60] sm:$0xff]
    %v1352 = vld [vmem:[%s1338 + $0x68] sm:$0xff]
    %v1353 = vld [vmem:[%s1338 + $0x70] sm:$0xff]
    %v1354 = vld [vmem:[%s1338 + $0x78] sm:$0xff]
    %v1371 = vunpack.c.l.b16 %v1339
    %v1372 = vunpack.c.h.b16 %v1339
    %v1373 = vunpack.c.l.b16 %v1340
    %v1374 = vunpack.c.h.b16 %v1340
    %v1375 = vunpack.c.l.b16 %v1341
    %v1376 = vunpack.c.h.b16 %v1341
    %v1377 = vunpack.c.l.b16 %v1342
    %v1378 = vunpack.c.h.b16 %v1342
    %v1379 = vunpack.c.l.b16 %v1343
    %v1380 = vunpack.c.h.b16 %v1343
    %v1381 = vunpack.c.l.b16 %v1344
    %v1382 = vunpack.c.h.b16 %v1344
    %v1383 = vunpack.c.l.b16 %v1345
    %v1384 = vunpack.c.h.b16 %v1345
    %v1385 = vunpack.c.l.b16 %v1346
    %v1386 = vunpack.c.h.b16 %v1346
    %v1387 = vunpack.c.l.b16 %v1347
    %v1388 = vunpack.c.h.b16 %v1347
    %v1389 = vunpack.c.l.b16 %v1348
    %v1390 = vunpack.c.h.b16 %v1348
    %v1391 = vunpack.c.l.b16 %v1349
    %v1392 = vunpack.c.h.b16 %v1349
    %v1393 = vunpack.c.l.b16 %v1350
    %v1394 = vunpack.c.h.b16 %v1350
    %v1395 = vunpack.c.l.b16 %v1351
    %v1396 = vunpack.c.h.b16 %v1351
    %v1397 = vunpack.c.l.b16 %v1352
    %v1398 = vunpack.c.h.b16 %v1352
    %v1399 = vunpack.c.l.b16 %v1353
    %v1400 = vunpack.c.h.b16 %v1353
    %v1401 = vunpack.c.l.b16 %v1354
    %v1402 = vunpack.c.h.b16 %v1354
    %v1403 = vpack.c.b16 %v1375, %v1371
    %v1404 = vpack.c.b16 %v1376, %v1372
    %v1405 = vpack.c.b16 %v1377, %v1373
    %v1406 = vpack.c.b16 %v1378, %v1374
    %v1407 = vpack.c.b16 %v1383, %v1379
    %v1408 = vpack.c.b16 %v1384, %v1380
    %v1409 = vpack.c.b16 %v1385, %v1381
    %v1410 = vpack.c.b16 %v1386, %v1382
    %v1411 = vpack.c.b16 %v1391, %v1387
    %v1412 = vpack.c.b16 %v1392, %v1388
    %v1413 = vpack.c.b16 %v1393, %v1389
    %v1414 = vpack.c.b16 %v1394, %v1390
    %v1415 = vpack.c.b16 %v1399, %v1395
    %v1416 = vpack.c.b16 %v1400, %v1396
    %v1417 = vpack.c.b16 %v1401, %v1397
    %v1418 = vpack.c.b16 %v1402, %v1398
    %1435 = vmatprep.subr.bf16.mxu0 0
    %1436 = vmatpush1.bf16.msra.mxu0 0
    %1437 = vmatprep.subr.bf16.mxu0 0
    %1438 = vmatpush1.bf16.msra.mxu0 0
    %1439 = vmatprep.subr.bf16.mxu0 0
    %1440 = vmatpush1.bf16.msra.mxu0 0
    %1441 = vmatprep.subr.bf16.mxu0 0
    %1442 = vmatpush1.bf16.msra.mxu0 0
    %1443 = vmatprep.subr.bf16.mxu0 %v1416
    %1444 = vmatpush1.bf16.msra.mxu0 %v1415
    %1445 = vmatprep.subr.bf16.mxu0 %v1412
    %1446 = vmatpush1.bf16.msra.mxu0 %v1411
    %1447 = vmatprep.subr.bf16.mxu0 %v1408
    %1448 = vmatpush1.bf16.msra.mxu0 %v1407
    %1449 = vmatprep.subr.bf16.mxu0 %v1404
    %1450 = vmatpush1.bf16.msra.mxu0 %v1403
    %1451 = vmatprep.subr.bf16.mxu0 0
    %1452 = vmatpush2.bf16.msra.mxu0 0
    %1453 = vmatprep.subr.bf16.mxu0 0
    %1454 = vmatpush2.bf16.msra.mxu0 0
    %1455 = vmatprep.subr.bf16.mxu0 0
    %1456 = vmatpush2.bf16.msra.mxu0 0
    %1457 = vmatprep.subr.bf16.mxu0 0
    %1458 = vmatpush2.bf16.msra.mxu0 0
    %1459 = vmatprep.subr.bf16.mxu0 0
    %1460 = vmatpush2.bf16.msra.mxu0 0
    %1461 = vmatprep.subr.bf16.mxu0 0
    %1462 = vmatpush2.bf16.msra.mxu0 0
    %1463 = vmatprep.subr.bf16.mxu0 0
    %1464 = vmatpush2.bf16.msra.mxu0 0
    %1465 = vmatprep.subr.bf16.mxu0 0
    %1466 = vmatpush2.bf16.msra.mxu0 0
    %1467 = vmatprep.mubr.bf16.mxu0 0
    %1468 = vmatmul.mubr.bf16.gmra.mxu0 %v688
    %v1469 = vpop.f32.mrf.mxu0
    %v1470 = vadd.f32 0.0, %v1469
    %v1471 = vpop.f32.mrf.mxu0
    %v1472 = vadd.f32 0.0, %v1471
    %v1473 = vpop.f32.mrf.mxu0
    %v1474 = vadd.f32 0.0, %v1473
    %v1475 = vpop.f32.mrf.mxu0
    %v1476 = vadd.f32 0.0, %v1475
    %1477 = vmatprep.mubr.bf16.mxu0 0
    %1478 = vmatmul.mubr.bf16.gmra.mxu0 %v691
    %v1479 = vpop.f32.mrf.mxu0
    %v1480 = vadd.f32 0.0, %v1479
    %v1481 = vpop.f32.mrf.mxu0
    %v1482 = vadd.f32 0.0, %v1481
    %v1483 = vpop.f32.mrf.mxu0
    %v1484 = vadd.f32 0.0, %v1483
    %v1485 = vpop.f32.mrf.mxu0
    %v1486 = vadd.f32 0.0, %v1485
    %1487 = vmatprep.mubr.bf16.mxu0 0
    %1488 = vmatmul.mubr.bf16.gmra.mxu0 %v694
    %v1489 = vpop.f32.mrf.mxu0
    %v1490 = vadd.f32 0.0, %v1489
    %v1491 = vpop.f32.mrf.mxu0
    %v1492 = vadd.f32 0.0, %v1491
    %v1493 = vpop.f32.mrf.mxu0
    %v1494 = vpop.f32.mrf.mxu0
    %1495 = vdwg.mxu0
    %1496 = vmatprep.subr.bf16.mxu0 0
    %1497 = vmatpush1.bf16.msra.mxu0 0
    %1498 = vmatprep.subr.bf16.mxu0 0
    %1499 = vmatpush1.bf16.msra.mxu0 0
    %1500 = vmatprep.subr.bf16.mxu0 0
    %1501 = vmatpush1.bf16.msra.mxu0 0
    %1502 = vmatprep.subr.bf16.mxu0 0
    %1503 = vmatpush1.bf16.msra.mxu0 0
    %1504 = vmatprep.subr.bf16.mxu0 %v1418
    %1505 = vmatpush1.bf16.msra.mxu0 %v1417
    %1506 = vmatprep.subr.bf16.mxu0 %v1414
    %1507 = vmatpush1.bf16.msra.mxu0 %v1413
    %1508 = vmatprep.subr.bf16.mxu0 %v1410
    %1509 = vmatpush1.bf16.msra.mxu0 %v1409
    %1510 = vmatprep.subr.bf16.mxu0 %v1406
    %1511 = vmatpush1.bf16.msra.mxu0 %v1405
    %1512 = vmatprep.subr.bf16.mxu0 0
    %1513 = vmatpush2.bf16.msra.mxu0 0
    %1514 = vmatprep.subr.bf16.mxu0 0
    %1515 = vmatpush2.bf16.msra.mxu0 0
    %1516 = vmatprep.subr.bf16.mxu0 0
    %1517 = vmatpush2.bf16.msra.mxu0 0
    %1518 = vmatprep.subr.bf16.mxu0 0
    %1519 = vmatpush2.bf16.msra.mxu0 0
    %1520 = vmatprep.subr.bf16.mxu0 0
    %1521 = vmatpush2.bf16.msra.mxu0 0
    %1522 = vmatprep.subr.bf16.mxu0 0
    %1523 = vmatpush2.bf16.msra.mxu0 0
    %1524 = vmatprep.subr.bf16.mxu0 0
    %1525 = vmatpush2.bf16.msra.mxu0 0
    %1526 = vmatprep.subr.bf16.mxu0 0
    %1527 = vmatpush2.bf16.msra.mxu0 0
    %1528 = vmatprep.mubr.bf16.mxu0 0
    %1529 = vmatmul.mubr.bf16.gmra.mxu0 %v688
    %v1530 = vpop.f32.mrf.mxu0
    %v1531 = vadd.f32 0.0, %v1530
    %v1532 = vpop.f32.mrf.mxu0
    %v1533 = vadd.f32 0.0, %v1532
    %v1534 = vpop.f32.mrf.mxu0
    %v1535 = vadd.f32 0.0, %v1534
    %v1536 = vpop.f32.mrf.mxu0
    %v1537 = vadd.f32 0.0, %v1536
    %1538 = vmatprep.mubr.bf16.mxu0 0
    %1539 = vmatmul.mubr.bf16.gmra.mxu0 %v691
    %v1540 = vpop.f32.mrf.mxu0
    %v1541 = vadd.f32 0.0, %v1540
    %v1542 = vpop.f32.mrf.mxu0
    %v1543 = vadd.f32 0.0, %v1542
    %v1544 = vpop.f32.mrf.mxu0
    %v1545 = vadd.f32 0.0, %v1544
    %v1546 = vpop.f32.mrf.mxu0
    %v1547 = vadd.f32 0.0, %v1546
    %1548 = vmatprep.mubr.bf16.mxu0 0
    %1549 = vmatmul.mubr.bf16.gmra.mxu0 %v694
    %v1550 = vpop.f32.mrf.mxu0
    %v1551 = vadd.f32 0.0, %v1550
    %v1552 = vpop.f32.mrf.mxu0
    %v1553 = vadd.f32 0.0, %v1552
    %v1554 = vpop.f32.mrf.mxu0
    %v1555 = vpop.f32.mrf.mxu0
    %1556 = vdwg.mxu0
    %v1557 = vadd.f32 %v1251, %v1470
    %v1558 = vadd.f32 %v1253, %v1472
    %v1559 = vadd.f32 %v1312, %v1531
    %v1560 = vadd.f32 %v1314, %v1533
    %v1561 = vadd.f32 %v1255, %v1474
    %v1562 = vadd.f32 %v1257, %v1476
    %v1563 = vadd.f32 %v1316, %v1535
    %v1564 = vadd.f32 %v1318, %v1537
    %v1565 = vadd.f32 %v1261, %v1480
    %v1566 = vadd.f32 %v1263, %v1482
    %v1567 = vadd.f32 %v1322, %v1541
    %v1568 = vadd.f32 %v1324, %v1543
    %v1569 = vadd.f32 %v1265, %v1484
    %v1570 = vadd.f32 %v1267, %v1486
    %v1571 = vadd.f32 %v1326, %v1545
    %v1572 = vadd.f32 %v1328, %v1547
    %v1573 = vadd.f32 %v1271, %v1490
    %v1574 = vadd.f32 %v1273, %v1492
    %v1575 = vadd.f32 %v1332, %v1551
    %v1576 = vadd.f32 %v1334, %v1553
    %s1577 = scalar_lea.vmem [#allocation8], 4
    %v1578 = vld [vmem:[%s1577] sm:$0xf]
    %v1580 = vlaneseq
    %v1581 = vshrl.u32 %v1580, 7
    %v1582 = vsub.s32 0, %v1581
    %v1583 = vrot.slane %v1578, %v1582
    %v1584 = vlaneseq
    %v1585 = vshrl.u32 %v1584, 7
    %v1586 = vsub.s32 1, %v1585
    %v1587 = vrot.slane %v1578, %v1586
    %v1588 = vlaneseq
    %v1589 = vshrl.u32 %v1588, 7
    %v1590 = vsub.s32 2, %v1589
    %v1591 = vrot.slane %v1578, %v1590
    %v1592 = vlaneseq
    %v1593 = vshrl.u32 %v1592, 7
    %v1594 = vsub.s32 3, %v1593
    %v1595 = vrot.slane %v1578, %v1594
    %v1600 = vadd.f32 %v1557, %v1583
    %v1601 = vadd.f32 %v1558, %v1587
    %v1602 = vadd.f32 %v1559, %v1591
    %v1603 = vadd.f32 %v1560, %v1595
    %v1604 = vadd.f32 %v1561, %v1583
    %v1605 = vadd.f32 %v1562, %v1587
    %v1606 = vadd.f32 %v1563, %v1591
    %v1607 = vadd.f32 %v1564, %v1595
    %v1608 = vadd.f32 %v1565, %v1583
    %v1609 = vadd.f32 %v1566, %v1587
    %v1610 = vadd.f32 %v1567, %v1591
    %v1611 = vadd.f32 %v1568, %v1595
    %v1612 = vadd.f32 %v1569, %v1583
    %v1613 = vadd.f32 %v1570, %v1587
    %v1614 = vadd.f32 %v1571, %v1591
    %v1615 = vadd.f32 %v1572, %v1595
    %v1616 = vadd.f32 %v1573, %v1583
    %v1617 = vadd.f32 %v1574, %v1587
    %v1618 = vadd.f32 %v1575, %v1591
    %v1619 = vadd.f32 %v1576, %v1595
    %1620 = vst [vmem:[#allocation3] sm:$0xff] %v1600
    %1621 = vst [vmem:[#allocation3 + $0x8] sm:$0xff] %v1601
    %1622 = vst [vmem:[#allocation3 + $0x10] sm:$0xff] %v1602
    %1623 = vst [vmem:[#allocation3 + $0x18] sm:$0xff] %v1603
    %1624 = vst [vmem:[#allocation3 + $0x20] sm:$0xff] %v1604
    %1625 = vst [vmem:[#allocation3 + $0x28] sm:$0xff] %v1605
    %1626 = vst [vmem:[#allocation3 + $0x30] sm:$0xff] %v1606
    %1627 = vst [vmem:[#allocation3 + $0x38] sm:$0xff] %v1607
    %1628 = vst [vmem:[#allocation3 + $0x40] sm:$0xff] %v1608
    %1629 = vst [vmem:[#allocation3 + $0x48] sm:$0xff] %v1609
    %1630 = vst [vmem:[#allocation3 + $0x50] sm:$0xff] %v1610
    %1631 = vst [vmem:[#allocation3 + $0x58] sm:$0xff] %v1611
    %1632 = vst [vmem:[#allocation3 + $0x60] sm:$0xff] %v1612
    %1633 = vst [vmem:[#allocation3 + $0x68] sm:$0xff] %v1613
    %1634 = vst [vmem:[#allocation3 + $0x70] sm:$0xff] %v1614
    %1635 = vst [vmem:[#allocation3 + $0x78] sm:$0xff] %v1615
    %1636 = vst [vmem:[#allocation3 + $0x80] sm:$0x3] %v1616
    %1637 = vst [vmem:[#allocation3 + $0x88] sm:$0x3] %v1617
    %1638 = vst [vmem:[#allocation3 + $0x90] sm:$0x3] %v1618
    %1639 = vst [vmem:[#allocation3 + $0x98] sm:$0x3] %v1619
    %vm1660 = vcmask 1040384
    %v1661 = vrot.slane %v880, 7
    %v1662 = vrot.slane %v881, 7
    %v1663 = vrot.slane %v882, 7
    %v1664 = vrot.slane %v883, 7
    %v1665 = vrot.slane %v884, 7
    %v1666 = vsel %vm1660, %v1661, %v1665
    %v1667 = vrot.slane %v885, 7
    %v1668 = vsel %vm1660, %v1662, %v1667
    %v1669 = vrot.slane %v886, 7
    %v1670 = vsel %vm1660, %v1663, %v1669
    %v1671 = vrot.slane %v887, 7
    %v1672 = vsel %vm1660, %v1664, %v1671
    %v1673 = vrot.slane %v888, 7
    %v1674 = vsel %vm1660, %v1665, %v1673
    %v1675 = vrot.slane %v889, 7
    %v1676 = vsel %vm1660, %v1667, %v1675
    %v1677 = vrot.slane %v890, 7
    %v1678 = vsel %vm1660, %v1669, %v1677
    %v1679 = vrot.slane %v891, 7
    %v1680 = vsel %vm1660, %v1671, %v1679
    %v1681 = vrot.slane %v892, 7
    %v1682 = vsel %vm1660, %v1673, %v1681
    %v1683 = vrot.slane %v893, 7
    %v1684 = vsel %vm1660, %v1675, %v1683
    %v1685 = vrot.slane %v894, 7
    %v1686 = vsel %vm1660, %v1677, %v1685
    %v1687 = vrot.slane %v895, 7
    %v1688 = vsel %vm1660, %v1679, %v1687
    %v1689 = vrot.slane %v896, 7
    %v1690 = vsel %vm1660, %v1681, %v1689
    %v1691 = vrot.slane %v897, 7
    %v1692 = vsel %vm1660, %v1683, %v1691
    %v1693 = vrot.slane %v898, 7
    %v1694 = vsel %vm1660, %v1685, %v1693
    %v1695 = vrot.slane %v899, 7
    %v1696 = vsel %vm1660, %v1687, %v1695
    %1717 = vst [vmem:[#allocation2] sm:$0xfe] %v1661
    %1718 = vst [vmem:[#allocation2 + $0x8] sm:$0xfe] %v1662
    %1719 = vst [vmem:[#allocation2 + $0x10] sm:$0xfe] %v1663
    %1720 = vst [vmem:[#allocation2 + $0x18] sm:$0xfe] %v1664
    %1721 = vst [vmem:[#allocation2 + $0x20] sm:$0xff] %v1666
    %1722 = vst [vmem:[#allocation2 + $0x28] sm:$0xff] %v1668
    %1723 = vst [vmem:[#allocation2 + $0x30] sm:$0xff] %v1670
    %1724 = vst [vmem:[#allocation2 + $0x38] sm:$0xff] %v1672
    %1725 = vst [vmem:[#allocation2 + $0x40] sm:$0xff] %v1674
    %1726 = vst [vmem:[#allocation2 + $0x48] sm:$0xff] %v1676
    %1727 = vst [vmem:[#allocation2 + $0x50] sm:$0xff] %v1678
    %1728 = vst [vmem:[#allocation2 + $0x58] sm:$0xff] %v1680
    %1729 = vst [vmem:[#allocation2 + $0x60] sm:$0xff] %v1682
    %1730 = vst [vmem:[#allocation2 + $0x68] sm:$0xff] %v1684
    %1731 = vst [vmem:[#allocation2 + $0x70] sm:$0xff] %v1686
    %1732 = vst [vmem:[#allocation2 + $0x78] sm:$0xff] %v1688
    %1733 = vst [vmem:[#allocation2 + $0x80] sm:$0x7] %v1690
    %1734 = vst [vmem:[#allocation2 + $0x88] sm:$0x7] %v1692
    %1735 = vst [vmem:[#allocation2 + $0x90] sm:$0x7] %v1694
    %1736 = vst [vmem:[#allocation2 + $0x98] sm:$0x7] %v1696
    %1737 = vst [vmem:[#allocation2 + $0x40] sm:$0x6] 0.0
    %1738 = vst [vmem:[#allocation2 + $0x48] sm:$0x6] 0.0
    %1739 = vst [vmem:[#allocation2 + $0x50] sm:$0x6] 0.0
    %1740 = vst [vmem:[#allocation2 + $0x58] sm:$0x6] 0.0
    %v1741 = vld [vmem:[#allocation2] sm:$0xff]
    %v1742 = vld [vmem:[#allocation2 + $0x8] sm:$0xff]
    %v1743 = vld [vmem:[#allocation2 + $0x10] sm:$0xff]
    %v1744 = vld [vmem:[#allocation2 + $0x18] sm:$0xff]
    %v1745 = vld [vmem:[#allocation2 + $0x20] sm:$0xff]
    %v1746 = vld [vmem:[#allocation2 + $0x28] sm:$0xff]
    %v1747 = vld [vmem:[#allocation2 + $0x30] sm:$0xff]
    %v1748 = vld [vmem:[#allocation2 + $0x38] sm:$0xff]
    %v1749 = vld [vmem:[#allocation2 + $0x40] sm:$0xff]
    %v1750 = vld [vmem:[#allocation2 + $0x48] sm:$0xff]
    %v1751 = vld [vmem:[#allocation2 + $0x50] sm:$0xff]
    %v1752 = vld [vmem:[#allocation2 + $0x58] sm:$0xff]
    %v1753 = vld [vmem:[#allocation2 + $0x60] sm:$0xff]
    %v1754 = vld [vmem:[#allocation2 + $0x68] sm:$0xff]
    %v1755 = vld [vmem:[#allocation2 + $0x70] sm:$0xff]
    %v1756 = vld [vmem:[#allocation2 + $0x78] sm:$0xff]
    %v1757 = vld [vmem:[#allocation2 + $0x80] sm:$0x3]
    %v1758 = vld [vmem:[#allocation2 + $0x88] sm:$0x3]
    %v1759 = vld [vmem:[#allocation2 + $0x90] sm:$0x3]
    %v1760 = vld [vmem:[#allocation2 + $0x98] sm:$0x3]
    %v1761 = vpack.c.bf16 %v1745, %v1741
    %v1762 = vpack.c.bf16 %v1746, %v1742
    %v1763 = vpack.c.bf16 %v1747, %v1743
    %v1764 = vpack.c.bf16 %v1748, %v1744
    %v1765 = vpack.c.bf16 %v1753, %v1749
    %v1766 = vpack.c.bf16 %v1754, %v1750
    %v1767 = vpack.c.bf16 %v1755, %v1751
    %v1768 = vpack.c.bf16 %v1756, %v1752
    %v1769 = vpack.c.bf16 %v1757, %v1757
    %v1770 = vpack.c.bf16 %v1758, %v1758
    %v1771 = vpack.c.bf16 %v1759, %v1759
    %v1772 = vpack.c.bf16 %v1760, %v1760
    %v1773 = vld [vmem:[#allocation6] sm:$0xff]
    %v1774 = vld [vmem:[#allocation6 + $0x8] sm:$0xff]
    %v1775 = vld [vmem:[#allocation6 + $0x10] sm:$0xff]
    %v1776 = vld [vmem:[#allocation6 + $0x18] sm:$0xff]
    %v1777 = vld [vmem:[#allocation6 + $0x20] sm:$0xff]
    %v1778 = vld [vmem:[#allocation6 + $0x28] sm:$0xff]
    %v1779 = vld [vmem:[#allocation6 + $0x30] sm:$0xff]
    %v1780 = vld [vmem:[#allocation6 + $0x38] sm:$0xff]
    %v1781 = vld [vmem:[#allocation6 + $0x40] sm:$0xff]
    %v1782 = vld [vmem:[#allocation6 + $0x48] sm:$0xff]
    %v1783 = vld [vmem:[#allocation6 + $0x50] sm:$0xff]
    %v1784 = vld [vmem:[#allocation6 + $0x58] sm:$0xff]
    %v1785 = vld [vmem:[#allocation6 + $0x60] sm:$0xff]
    %v1786 = vld [vmem:[#allocation6 + $0x68] sm:$0xff]
    %v1787 = vld [vmem:[#allocation6 + $0x70] sm:$0xff]
    %v1788 = vld [vmem:[#allocation6 + $0x78] sm:$0xff]
    %v1789 = vld [vmem:[#allocation6 + $0x80] sm:$0xff]
    %v1790 = vld [vmem:[#allocation6 + $0x88] sm:$0xff]
    %v1791 = vld [vmem:[#allocation6 + $0x90] sm:$0xff]
    %v1792 = vld [vmem:[#allocation6 + $0x98] sm:$0xff]
    %v1793 = vld [vmem:[#allocation6 + $0xa0] sm:$0xff]
    %v1794 = vld [vmem:[#allocation6 + $0xa8] sm:$0xff]
    %v1795 = vld [vmem:[#allocation6 + $0xb0] sm:$0xff]
    %v1796 = vld [vmem:[#allocation6 + $0xb8] sm:$0xff]
    %v1797 = vld [vmem:[#allocation6 + $0xc0] sm:$0xff]
    %v1798 = vld [vmem:[#allocation6 + $0xc8] sm:$0xff]
    %v1799 = vld [vmem:[#allocation6 + $0xd0] sm:$0xff]
    %v1800 = vld [vmem:[#allocation6 + $0xd8] sm:$0xff]
    %v1801 = vld [vmem:[#allocation6 + $0xe0] sm:$0xff]
    %v1802 = vld [vmem:[#allocation6 + $0xe8] sm:$0xff]
    %v1803 = vld [vmem:[#allocation6 + $0xf0] sm:$0xff]
    %v1804 = vld [vmem:[#allocation6 + $0xf8] sm:$0xff]
    %v1805 = vld [vmem:[#allocation6 + $0x100] sm:$0xff]
    %v1806 = vld [vmem:[#allocation6 + $0x108] sm:$0xff]
    %v1807 = vld [vmem:[#allocation6 + $0x110] sm:$0xff]
    %v1808 = vld [vmem:[#allocation6 + $0x118] sm:$0xff]
    %v1809 = vld [vmem:[#allocation6 + $0x120] sm:$0xff]
    %v1810 = vld [vmem:[#allocation6 + $0x128] sm:$0xff]
    %v1811 = vld [vmem:[#allocation6 + $0x130] sm:$0xff]
    %v1812 = vld [vmem:[#allocation6 + $0x138] sm:$0xff]
    %v1813 = vld [vmem:[#allocation6 + $0x140] sm:$0xff]
    %v1814 = vld [vmem:[#allocation6 + $0x148] sm:$0xff]
    %v1815 = vld [vmem:[#allocation6 + $0x150] sm:$0xff]
    %v1816 = vld [vmem:[#allocation6 + $0x158] sm:$0xff]
    %v1817 = vld [vmem:[#allocation6 + $0x160] sm:$0xff]
    %v1818 = vld [vmem:[#allocation6 + $0x168] sm:$0xff]
    %v1819 = vld [vmem:[#allocation6 + $0x170] sm:$0xff]
    %v1820 = vld [vmem:[#allocation6 + $0x178] sm:$0xff]
    %v1821 = vld [vmem:[#allocation6 + $0x180] sm:$0xff]
    %v1822 = vld [vmem:[#allocation6 + $0x188] sm:$0xff]
    %v1823 = vld [vmem:[#allocation6 + $0x190] sm:$0xff]
    %v1824 = vld [vmem:[#allocation6 + $0x198] sm:$0xff]
    %v1825 = vld [vmem:[#allocation6 + $0x1a0] sm:$0xff]
    %v1826 = vld [vmem:[#allocation6 + $0x1a8] sm:$0xff]
    %v1827 = vld [vmem:[#allocation6 + $0x1b0] sm:$0xff]
    %v1828 = vld [vmem:[#allocation6 + $0x1b8] sm:$0xff]
    %v1829 = vld [vmem:[#allocation6 + $0x1c0] sm:$0xff]
    %v1830 = vld [vmem:[#allocation6 + $0x1c8] sm:$0xff]
    %v1831 = vld [vmem:[#allocation6 + $0x1d0] sm:$0xff]
    %v1832 = vld [vmem:[#allocation6 + $0x1d8] sm:$0xff]
    %v1833 = vld [vmem:[#allocation6 + $0x1e0] sm:$0xff]
    %v1834 = vld [vmem:[#allocation6 + $0x1e8] sm:$0xff]
    %v1835 = vld [vmem:[#allocation6 + $0x1f0] sm:$0xff]
    %v1836 = vld [vmem:[#allocation6 + $0x1f8] sm:$0xff]
    %v1837 = vld [vmem:[#allocation6 + $0x200] sm:$0xff]
    %v1838 = vld [vmem:[#allocation6 + $0x208] sm:$0xff]
    %v1839 = vld [vmem:[#allocation6 + $0x210] sm:$0xff]
    %v1840 = vld [vmem:[#allocation6 + $0x218] sm:$0xff]
    %v1841 = vld [vmem:[#allocation6 + $0x220] sm:$0xff]
    %v1842 = vld [vmem:[#allocation6 + $0x228] sm:$0xff]
    %v1843 = vld [vmem:[#allocation6 + $0x230] sm:$0xff]
    %v1844 = vld [vmem:[#allocation6 + $0x238] sm:$0xff]
    %v1845 = vld [vmem:[#allocation6 + $0x240] sm:$0xff]
    %v1846 = vld [vmem:[#allocation6 + $0x248] sm:$0xff]
    %v1847 = vld [vmem:[#allocation6 + $0x250] sm:$0xff]
    %v1848 = vld [vmem:[#allocation6 + $0x258] sm:$0xff]
    %v1849 = vld [vmem:[#allocation6 + $0x260] sm:$0xff]
    %v1850 = vld [vmem:[#allocation6 + $0x268] sm:$0xff]
    %v1851 = vld [vmem:[#allocation6 + $0x270] sm:$0xff]
    %v1852 = vld [vmem:[#allocation6 + $0x278] sm:$0xff]
    %v1853 = vld [vmem:[#allocation6 + $0x280] sm:$0xff]
    %v1854 = vld [vmem:[#allocation6 + $0x288] sm:$0xff]
    %v1855 = vld [vmem:[#allocation6 + $0x290] sm:$0xff]
    %v1856 = vld [vmem:[#allocation6 + $0x298] sm:$0xff]
    %v1857 = vld [vmem:[#allocation6 + $0x2a0] sm:$0xff]
    %v1858 = vld [vmem:[#allocation6 + $0x2a8] sm:$0xff]
    %v1859 = vld [vmem:[#allocation6 + $0x2b0] sm:$0xff]
    %v1860 = vld [vmem:[#allocation6 + $0x2b8] sm:$0xff]
    %v1861 = vld [vmem:[#allocation6 + $0x2c0] sm:$0xff]
    %v1862 = vld [vmem:[#allocation6 + $0x2c8] sm:$0xff]
    %v1863 = vld [vmem:[#allocation6 + $0x2d0] sm:$0xff]
    %v1864 = vld [vmem:[#allocation6 + $0x2d8] sm:$0xff]
    %v1865 = vld [vmem:[#allocation6 + $0x2e0] sm:$0xff]
    %v1866 = vld [vmem:[#allocation6 + $0x2e8] sm:$0xff]
    %v1867 = vld [vmem:[#allocation6 + $0x2f0] sm:$0xff]
    %v1868 = vld [vmem:[#allocation6 + $0x2f8] sm:$0xff]
    %v1869 = vld [vmem:[#allocation6 + $0x300] sm:$0xff]
    %v1870 = vld [vmem:[#allocation6 + $0x308] sm:$0xff]
    %v1871 = vld [vmem:[#allocation6 + $0x310] sm:$0xff]
    %v1872 = vld [vmem:[#allocation6 + $0x318] sm:$0xff]
    %v1873 = vld [vmem:[#allocation6 + $0x320] sm:$0xff]
    %v1874 = vld [vmem:[#allocation6 + $0x328] sm:$0xff]
    %v1875 = vld [vmem:[#allocation6 + $0x330] sm:$0xff]
    %v1876 = vld [vmem:[#allocation6 + $0x338] sm:$0xff]
    %v1877 = vld [vmem:[#allocation6 + $0x340] sm:$0xff]
    %v1878 = vld [vmem:[#allocation6 + $0x348] sm:$0xff]
    %v1879 = vld [vmem:[#allocation6 + $0x350] sm:$0xff]
    %v1880 = vld [vmem:[#allocation6 + $0x358] sm:$0xff]
    %v1881 = vld [vmem:[#allocation6 + $0x360] sm:$0xff]
    %v1882 = vld [vmem:[#allocation6 + $0x368] sm:$0xff]
    %v1883 = vld [vmem:[#allocation6 + $0x370] sm:$0xff]
    %v1884 = vld [vmem:[#allocation6 + $0x378] sm:$0xff]
    %v1885 = vld [vmem:[#allocation6 + $0x380] sm:$0xff]
    %v1886 = vld [vmem:[#allocation6 + $0x388] sm:$0xff]
    %v1887 = vld [vmem:[#allocation6 + $0x390] sm:$0xff]
    %v1888 = vld [vmem:[#allocation6 + $0x398] sm:$0xff]
    %v1889 = vld [vmem:[#allocation6 + $0x3a0] sm:$0xff]
    %v1890 = vld [vmem:[#allocation6 + $0x3a8] sm:$0xff]
    %v1891 = vld [vmem:[#allocation6 + $0x3b0] sm:$0xff]
    %v1892 = vld [vmem:[#allocation6 + $0x3b8] sm:$0xff]
    %v1893 = vld [vmem:[#allocation6 + $0x3c0] sm:$0xff]
    %v1894 = vld [vmem:[#allocation6 + $0x3c8] sm:$0xff]
    %v1895 = vld [vmem:[#allocation6 + $0x3d0] sm:$0xff]
    %v1896 = vld [vmem:[#allocation6 + $0x3d8] sm:$0xff]
    %v1897 = vld [vmem:[#allocation6 + $0x3e0] sm:$0xff]
    %v1898 = vld [vmem:[#allocation6 + $0x3e8] sm:$0xff]
    %v1899 = vld [vmem:[#allocation6 + $0x3f0] sm:$0xff]
    %v1900 = vld [vmem:[#allocation6 + $0x3f8] sm:$0xff]
    %v1901 = vld [vmem:[#allocation2] sm:$0xfe]
    %v1902 = vld [vmem:[#allocation2 + $0x8] sm:$0xfe]
    %v1903 = vld [vmem:[#allocation2 + $0x10] sm:$0xfe]
    %v1904 = vld [vmem:[#allocation2 + $0x18] sm:$0xfe]
    %v1905 = vld [vmem:[#allocation2 + $0x80] sm:$0x7]
    %v1906 = vld [vmem:[#allocation2 + $0x88] sm:$0x7]
    %v1907 = vld [vmem:[#allocation2 + $0x90] sm:$0x7]
    %v1908 = vld [vmem:[#allocation2 + $0x98] sm:$0x7]
    %v1909 = vpack.c.bf16 %v1745, %v1901
    %v1910 = vpack.c.bf16 %v1746, %v1902
    %v1911 = vpack.c.bf16 %v1747, %v1903
    %v1912 = vpack.c.bf16 %v1748, %v1904
    %v1913 = vpack.c.bf16 %v1905, %v1905
    %v1914 = vpack.c.bf16 %v1906, %v1906
    %v1915 = vpack.c.bf16 %v1907, %v1907
    %v1916 = vpack.c.bf16 %v1908, %v1908
    %s1917 = scalar_lea.vmem [#allocation6], 1024
    %v1918 = vld [vmem:[%s1917] sm:$0xff]
    %v1919 = vld [vmem:[%s1917 + $0x8] sm:$0xff]
    %v1920 = vld [vmem:[%s1917 + $0x10] sm:$0xff]
    %v1921 = vld [vmem:[%s1917 + $0x18] sm:$0xff]
    %v1922 = vld [vmem:[%s1917 + $0x20] sm:$0xff]
    %v1923 = vld [vmem:[%s1917 + $0x28] sm:$0xff]
    %v1924 = vld [vmem:[%s1917 + $0x30] sm:$0xff]
    %v1925 = vld [vmem:[%s1917 + $0x38] sm:$0xff]
    %v1926 = vld [vmem:[%s1917 + $0x40] sm:$0xff]
    %v1927 = vld [vmem:[%s1917 + $0x48] sm:$0xff]
    %v1928 = vld [vmem:[%s1917 + $0x50] sm:$0xff]
    %v1929 = vld [vmem:[%s1917 + $0x58] sm:$0xff]
    %v1930 = vld [vmem:[%s1917 + $0x60] sm:$0xff]
    %v1931 = vld [vmem:[%s1917 + $0x68] sm:$0xff]
    %v1932 = vld [vmem:[%s1917 + $0x70] sm:$0xff]
    %v1933 = vld [vmem:[%s1917 + $0x78] sm:$0xff]
    %v1934 = vld [vmem:[%s1917 + $0x80] sm:$0xff]
    %v1935 = vld [vmem:[%s1917 + $0x88] sm:$0xff]
    %v1936 = vld [vmem:[%s1917 + $0x90] sm:$0xff]
    %v1937 = vld [vmem:[%s1917 + $0x98] sm:$0xff]
    %v1938 = vld [vmem:[%s1917 + $0xa0] sm:$0xff]
    %v1939 = vld [vmem:[%s1917 + $0xa8] sm:$0xff]
    %v1940 = vld [vmem:[%s1917 + $0xb0] sm:$0xff]
    %v1941 = vld [vmem:[%s1917 + $0xb8] sm:$0xff]
    %v1942 = vld [vmem:[%s1917 + $0xc0] sm:$0xff]
    %v1943 = vld [vmem:[%s1917 + $0xc8] sm:$0xff]
    %v1944 = vld [vmem:[%s1917 + $0xd0] sm:$0xff]
    %v1945 = vld [vmem:[%s1917 + $0xd8] sm:$0xff]
    %v1946 = vld [vmem:[%s1917 + $0xe0] sm:$0xff]
    %v1947 = vld [vmem:[%s1917 + $0xe8] sm:$0xff]
    %v1948 = vld [vmem:[%s1917 + $0xf0] sm:$0xff]
    %v1949 = vld [vmem:[%s1917 + $0xf8] sm:$0xff]
    %v1950 = vld [vmem:[%s1917 + $0x100] sm:$0xff]
    %v1951 = vld [vmem:[%s1917 + $0x108] sm:$0xff]
    %v1952 = vld [vmem:[%s1917 + $0x110] sm:$0xff]
    %v1953 = vld [vmem:[%s1917 + $0x118] sm:$0xff]
    %v1954 = vld [vmem:[%s1917 + $0x120] sm:$0xff]
    %v1955 = vld [vmem:[%s1917 + $0x128] sm:$0xff]
    %v1956 = vld [vmem:[%s1917 + $0x130] sm:$0xff]
    %v1957 = vld [vmem:[%s1917 + $0x138] sm:$0xff]
    %v1958 = vld [vmem:[%s1917 + $0x140] sm:$0xff]
    %v1959 = vld [vmem:[%s1917 + $0x148] sm:$0xff]
    %v1960 = vld [vmem:[%s1917 + $0x150] sm:$0xff]
    %v1961 = vld [vmem:[%s1917 + $0x158] sm:$0xff]
    %v1962 = vld [vmem:[%s1917 + $0x160] sm:$0xff]
    %v1963 = vld [vmem:[%s1917 + $0x168] sm:$0xff]
    %v1964 = vld [vmem:[%s1917 + $0x170] sm:$0xff]
    %v1965 = vld [vmem:[%s1917 + $0x178] sm:$0xff]
    %v1966 = vld [vmem:[%s1917 + $0x180] sm:$0xff]
    %v1967 = vld [vmem:[%s1917 + $0x188] sm:$0xff]
    %v1968 = vld [vmem:[%s1917 + $0x190] sm:$0xff]
    %v1969 = vld [vmem:[%s1917 + $0x198] sm:$0xff]
    %v1970 = vld [vmem:[%s1917 + $0x1a0] sm:$0xff]
    %v1971 = vld [vmem:[%s1917 + $0x1a8] sm:$0xff]
    %v1972 = vld [vmem:[%s1917 + $0x1b0] sm:$0xff]
    %v1973 = vld [vmem:[%s1917 + $0x1b8] sm:$0xff]
    %v1974 = vld [vmem:[%s1917 + $0x1c0] sm:$0xff]
    %v1975 = vld [vmem:[%s1917 + $0x1c8] sm:$0xff]
    %v1976 = vld [vmem:[%s1917 + $0x1d0] sm:$0xff]
    %v1977 = vld [vmem:[%s1917 + $0x1d8] sm:$0xff]
    %v1978 = vld [vmem:[%s1917 + $0x1e0] sm:$0xff]
    %v1979 = vld [vmem:[%s1917 + $0x1e8] sm:$0xff]
    %v1980 = vld [vmem:[%s1917 + $0x1f0] sm:$0xff]
    %v1981 = vld [vmem:[%s1917 + $0x1f8] sm:$0xff]
    %v1982 = vld [vmem:[%s1917 + $0x200] sm:$0xff]
    %v1983 = vld [vmem:[%s1917 + $0x208] sm:$0xff]
    %v1984 = vld [vmem:[%s1917 + $0x210] sm:$0xff]
    %v1985 = vld [vmem:[%s1917 + $0x218] sm:$0xff]
    %v1986 = vld [vmem:[%s1917 + $0x220] sm:$0xff]
    %v1987 = vld [vmem:[%s1917 + $0x228] sm:$0xff]
    %v1988 = vld [vmem:[%s1917 + $0x230] sm:$0xff]
    %v1989 = vld [vmem:[%s1917 + $0x238] sm:$0xff]
    %v1990 = vld [vmem:[%s1917 + $0x240] sm:$0xff]
    %v1991 = vld [vmem:[%s1917 + $0x248] sm:$0xff]
    %v1992 = vld [vmem:[%s1917 + $0x250] sm:$0xff]
    %v1993 = vld [vmem:[%s1917 + $0x258] sm:$0xff]
    %v1994 = vld [vmem:[%s1917 + $0x260] sm:$0xff]
    %v1995 = vld [vmem:[%s1917 + $0x268] sm:$0xff]
    %v1996 = vld [vmem:[%s1917 + $0x270] sm:$0xff]
    %v1997 = vld [vmem:[%s1917 + $0x278] sm:$0xff]
    %v1998 = vld [vmem:[%s1917 + $0x280] sm:$0xff]
    %v1999 = vld [vmem:[%s1917 + $0x288] sm:$0xff]
    %v2000 = vld [vmem:[%s1917 + $0x290] sm:$0xff]
    %v2001 = vld [vmem:[%s1917 + $0x298] sm:$0xff]
    %v2002 = vld [vmem:[%s1917 + $0x2a0] sm:$0xff]
    %v2003 = vld [vmem:[%s1917 + $0x2a8] sm:$0xff]
    %v2004 = vld [vmem:[%s1917 + $0x2b0] sm:$0xff]
    %v2005 = vld [vmem:[%s1917 + $0x2b8] sm:$0xff]
    %v2006 = vld [vmem:[%s1917 + $0x2c0] sm:$0xff]
    %v2007 = vld [vmem:[%s1917 + $0x2c8] sm:$0xff]
    %v2008 = vld [vmem:[%s1917 + $0x2d0] sm:$0xff]
    %v2009 = vld [vmem:[%s1917 + $0x2d8] sm:$0xff]
    %v2010 = vld [vmem:[%s1917 + $0x2e0] sm:$0xff]
    %v2011 = vld [vmem:[%s1917 + $0x2e8] sm:$0xff]
    %v2012 = vld [vmem:[%s1917 + $0x2f0] sm:$0xff]
    %v2013 = vld [vmem:[%s1917 + $0x2f8] sm:$0xff]
    %v2014 = vld [vmem:[%s1917 + $0x300] sm:$0xff]
    %v2015 = vld [vmem:[%s1917 + $0x308] sm:$0xff]
    %v2016 = vld [vmem:[%s1917 + $0x310] sm:$0xff]
    %v2017 = vld [vmem:[%s1917 + $0x318] sm:$0xff]
    %v2018 = vld [vmem:[%s1917 + $0x320] sm:$0xff]
    %v2019 = vld [vmem:[%s1917 + $0x328] sm:$0xff]
    %v2020 = vld [vmem:[%s1917 + $0x330] sm:$0xff]
    %v2021 = vld [vmem:[%s1917 + $0x338] sm:$0xff]
    %v2022 = vld [vmem:[%s1917 + $0x340] sm:$0xff]
    %v2023 = vld [vmem:[%s1917 + $0x348] sm:$0xff]
    %v2024 = vld [vmem:[%s1917 + $0x350] sm:$0xff]
    %v2025 = vld [vmem:[%s1917 + $0x358] sm:$0xff]
    %v2026 = vld [vmem:[%s1917 + $0x360] sm:$0xff]
    %v2027 = vld [vmem:[%s1917 + $0x368] sm:$0xff]
    %v2028 = vld [vmem:[%s1917 + $0x370] sm:$0xff]
    %v2029 = vld [vmem:[%s1917 + $0x378] sm:$0xff]
    %v2030 = vld [vmem:[%s1917 + $0x380] sm:$0xff]
    %v2031 = vld [vmem:[%s1917 + $0x388] sm:$0xff]
    %v2032 = vld [vmem:[%s1917 + $0x390] sm:$0xff]
    %v2033 = vld [vmem:[%s1917 + $0x398] sm:$0xff]
    %v2034 = vld [vmem:[%s1917 + $0x3a0] sm:$0xff]
    %v2035 = vld [vmem:[%s1917 + $0x3a8] sm:$0xff]
    %v2036 = vld [vmem:[%s1917 + $0x3b0] sm:$0xff]
    %v2037 = vld [vmem:[%s1917 + $0x3b8] sm:$0xff]
    %v2038 = vld [vmem:[%s1917 + $0x3c0] sm:$0xff]
    %v2039 = vld [vmem:[%s1917 + $0x3c8] sm:$0xff]
    %v2040 = vld [vmem:[%s1917 + $0x3d0] sm:$0xff]
    %v2041 = vld [vmem:[%s1917 + $0x3d8] sm:$0xff]
    %v2042 = vld [vmem:[%s1917 + $0x3e0] sm:$0xff]
    %v2043 = vld [vmem:[%s1917 + $0x3e8] sm:$0xff]
    %v2044 = vld [vmem:[%s1917 + $0x3f0] sm:$0xff]
    %v2045 = vld [vmem:[%s1917 + $0x3f8] sm:$0xff]
    %vm2046 = vsmask.f32 7424
    %v2048 = vshrl.u32 %v1909, 16
    %v2050 = vshll.u32 %v1909, 16
    %v2052 = vrot.slane %v2050, 1
    %v2053 = vor.u32 %v2048, %v2052
    %v2055 = vshll.u32 %v1765, 16
    %v2057 = vrot.slane %v2055, 1
    %v2058 = vsel %vm2046, %v2053, %v2057
    %v2060 = vshrl.u32 %v1910, 16
    %v2062 = vshll.u32 %v1910, 16
    %v2064 = vrot.slane %v2062, 1
    %v2065 = vor.u32 %v2060, %v2064
    %v2067 = vshll.u32 %v1766, 16
    %v2069 = vrot.slane %v2067, 1
    %v2070 = vsel %vm2046, %v2065, %v2069
    %v2072 = vshrl.u32 %v1911, 16
    %v2074 = vshll.u32 %v1911, 16
    %v2076 = vrot.slane %v2074, 1
    %v2077 = vor.u32 %v2072, %v2076
    %v2079 = vshll.u32 %v1767, 16
    %v2081 = vrot.slane %v2079, 1
    %v2082 = vsel %vm2046, %v2077, %v2081
    %v2084 = vshrl.u32 %v1912, 16
    %v2086 = vshll.u32 %v1912, 16
    %v2088 = vrot.slane %v2086, 1
    %v2089 = vor.u32 %v2084, %v2088
    %v2091 = vshll.u32 %v1768, 16
    %v2093 = vrot.slane %v2091, 1
    %v2094 = vsel %vm2046, %v2089, %v2093
    %v2095 = vshrl.u32 %v1765, 16
    %v2097 = vor.u32 %v2095, %v2057
    %v2099 = vshll.u32 %v1913, 16
    %v2101 = vrot.slane %v2099, 1
    %v2102 = vsel %vm2046, %v2097, %v2101
    %v2103 = vshrl.u32 %v1766, 16
    %v2105 = vor.u32 %v2103, %v2069
    %v2107 = vshll.u32 %v1914, 16
    %v2109 = vrot.slane %v2107, 1
    %v2110 = vsel %vm2046, %v2105, %v2109
    %v2111 = vshrl.u32 %v1767, 16
    %v2113 = vor.u32 %v2111, %v2081
    %v2115 = vshll.u32 %v1915, 16
    %v2117 = vrot.slane %v2115, 1
    %v2118 = vsel %vm2046, %v2113, %v2117
    %v2119 = vshrl.u32 %v1768, 16
    %v2121 = vor.u32 %v2119, %v2093
    %v2123 = vshll.u32 %v1916, 16
    %v2125 = vrot.slane %v2123, 1
    %v2126 = vsel %vm2046, %v2121, %v2125
    %v2127 = vshrl.u32 %v1913, 16
    %v2129 = vor.u32 %v2127, %v2101
    %v2130 = vshrl.u32 %v1914, 16
    %v2132 = vor.u32 %v2130, %v2109
    %v2133 = vshrl.u32 %v1915, 16
    %v2135 = vor.u32 %v2133, %v2117
    %v2136 = vshrl.u32 %v1916, 16
    %v2138 = vor.u32 %v2136, %v2125
    %v2279 = vunpack.c.l.b16 %v1918
    %v2280 = vunpack.c.h.b16 %v1918
    %v2281 = vunpack.c.l.b16 %v1919
    %v2282 = vunpack.c.h.b16 %v1919
    %v2283 = vunpack.c.l.b16 %v1920
    %v2284 = vunpack.c.h.b16 %v1920
    %v2285 = vunpack.c.l.b16 %v1921
    %v2286 = vunpack.c.h.b16 %v1921
    %v2287 = vunpack.c.l.b16 %v1922
    %v2288 = vunpack.c.h.b16 %v1922
    %v2289 = vunpack.c.l.b16 %v1923
    %v2290 = vunpack.c.h.b16 %v1923
    %v2291 = vunpack.c.l.b16 %v1924
    %v2292 = vunpack.c.h.b16 %v1924
    %v2293 = vunpack.c.l.b16 %v1925
    %v2294 = vunpack.c.h.b16 %v1925
    %v2295 = vunpack.c.l.b16 %v1926
    %v2296 = vunpack.c.h.b16 %v1926
    %v2297 = vunpack.c.l.b16 %v1927
    %v2298 = vunpack.c.h.b16 %v1927
    %v2299 = vunpack.c.l.b16 %v1928
    %v2300 = vunpack.c.h.b16 %v1928
    %v2301 = vunpack.c.l.b16 %v1929
    %v2302 = vunpack.c.h.b16 %v1929
    %v2303 = vunpack.c.l.b16 %v1930
    %v2304 = vunpack.c.h.b16 %v1930
    %v2305 = vunpack.c.l.b16 %v1931
    %v2306 = vunpack.c.h.b16 %v1931
    %v2307 = vunpack.c.l.b16 %v1932
    %v2308 = vunpack.c.h.b16 %v1932
    %v2309 = vunpack.c.l.b16 %v1933
    %v2310 = vunpack.c.h.b16 %v1933
    %v2311 = vunpack.c.l.b16 %v1934
    %v2312 = vunpack.c.h.b16 %v1934
    %v2313 = vunpack.c.l.b16 %v1935
    %v2314 = vunpack.c.h.b16 %v1935
    %v2315 = vunpack.c.l.b16 %v1936
    %v2316 = vunpack.c.h.b16 %v1936
    %v2317 = vunpack.c.l.b16 %v1937
    %v2318 = vunpack.c.h.b16 %v1937
    %v2319 = vunpack.c.l.b16 %v1938
    %v2320 = vunpack.c.h.b16 %v1938
    %v2321 = vunpack.c.l.b16 %v1939
    %v2322 = vunpack.c.h.b16 %v1939
    %v2323 = vunpack.c.l.b16 %v1940
    %v2324 = vunpack.c.h.b16 %v1940
    %v2325 = vunpack.c.l.b16 %v1941
    %v2326 = vunpack.c.h.b16 %v1941
    %v2327 = vunpack.c.l.b16 %v1942
    %v2328 = vunpack.c.h.b16 %v1942
    %v2329 = vunpack.c.l.b16 %v1943
    %v2330 = vunpack.c.h.b16 %v1943
    %v2331 = vunpack.c.l.b16 %v1944
    %v2332 = vunpack.c.h.b16 %v1944
    %v2333 = vunpack.c.l.b16 %v1945
    %v2334 = vunpack.c.h.b16 %v1945
    %v2335 = vunpack.c.l.b16 %v1946
    %v2336 = vunpack.c.h.b16 %v1946
    %v2337 = vunpack.c.l.b16 %v1947
    %v2338 = vunpack.c.h.b16 %v1947
    %v2339 = vunpack.c.l.b16 %v1948
    %v2340 = vunpack.c.h.b16 %v1948
    %v2341 = vunpack.c.l.b16 %v1949
    %v2342 = vunpack.c.h.b16 %v1949
    %v2343 = vunpack.c.l.b16 %v1950
    %v2344 = vunpack.c.h.b16 %v1950
    %v2345 = vunpack.c.l.b16 %v1951
    %v2346 = vunpack.c.h.b16 %v1951
    %v2347 = vunpack.c.l.b16 %v1952
    %v2348 = vunpack.c.h.b16 %v1952
    %v2349 = vunpack.c.l.b16 %v1953
    %v2350 = vunpack.c.h.b16 %v1953
    %v2351 = vunpack.c.l.b16 %v1954
    %v2352 = vunpack.c.h.b16 %v1954
    %v2353 = vunpack.c.l.b16 %v1955
    %v2354 = vunpack.c.h.b16 %v1955
    %v2355 = vunpack.c.l.b16 %v1956
    %v2356 = vunpack.c.h.b16 %v1956
    %v2357 = vunpack.c.l.b16 %v1957
    %v2358 = vunpack.c.h.b16 %v1957
    %v2359 = vunpack.c.l.b16 %v1958
    %v2360 = vunpack.c.h.b16 %v1958
    %v2361 = vunpack.c.l.b16 %v1959
    %v2362 = vunpack.c.h.b16 %v1959
    %v2363 = vunpack.c.l.b16 %v1960
    %v2364 = vunpack.c.h.b16 %v1960
    %v2365 = vunpack.c.l.b16 %v1961
    %v2366 = vunpack.c.h.b16 %v1961
    %v2367 = vunpack.c.l.b16 %v1962
    %v2368 = vunpack.c.h.b16 %v1962
    %v2369 = vunpack.c.l.b16 %v1963
    %v2370 = vunpack.c.h.b16 %v1963
    %v2371 = vunpack.c.l.b16 %v1964
    %v2372 = vunpack.c.h.b16 %v1964
    %v2373 = vunpack.c.l.b16 %v1965
    %v2374 = vunpack.c.h.b16 %v1965
    %v2375 = vunpack.c.l.b16 %v1966
    %v2376 = vunpack.c.h.b16 %v1966
    %v2377 = vunpack.c.l.b16 %v1967
    %v2378 = vunpack.c.h.b16 %v1967
    %v2379 = vunpack.c.l.b16 %v1968
    %v2380 = vunpack.c.h.b16 %v1968
    %v2381 = vunpack.c.l.b16 %v1969
    %v2382 = vunpack.c.h.b16 %v1969
    %v2383 = vunpack.c.l.b16 %v1970
    %v2384 = vunpack.c.h.b16 %v1970
    %v2385 = vunpack.c.l.b16 %v1971
    %v2386 = vunpack.c.h.b16 %v1971
    %v2387 = vunpack.c.l.b16 %v1972
    %v2388 = vunpack.c.h.b16 %v1972
    %v2389 = vunpack.c.l.b16 %v1973
    %v2390 = vunpack.c.h.b16 %v1973
    %v2391 = vunpack.c.l.b16 %v1974
    %v2392 = vunpack.c.h.b16 %v1974
    %v2393 = vunpack.c.l.b16 %v1975
    %v2394 = vunpack.c.h.b16 %v1975
    %v2395 = vunpack.c.l.b16 %v1976
    %v2396 = vunpack.c.h.b16 %v1976
    %v2397 = vunpack.c.l.b16 %v1977
    %v2398 = vunpack.c.h.b16 %v1977
    %v2399 = vunpack.c.l.b16 %v1978
    %v2400 = vunpack.c.h.b16 %v1978
    %v2401 = vunpack.c.l.b16 %v1979
    %v2402 = vunpack.c.h.b16 %v1979
    %v2403 = vunpack.c.l.b16 %v1980
    %v2404 = vunpack.c.h.b16 %v1980
    %v2405 = vunpack.c.l.b16 %v1981
    %v2406 = vunpack.c.h.b16 %v1981
    %v2407 = vunpack.c.l.b16 %v1982
    %v2408 = vunpack.c.h.b16 %v1982
    %v2409 = vunpack.c.l.b16 %v1983
    %v2410 = vunpack.c.h.b16 %v1983
    %v2411 = vunpack.c.l.b16 %v1984
    %v2412 = vunpack.c.h.b16 %v1984
    %v2413 = vunpack.c.l.b16 %v1985
    %v2414 = vunpack.c.h.b16 %v1985
    %v2415 = vunpack.c.l.b16 %v1986
    %v2416 = vunpack.c.h.b16 %v1986
    %v2417 = vunpack.c.l.b16 %v1987
    %v2418 = vunpack.c.h.b16 %v1987
    %v2419 = vunpack.c.l.b16 %v1988
    %v2420 = vunpack.c.h.b16 %v1988
    %v2421 = vunpack.c.l.b16 %v1989
    %v2422 = vunpack.c.h.b16 %v1989
    %v2423 = vunpack.c.l.b16 %v1990
    %v2424 = vunpack.c.h.b16 %v1990
    %v2425 = vunpack.c.l.b16 %v1991
    %v2426 = vunpack.c.h.b16 %v1991
    %v2427 = vunpack.c.l.b16 %v1992
    %v2428 = vunpack.c.h.b16 %v1992
    %v2429 = vunpack.c.l.b16 %v1993
    %v2430 = vunpack.c.h.b16 %v1993
    %v2431 = vunpack.c.l.b16 %v1994
    %v2432 = vunpack.c.h.b16 %v1994
    %v2433 = vunpack.c.l.b16 %v1995
    %v2434 = vunpack.c.h.b16 %v1995
    %v2435 = vunpack.c.l.b16 %v1996
    %v2436 = vunpack.c.h.b16 %v1996
    %v2437 = vunpack.c.l.b16 %v1997
    %v2438 = vunpack.c.h.b16 %v1997
    %v2439 = vunpack.c.l.b16 %v1998
    %v2440 = vunpack.c.h.b16 %v1998
    %v2441 = vunpack.c.l.b16 %v1999
    %v2442 = vunpack.c.h.b16 %v1999
    %v2443 = vunpack.c.l.b16 %v2000
    %v2444 = vunpack.c.h.b16 %v2000
    %v2445 = vunpack.c.l.b16 %v2001
    %v2446 = vunpack.c.h.b16 %v2001
    %v2447 = vunpack.c.l.b16 %v2002
    %v2448 = vunpack.c.h.b16 %v2002
    %v2449 = vunpack.c.l.b16 %v2003
    %v2450 = vunpack.c.h.b16 %v2003
    %v2451 = vunpack.c.l.b16 %v2004
    %v2452 = vunpack.c.h.b16 %v2004
    %v2453 = vunpack.c.l.b16 %v2005
    %v2454 = vunpack.c.h.b16 %v2005
    %v2455 = vunpack.c.l.b16 %v2006
    %v2456 = vunpack.c.h.b16 %v2006
    %v2457 = vunpack.c.l.b16 %v2007
    %v2458 = vunpack.c.h.b16 %v2007
    %v2459 = vunpack.c.l.b16 %v2008
    %v2460 = vunpack.c.h.b16 %v2008
    %v2461 = vunpack.c.l.b16 %v2009
    %v2462 = vunpack.c.h.b16 %v2009
    %v2463 = vunpack.c.l.b16 %v2010
    %v2464 = vunpack.c.h.b16 %v2010
    %v2465 = vunpack.c.l.b16 %v2011
    %v2466 = vunpack.c.h.b16 %v2011
    %v2467 = vunpack.c.l.b16 %v2012
    %v2468 = vunpack.c.h.b16 %v2012
    %v2469 = vunpack.c.l.b16 %v2013
    %v2470 = vunpack.c.h.b16 %v2013
    %v2471 = vunpack.c.l.b16 %v2014
    %v2472 = vunpack.c.h.b16 %v2014
    %v2473 = vunpack.c.l.b16 %v2015
    %v2474 = vunpack.c.h.b16 %v2015
    %v2475 = vunpack.c.l.b16 %v2016
    %v2476 = vunpack.c.h.b16 %v2016
    %v2477 = vunpack.c.l.b16 %v2017
    %v2478 = vunpack.c.h.b16 %v2017
    %v2479 = vunpack.c.l.b16 %v2018
    %v2480 = vunpack.c.h.b16 %v2018
    %v2481 = vunpack.c.l.b16 %v2019
    %v2482 = vunpack.c.h.b16 %v2019
    %v2483 = vunpack.c.l.b16 %v2020
    %v2484 = vunpack.c.h.b16 %v2020
    %v2485 = vunpack.c.l.b16 %v2021
    %v2486 = vunpack.c.h.b16 %v2021
    %v2487 = vunpack.c.l.b16 %v2022
    %v2488 = vunpack.c.h.b16 %v2022
    %v2489 = vunpack.c.l.b16 %v2023
    %v2490 = vunpack.c.h.b16 %v2023
    %v2491 = vunpack.c.l.b16 %v2024
    %v2492 = vunpack.c.h.b16 %v2024
    %v2493 = vunpack.c.l.b16 %v2025
    %v2494 = vunpack.c.h.b16 %v2025
    %v2495 = vunpack.c.l.b16 %v2026
    %v2496 = vunpack.c.h.b16 %v2026
    %v2497 = vunpack.c.l.b16 %v2027
    %v2498 = vunpack.c.h.b16 %v2027
    %v2499 = vunpack.c.l.b16 %v2028
    %v2500 = vunpack.c.h.b16 %v2028
    %v2501 = vunpack.c.l.b16 %v2029
    %v2502 = vunpack.c.h.b16 %v2029
    %v2503 = vunpack.c.l.b16 %v2030
    %v2504 = vunpack.c.h.b16 %v2030
    %v2505 = vunpack.c.l.b16 %v2031
    %v2506 = vunpack.c.h.b16 %v2031
    %v2507 = vunpack.c.l.b16 %v2032
    %v2508 = vunpack.c.h.b16 %v2032
    %v2509 = vunpack.c.l.b16 %v2033
    %v2510 = vunpack.c.h.b16 %v2033
    %v2511 = vunpack.c.l.b16 %v2034
    %v2512 = vunpack.c.h.b16 %v2034
    %v2513 = vunpack.c.l.b16 %v2035
    %v2514 = vunpack.c.h.b16 %v2035
    %v2515 = vunpack.c.l.b16 %v2036
    %v2516 = vunpack.c.h.b16 %v2036
    %v2517 = vunpack.c.l.b16 %v2037
    %v2518 = vunpack.c.h.b16 %v2037
    %v2519 = vunpack.c.l.b16 %v2038
    %v2520 = vunpack.c.h.b16 %v2038
    %v2521 = vunpack.c.l.b16 %v2039
    %v2522 = vunpack.c.h.b16 %v2039
    %v2523 = vunpack.c.l.b16 %v2040
    %v2524 = vunpack.c.h.b16 %v2040
    %v2525 = vunpack.c.l.b16 %v2041
    %v2526 = vunpack.c.h.b16 %v2041
    %v2527 = vunpack.c.l.b16 %v2042
    %v2528 = vunpack.c.h.b16 %v2042
    %v2529 = vunpack.c.l.b16 %v2043
    %v2530 = vunpack.c.h.b16 %v2043
    %v2531 = vunpack.c.l.b16 %v2044
    %v2532 = vunpack.c.h.b16 %v2044
    %v2533 = vunpack.c.l.b16 %v2045
    %v2534 = vunpack.c.h.b16 %v2045
    %v2535 = vpack.c.b16 %v2283, %v2279
    %v2536 = vpack.c.b16 %v2284, %v2280
    %v2537 = vpack.c.b16 %v2285, %v2281
    %v2538 = vpack.c.b16 %v2286, %v2282
    %v2539 = vpack.c.b16 %v2291, %v2287
    %v2540 = vpack.c.b16 %v2292, %v2288
    %v2541 = vpack.c.b16 %v2293, %v2289
    %v2542 = vpack.c.b16 %v2294, %v2290
    %v2543 = vpack.c.b16 %v2299, %v2295
    %v2544 = vpack.c.b16 %v2300, %v2296
    %v2545 = vpack.c.b16 %v2301, %v2297
    %v2546 = vpack.c.b16 %v2302, %v2298
    %v2547 = vpack.c.b16 %v2307, %v2303
    %v2548 = vpack.c.b16 %v2308, %v2304
    %v2549 = vpack.c.b16 %v2309, %v2305
    %v2550 = vpack.c.b16 %v2310, %v2306
    %v2551 = vpack.c.b16 %v2315, %v2311
    %v2552 = vpack.c.b16 %v2316, %v2312
    %v2553 = vpack.c.b16 %v2317, %v2313
    %v2554 = vpack.c.b16 %v2318, %v2314
    %v2555 = vpack.c.b16 %v2323, %v2319
    %v2556 = vpack.c.b16 %v2324, %v2320
    %v2557 = vpack.c.b16 %v2325, %v2321
    %v2558 = vpack.c.b16 %v2326, %v2322
    %v2559 = vpack.c.b16 %v2331, %v2327
    %v2560 = vpack.c.b16 %v2332, %v2328
    %v2561 = vpack.c.b16 %v2333, %v2329
    %v2562 = vpack.c.b16 %v2334, %v2330
    %v2563 = vpack.c.b16 %v2339, %v2335
    %v2564 = vpack.c.b16 %v2340, %v2336
    %v2565 = vpack.c.b16 %v2341, %v2337
    %v2566 = vpack.c.b16 %v2342, %v2338
    %v2567 = vpack.c.b16 %v2347, %v2343
    %v2568 = vpack.c.b16 %v2348, %v2344
    %v2569 = vpack.c.b16 %v2349, %v2345
    %v2570 = vpack.c.b16 %v2350, %v2346
    %v2571 = vpack.c.b16 %v2355, %v2351
    %v2572 = vpack.c.b16 %v2356, %v2352
    %v2573 = vpack.c.b16 %v2357, %v2353
    %v2574 = vpack.c.b16 %v2358, %v2354
    %v2575 = vpack.c.b16 %v2363, %v2359
    %v2576 = vpack.c.b16 %v2364, %v2360
    %v2577 = vpack.c.b16 %v2365, %v2361
    %v2578 = vpack.c.b16 %v2366, %v2362
    %v2579 = vpack.c.b16 %v2371, %v2367
    %v2580 = vpack.c.b16 %v2372, %v2368
    %v2581 = vpack.c.b16 %v2373, %v2369
    %v2582 = vpack.c.b16 %v2374, %v2370
    %v2583 = vpack.c.b16 %v2379, %v2375
    %v2584 = vpack.c.b16 %v2380, %v2376
    %v2585 = vpack.c.b16 %v2381, %v2377
    %v2586 = vpack.c.b16 %v2382, %v2378
    %v2587 = vpack.c.b16 %v2387, %v2383
    %v2588 = vpack.c.b16 %v2388, %v2384
    %v2589 = vpack.c.b16 %v2389, %v2385
    %v2590 = vpack.c.b16 %v2390, %v2386
    %v2591 = vpack.c.b16 %v2395, %v2391
    %v2592 = vpack.c.b16 %v2396, %v2392
    %v2593 = vpack.c.b16 %v2397, %v2393
    %v2594 = vpack.c.b16 %v2398, %v2394
    %v2595 = vpack.c.b16 %v2403, %v2399
    %v2596 = vpack.c.b16 %v2404, %v2400
    %v2597 = vpack.c.b16 %v2405, %v2401
    %v2598 = vpack.c.b16 %v2406, %v2402
    %v2599 = vpack.c.b16 %v2411, %v2407
    %v2600 = vpack.c.b16 %v2412, %v2408
    %v2601 = vpack.c.b16 %v2413, %v2409
    %v2602 = vpack.c.b16 %v2414, %v2410
    %v2603 = vpack.c.b16 %v2419, %v2415
    %v2604 = vpack.c.b16 %v2420, %v2416
    %v2605 = vpack.c.b16 %v2421, %v2417
    %v2606 = vpack.c.b16 %v2422, %v2418
    %v2607 = vpack.c.b16 %v2427, %v2423
    %v2608 = vpack.c.b16 %v2428, %v2424
    %v2609 = vpack.c.b16 %v2429, %v2425
    %v2610 = vpack.c.b16 %v2430, %v2426
    %v2611 = vpack.c.b16 %v2435, %v2431
    %v2612 = vpack.c.b16 %v2436, %v2432
    %v2613 = vpack.c.b16 %v2437, %v2433
    %v2614 = vpack.c.b16 %v2438, %v2434
    %v2615 = vpack.c.b16 %v2443, %v2439
    %v2616 = vpack.c.b16 %v2444, %v2440
    %v2617 = vpack.c.b16 %v2445, %v2441
    %v2618 = vpack.c.b16 %v2446, %v2442
    %v2619 = vpack.c.b16 %v2451, %v2447
    %v2620 = vpack.c.b16 %v2452, %v2448
    %v2621 = vpack.c.b16 %v2453, %v2449
    %v2622 = vpack.c.b16 %v2454, %v2450
    %v2623 = vpack.c.b16 %v2459, %v2455
    %v2624 = vpack.c.b16 %v2460, %v2456
    %v2625 = vpack.c.b16 %v2461, %v2457
    %v2626 = vpack.c.b16 %v2462, %v2458
    %v2627 = vpack.c.b16 %v2467, %v2463
    %v2628 = vpack.c.b16 %v2468, %v2464
    %v2629 = vpack.c.b16 %v2469, %v2465
    %v2630 = vpack.c.b16 %v2470, %v2466
    %v2631 = vpack.c.b16 %v2475, %v2471
    %v2632 = vpack.c.b16 %v2476, %v2472
    %v2633 = vpack.c.b16 %v2477, %v2473
    %v2634 = vpack.c.b16 %v2478, %v2474
    %v2635 = vpack.c.b16 %v2483, %v2479
    %v2636 = vpack.c.b16 %v2484, %v2480
    %v2637 = vpack.c.b16 %v2485, %v2481
    %v2638 = vpack.c.b16 %v2486, %v2482
    %v2639 = vpack.c.b16 %v2491, %v2487
    %v2640 = vpack.c.b16 %v2492, %v2488
    %v2641 = vpack.c.b16 %v2493, %v2489
    %v2642 = vpack.c.b16 %v2494, %v2490
    %v2643 = vpack.c.b16 %v2499, %v2495
    %v2644 = vpack.c.b16 %v2500, %v2496
    %v2645 = vpack.c.b16 %v2501, %v2497
    %v2646 = vpack.c.b16 %v2502, %v2498
    %v2647 = vpack.c.b16 %v2507, %v2503
    %v2648 = vpack.c.b16 %v2508, %v2504
    %v2649 = vpack.c.b16 %v2509, %v2505
    %v2650 = vpack.c.b16 %v2510, %v2506
    %v2651 = vpack.c.b16 %v2515, %v2511
    %v2652 = vpack.c.b16 %v2516, %v2512
    %v2653 = vpack.c.b16 %v2517, %v2513
    %v2654 = vpack.c.b16 %v2518, %v2514
    %v2655 = vpack.c.b16 %v2523, %v2519
    %v2656 = vpack.c.b16 %v2524, %v2520
    %v2657 = vpack.c.b16 %v2525, %v2521
    %v2658 = vpack.c.b16 %v2526, %v2522
    %v2659 = vpack.c.b16 %v2531, %v2527
    %v2660 = vpack.c.b16 %v2532, %v2528
    %v2661 = vpack.c.b16 %v2533, %v2529
    %v2662 = vpack.c.b16 %v2534, %v2530
    %2791 = vmatprep.subr.bf16.mxu0 %v2564
    %2792 = vmatpush1.bf16.msra.mxu0 %v2563
    %2793 = vmatprep.subr.bf16.mxu0 %v2560
    %2794 = vmatpush1.bf16.msra.mxu0 %v2559
    %2795 = vmatprep.subr.bf16.mxu0 %v2556
    %2796 = vmatpush1.bf16.msra.mxu0 %v2555
    %2797 = vmatprep.subr.bf16.mxu0 %v2552
    %2798 = vmatpush1.bf16.msra.mxu0 %v2551
    %2799 = vmatprep.subr.bf16.mxu0 %v2548
    %2800 = vmatpush1.bf16.msra.mxu0 %v2547
    %2801 = vmatprep.subr.bf16.mxu0 %v2544
    %2802 = vmatpush1.bf16.msra.mxu0 %v2543
    %2803 = vmatprep.subr.bf16.mxu0 %v2540
    %2804 = vmatpush1.bf16.msra.mxu0 %v2539
    %2805 = vmatprep.subr.bf16.mxu0 %v2536
    %2806 = vmatpush1.bf16.msra.mxu0 %v2535
    %2807 = vmatprep.subr.bf16.mxu0 %v2596
    %2808 = vmatpush2.bf16.msra.mxu0 %v2595
    %2809 = vmatprep.subr.bf16.mxu0 %v2592
    %2810 = vmatpush2.bf16.msra.mxu0 %v2591
    %2811 = vmatprep.subr.bf16.mxu0 %v2588
    %2812 = vmatpush2.bf16.msra.mxu0 %v2587
    %2813 = vmatprep.subr.bf16.mxu0 %v2584
    %2814 = vmatpush2.bf16.msra.mxu0 %v2583
    %2815 = vmatprep.subr.bf16.mxu0 %v2580
    %2816 = vmatpush2.bf16.msra.mxu0 %v2579
    %2817 = vmatprep.subr.bf16.mxu0 %v2576
    %2818 = vmatpush2.bf16.msra.mxu0 %v2575
    %2819 = vmatprep.subr.bf16.mxu0 %v2572
    %2820 = vmatpush2.bf16.msra.mxu0 %v2571
    %2821 = vmatprep.subr.bf16.mxu0 %v2568
    %2822 = vmatpush2.bf16.msra.mxu0 %v2567
    %2823 = vmatprep.mubr.bf16.mxu0 %v2070
    %2824 = vmatmul.mubr.bf16.gmra.mxu0 %v2058
    %v2825 = vpop.f32.mrf.mxu0
    %v2826 = vadd.f32 0.0, %v2825
    %v2827 = vpop.f32.mrf.mxu0
    %v2828 = vadd.f32 0.0, %v2827
    %v2829 = vpop.f32.mrf.mxu0
    %v2830 = vadd.f32 0.0, %v2829
    %v2831 = vpop.f32.mrf.mxu0
    %v2832 = vadd.f32 0.0, %v2831
    %2833 = vmatprep.mubr.bf16.mxu0 %v2110
    %2834 = vmatmul.mubr.bf16.gmra.mxu0 %v2102
    %v2835 = vpop.f32.mrf.mxu0
    %v2836 = vadd.f32 0.0, %v2835
    %v2837 = vpop.f32.mrf.mxu0
    %v2838 = vadd.f32 0.0, %v2837
    %v2839 = vpop.f32.mrf.mxu0
    %v2840 = vadd.f32 0.0, %v2839
    %v2841 = vpop.f32.mrf.mxu0
    %v2842 = vadd.f32 0.0, %v2841
    %2843 = vmatprep.mubr.bf16.mxu0 %v2132
    %2844 = vmatmul.mubr.bf16.gmra.mxu0 %v2129
    %v2845 = vpop.f32.mrf.mxu0
    %v2846 = vadd.f32 0.0, %v2845
    %v2847 = vpop.f32.mrf.mxu0
    %v2848 = vadd.f32 0.0, %v2847
    %v2849 = vpop.f32.mrf.mxu0
    %v2850 = vpop.f32.mrf.mxu0
    %2851 = vdwg.mxu0
    %2852 = vmatprep.subr.bf16.mxu0 %v2628
    %2853 = vmatpush1.bf16.msra.mxu0 %v2627
    %2854 = vmatprep.subr.bf16.mxu0 %v2624
    %2855 = vmatpush1.bf16.msra.mxu0 %v2623
    %2856 = vmatprep.subr.bf16.mxu0 %v2620
    %2857 = vmatpush1.bf16.msra.mxu0 %v2619
    %2858 = vmatprep.subr.bf16.mxu0 %v2616
    %2859 = vmatpush1.bf16.msra.mxu0 %v2615
    %2860 = vmatprep.subr.bf16.mxu0 %v2612
    %2861 = vmatpush1.bf16.msra.mxu0 %v2611
    %2862 = vmatprep.subr.bf16.mxu0 %v2608
    %2863 = vmatpush1.bf16.msra.mxu0 %v2607
    %2864 = vmatprep.subr.bf16.mxu0 %v2604
    %2865 = vmatpush1.bf16.msra.mxu0 %v2603
    %2866 = vmatprep.subr.bf16.mxu0 %v2600
    %2867 = vmatpush1.bf16.msra.mxu0 %v2599
    %2868 = vmatprep.subr.bf16.mxu0 %v2660
    %2869 = vmatpush2.bf16.msra.mxu0 %v2659
    %2870 = vmatprep.subr.bf16.mxu0 %v2656
    %2871 = vmatpush2.bf16.msra.mxu0 %v2655
    %2872 = vmatprep.subr.bf16.mxu0 %v2652
    %2873 = vmatpush2.bf16.msra.mxu0 %v2651
    %2874 = vmatprep.subr.bf16.mxu0 %v2648
    %2875 = vmatpush2.bf16.msra.mxu0 %v2647
    %2876 = vmatprep.subr.bf16.mxu0 %v2644
    %2877 = vmatpush2.bf16.msra.mxu0 %v2643
    %2878 = vmatprep.subr.bf16.mxu0 %v2640
    %2879 = vmatpush2.bf16.msra.mxu0 %v2639
    %2880 = vmatprep.subr.bf16.mxu0 %v2636
    %2881 = vmatpush2.bf16.msra.mxu0 %v2635
    %2882 = vmatprep.subr.bf16.mxu0 %v2632
    %2883 = vmatpush2.bf16.msra.mxu0 %v2631
    %2884 = vmatprep.mubr.bf16.mxu0 %v2094
    %2885 = vmatmul.mubr.bf16.gmra.mxu0 %v2082
    %v2886 = vpop.f32.mrf.mxu0
    %v2887 = vadd.f32 %v2826, %v2886
    %v2888 = vpop.f32.mrf.mxu0
    %v2889 = vadd.f32 %v2828, %v2888
    %v2890 = vpop.f32.mrf.mxu0
    %v2891 = vadd.f32 %v2830, %v2890
    %v2892 = vpop.f32.mrf.mxu0
    %v2893 = vadd.f32 %v2832, %v2892
    %2894 = vmatprep.mubr.bf16.mxu0 %v2126
    %2895 = vmatmul.mubr.bf16.gmra.mxu0 %v2118
    %v2896 = vpop.f32.mrf.mxu0
    %v2897 = vadd.f32 %v2836, %v2896
    %v2898 = vpop.f32.mrf.mxu0
    %v2899 = vadd.f32 %v2838, %v2898
    %v2900 = vpop.f32.mrf.mxu0
    %v2901 = vadd.f32 %v2840, %v2900
    %v2902 = vpop.f32.mrf.mxu0
    %v2903 = vadd.f32 %v2842, %v2902
    %2904 = vmatprep.mubr.bf16.mxu0 %v2138
    %2905 = vmatmul.mubr.bf16.gmra.mxu0 %v2135
    %v2906 = vpop.f32.mrf.mxu0
    %v2907 = vadd.f32 %v2846, %v2906
    %v2908 = vpop.f32.mrf.mxu0
    %v2909 = vadd.f32 %v2848, %v2908
    %v2910 = vpop.f32.mrf.mxu0
    %v2911 = vpop.f32.mrf.mxu0
    %2912 = vdwg.mxu0
    %2913 = vmatprep.subr.bf16.mxu0 %v2566
    %2914 = vmatpush1.bf16.msra.mxu0 %v2565
    %2915 = vmatprep.subr.bf16.mxu0 %v2562
    %2916 = vmatpush1.bf16.msra.mxu0 %v2561
    %2917 = vmatprep.subr.bf16.mxu0 %v2558
    %2918 = vmatpush1.bf16.msra.mxu0 %v2557
    %2919 = vmatprep.subr.bf16.mxu0 %v2554
    %2920 = vmatpush1.bf16.msra.mxu0 %v2553
    %2921 = vmatprep.subr.bf16.mxu0 %v2550
    %2922 = vmatpush1.bf16.msra.mxu0 %v2549
    %2923 = vmatprep.subr.bf16.mxu0 %v2546
    %2924 = vmatpush1.bf16.msra.mxu0 %v2545
    %2925 = vmatprep.subr.bf16.mxu0 %v2542
    %2926 = vmatpush1.bf16.msra.mxu0 %v2541
    %2927 = vmatprep.subr.bf16.mxu0 %v2538
    %2928 = vmatpush1.bf16.msra.mxu0 %v2537
    %2929 = vmatprep.subr.bf16.mxu0 %v2598
    %2930 = vmatpush2.bf16.msra.mxu0 %v2597
    %2931 = vmatprep.subr.bf16.mxu0 %v2594
    %2932 = vmatpush2.bf16.msra.mxu0 %v2593
    %2933 = vmatprep.subr.bf16.mxu0 %v2590
    %2934 = vmatpush2.bf16.msra.mxu0 %v2589
    %2935 = vmatprep.subr.bf16.mxu0 %v2586
    %2936 = vmatpush2.bf16.msra.mxu0 %v2585
    %2937 = vmatprep.subr.bf16.mxu0 %v2582
    %2938 = vmatpush2.bf16.msra.mxu0 %v2581
    %2939 = vmatprep.subr.bf16.mxu0 %v2578
    %2940 = vmatpush2.bf16.msra.mxu0 %v2577
    %2941 = vmatprep.subr.bf16.mxu0 %v2574
    %2942 = vmatpush2.bf16.msra.mxu0 %v2573
    %2943 = vmatprep.subr.bf16.mxu0 %v2570
    %2944 = vmatpush2.bf16.msra.mxu0 %v2569
    %2945 = vmatprep.mubr.bf16.mxu0 %v2070
    %2946 = vmatmul.mubr.bf16.gmra.mxu0 %v2058
    %v2947 = vpop.f32.mrf.mxu0
    %v2948 = vadd.f32 0.0, %v2947
    %v2949 = vpop.f32.mrf.mxu0
    %v2950 = vadd.f32 0.0, %v2949
    %v2951 = vpop.f32.mrf.mxu0
    %v2952 = vadd.f32 0.0, %v2951
    %v2953 = vpop.f32.mrf.mxu0
    %v2954 = vadd.f32 0.0, %v2953
    %2955 = vmatprep.mubr.bf16.mxu0 %v2110
    %2956 = vmatmul.mubr.bf16.gmra.mxu0 %v2102
    %v2957 = vpop.f32.mrf.mxu0
    %v2958 = vadd.f32 0.0, %v2957
    %v2959 = vpop.f32.mrf.mxu0
    %v2960 = vadd.f32 0.0, %v2959
    %v2961 = vpop.f32.mrf.mxu0
    %v2962 = vadd.f32 0.0, %v2961
    %v2963 = vpop.f32.mrf.mxu0
    %v2964 = vadd.f32 0.0, %v2963
    %2965 = vmatprep.mubr.bf16.mxu0 %v2132
    %2966 = vmatmul.mubr.bf16.gmra.mxu0 %v2129
    %v2967 = vpop.f32.mrf.mxu0
    %v2968 = vadd.f32 0.0, %v2967
    %v2969 = vpop.f32.mrf.mxu0
    %v2970 = vadd.f32 0.0, %v2969
    %v2971 = vpop.f32.mrf.mxu0
    %v2972 = vpop.f32.mrf.mxu0
    %2973 = vdwg.mxu0
    %2974 = vmatprep.subr.bf16.mxu0 %v2630
    %2975 = vmatpush1.bf16.msra.mxu0 %v2629
    %2976 = vmatprep.subr.bf16.mxu0 %v2626
    %2977 = vmatpush1.bf16.msra.mxu0 %v2625
    %2978 = vmatprep.subr.bf16.mxu0 %v2622
    %2979 = vmatpush1.bf16.msra.mxu0 %v2621
    %2980 = vmatprep.subr.bf16.mxu0 %v2618
    %2981 = vmatpush1.bf16.msra.mxu0 %v2617
    %2982 = vmatprep.subr.bf16.mxu0 %v2614
    %2983 = vmatpush1.bf16.msra.mxu0 %v2613
    %2984 = vmatprep.subr.bf16.mxu0 %v2610
    %2985 = vmatpush1.bf16.msra.mxu0 %v2609
    %2986 = vmatprep.subr.bf16.mxu0 %v2606
    %2987 = vmatpush1.bf16.msra.mxu0 %v2605
    %2988 = vmatprep.subr.bf16.mxu0 %v2602
    %2989 = vmatpush1.bf16.msra.mxu0 %v2601
    %2990 = vmatprep.subr.bf16.mxu0 %v2662
    %2991 = vmatpush2.bf16.msra.mxu0 %v2661
    %2992 = vmatprep.subr.bf16.mxu0 %v2658
    %2993 = vmatpush2.bf16.msra.mxu0 %v2657
    %2994 = vmatprep.subr.bf16.mxu0 %v2654
    %2995 = vmatpush2.bf16.msra.mxu0 %v2653
    %2996 = vmatprep.subr.bf16.mxu0 %v2650
    %2997 = vmatpush2.bf16.msra.mxu0 %v2649
    %2998 = vmatprep.subr.bf16.mxu0 %v2646
    %2999 = vmatpush2.bf16.msra.mxu0 %v2645
    %3000 = vmatprep.subr.bf16.mxu0 %v2642
    %3001 = vmatpush2.bf16.msra.mxu0 %v2641
    %3002 = vmatprep.subr.bf16.mxu0 %v2638
    %3003 = vmatpush2.bf16.msra.mxu0 %v2637
    %3004 = vmatprep.subr.bf16.mxu0 %v2634
    %3005 = vmatpush2.bf16.msra.mxu0 %v2633
    %3006 = vmatprep.mubr.bf16.mxu0 %v2094
    %3007 = vmatmul.mubr.bf16.gmra.mxu0 %v2082
    %v3008 = vpop.f32.mrf.mxu0
    %v3009 = vadd.f32 %v2948, %v3008
    %v3010 = vpop.f32.mrf.mxu0
    %v3011 = vadd.f32 %v2950, %v3010
    %v3012 = vpop.f32.mrf.mxu0
    %v3013 = vadd.f32 %v2952, %v3012
    %v3014 = vpop.f32.mrf.mxu0
    %v3015 = vadd.f32 %v2954, %v3014
    %3016 = vmatprep.mubr.bf16.mxu0 %v2126
    %3017 = vmatmul.mubr.bf16.gmra.mxu0 %v2118
    %v3018 = vpop.f32.mrf.mxu0
    %v3019 = vadd.f32 %v2958, %v3018
    %v3020 = vpop.f32.mrf.mxu0
    %v3021 = vadd.f32 %v2960, %v3020
    %v3022 = vpop.f32.mrf.mxu0
    %v3023 = vadd.f32 %v2962, %v3022
    %v3024 = vpop.f32.mrf.mxu0
    %v3025 = vadd.f32 %v2964, %v3024
    %3026 = vmatprep.mubr.bf16.mxu0 %v2138
    %3027 = vmatmul.mubr.bf16.gmra.mxu0 %v2135
    %v3028 = vpop.f32.mrf.mxu0
    %v3029 = vadd.f32 %v2968, %v3028
    %v3030 = vpop.f32.mrf.mxu0
    %v3031 = vadd.f32 %v2970, %v3030
    %v3032 = vpop.f32.mrf.mxu0
    %v3033 = vpop.f32.mrf.mxu0
    %3034 = vdwg.mxu0
    %v3163 = vunpack.c.l.b16 %v1773
    %v3164 = vunpack.c.h.b16 %v1773
    %v3165 = vunpack.c.l.b16 %v1774
    %v3166 = vunpack.c.h.b16 %v1774
    %v3167 = vunpack.c.l.b16 %v1775
    %v3168 = vunpack.c.h.b16 %v1775
    %v3169 = vunpack.c.l.b16 %v1776
    %v3170 = vunpack.c.h.b16 %v1776
    %v3171 = vunpack.c.l.b16 %v1777
    %v3172 = vunpack.c.h.b16 %v1777
    %v3173 = vunpack.c.l.b16 %v1778
    %v3174 = vunpack.c.h.b16 %v1778
    %v3175 = vunpack.c.l.b16 %v1779
    %v3176 = vunpack.c.h.b16 %v1779
    %v3177 = vunpack.c.l.b16 %v1780
    %v3178 = vunpack.c.h.b16 %v1780
    %v3179 = vunpack.c.l.b16 %v1781
    %v3180 = vunpack.c.h.b16 %v1781
    %v3181 = vunpack.c.l.b16 %v1782
    %v3182 = vunpack.c.h.b16 %v1782
    %v3183 = vunpack.c.l.b16 %v1783
    %v3184 = vunpack.c.h.b16 %v1783
    %v3185 = vunpack.c.l.b16 %v1784
    %v3186 = vunpack.c.h.b16 %v1784
    %v3187 = vunpack.c.l.b16 %v1785
    %v3188 = vunpack.c.h.b16 %v1785
    %v3189 = vunpack.c.l.b16 %v1786
    %v3190 = vunpack.c.h.b16 %v1786
    %v3191 = vunpack.c.l.b16 %v1787
    %v3192 = vunpack.c.h.b16 %v1787
    %v3193 = vunpack.c.l.b16 %v1788
    %v3194 = vunpack.c.h.b16 %v1788
    %v3195 = vunpack.c.l.b16 %v1789
    %v3196 = vunpack.c.h.b16 %v1789
    %v3197 = vunpack.c.l.b16 %v1790
    %v3198 = vunpack.c.h.b16 %v1790
    %v3199 = vunpack.c.l.b16 %v1791
    %v3200 = vunpack.c.h.b16 %v1791
    %v3201 = vunpack.c.l.b16 %v1792
    %v3202 = vunpack.c.h.b16 %v1792
    %v3203 = vunpack.c.l.b16 %v1793
    %v3204 = vunpack.c.h.b16 %v1793
    %v3205 = vunpack.c.l.b16 %v1794
    %v3206 = vunpack.c.h.b16 %v1794
    %v3207 = vunpack.c.l.b16 %v1795
    %v3208 = vunpack.c.h.b16 %v1795
    %v3209 = vunpack.c.l.b16 %v1796
    %v3210 = vunpack.c.h.b16 %v1796
    %v3211 = vunpack.c.l.b16 %v1797
    %v3212 = vunpack.c.h.b16 %v1797
    %v3213 = vunpack.c.l.b16 %v1798
    %v3214 = vunpack.c.h.b16 %v1798
    %v3215 = vunpack.c.l.b16 %v1799
    %v3216 = vunpack.c.h.b16 %v1799
    %v3217 = vunpack.c.l.b16 %v1800
    %v3218 = vunpack.c.h.b16 %v1800
    %v3219 = vunpack.c.l.b16 %v1801
    %v3220 = vunpack.c.h.b16 %v1801
    %v3221 = vunpack.c.l.b16 %v1802
    %v3222 = vunpack.c.h.b16 %v1802
    %v3223 = vunpack.c.l.b16 %v1803
    %v3224 = vunpack.c.h.b16 %v1803
    %v3225 = vunpack.c.l.b16 %v1804
    %v3226 = vunpack.c.h.b16 %v1804
    %v3227 = vunpack.c.l.b16 %v1805
    %v3228 = vunpack.c.h.b16 %v1805
    %v3229 = vunpack.c.l.b16 %v1806
    %v3230 = vunpack.c.h.b16 %v1806
    %v3231 = vunpack.c.l.b16 %v1807
    %v3232 = vunpack.c.h.b16 %v1807
    %v3233 = vunpack.c.l.b16 %v1808
    %v3234 = vunpack.c.h.b16 %v1808
    %v3235 = vunpack.c.l.b16 %v1809
    %v3236 = vunpack.c.h.b16 %v1809
    %v3237 = vunpack.c.l.b16 %v1810
    %v3238 = vunpack.c.h.b16 %v1810
    %v3239 = vunpack.c.l.b16 %v1811
    %v3240 = vunpack.c.h.b16 %v1811
    %v3241 = vunpack.c.l.b16 %v1812
    %v3242 = vunpack.c.h.b16 %v1812
    %v3243 = vunpack.c.l.b16 %v1813
    %v3244 = vunpack.c.h.b16 %v1813
    %v3245 = vunpack.c.l.b16 %v1814
    %v3246 = vunpack.c.h.b16 %v1814
    %v3247 = vunpack.c.l.b16 %v1815
    %v3248 = vunpack.c.h.b16 %v1815
    %v3249 = vunpack.c.l.b16 %v1816
    %v3250 = vunpack.c.h.b16 %v1816
    %v3251 = vunpack.c.l.b16 %v1817
    %v3252 = vunpack.c.h.b16 %v1817
    %v3253 = vunpack.c.l.b16 %v1818
    %v3254 = vunpack.c.h.b16 %v1818
    %v3255 = vunpack.c.l.b16 %v1819
    %v3256 = vunpack.c.h.b16 %v1819
    %v3257 = vunpack.c.l.b16 %v1820
    %v3258 = vunpack.c.h.b16 %v1820
    %v3259 = vunpack.c.l.b16 %v1821
    %v3260 = vunpack.c.h.b16 %v1821
    %v3261 = vunpack.c.l.b16 %v1822
    %v3262 = vunpack.c.h.b16 %v1822
    %v3263 = vunpack.c.l.b16 %v1823
    %v3264 = vunpack.c.h.b16 %v1823
    %v3265 = vunpack.c.l.b16 %v1824
    %v3266 = vunpack.c.h.b16 %v1824
    %v3267 = vunpack.c.l.b16 %v1825
    %v3268 = vunpack.c.h.b16 %v1825
    %v3269 = vunpack.c.l.b16 %v1826
    %v3270 = vunpack.c.h.b16 %v1826
    %v3271 = vunpack.c.l.b16 %v1827
    %v3272 = vunpack.c.h.b16 %v1827
    %v3273 = vunpack.c.l.b16 %v1828
    %v3274 = vunpack.c.h.b16 %v1828
    %v3275 = vunpack.c.l.b16 %v1829
    %v3276 = vunpack.c.h.b16 %v1829
    %v3277 = vunpack.c.l.b16 %v1830
    %v3278 = vunpack.c.h.b16 %v1830
    %v3279 = vunpack.c.l.b16 %v1831
    %v3280 = vunpack.c.h.b16 %v1831
    %v3281 = vunpack.c.l.b16 %v1832
    %v3282 = vunpack.c.h.b16 %v1832
    %v3283 = vunpack.c.l.b16 %v1833
    %v3284 = vunpack.c.h.b16 %v1833
    %v3285 = vunpack.c.l.b16 %v1834
    %v3286 = vunpack.c.h.b16 %v1834
    %v3287 = vunpack.c.l.b16 %v1835
    %v3288 = vunpack.c.h.b16 %v1835
    %v3289 = vunpack.c.l.b16 %v1836
    %v3290 = vunpack.c.h.b16 %v1836
    %v3291 = vunpack.c.l.b16 %v1837
    %v3292 = vunpack.c.h.b16 %v1837
    %v3293 = vunpack.c.l.b16 %v1838
    %v3294 = vunpack.c.h.b16 %v1838
    %v3295 = vunpack.c.l.b16 %v1839
    %v3296 = vunpack.c.h.b16 %v1839
    %v3297 = vunpack.c.l.b16 %v1840
    %v3298 = vunpack.c.h.b16 %v1840
    %v3299 = vunpack.c.l.b16 %v1841
    %v3300 = vunpack.c.h.b16 %v1841
    %v3301 = vunpack.c.l.b16 %v1842
    %v3302 = vunpack.c.h.b16 %v1842
    %v3303 = vunpack.c.l.b16 %v1843
    %v3304 = vunpack.c.h.b16 %v1843
    %v3305 = vunpack.c.l.b16 %v1844
    %v3306 = vunpack.c.h.b16 %v1844
    %v3307 = vunpack.c.l.b16 %v1845
    %v3308 = vunpack.c.h.b16 %v1845
    %v3309 = vunpack.c.l.b16 %v1846
    %v3310 = vunpack.c.h.b16 %v1846
    %v3311 = vunpack.c.l.b16 %v1847
    %v3312 = vunpack.c.h.b16 %v1847
    %v3313 = vunpack.c.l.b16 %v1848
    %v3314 = vunpack.c.h.b16 %v1848
    %v3315 = vunpack.c.l.b16 %v1849
    %v3316 = vunpack.c.h.b16 %v1849
    %v3317 = vunpack.c.l.b16 %v1850
    %v3318 = vunpack.c.h.b16 %v1850
    %v3319 = vunpack.c.l.b16 %v1851
    %v3320 = vunpack.c.h.b16 %v1851
    %v3321 = vunpack.c.l.b16 %v1852
    %v3322 = vunpack.c.h.b16 %v1852
    %v3323 = vunpack.c.l.b16 %v1853
    %v3324 = vunpack.c.h.b16 %v1853
    %v3325 = vunpack.c.l.b16 %v1854
    %v3326 = vunpack.c.h.b16 %v1854
    %v3327 = vunpack.c.l.b16 %v1855
    %v3328 = vunpack.c.h.b16 %v1855
    %v3329 = vunpack.c.l.b16 %v1856
    %v3330 = vunpack.c.h.b16 %v1856
    %v3331 = vunpack.c.l.b16 %v1857
    %v3332 = vunpack.c.h.b16 %v1857
    %v3333 = vunpack.c.l.b16 %v1858
    %v3334 = vunpack.c.h.b16 %v1858
    %v3335 = vunpack.c.l.b16 %v1859
    %v3336 = vunpack.c.h.b16 %v1859
    %v3337 = vunpack.c.l.b16 %v1860
    %v3338 = vunpack.c.h.b16 %v1860
    %v3339 = vunpack.c.l.b16 %v1861
    %v3340 = vunpack.c.h.b16 %v1861
    %v3341 = vunpack.c.l.b16 %v1862
    %v3342 = vunpack.c.h.b16 %v1862
    %v3343 = vunpack.c.l.b16 %v1863
    %v3344 = vunpack.c.h.b16 %v1863
    %v3345 = vunpack.c.l.b16 %v1864
    %v3346 = vunpack.c.h.b16 %v1864
    %v3347 = vunpack.c.l.b16 %v1865
    %v3348 = vunpack.c.h.b16 %v1865
    %v3349 = vunpack.c.l.b16 %v1866
    %v3350 = vunpack.c.h.b16 %v1866
    %v3351 = vunpack.c.l.b16 %v1867
    %v3352 = vunpack.c.h.b16 %v1867
    %v3353 = vunpack.c.l.b16 %v1868
    %v3354 = vunpack.c.h.b16 %v1868
    %v3355 = vunpack.c.l.b16 %v1869
    %v3356 = vunpack.c.h.b16 %v1869
    %v3357 = vunpack.c.l.b16 %v1870
    %v3358 = vunpack.c.h.b16 %v1870
    %v3359 = vunpack.c.l.b16 %v1871
    %v3360 = vunpack.c.h.b16 %v1871
    %v3361 = vunpack.c.l.b16 %v1872
    %v3362 = vunpack.c.h.b16 %v1872
    %v3363 = vunpack.c.l.b16 %v1873
    %v3364 = vunpack.c.h.b16 %v1873
    %v3365 = vunpack.c.l.b16 %v1874
    %v3366 = vunpack.c.h.b16 %v1874
    %v3367 = vunpack.c.l.b16 %v1875
    %v3368 = vunpack.c.h.b16 %v1875
    %v3369 = vunpack.c.l.b16 %v1876
    %v3370 = vunpack.c.h.b16 %v1876
    %v3371 = vunpack.c.l.b16 %v1877
    %v3372 = vunpack.c.h.b16 %v1877
    %v3373 = vunpack.c.l.b16 %v1878
    %v3374 = vunpack.c.h.b16 %v1878
    %v3375 = vunpack.c.l.b16 %v1879
    %v3376 = vunpack.c.h.b16 %v1879
    %v3377 = vunpack.c.l.b16 %v1880
    %v3378 = vunpack.c.h.b16 %v1880
    %v3379 = vunpack.c.l.b16 %v1881
    %v3380 = vunpack.c.h.b16 %v1881
    %v3381 = vunpack.c.l.b16 %v1882
    %v3382 = vunpack.c.h.b16 %v1882
    %v3383 = vunpack.c.l.b16 %v1883
    %v3384 = vunpack.c.h.b16 %v1883
    %v3385 = vunpack.c.l.b16 %v1884
    %v3386 = vunpack.c.h.b16 %v1884
    %v3387 = vunpack.c.l.b16 %v1885
    %v3388 = vunpack.c.h.b16 %v1885
    %v3389 = vunpack.c.l.b16 %v1886
    %v3390 = vunpack.c.h.b16 %v1886
    %v3391 = vunpack.c.l.b16 %v1887
    %v3392 = vunpack.c.h.b16 %v1887
    %v3393 = vunpack.c.l.b16 %v1888
    %v3394 = vunpack.c.h.b16 %v1888
    %v3395 = vunpack.c.l.b16 %v1889
    %v3396 = vunpack.c.h.b16 %v1889
    %v3397 = vunpack.c.l.b16 %v1890
    %v3398 = vunpack.c.h.b16 %v1890
    %v3399 = vunpack.c.l.b16 %v1891
    %v3400 = vunpack.c.h.b16 %v1891
    %v3401 = vunpack.c.l.b16 %v1892
    %v3402 = vunpack.c.h.b16 %v1892
    %v3403 = vunpack.c.l.b16 %v1893
    %v3404 = vunpack.c.h.b16 %v1893
    %v3405 = vunpack.c.l.b16 %v1894
    %v3406 = vunpack.c.h.b16 %v1894
    %v3407 = vunpack.c.l.b16 %v1895
    %v3408 = vunpack.c.h.b16 %v1895
    %v3409 = vunpack.c.l.b16 %v1896
    %v3410 = vunpack.c.h.b16 %v1896
    %v3411 = vunpack.c.l.b16 %v1897
    %v3412 = vunpack.c.h.b16 %v1897
    %v3413 = vunpack.c.l.b16 %v1898
    %v3414 = vunpack.c.h.b16 %v1898
    %v3415 = vunpack.c.l.b16 %v1899
    %v3416 = vunpack.c.h.b16 %v1899
    %v3417 = vunpack.c.l.b16 %v1900
    %v3418 = vunpack.c.h.b16 %v1900
    %v3419 = vpack.c.b16 %v3167, %v3163
    %v3420 = vpack.c.b16 %v3168, %v3164
    %v3421 = vpack.c.b16 %v3169, %v3165
    %v3422 = vpack.c.b16 %v3170, %v3166
    %v3423 = vpack.c.b16 %v3175, %v3171
    %v3424 = vpack.c.b16 %v3176, %v3172
    %v3425 = vpack.c.b16 %v3177, %v3173
    %v3426 = vpack.c.b16 %v3178, %v3174
    %v3427 = vpack.c.b16 %v3183, %v3179
    %v3428 = vpack.c.b16 %v3184, %v3180
    %v3429 = vpack.c.b16 %v3185, %v3181
    %v3430 = vpack.c.b16 %v3186, %v3182
    %v3431 = vpack.c.b16 %v3191, %v3187
    %v3432 = vpack.c.b16 %v3192, %v3188
    %v3433 = vpack.c.b16 %v3193, %v3189
    %v3434 = vpack.c.b16 %v3194, %v3190
    %v3435 = vpack.c.b16 %v3199, %v3195
    %v3436 = vpack.c.b16 %v3200, %v3196
    %v3437 = vpack.c.b16 %v3201, %v3197
    %v3438 = vpack.c.b16 %v3202, %v3198
    %v3439 = vpack.c.b16 %v3207, %v3203
    %v3440 = vpack.c.b16 %v3208, %v3204
    %v3441 = vpack.c.b16 %v3209, %v3205
    %v3442 = vpack.c.b16 %v3210, %v3206
    %v3443 = vpack.c.b16 %v3215, %v3211
    %v3444 = vpack.c.b16 %v3216, %v3212
    %v3445 = vpack.c.b16 %v3217, %v3213
    %v3446 = vpack.c.b16 %v3218, %v3214
    %v3447 = vpack.c.b16 %v3223, %v3219
    %v3448 = vpack.c.b16 %v3224, %v3220
    %v3449 = vpack.c.b16 %v3225, %v3221
    %v3450 = vpack.c.b16 %v3226, %v3222
    %v3451 = vpack.c.b16 %v3231, %v3227
    %v3452 = vpack.c.b16 %v3232, %v3228
    %v3453 = vpack.c.b16 %v3233, %v3229
    %v3454 = vpack.c.b16 %v3234, %v3230
    %v3455 = vpack.c.b16 %v3239, %v3235
    %v3456 = vpack.c.b16 %v3240, %v3236
    %v3457 = vpack.c.b16 %v3241, %v3237
    %v3458 = vpack.c.b16 %v3242, %v3238
    %v3459 = vpack.c.b16 %v3247, %v3243
    %v3460 = vpack.c.b16 %v3248, %v3244
    %v3461 = vpack.c.b16 %v3249, %v3245
    %v3462 = vpack.c.b16 %v3250, %v3246
    %v3463 = vpack.c.b16 %v3255, %v3251
    %v3464 = vpack.c.b16 %v3256, %v3252
    %v3465 = vpack.c.b16 %v3257, %v3253
    %v3466 = vpack.c.b16 %v3258, %v3254
    %v3467 = vpack.c.b16 %v3263, %v3259
    %v3468 = vpack.c.b16 %v3264, %v3260
    %v3469 = vpack.c.b16 %v3265, %v3261
    %v3470 = vpack.c.b16 %v3266, %v3262
    %v3471 = vpack.c.b16 %v3271, %v3267
    %v3472 = vpack.c.b16 %v3272, %v3268
    %v3473 = vpack.c.b16 %v3273, %v3269
    %v3474 = vpack.c.b16 %v3274, %v3270
    %v3475 = vpack.c.b16 %v3279, %v3275
    %v3476 = vpack.c.b16 %v3280, %v3276
    %v3477 = vpack.c.b16 %v3281, %v3277
    %v3478 = vpack.c.b16 %v3282, %v3278
    %v3479 = vpack.c.b16 %v3287, %v3283
    %v3480 = vpack.c.b16 %v3288, %v3284
    %v3481 = vpack.c.b16 %v3289, %v3285
    %v3482 = vpack.c.b16 %v3290, %v3286
    %v3483 = vpack.c.b16 %v3295, %v3291
    %v3484 = vpack.c.b16 %v3296, %v3292
    %v3485 = vpack.c.b16 %v3297, %v3293
    %v3486 = vpack.c.b16 %v3298, %v3294
    %v3487 = vpack.c.b16 %v3303, %v3299
    %v3488 = vpack.c.b16 %v3304, %v3300
    %v3489 = vpack.c.b16 %v3305, %v3301
    %v3490 = vpack.c.b16 %v3306, %v3302
    %v3491 = vpack.c.b16 %v3311, %v3307
    %v3492 = vpack.c.b16 %v3312, %v3308
    %v3493 = vpack.c.b16 %v3313, %v3309
    %v3494 = vpack.c.b16 %v3314, %v3310
    %v3495 = vpack.c.b16 %v3319, %v3315
    %v3496 = vpack.c.b16 %v3320, %v3316
    %v3497 = vpack.c.b16 %v3321, %v3317
    %v3498 = vpack.c.b16 %v3322, %v3318
    %v3499 = vpack.c.b16 %v3327, %v3323
    %v3500 = vpack.c.b16 %v3328, %v3324
    %v3501 = vpack.c.b16 %v3329, %v3325
    %v3502 = vpack.c.b16 %v3330, %v3326
    %v3503 = vpack.c.b16 %v3335, %v3331
    %v3504 = vpack.c.b16 %v3336, %v3332
    %v3505 = vpack.c.b16 %v3337, %v3333
    %v3506 = vpack.c.b16 %v3338, %v3334
    %v3507 = vpack.c.b16 %v3343, %v3339
    %v3508 = vpack.c.b16 %v3344, %v3340
    %v3509 = vpack.c.b16 %v3345, %v3341
    %v3510 = vpack.c.b16 %v3346, %v3342
    %v3511 = vpack.c.b16 %v3351, %v3347
    %v3512 = vpack.c.b16 %v3352, %v3348
    %v3513 = vpack.c.b16 %v3353, %v3349
    %v3514 = vpack.c.b16 %v3354, %v3350
    %v3515 = vpack.c.b16 %v3359, %v3355
    %v3516 = vpack.c.b16 %v3360, %v3356
    %v3517 = vpack.c.b16 %v3361, %v3357
    %v3518 = vpack.c.b16 %v3362, %v3358
    %v3519 = vpack.c.b16 %v3367, %v3363
    %v3520 = vpack.c.b16 %v3368, %v3364
    %v3521 = vpack.c.b16 %v3369, %v3365
    %v3522 = vpack.c.b16 %v3370, %v3366
    %v3523 = vpack.c.b16 %v3375, %v3371
    %v3524 = vpack.c.b16 %v3376, %v3372
    %v3525 = vpack.c.b16 %v3377, %v3373
    %v3526 = vpack.c.b16 %v3378, %v3374
    %v3527 = vpack.c.b16 %v3383, %v3379
    %v3528 = vpack.c.b16 %v3384, %v3380
    %v3529 = vpack.c.b16 %v3385, %v3381
    %v3530 = vpack.c.b16 %v3386, %v3382
    %v3531 = vpack.c.b16 %v3391, %v3387
    %v3532 = vpack.c.b16 %v3392, %v3388
    %v3533 = vpack.c.b16 %v3393, %v3389
    %v3534 = vpack.c.b16 %v3394, %v3390
    %v3535 = vpack.c.b16 %v3399, %v3395
    %v3536 = vpack.c.b16 %v3400, %v3396
    %v3537 = vpack.c.b16 %v3401, %v3397
    %v3538 = vpack.c.b16 %v3402, %v3398
    %v3539 = vpack.c.b16 %v3407, %v3403
    %v3540 = vpack.c.b16 %v3408, %v3404
    %v3541 = vpack.c.b16 %v3409, %v3405
    %v3542 = vpack.c.b16 %v3410, %v3406
    %v3543 = vpack.c.b16 %v3415, %v3411
    %v3544 = vpack.c.b16 %v3416, %v3412
    %v3545 = vpack.c.b16 %v3417, %v3413
    %v3546 = vpack.c.b16 %v3418, %v3414
    %3675 = vmatprep.subr.bf16.mxu0 %v3448
    %3676 = vmatpush1.bf16.msra.mxu0 %v3447
    %3677 = vmatprep.subr.bf16.mxu0 %v3444
    %3678 = vmatpush1.bf16.msra.mxu0 %v3443
    %3679 = vmatprep.subr.bf16.mxu0 %v3440
    %3680 = vmatpush1.bf16.msra.mxu0 %v3439
    %3681 = vmatprep.subr.bf16.mxu0 %v3436
    %3682 = vmatpush1.bf16.msra.mxu0 %v3435
    %3683 = vmatprep.subr.bf16.mxu0 %v3432
    %3684 = vmatpush1.bf16.msra.mxu0 %v3431
    %3685 = vmatprep.subr.bf16.mxu0 %v3428
    %3686 = vmatpush1.bf16.msra.mxu0 %v3427
    %3687 = vmatprep.subr.bf16.mxu0 %v3424
    %3688 = vmatpush1.bf16.msra.mxu0 %v3423
    %3689 = vmatprep.subr.bf16.mxu0 %v3420
    %3690 = vmatpush1.bf16.msra.mxu0 %v3419
    %3691 = vmatprep.subr.bf16.mxu0 %v3480
    %3692 = vmatpush2.bf16.msra.mxu0 %v3479
    %3693 = vmatprep.subr.bf16.mxu0 %v3476
    %3694 = vmatpush2.bf16.msra.mxu0 %v3475
    %3695 = vmatprep.subr.bf16.mxu0 %v3472
    %3696 = vmatpush2.bf16.msra.mxu0 %v3471
    %3697 = vmatprep.subr.bf16.mxu0 %v3468
    %3698 = vmatpush2.bf16.msra.mxu0 %v3467
    %3699 = vmatprep.subr.bf16.mxu0 %v3464
    %3700 = vmatpush2.bf16.msra.mxu0 %v3463
    %3701 = vmatprep.subr.bf16.mxu0 %v3460
    %3702 = vmatpush2.bf16.msra.mxu0 %v3459
    %3703 = vmatprep.subr.bf16.mxu0 %v3456
    %3704 = vmatpush2.bf16.msra.mxu0 %v3455
    %3705 = vmatprep.subr.bf16.mxu0 %v3452
    %3706 = vmatpush2.bf16.msra.mxu0 %v3451
    %3707 = vmatprep.mubr.bf16.mxu0 %v1762
    %3708 = vmatmul.mubr.bf16.gmra.mxu0 %v1761
    %v3709 = vpop.f32.mrf.mxu0
    %v3710 = vadd.f32 %v2887, %v3709
    %v3711 = vpop.f32.mrf.mxu0
    %v3712 = vadd.f32 %v2889, %v3711
    %v3713 = vpop.f32.mrf.mxu0
    %v3714 = vadd.f32 %v2891, %v3713
    %v3715 = vpop.f32.mrf.mxu0
    %v3716 = vadd.f32 %v2893, %v3715
    %3717 = vmatprep.mubr.bf16.mxu0 %v1766
    %3718 = vmatmul.mubr.bf16.gmra.mxu0 %v1765
    %v3719 = vpop.f32.mrf.mxu0
    %v3720 = vadd.f32 %v2897, %v3719
    %v3721 = vpop.f32.mrf.mxu0
    %v3722 = vadd.f32 %v2899, %v3721
    %v3723 = vpop.f32.mrf.mxu0
    %v3724 = vadd.f32 %v2901, %v3723
    %v3725 = vpop.f32.mrf.mxu0
    %v3726 = vadd.f32 %v2903, %v3725
    %3727 = vmatprep.mubr.bf16.mxu0 %v1770
    %3728 = vmatmul.mubr.bf16.gmra.mxu0 %v1769
    %v3729 = vpop.f32.mrf.mxu0
    %v3730 = vadd.f32 %v2907, %v3729
    %v3731 = vpop.f32.mrf.mxu0
    %v3732 = vadd.f32 %v2909, %v3731
    %v3733 = vpop.f32.mrf.mxu0
    %v3734 = vpop.f32.mrf.mxu0
    %3735 = vdwg.mxu0
    %3736 = vmatprep.subr.bf16.mxu0 %v3512
    %3737 = vmatpush1.bf16.msra.mxu0 %v3511
    %3738 = vmatprep.subr.bf16.mxu0 %v3508
    %3739 = vmatpush1.bf16.msra.mxu0 %v3507
    %3740 = vmatprep.subr.bf16.mxu0 %v3504
    %3741 = vmatpush1.bf16.msra.mxu0 %v3503
    %3742 = vmatprep.subr.bf16.mxu0 %v3500
    %3743 = vmatpush1.bf16.msra.mxu0 %v3499
    %3744 = vmatprep.subr.bf16.mxu0 %v3496
    %3745 = vmatpush1.bf16.msra.mxu0 %v3495
    %3746 = vmatprep.subr.bf16.mxu0 %v3492
    %3747 = vmatpush1.bf16.msra.mxu0 %v3491
    %3748 = vmatprep.subr.bf16.mxu0 %v3488
    %3749 = vmatpush1.bf16.msra.mxu0 %v3487
    %3750 = vmatprep.subr.bf16.mxu0 %v3484
    %3751 = vmatpush1.bf16.msra.mxu0 %v3483
    %3752 = vmatprep.subr.bf16.mxu0 %v3544
    %3753 = vmatpush2.bf16.msra.mxu0 %v3543
    %3754 = vmatprep.subr.bf16.mxu0 %v3540
    %3755 = vmatpush2.bf16.msra.mxu0 %v3539
    %3756 = vmatprep.subr.bf16.mxu0 %v3536
    %3757 = vmatpush2.bf16.msra.mxu0 %v3535
    %3758 = vmatprep.subr.bf16.mxu0 %v3532
    %3759 = vmatpush2.bf16.msra.mxu0 %v3531
    %3760 = vmatprep.subr.bf16.mxu0 %v3528
    %3761 = vmatpush2.bf16.msra.mxu0 %v3527
    %3762 = vmatprep.subr.bf16.mxu0 %v3524
    %3763 = vmatpush2.bf16.msra.mxu0 %v3523
    %3764 = vmatprep.subr.bf16.mxu0 %v3520
    %3765 = vmatpush2.bf16.msra.mxu0 %v3519
    %3766 = vmatprep.subr.bf16.mxu0 %v3516
    %3767 = vmatpush2.bf16.msra.mxu0 %v3515
    %3768 = vmatprep.mubr.bf16.mxu0 %v1764
    %3769 = vmatmul.mubr.bf16.gmra.mxu0 %v1763
    %v3770 = vpop.f32.mrf.mxu0
    %v3771 = vadd.f32 %v3710, %v3770
    %v3772 = vpop.f32.mrf.mxu0
    %v3773 = vadd.f32 %v3712, %v3772
    %v3774 = vpop.f32.mrf.mxu0
    %v3775 = vadd.f32 %v3714, %v3774
    %v3776 = vpop.f32.mrf.mxu0
    %v3777 = vadd.f32 %v3716, %v3776
    %3778 = vmatprep.mubr.bf16.mxu0 %v1768
    %3779 = vmatmul.mubr.bf16.gmra.mxu0 %v1767
    %v3780 = vpop.f32.mrf.mxu0
    %v3781 = vadd.f32 %v3720, %v3780
    %v3782 = vpop.f32.mrf.mxu0
    %v3783 = vadd.f32 %v3722, %v3782
    %v3784 = vpop.f32.mrf.mxu0
    %v3785 = vadd.f32 %v3724, %v3784
    %v3786 = vpop.f32.mrf.mxu0
    %v3787 = vadd.f32 %v3726, %v3786
    %3788 = vmatprep.mubr.bf16.mxu0 %v1772
    %3789 = vmatmul.mubr.bf16.gmra.mxu0 %v1771
    %v3790 = vpop.f32.mrf.mxu0
    %v3791 = vadd.f32 %v3730, %v3790
    %v3792 = vpop.f32.mrf.mxu0
    %v3793 = vadd.f32 %v3732, %v3792
    %v3794 = vpop.f32.mrf.mxu0
    %v3795 = vpop.f32.mrf.mxu0
    %3796 = vdwg.mxu0
    %3797 = vmatprep.subr.bf16.mxu0 %v3450
    %3798 = vmatpush1.bf16.msra.mxu0 %v3449
    %3799 = vmatprep.subr.bf16.mxu0 %v3446
    %3800 = vmatpush1.bf16.msra.mxu0 %v3445
    %3801 = vmatprep.subr.bf16.mxu0 %v3442
    %3802 = vmatpush1.bf16.msra.mxu0 %v3441
    %3803 = vmatprep.subr.bf16.mxu0 %v3438
    %3804 = vmatpush1.bf16.msra.mxu0 %v3437
    %3805 = vmatprep.subr.bf16.mxu0 %v3434
    %3806 = vmatpush1.bf16.msra.mxu0 %v3433
    %3807 = vmatprep.subr.bf16.mxu0 %v3430
    %3808 = vmatpush1.bf16.msra.mxu0 %v3429
    %3809 = vmatprep.subr.bf16.mxu0 %v3426
    %3810 = vmatpush1.bf16.msra.mxu0 %v3425
    %3811 = vmatprep.subr.bf16.mxu0 %v3422
    %3812 = vmatpush1.bf16.msra.mxu0 %v3421
    %3813 = vmatprep.subr.bf16.mxu0 %v3482
    %3814 = vmatpush2.bf16.msra.mxu0 %v3481
    %3815 = vmatprep.subr.bf16.mxu0 %v3478
    %3816 = vmatpush2.bf16.msra.mxu0 %v3477
    %3817 = vmatprep.subr.bf16.mxu0 %v3474
    %3818 = vmatpush2.bf16.msra.mxu0 %v3473
    %3819 = vmatprep.subr.bf16.mxu0 %v3470
    %3820 = vmatpush2.bf16.msra.mxu0 %v3469
    %3821 = vmatprep.subr.bf16.mxu0 %v3466
    %3822 = vmatpush2.bf16.msra.mxu0 %v3465
    %3823 = vmatprep.subr.bf16.mxu0 %v3462
    %3824 = vmatpush2.bf16.msra.mxu0 %v3461
    %3825 = vmatprep.subr.bf16.mxu0 %v3458
    %3826 = vmatpush2.bf16.msra.mxu0 %v3457
    %3827 = vmatprep.subr.bf16.mxu0 %v3454
    %3828 = vmatpush2.bf16.msra.mxu0 %v3453
    %3829 = vmatprep.mubr.bf16.mxu0 %v1762
    %3830 = vmatmul.mubr.bf16.gmra.mxu0 %v1761
    %v3831 = vpop.f32.mrf.mxu0
    %v3832 = vadd.f32 %v3009, %v3831
    %v3833 = vpop.f32.mrf.mxu0
    %v3834 = vadd.f32 %v3011, %v3833
    %v3835 = vpop.f32.mrf.mxu0
    %v3836 = vadd.f32 %v3013, %v3835
    %v3837 = vpop.f32.mrf.mxu0
    %v3838 = vadd.f32 %v3015, %v3837
    %3839 = vmatprep.mubr.bf16.mxu0 %v1766
    %3840 = vmatmul.mubr.bf16.gmra.mxu0 %v1765
    %v3841 = vpop.f32.mrf.mxu0
    %v3842 = vadd.f32 %v3019, %v3841
    %v3843 = vpop.f32.mrf.mxu0
    %v3844 = vadd.f32 %v3021, %v3843
    %v3845 = vpop.f32.mrf.mxu0
    %v3846 = vadd.f32 %v3023, %v3845
    %v3847 = vpop.f32.mrf.mxu0
    %v3848 = vadd.f32 %v3025, %v3847
    %3849 = vmatprep.mubr.bf16.mxu0 %v1770
    %3850 = vmatmul.mubr.bf16.gmra.mxu0 %v1769
    %v3851 = vpop.f32.mrf.mxu0
    %v3852 = vadd.f32 %v3029, %v3851
    %v3853 = vpop.f32.mrf.mxu0
    %v3854 = vadd.f32 %v3031, %v3853
    %v3855 = vpop.f32.mrf.mxu0
    %v3856 = vpop.f32.mrf.mxu0
    %3857 = vdwg.mxu0
    %3858 = vmatprep.subr.bf16.mxu0 %v3514
    %3859 = vmatpush1.bf16.msra.mxu0 %v3513
    %3860 = vmatprep.subr.bf16.mxu0 %v3510
    %3861 = vmatpush1.bf16.msra.mxu0 %v3509
    %3862 = vmatprep.subr.bf16.mxu0 %v3506
    %3863 = vmatpush1.bf16.msra.mxu0 %v3505
    %3864 = vmatprep.subr.bf16.mxu0 %v3502
    %3865 = vmatpush1.bf16.msra.mxu0 %v3501
    %3866 = vmatprep.subr.bf16.mxu0 %v3498
    %3867 = vmatpush1.bf16.msra.mxu0 %v3497
    %3868 = vmatprep.subr.bf16.mxu0 %v3494
    %3869 = vmatpush1.bf16.msra.mxu0 %v3493
    %3870 = vmatprep.subr.bf16.mxu0 %v3490
    %3871 = vmatpush1.bf16.msra.mxu0 %v3489
    %3872 = vmatprep.subr.bf16.mxu0 %v3486
    %3873 = vmatpush1.bf16.msra.mxu0 %v3485
    %3874 = vmatprep.subr.bf16.mxu0 %v3546
    %3875 = vmatpush2.bf16.msra.mxu0 %v3545
    %3876 = vmatprep.subr.bf16.mxu0 %v3542
    %3877 = vmatpush2.bf16.msra.mxu0 %v3541
    %3878 = vmatprep.subr.bf16.mxu0 %v3538
    %3879 = vmatpush2.bf16.msra.mxu0 %v3537
    %3880 = vmatprep.subr.bf16.mxu0 %v3534
    %3881 = vmatpush2.bf16.msra.mxu0 %v3533
    %3882 = vmatprep.subr.bf16.mxu0 %v3530
    %3883 = vmatpush2.bf16.msra.mxu0 %v3529
    %3884 = vmatprep.subr.bf16.mxu0 %v3526
    %3885 = vmatpush2.bf16.msra.mxu0 %v3525
    %3886 = vmatprep.subr.bf16.mxu0 %v3522
    %3887 = vmatpush2.bf16.msra.mxu0 %v3521
    %3888 = vmatprep.subr.bf16.mxu0 %v3518
    %3889 = vmatpush2.bf16.msra.mxu0 %v3517
    %3890 = vmatprep.mubr.bf16.mxu0 %v1764
    %3891 = vmatmul.mubr.bf16.gmra.mxu0 %v1763
    %v3892 = vpop.f32.mrf.mxu0
    %v3893 = vadd.f32 %v3832, %v3892
    %v3894 = vpop.f32.mrf.mxu0
    %v3895 = vadd.f32 %v3834, %v3894
    %v3896 = vpop.f32.mrf.mxu0
    %v3897 = vadd.f32 %v3836, %v3896
    %v3898 = vpop.f32.mrf.mxu0
    %v3899 = vadd.f32 %v3838, %v3898
    %3900 = vmatprep.mubr.bf16.mxu0 %v1768
    %3901 = vmatmul.mubr.bf16.gmra.mxu0 %v1767
    %v3902 = vpop.f32.mrf.mxu0
    %v3903 = vadd.f32 %v3842, %v3902
    %v3904 = vpop.f32.mrf.mxu0
    %v3905 = vadd.f32 %v3844, %v3904
    %v3906 = vpop.f32.mrf.mxu0
    %v3907 = vadd.f32 %v3846, %v3906
    %v3908 = vpop.f32.mrf.mxu0
    %v3909 = vadd.f32 %v3848, %v3908
    %3910 = vmatprep.mubr.bf16.mxu0 %v1772
    %3911 = vmatmul.mubr.bf16.gmra.mxu0 %v1771
    %v3912 = vpop.f32.mrf.mxu0
    %v3913 = vadd.f32 %v3852, %v3912
    %v3914 = vpop.f32.mrf.mxu0
    %v3915 = vadd.f32 %v3854, %v3914
    %v3916 = vpop.f32.mrf.mxu0
    %v3917 = vpop.f32.mrf.mxu0
    %3918 = vdwg.mxu0
    %v3919 = vld [vmem:[#allocation2] sm:$0xfc]
    %v3920 = vld [vmem:[#allocation2 + $0x8] sm:$0xfc]
    %v3921 = vld [vmem:[#allocation2 + $0x10] sm:$0xfc]
    %v3922 = vld [vmem:[#allocation2 + $0x18] sm:$0xfc]
    %v3923 = vld [vmem:[#allocation2 + $0x80] sm:$0xf]
    %v3924 = vld [vmem:[#allocation2 + $0x88] sm:$0xf]
    %v3925 = vld [vmem:[#allocation2 + $0x90] sm:$0xf]
    %v3926 = vld [vmem:[#allocation2 + $0x98] sm:$0xf]
    %v3927 = vpack.c.bf16 %v1745, %v3919
    %v3928 = vpack.c.bf16 %v1746, %v3920
    %v3929 = vpack.c.bf16 %v1747, %v3921
    %v3930 = vpack.c.bf16 %v1748, %v3922
    %v3931 = vpack.c.bf16 %v3923, %v3923
    %v3932 = vpack.c.bf16 %v3924, %v3924
    %v3933 = vpack.c.bf16 %v3925, %v3925
    %v3934 = vpack.c.bf16 %v3926, %v3926
    %s3935 = scalar_lea.vmem [#allocation6], 2048
    %v3936 = vld [vmem:[%s3935] sm:$0xff]
    %v3937 = vld [vmem:[%s3935 + $0x8] sm:$0xff]
    %v3938 = vld [vmem:[%s3935 + $0x10] sm:$0xff]
    %v3939 = vld [vmem:[%s3935 + $0x18] sm:$0xff]
    %v3940 = vld [vmem:[%s3935 + $0x20] sm:$0xff]
    %v3941 = vld [vmem:[%s3935 + $0x28] sm:$0xff]
    %v3942 = vld [vmem:[%s3935 + $0x30] sm:$0xff]
    %v3943 = vld [vmem:[%s3935 + $0x38] sm:$0xff]
    %v3944 = vld [vmem:[%s3935 + $0x40] sm:$0xff]
    %v3945 = vld [vmem:[%s3935 + $0x48] sm:$0xff]
    %v3946 = vld [vmem:[%s3935 + $0x50] sm:$0xff]
    %v3947 = vld [vmem:[%s3935 + $0x58] sm:$0xff]
    %v3948 = vld [vmem:[%s3935 + $0x60] sm:$0xff]
    %v3949 = vld [vmem:[%s3935 + $0x68] sm:$0xff]
    %v3950 = vld [vmem:[%s3935 + $0x70] sm:$0xff]
    %v3951 = vld [vmem:[%s3935 + $0x78] sm:$0xff]
    %v3952 = vld [vmem:[%s3935 + $0x80] sm:$0xff]
    %v3953 = vld [vmem:[%s3935 + $0x88] sm:$0xff]
    %v3954 = vld [vmem:[%s3935 + $0x90] sm:$0xff]
    %v3955 = vld [vmem:[%s3935 + $0x98] sm:$0xff]
    %v3956 = vld [vmem:[%s3935 + $0xa0] sm:$0xff]
    %v3957 = vld [vmem:[%s3935 + $0xa8] sm:$0xff]
    %v3958 = vld [vmem:[%s3935 + $0xb0] sm:$0xff]
    %v3959 = vld [vmem:[%s3935 + $0xb8] sm:$0xff]
    %v3960 = vld [vmem:[%s3935 + $0xc0] sm:$0xff]
    %v3961 = vld [vmem:[%s3935 + $0xc8] sm:$0xff]
    %v3962 = vld [vmem:[%s3935 + $0xd0] sm:$0xff]
    %v3963 = vld [vmem:[%s3935 + $0xd8] sm:$0xff]
    %v3964 = vld [vmem:[%s3935 + $0xe0] sm:$0xff]
    %v3965 = vld [vmem:[%s3935 + $0xe8] sm:$0xff]
    %v3966 = vld [vmem:[%s3935 + $0xf0] sm:$0xff]
    %v3967 = vld [vmem:[%s3935 + $0xf8] sm:$0xff]
    %v3968 = vld [vmem:[%s3935 + $0x100] sm:$0xff]
    %v3969 = vld [vmem:[%s3935 + $0x108] sm:$0xff]
    %v3970 = vld [vmem:[%s3935 + $0x110] sm:$0xff]
    %v3971 = vld [vmem:[%s3935 + $0x118] sm:$0xff]
    %v3972 = vld [vmem:[%s3935 + $0x120] sm:$0xff]
    %v3973 = vld [vmem:[%s3935 + $0x128] sm:$0xff]
    %v3974 = vld [vmem:[%s3935 + $0x130] sm:$0xff]
    %v3975 = vld [vmem:[%s3935 + $0x138] sm:$0xff]
    %v3976 = vld [vmem:[%s3935 + $0x140] sm:$0xff]
    %v3977 = vld [vmem:[%s3935 + $0x148] sm:$0xff]
    %v3978 = vld [vmem:[%s3935 + $0x150] sm:$0xff]
    %v3979 = vld [vmem:[%s3935 + $0x158] sm:$0xff]
    %v3980 = vld [vmem:[%s3935 + $0x160] sm:$0xff]
    %v3981 = vld [vmem:[%s3935 + $0x168] sm:$0xff]
    %v3982 = vld [vmem:[%s3935 + $0x170] sm:$0xff]
    %v3983 = vld [vmem:[%s3935 + $0x178] sm:$0xff]
    %v3984 = vld [vmem:[%s3935 + $0x180] sm:$0xff]
    %v3985 = vld [vmem:[%s3935 + $0x188] sm:$0xff]
    %v3986 = vld [vmem:[%s3935 + $0x190] sm:$0xff]
    %v3987 = vld [vmem:[%s3935 + $0x198] sm:$0xff]
    %v3988 = vld [vmem:[%s3935 + $0x1a0] sm:$0xff]
    %v3989 = vld [vmem:[%s3935 + $0x1a8] sm:$0xff]
    %v3990 = vld [vmem:[%s3935 + $0x1b0] sm:$0xff]
    %v3991 = vld [vmem:[%s3935 + $0x1b8] sm:$0xff]
    %v3992 = vld [vmem:[%s3935 + $0x1c0] sm:$0xff]
    %v3993 = vld [vmem:[%s3935 + $0x1c8] sm:$0xff]
    %v3994 = vld [vmem:[%s3935 + $0x1d0] sm:$0xff]
    %v3995 = vld [vmem:[%s3935 + $0x1d8] sm:$0xff]
    %v3996 = vld [vmem:[%s3935 + $0x1e0] sm:$0xff]
    %v3997 = vld [vmem:[%s3935 + $0x1e8] sm:$0xff]
    %v3998 = vld [vmem:[%s3935 + $0x1f0] sm:$0xff]
    %v3999 = vld [vmem:[%s3935 + $0x1f8] sm:$0xff]
    %v4000 = vld [vmem:[%s3935 + $0x200] sm:$0xff]
    %v4001 = vld [vmem:[%s3935 + $0x208] sm:$0xff]
    %v4002 = vld [vmem:[%s3935 + $0x210] sm:$0xff]
    %v4003 = vld [vmem:[%s3935 + $0x218] sm:$0xff]
    %v4004 = vld [vmem:[%s3935 + $0x220] sm:$0xff]
    %v4005 = vld [vmem:[%s3935 + $0x228] sm:$0xff]
    %v4006 = vld [vmem:[%s3935 + $0x230] sm:$0xff]
    %v4007 = vld [vmem:[%s3935 + $0x238] sm:$0xff]
    %v4008 = vld [vmem:[%s3935 + $0x240] sm:$0xff]
    %v4009 = vld [vmem:[%s3935 + $0x248] sm:$0xff]
    %v4010 = vld [vmem:[%s3935 + $0x250] sm:$0xff]
    %v4011 = vld [vmem:[%s3935 + $0x258] sm:$0xff]
    %v4012 = vld [vmem:[%s3935 + $0x260] sm:$0xff]
    %v4013 = vld [vmem:[%s3935 + $0x268] sm:$0xff]
    %v4014 = vld [vmem:[%s3935 + $0x270] sm:$0xff]
    %v4015 = vld [vmem:[%s3935 + $0x278] sm:$0xff]
    %v4016 = vld [vmem:[%s3935 + $0x280] sm:$0xff]
    %v4017 = vld [vmem:[%s3935 + $0x288] sm:$0xff]
    %v4018 = vld [vmem:[%s3935 + $0x290] sm:$0xff]
    %v4019 = vld [vmem:[%s3935 + $0x298] sm:$0xff]
    %v4020 = vld [vmem:[%s3935 + $0x2a0] sm:$0xff]
    %v4021 = vld [vmem:[%s3935 + $0x2a8] sm:$0xff]
    %v4022 = vld [vmem:[%s3935 + $0x2b0] sm:$0xff]
    %v4023 = vld [vmem:[%s3935 + $0x2b8] sm:$0xff]
    %v4024 = vld [vmem:[%s3935 + $0x2c0] sm:$0xff]
    %v4025 = vld [vmem:[%s3935 + $0x2c8] sm:$0xff]
    %v4026 = vld [vmem:[%s3935 + $0x2d0] sm:$0xff]
    %v4027 = vld [vmem:[%s3935 + $0x2d8] sm:$0xff]
    %v4028 = vld [vmem:[%s3935 + $0x2e0] sm:$0xff]
    %v4029 = vld [vmem:[%s3935 + $0x2e8] sm:$0xff]
    %v4030 = vld [vmem:[%s3935 + $0x2f0] sm:$0xff]
    %v4031 = vld [vmem:[%s3935 + $0x2f8] sm:$0xff]
    %v4032 = vld [vmem:[%s3935 + $0x300] sm:$0xff]
    %v4033 = vld [vmem:[%s3935 + $0x308] sm:$0xff]
    %v4034 = vld [vmem:[%s3935 + $0x310] sm:$0xff]
    %v4035 = vld [vmem:[%s3935 + $0x318] sm:$0xff]
    %v4036 = vld [vmem:[%s3935 + $0x320] sm:$0xff]
    %v4037 = vld [vmem:[%s3935 + $0x328] sm:$0xff]
    %v4038 = vld [vmem:[%s3935 + $0x330] sm:$0xff]
    %v4039 = vld [vmem:[%s3935 + $0x338] sm:$0xff]
    %v4040 = vld [vmem:[%s3935 + $0x340] sm:$0xff]
    %v4041 = vld [vmem:[%s3935 + $0x348] sm:$0xff]
    %v4042 = vld [vmem:[%s3935 + $0x350] sm:$0xff]
    %v4043 = vld [vmem:[%s3935 + $0x358] sm:$0xff]
    %v4044 = vld [vmem:[%s3935 + $0x360] sm:$0xff]
    %v4045 = vld [vmem:[%s3935 + $0x368] sm:$0xff]
    %v4046 = vld [vmem:[%s3935 + $0x370] sm:$0xff]
    %v4047 = vld [vmem:[%s3935 + $0x378] sm:$0xff]
    %v4048 = vld [vmem:[%s3935 + $0x380] sm:$0xff]
    %v4049 = vld [vmem:[%s3935 + $0x388] sm:$0xff]
    %v4050 = vld [vmem:[%s3935 + $0x390] sm:$0xff]
    %v4051 = vld [vmem:[%s3935 + $0x398] sm:$0xff]
    %v4052 = vld [vmem:[%s3935 + $0x3a0] sm:$0xff]
    %v4053 = vld [vmem:[%s3935 + $0x3a8] sm:$0xff]
    %v4054 = vld [vmem:[%s3935 + $0x3b0] sm:$0xff]
    %v4055 = vld [vmem:[%s3935 + $0x3b8] sm:$0xff]
    %v4056 = vld [vmem:[%s3935 + $0x3c0] sm:$0xff]
    %v4057 = vld [vmem:[%s3935 + $0x3c8] sm:$0xff]
    %v4058 = vld [vmem:[%s3935 + $0x3d0] sm:$0xff]
    %v4059 = vld [vmem:[%s3935 + $0x3d8] sm:$0xff]
    %v4060 = vld [vmem:[%s3935 + $0x3e0] sm:$0xff]
    %v4061 = vld [vmem:[%s3935 + $0x3e8] sm:$0xff]
    %v4062 = vld [vmem:[%s3935 + $0x3f0] sm:$0xff]
    %v4063 = vld [vmem:[%s3935 + $0x3f8] sm:$0xff]
    %vm4076 = vcmask 1046528
    %v4077 = vrot.slane %v3927, 1
    %v4078 = vrot.slane %v1765, 1
    %v4079 = vsel %vm4076, %v4077, %v4078
    %v4080 = vrot.slane %v3928, 1
    %v4081 = vrot.slane %v1766, 1
    %v4082 = vsel %vm4076, %v4080, %v4081
    %v4083 = vrot.slane %v3929, 1
    %v4084 = vrot.slane %v1767, 1
    %v4085 = vsel %vm4076, %v4083, %v4084
    %v4086 = vrot.slane %v3930, 1
    %v4087 = vrot.slane %v1768, 1
    %v4088 = vsel %vm4076, %v4086, %v4087
    %v4089 = vrot.slane %v3931, 1
    %v4090 = vsel %vm4076, %v4078, %v4089
    %v4091 = vrot.slane %v3932, 1
    %v4092 = vsel %vm4076, %v4081, %v4091
    %v4093 = vrot.slane %v3933, 1
    %v4094 = vsel %vm4076, %v4084, %v4093
    %v4095 = vrot.slane %v3934, 1
    %v4096 = vsel %vm4076, %v4087, %v4095
    %v4237 = vunpack.c.l.b16 %v3936
    %v4238 = vunpack.c.h.b16 %v3936
    %v4239 = vunpack.c.l.b16 %v3937
    %v4240 = vunpack.c.h.b16 %v3937
    %v4241 = vunpack.c.l.b16 %v3938
    %v4242 = vunpack.c.h.b16 %v3938
    %v4243 = vunpack.c.l.b16 %v3939
    %v4244 = vunpack.c.h.b16 %v3939
    %v4245 = vunpack.c.l.b16 %v3940
    %v4246 = vunpack.c.h.b16 %v3940
    %v4247 = vunpack.c.l.b16 %v3941
    %v4248 = vunpack.c.h.b16 %v3941
    %v4249 = vunpack.c.l.b16 %v3942
    %v4250 = vunpack.c.h.b16 %v3942
    %v4251 = vunpack.c.l.b16 %v3943
    %v4252 = vunpack.c.h.b16 %v3943
    %v4253 = vunpack.c.l.b16 %v3944
    %v4254 = vunpack.c.h.b16 %v3944
    %v4255 = vunpack.c.l.b16 %v3945
    %v4256 = vunpack.c.h.b16 %v3945
    %v4257 = vunpack.c.l.b16 %v3946
    %v4258 = vunpack.c.h.b16 %v3946
    %v4259 = vunpack.c.l.b16 %v3947
    %v4260 = vunpack.c.h.b16 %v3947
    %v4261 = vunpack.c.l.b16 %v3948
    %v4262 = vunpack.c.h.b16 %v3948
    %v4263 = vunpack.c.l.b16 %v3949
    %v4264 = vunpack.c.h.b16 %v3949
    %v4265 = vunpack.c.l.b16 %v3950
    %v4266 = vunpack.c.h.b16 %v3950
    %v4267 = vunpack.c.l.b16 %v3951
    %v4268 = vunpack.c.h.b16 %v3951
    %v4269 = vunpack.c.l.b16 %v3952
    %v4270 = vunpack.c.h.b16 %v3952
    %v4271 = vunpack.c.l.b16 %v3953
    %v4272 = vunpack.c.h.b16 %v3953
    %v4273 = vunpack.c.l.b16 %v3954
    %v4274 = vunpack.c.h.b16 %v3954
    %v4275 = vunpack.c.l.b16 %v3955
    %v4276 = vunpack.c.h.b16 %v3955
    %v4277 = vunpack.c.l.b16 %v3956
    %v4278 = vunpack.c.h.b16 %v3956
    %v4279 = vunpack.c.l.b16 %v3957
    %v4280 = vunpack.c.h.b16 %v3957
    %v4281 = vunpack.c.l.b16 %v3958
    %v4282 = vunpack.c.h.b16 %v3958
    %v4283 = vunpack.c.l.b16 %v3959
    %v4284 = vunpack.c.h.b16 %v3959
    %v4285 = vunpack.c.l.b16 %v3960
    %v4286 = vunpack.c.h.b16 %v3960
    %v4287 = vunpack.c.l.b16 %v3961
    %v4288 = vunpack.c.h.b16 %v3961
    %v4289 = vunpack.c.l.b16 %v3962
    %v4290 = vunpack.c.h.b16 %v3962
    %v4291 = vunpack.c.l.b16 %v3963
    %v4292 = vunpack.c.h.b16 %v3963
    %v4293 = vunpack.c.l.b16 %v3964
    %v4294 = vunpack.c.h.b16 %v3964
    %v4295 = vunpack.c.l.b16 %v3965
    %v4296 = vunpack.c.h.b16 %v3965
    %v4297 = vunpack.c.l.b16 %v3966
    %v4298 = vunpack.c.h.b16 %v3966
    %v4299 = vunpack.c.l.b16 %v3967
    %v4300 = vunpack.c.h.b16 %v3967
    %v4301 = vunpack.c.l.b16 %v3968
    %v4302 = vunpack.c.h.b16 %v3968
    %v4303 = vunpack.c.l.b16 %v3969
    %v4304 = vunpack.c.h.b16 %v3969
    %v4305 = vunpack.c.l.b16 %v3970
    %v4306 = vunpack.c.h.b16 %v3970
    %v4307 = vunpack.c.l.b16 %v3971
    %v4308 = vunpack.c.h.b16 %v3971
    %v4309 = vunpack.c.l.b16 %v3972
    %v4310 = vunpack.c.h.b16 %v3972
    %v4311 = vunpack.c.l.b16 %v3973
    %v4312 = vunpack.c.h.b16 %v3973
    %v4313 = vunpack.c.l.b16 %v3974
    %v4314 = vunpack.c.h.b16 %v3974
    %v4315 = vunpack.c.l.b16 %v3975
    %v4316 = vunpack.c.h.b16 %v3975
    %v4317 = vunpack.c.l.b16 %v3976
    %v4318 = vunpack.c.h.b16 %v3976
    %v4319 = vunpack.c.l.b16 %v3977
    %v4320 = vunpack.c.h.b16 %v3977
    %v4321 = vunpack.c.l.b16 %v3978
    %v4322 = vunpack.c.h.b16 %v3978
    %v4323 = vunpack.c.l.b16 %v3979
    %v4324 = vunpack.c.h.b16 %v3979
    %v4325 = vunpack.c.l.b16 %v3980
    %v4326 = vunpack.c.h.b16 %v3980
    %v4327 = vunpack.c.l.b16 %v3981
    %v4328 = vunpack.c.h.b16 %v3981
    %v4329 = vunpack.c.l.b16 %v3982
    %v4330 = vunpack.c.h.b16 %v3982
    %v4331 = vunpack.c.l.b16 %v3983
    %v4332 = vunpack.c.h.b16 %v3983
    %v4333 = vunpack.c.l.b16 %v3984
    %v4334 = vunpack.c.h.b16 %v3984
    %v4335 = vunpack.c.l.b16 %v3985
    %v4336 = vunpack.c.h.b16 %v3985
    %v4337 = vunpack.c.l.b16 %v3986
    %v4338 = vunpack.c.h.b16 %v3986
    %v4339 = vunpack.c.l.b16 %v3987
    %v4340 = vunpack.c.h.b16 %v3987
    %v4341 = vunpack.c.l.b16 %v3988
    %v4342 = vunpack.c.h.b16 %v3988
    %v4343 = vunpack.c.l.b16 %v3989
    %v4344 = vunpack.c.h.b16 %v3989
    %v4345 = vunpack.c.l.b16 %v3990
    %v4346 = vunpack.c.h.b16 %v3990
    %v4347 = vunpack.c.l.b16 %v3991
    %v4348 = vunpack.c.h.b16 %v3991
    %v4349 = vunpack.c.l.b16 %v3992
    %v4350 = vunpack.c.h.b16 %v3992
    %v4351 = vunpack.c.l.b16 %v3993
    %v4352 = vunpack.c.h.b16 %v3993
    %v4353 = vunpack.c.l.b16 %v3994
    %v4354 = vunpack.c.h.b16 %v3994
    %v4355 = vunpack.c.l.b16 %v3995
    %v4356 = vunpack.c.h.b16 %v3995
    %v4357 = vunpack.c.l.b16 %v3996
    %v4358 = vunpack.c.h.b16 %v3996
    %v4359 = vunpack.c.l.b16 %v3997
    %v4360 = vunpack.c.h.b16 %v3997
    %v4361 = vunpack.c.l.b16 %v3998
    %v4362 = vunpack.c.h.b16 %v3998
    %v4363 = vunpack.c.l.b16 %v3999
    %v4364 = vunpack.c.h.b16 %v3999
    %v4365 = vunpack.c.l.b16 %v4000
    %v4366 = vunpack.c.h.b16 %v4000
    %v4367 = vunpack.c.l.b16 %v4001
    %v4368 = vunpack.c.h.b16 %v4001
    %v4369 = vunpack.c.l.b16 %v4002
    %v4370 = vunpack.c.h.b16 %v4002
    %v4371 = vunpack.c.l.b16 %v4003
    %v4372 = vunpack.c.h.b16 %v4003
    %v4373 = vunpack.c.l.b16 %v4004
    %v4374 = vunpack.c.h.b16 %v4004
    %v4375 = vunpack.c.l.b16 %v4005
    %v4376 = vunpack.c.h.b16 %v4005
    %v4377 = vunpack.c.l.b16 %v4006
    %v4378 = vunpack.c.h.b16 %v4006
    %v4379 = vunpack.c.l.b16 %v4007
    %v4380 = vunpack.c.h.b16 %v4007
    %v4381 = vunpack.c.l.b16 %v4008
    %v4382 = vunpack.c.h.b16 %v4008
    %v4383 = vunpack.c.l.b16 %v4009
    %v4384 = vunpack.c.h.b16 %v4009
    %v4385 = vunpack.c.l.b16 %v4010
    %v4386 = vunpack.c.h.b16 %v4010
    %v4387 = vunpack.c.l.b16 %v4011
    %v4388 = vunpack.c.h.b16 %v4011
    %v4389 = vunpack.c.l.b16 %v4012
    %v4390 = vunpack.c.h.b16 %v4012
    %v4391 = vunpack.c.l.b16 %v4013
    %v4392 = vunpack.c.h.b16 %v4013
    %v4393 = vunpack.c.l.b16 %v4014
    %v4394 = vunpack.c.h.b16 %v4014
    %v4395 = vunpack.c.l.b16 %v4015
    %v4396 = vunpack.c.h.b16 %v4015
    %v4397 = vunpack.c.l.b16 %v4016
    %v4398 = vunpack.c.h.b16 %v4016
    %v4399 = vunpack.c.l.b16 %v4017
    %v4400 = vunpack.c.h.b16 %v4017
    %v4401 = vunpack.c.l.b16 %v4018
    %v4402 = vunpack.c.h.b16 %v4018
    %v4403 = vunpack.c.l.b16 %v4019
    %v4404 = vunpack.c.h.b16 %v4019
    %v4405 = vunpack.c.l.b16 %v4020
    %v4406 = vunpack.c.h.b16 %v4020
    %v4407 = vunpack.c.l.b16 %v4021
    %v4408 = vunpack.c.h.b16 %v4021
    %v4409 = vunpack.c.l.b16 %v4022
    %v4410 = vunpack.c.h.b16 %v4022
    %v4411 = vunpack.c.l.b16 %v4023
    %v4412 = vunpack.c.h.b16 %v4023
    %v4413 = vunpack.c.l.b16 %v4024
    %v4414 = vunpack.c.h.b16 %v4024
    %v4415 = vunpack.c.l.b16 %v4025
    %v4416 = vunpack.c.h.b16 %v4025
    %v4417 = vunpack.c.l.b16 %v4026
    %v4418 = vunpack.c.h.b16 %v4026
    %v4419 = vunpack.c.l.b16 %v4027
    %v4420 = vunpack.c.h.b16 %v4027
    %v4421 = vunpack.c.l.b16 %v4028
    %v4422 = vunpack.c.h.b16 %v4028
    %v4423 = vunpack.c.l.b16 %v4029
    %v4424 = vunpack.c.h.b16 %v4029
    %v4425 = vunpack.c.l.b16 %v4030
    %v4426 = vunpack.c.h.b16 %v4030
    %v4427 = vunpack.c.l.b16 %v4031
    %v4428 = vunpack.c.h.b16 %v4031
    %v4429 = vunpack.c.l.b16 %v4032
    %v4430 = vunpack.c.h.b16 %v4032
    %v4431 = vunpack.c.l.b16 %v4033
    %v4432 = vunpack.c.h.b16 %v4033
    %v4433 = vunpack.c.l.b16 %v4034
    %v4434 = vunpack.c.h.b16 %v4034
    %v4435 = vunpack.c.l.b16 %v4035
    %v4436 = vunpack.c.h.b16 %v4035
    %v4437 = vunpack.c.l.b16 %v4036
    %v4438 = vunpack.c.h.b16 %v4036
    %v4439 = vunpack.c.l.b16 %v4037
    %v4440 = vunpack.c.h.b16 %v4037
    %v4441 = vunpack.c.l.b16 %v4038
    %v4442 = vunpack.c.h.b16 %v4038
    %v4443 = vunpack.c.l.b16 %v4039
    %v4444 = vunpack.c.h.b16 %v4039
    %v4445 = vunpack.c.l.b16 %v4040
    %v4446 = vunpack.c.h.b16 %v4040
    %v4447 = vunpack.c.l.b16 %v4041
    %v4448 = vunpack.c.h.b16 %v4041
    %v4449 = vunpack.c.l.b16 %v4042
    %v4450 = vunpack.c.h.b16 %v4042
    %v4451 = vunpack.c.l.b16 %v4043
    %v4452 = vunpack.c.h.b16 %v4043
    %v4453 = vunpack.c.l.b16 %v4044
    %v4454 = vunpack.c.h.b16 %v4044
    %v4455 = vunpack.c.l.b16 %v4045
    %v4456 = vunpack.c.h.b16 %v4045
    %v4457 = vunpack.c.l.b16 %v4046
    %v4458 = vunpack.c.h.b16 %v4046
    %v4459 = vunpack.c.l.b16 %v4047
    %v4460 = vunpack.c.h.b16 %v4047
    %v4461 = vunpack.c.l.b16 %v4048
    %v4462 = vunpack.c.h.b16 %v4048
    %v4463 = vunpack.c.l.b16 %v4049
    %v4464 = vunpack.c.h.b16 %v4049
    %v4465 = vunpack.c.l.b16 %v4050
    %v4466 = vunpack.c.h.b16 %v4050
    %v4467 = vunpack.c.l.b16 %v4051
    %v4468 = vunpack.c.h.b16 %v4051
    %v4469 = vunpack.c.l.b16 %v4052
    %v4470 = vunpack.c.h.b16 %v4052
    %v4471 = vunpack.c.l.b16 %v4053
    %v4472 = vunpack.c.h.b16 %v4053
    %v4473 = vunpack.c.l.b16 %v4054
    %v4474 = vunpack.c.h.b16 %v4054
    %v4475 = vunpack.c.l.b16 %v4055
    %v4476 = vunpack.c.h.b16 %v4055
    %v4477 = vunpack.c.l.b16 %v4056
    %v4478 = vunpack.c.h.b16 %v4056
    %v4479 = vunpack.c.l.b16 %v4057
    %v4480 = vunpack.c.h.b16 %v4057
    %v4481 = vunpack.c.l.b16 %v4058
    %v4482 = vunpack.c.h.b16 %v4058
    %v4483 = vunpack.c.l.b16 %v4059
    %v4484 = vunpack.c.h.b16 %v4059
    %v4485 = vunpack.c.l.b16 %v4060
    %v4486 = vunpack.c.h.b16 %v4060
    %v4487 = vunpack.c.l.b16 %v4061
    %v4488 = vunpack.c.h.b16 %v4061
    %v4489 = vunpack.c.l.b16 %v4062
    %v4490 = vunpack.c.h.b16 %v4062
    %v4491 = vunpack.c.l.b16 %v4063
    %v4492 = vunpack.c.h.b16 %v4063
    %v4493 = vpack.c.b16 %v4241, %v4237
    %v4494 = vpack.c.b16 %v4242, %v4238
    %v4495 = vpack.c.b16 %v4243, %v4239
    %v4496 = vpack.c.b16 %v4244, %v4240
    %v4497 = vpack.c.b16 %v4249, %v4245
    %v4498 = vpack.c.b16 %v4250, %v4246
    %v4499 = vpack.c.b16 %v4251, %v4247
    %v4500 = vpack.c.b16 %v4252, %v4248
    %v4501 = vpack.c.b16 %v4257, %v4253
    %v4502 = vpack.c.b16 %v4258, %v4254
    %v4503 = vpack.c.b16 %v4259, %v4255
    %v4504 = vpack.c.b16 %v4260, %v4256
    %v4505 = vpack.c.b16 %v4265, %v4261
    %v4506 = vpack.c.b16 %v4266, %v4262
    %v4507 = vpack.c.b16 %v4267, %v4263
    %v4508 = vpack.c.b16 %v4268, %v4264
    %v4509 = vpack.c.b16 %v4273, %v4269
    %v4510 = vpack.c.b16 %v4274, %v4270
    %v4511 = vpack.c.b16 %v4275, %v4271
    %v4512 = vpack.c.b16 %v4276, %v4272
    %v4513 = vpack.c.b16 %v4281, %v4277
    %v4514 = vpack.c.b16 %v4282, %v4278
    %v4515 = vpack.c.b16 %v4283, %v4279
    %v4516 = vpack.c.b16 %v4284, %v4280
    %v4517 = vpack.c.b16 %v4289, %v4285
    %v4518 = vpack.c.b16 %v4290, %v4286
    %v4519 = vpack.c.b16 %v4291, %v4287
    %v4520 = vpack.c.b16 %v4292, %v4288
    %v4521 = vpack.c.b16 %v4297, %v4293
    %v4522 = vpack.c.b16 %v4298, %v4294
    %v4523 = vpack.c.b16 %v4299, %v4295
    %v4524 = vpack.c.b16 %v4300, %v4296
    %v4525 = vpack.c.b16 %v4305, %v4301
    %v4526 = vpack.c.b16 %v4306, %v4302
    %v4527 = vpack.c.b16 %v4307, %v4303
    %v4528 = vpack.c.b16 %v4308, %v4304
    %v4529 = vpack.c.b16 %v4313, %v4309
    %v4530 = vpack.c.b16 %v4314, %v4310
    %v4531 = vpack.c.b16 %v4315, %v4311
    %v4532 = vpack.c.b16 %v4316, %v4312
    %v4533 = vpack.c.b16 %v4321, %v4317
    %v4534 = vpack.c.b16 %v4322, %v4318
    %v4535 = vpack.c.b16 %v4323, %v4319
    %v4536 = vpack.c.b16 %v4324, %v4320
    %v4537 = vpack.c.b16 %v4329, %v4325
    %v4538 = vpack.c.b16 %v4330, %v4326
    %v4539 = vpack.c.b16 %v4331, %v4327
    %v4540 = vpack.c.b16 %v4332, %v4328
    %v4541 = vpack.c.b16 %v4337, %v4333
    %v4542 = vpack.c.b16 %v4338, %v4334
    %v4543 = vpack.c.b16 %v4339, %v4335
    %v4544 = vpack.c.b16 %v4340, %v4336
    %v4545 = vpack.c.b16 %v4345, %v4341
    %v4546 = vpack.c.b16 %v4346, %v4342
    %v4547 = vpack.c.b16 %v4347, %v4343
    %v4548 = vpack.c.b16 %v4348, %v4344
    %v4549 = vpack.c.b16 %v4353, %v4349
    %v4550 = vpack.c.b16 %v4354, %v4350
    %v4551 = vpack.c.b16 %v4355, %v4351
    %v4552 = vpack.c.b16 %v4356, %v4352
    %v4553 = vpack.c.b16 %v4361, %v4357
    %v4554 = vpack.c.b16 %v4362, %v4358
    %v4555 = vpack.c.b16 %v4363, %v4359
    %v4556 = vpack.c.b16 %v4364, %v4360
    %v4557 = vpack.c.b16 %v4369, %v4365
    %v4558 = vpack.c.b16 %v4370, %v4366
    %v4559 = vpack.c.b16 %v4371, %v4367
    %v4560 = vpack.c.b16 %v4372, %v4368
    %v4561 = vpack.c.b16 %v4377, %v4373
    %v4562 = vpack.c.b16 %v4378, %v4374
    %v4563 = vpack.c.b16 %v4379, %v4375
    %v4564 = vpack.c.b16 %v4380, %v4376
    %v4565 = vpack.c.b16 %v4385, %v4381
    %v4566 = vpack.c.b16 %v4386, %v4382
    %v4567 = vpack.c.b16 %v4387, %v4383
    %v4568 = vpack.c.b16 %v4388, %v4384
    %v4569 = vpack.c.b16 %v4393, %v4389
    %v4570 = vpack.c.b16 %v4394, %v4390
    %v4571 = vpack.c.b16 %v4395, %v4391
    %v4572 = vpack.c.b16 %v4396, %v4392
    %v4573 = vpack.c.b16 %v4401, %v4397
    %v4574 = vpack.c.b16 %v4402, %v4398
    %v4575 = vpack.c.b16 %v4403, %v4399
    %v4576 = vpack.c.b16 %v4404, %v4400
    %v4577 = vpack.c.b16 %v4409, %v4405
    %v4578 = vpack.c.b16 %v4410, %v4406
    %v4579 = vpack.c.b16 %v4411, %v4407
    %v4580 = vpack.c.b16 %v4412, %v4408
    %v4581 = vpack.c.b16 %v4417, %v4413
    %v4582 = vpack.c.b16 %v4418, %v4414
    %v4583 = vpack.c.b16 %v4419, %v4415
    %v4584 = vpack.c.b16 %v4420, %v4416
    %v4585 = vpack.c.b16 %v4425, %v4421
    %v4586 = vpack.c.b16 %v4426, %v4422
    %v4587 = vpack.c.b16 %v4427, %v4423
    %v4588 = vpack.c.b16 %v4428, %v4424
    %v4589 = vpack.c.b16 %v4433, %v4429
    %v4590 = vpack.c.b16 %v4434, %v4430
    %v4591 = vpack.c.b16 %v4435, %v4431
    %v4592 = vpack.c.b16 %v4436, %v4432
    %v4593 = vpack.c.b16 %v4441, %v4437
    %v4594 = vpack.c.b16 %v4442, %v4438
    %v4595 = vpack.c.b16 %v4443, %v4439
    %v4596 = vpack.c.b16 %v4444, %v4440
    %v4597 = vpack.c.b16 %v4449, %v4445
    %v4598 = vpack.c.b16 %v4450, %v4446
    %v4599 = vpack.c.b16 %v4451, %v4447
    %v4600 = vpack.c.b16 %v4452, %v4448
    %v4601 = vpack.c.b16 %v4457, %v4453
    %v4602 = vpack.c.b16 %v4458, %v4454
    %v4603 = vpack.c.b16 %v4459, %v4455
    %v4604 = vpack.c.b16 %v4460, %v4456
    %v4605 = vpack.c.b16 %v4465, %v4461
    %v4606 = vpack.c.b16 %v4466, %v4462
    %v4607 = vpack.c.b16 %v4467, %v4463
    %v4608 = vpack.c.b16 %v4468, %v4464
    %v4609 = vpack.c.b16 %v4473, %v4469
    %v4610 = vpack.c.b16 %v4474, %v4470
    %v4611 = vpack.c.b16 %v4475, %v4471
    %v4612 = vpack.c.b16 %v4476, %v4472
    %v4613 = vpack.c.b16 %v4481, %v4477
    %v4614 = vpack.c.b16 %v4482, %v4478
    %v4615 = vpack.c.b16 %v4483, %v4479
    %v4616 = vpack.c.b16 %v4484, %v4480
    %v4617 = vpack.c.b16 %v4489, %v4485
    %v4618 = vpack.c.b16 %v4490, %v4486
    %v4619 = vpack.c.b16 %v4491, %v4487
    %v4620 = vpack.c.b16 %v4492, %v4488
    %4749 = vmatprep.subr.bf16.mxu0 %v4522
    %4750 = vmatpush1.bf16.msra.mxu0 %v4521
    %4751 = vmatprep.subr.bf16.mxu0 %v4518
    %4752 = vmatpush1.bf16.msra.mxu0 %v4517
    %4753 = vmatprep.subr.bf16.mxu0 %v4514
    %4754 = vmatpush1.bf16.msra.mxu0 %v4513
    %4755 = vmatprep.subr.bf16.mxu0 %v4510
    %4756 = vmatpush1.bf16.msra.mxu0 %v4509
    %4757 = vmatprep.subr.bf16.mxu0 %v4506
    %4758 = vmatpush1.bf16.msra.mxu0 %v4505
    %4759 = vmatprep.subr.bf16.mxu0 %v4502
    %4760 = vmatpush1.bf16.msra.mxu0 %v4501
    %4761 = vmatprep.subr.bf16.mxu0 %v4498
    %4762 = vmatpush1.bf16.msra.mxu0 %v4497
    %4763 = vmatprep.subr.bf16.mxu0 %v4494
    %4764 = vmatpush1.bf16.msra.mxu0 %v4493
    %4765 = vmatprep.subr.bf16.mxu0 %v4554
    %4766 = vmatpush2.bf16.msra.mxu0 %v4553
    %4767 = vmatprep.subr.bf16.mxu0 %v4550
    %4768 = vmatpush2.bf16.msra.mxu0 %v4549
    %4769 = vmatprep.subr.bf16.mxu0 %v4546
    %4770 = vmatpush2.bf16.msra.mxu0 %v4545
    %4771 = vmatprep.subr.bf16.mxu0 %v4542
    %4772 = vmatpush2.bf16.msra.mxu0 %v4541
    %4773 = vmatprep.subr.bf16.mxu0 %v4538
    %4774 = vmatpush2.bf16.msra.mxu0 %v4537
    %4775 = vmatprep.subr.bf16.mxu0 %v4534
    %4776 = vmatpush2.bf16.msra.mxu0 %v4533
    %4777 = vmatprep.subr.bf16.mxu0 %v4530
    %4778 = vmatpush2.bf16.msra.mxu0 %v4529
    %4779 = vmatprep.subr.bf16.mxu0 %v4526
    %4780 = vmatpush2.bf16.msra.mxu0 %v4525
    %4781 = vmatprep.mubr.bf16.mxu0 %v4082
    %4782 = vmatmul.mubr.bf16.gmra.mxu0 %v4079
    %v4783 = vpop.f32.mrf.mxu0
    %v4784 = vadd.f32 0.0, %v4783
    %v4785 = vpop.f32.mrf.mxu0
    %v4786 = vadd.f32 0.0, %v4785
    %v4787 = vpop.f32.mrf.mxu0
    %v4788 = vadd.f32 0.0, %v4787
    %v4789 = vpop.f32.mrf.mxu0
    %v4790 = vadd.f32 0.0, %v4789
    %4791 = vmatprep.mubr.bf16.mxu0 %v4092
    %4792 = vmatmul.mubr.bf16.gmra.mxu0 %v4090
    %v4793 = vpop.f32.mrf.mxu0
    %v4794 = vadd.f32 0.0, %v4793
    %v4795 = vpop.f32.mrf.mxu0
    %v4796 = vadd.f32 0.0, %v4795
    %v4797 = vpop.f32.mrf.mxu0
    %v4798 = vadd.f32 0.0, %v4797
    %v4799 = vpop.f32.mrf.mxu0
    %v4800 = vadd.f32 0.0, %v4799
    %4801 = vmatprep.mubr.bf16.mxu0 %v4091
    %4802 = vmatmul.mubr.bf16.gmra.mxu0 %v4089
    %v4803 = vpop.f32.mrf.mxu0
    %v4804 = vadd.f32 0.0, %v4803
    %v4805 = vpop.f32.mrf.mxu0
    %v4806 = vadd.f32 0.0, %v4805
    %v4807 = vpop.f32.mrf.mxu0
    %v4808 = vpop.f32.mrf.mxu0
    %4809 = vdwg.mxu0
    %4810 = vmatprep.subr.bf16.mxu0 %v4586
    %4811 = vmatpush1.bf16.msra.mxu0 %v4585
    %4812 = vmatprep.subr.bf16.mxu0 %v4582
    %4813 = vmatpush1.bf16.msra.mxu0 %v4581
    %4814 = vmatprep.subr.bf16.mxu0 %v4578
    %4815 = vmatpush1.bf16.msra.mxu0 %v4577
    %4816 = vmatprep.subr.bf16.mxu0 %v4574
    %4817 = vmatpush1.bf16.msra.mxu0 %v4573
    %4818 = vmatprep.subr.bf16.mxu0 %v4570
    %4819 = vmatpush1.bf16.msra.mxu0 %v4569
    %4820 = vmatprep.subr.bf16.mxu0 %v4566
    %4821 = vmatpush1.bf16.msra.mxu0 %v4565
    %4822 = vmatprep.subr.bf16.mxu0 %v4562
    %4823 = vmatpush1.bf16.msra.mxu0 %v4561
    %4824 = vmatprep.subr.bf16.mxu0 %v4558
    %4825 = vmatpush1.bf16.msra.mxu0 %v4557
    %4826 = vmatprep.subr.bf16.mxu0 %v4618
    %4827 = vmatpush2.bf16.msra.mxu0 %v4617
    %4828 = vmatprep.subr.bf16.mxu0 %v4614
    %4829 = vmatpush2.bf16.msra.mxu0 %v4613
    %4830 = vmatprep.subr.bf16.mxu0 %v4610
    %4831 = vmatpush2.bf16.msra.mxu0 %v4609
    %4832 = vmatprep.subr.bf16.mxu0 %v4606
    %4833 = vmatpush2.bf16.msra.mxu0 %v4605
    %4834 = vmatprep.subr.bf16.mxu0 %v4602
    %4835 = vmatpush2.bf16.msra.mxu0 %v4601
    %4836 = vmatprep.subr.bf16.mxu0 %v4598
    %4837 = vmatpush2.bf16.msra.mxu0 %v4597
    %4838 = vmatprep.subr.bf16.mxu0 %v4594
    %4839 = vmatpush2.bf16.msra.mxu0 %v4593
    %4840 = vmatprep.subr.bf16.mxu0 %v4590
    %4841 = vmatpush2.bf16.msra.mxu0 %v4589
    %4842 = vmatprep.mubr.bf16.mxu0 %v4088
    %4843 = vmatmul.mubr.bf16.gmra.mxu0 %v4085
    %v4844 = vpop.f32.mrf.mxu0
    %v4845 = vadd.f32 %v4784, %v4844
    %v4846 = vpop.f32.mrf.mxu0
    %v4847 = vadd.f32 %v4786, %v4846
    %v4848 = vpop.f32.mrf.mxu0
    %v4849 = vadd.f32 %v4788, %v4848
    %v4850 = vpop.f32.mrf.mxu0
    %v4851 = vadd.f32 %v4790, %v4850
    %4852 = vmatprep.mubr.bf16.mxu0 %v4096
    %4853 = vmatmul.mubr.bf16.gmra.mxu0 %v4094
    %v4854 = vpop.f32.mrf.mxu0
    %v4855 = vadd.f32 %v4794, %v4854
    %v4856 = vpop.f32.mrf.mxu0
    %v4857 = vadd.f32 %v4796, %v4856
    %v4858 = vpop.f32.mrf.mxu0
    %v4859 = vadd.f32 %v4798, %v4858
    %v4860 = vpop.f32.mrf.mxu0
    %v4861 = vadd.f32 %v4800, %v4860
    %4862 = vmatprep.mubr.bf16.mxu0 %v4095
    %4863 = vmatmul.mubr.bf16.gmra.mxu0 %v4093
    %v4864 = vpop.f32.mrf.mxu0
    %v4865 = vadd.f32 %v4804, %v4864
    %v4866 = vpop.f32.mrf.mxu0
    %v4867 = vadd.f32 %v4806, %v4866
    %v4868 = vpop.f32.mrf.mxu0
    %v4869 = vpop.f32.mrf.mxu0
    %4870 = vdwg.mxu0
    %4871 = vmatprep.subr.bf16.mxu0 %v4524
    %4872 = vmatpush1.bf16.msra.mxu0 %v4523
    %4873 = vmatprep.subr.bf16.mxu0 %v4520
    %4874 = vmatpush1.bf16.msra.mxu0 %v4519
    %4875 = vmatprep.subr.bf16.mxu0 %v4516
    %4876 = vmatpush1.bf16.msra.mxu0 %v4515
    %4877 = vmatprep.subr.bf16.mxu0 %v4512
    %4878 = vmatpush1.bf16.msra.mxu0 %v4511
    %4879 = vmatprep.subr.bf16.mxu0 %v4508
    %4880 = vmatpush1.bf16.msra.mxu0 %v4507
    %4881 = vmatprep.subr.bf16.mxu0 %v4504
    %4882 = vmatpush1.bf16.msra.mxu0 %v4503
    %4883 = vmatprep.subr.bf16.mxu0 %v4500
    %4884 = vmatpush1.bf16.msra.mxu0 %v4499
    %4885 = vmatprep.subr.bf16.mxu0 %v4496
    %4886 = vmatpush1.bf16.msra.mxu0 %v4495
    %4887 = vmatprep.subr.bf16.mxu0 %v4556
    %4888 = vmatpush2.bf16.msra.mxu0 %v4555
    %4889 = vmatprep.subr.bf16.mxu0 %v4552
    %4890 = vmatpush2.bf16.msra.mxu0 %v4551
    %4891 = vmatprep.subr.bf16.mxu0 %v4548
    %4892 = vmatpush2.bf16.msra.mxu0 %v4547
    %4893 = vmatprep.subr.bf16.mxu0 %v4544
    %4894 = vmatpush2.bf16.msra.mxu0 %v4543
    %4895 = vmatprep.subr.bf16.mxu0 %v4540
    %4896 = vmatpush2.bf16.msra.mxu0 %v4539
    %4897 = vmatprep.subr.bf16.mxu0 %v4536
    %4898 = vmatpush2.bf16.msra.mxu0 %v4535
    %4899 = vmatprep.subr.bf16.mxu0 %v4532
    %4900 = vmatpush2.bf16.msra.mxu0 %v4531
    %4901 = vmatprep.subr.bf16.mxu0 %v4528
    %4902 = vmatpush2.bf16.msra.mxu0 %v4527
    %4903 = vmatprep.mubr.bf16.mxu0 %v4082
    %4904 = vmatmul.mubr.bf16.gmra.mxu0 %v4079
    %v4905 = vpop.f32.mrf.mxu0
    %v4906 = vadd.f32 0.0, %v4905
    %v4907 = vpop.f32.mrf.mxu0
    %v4908 = vadd.f32 0.0, %v4907
    %v4909 = vpop.f32.mrf.mxu0
    %v4910 = vadd.f32 0.0, %v4909
    %v4911 = vpop.f32.mrf.mxu0
    %v4912 = vadd.f32 0.0, %v4911
    %4913 = vmatprep.mubr.bf16.mxu0 %v4092
    %4914 = vmatmul.mubr.bf16.gmra.mxu0 %v4090
    %v4915 = vpop.f32.mrf.mxu0
    %v4916 = vadd.f32 0.0, %v4915
    %v4917 = vpop.f32.mrf.mxu0
    %v4918 = vadd.f32 0.0, %v4917
    %v4919 = vpop.f32.mrf.mxu0
    %v4920 = vadd.f32 0.0, %v4919
    %v4921 = vpop.f32.mrf.mxu0
    %v4922 = vadd.f32 0.0, %v4921
    %4923 = vmatprep.mubr.bf16.mxu0 %v4091
    %4924 = vmatmul.mubr.bf16.gmra.mxu0 %v4089
    %v4925 = vpop.f32.mrf.mxu0
    %v4926 = vadd.f32 0.0, %v4925
    %v4927 = vpop.f32.mrf.mxu0
    %v4928 = vadd.f32 0.0, %v4927
    %v4929 = vpop.f32.mrf.mxu0
    %v4930 = vpop.f32.mrf.mxu0
    %4931 = vdwg.mxu0
    %4932 = vmatprep.subr.bf16.mxu0 %v4588
    %4933 = vmatpush1.bf16.msra.mxu0 %v4587
    %4934 = vmatprep.subr.bf16.mxu0 %v4584
    %4935 = vmatpush1.bf16.msra.mxu0 %v4583
    %4936 = vmatprep.subr.bf16.mxu0 %v4580
    %4937 = vmatpush1.bf16.msra.mxu0 %v4579
    %4938 = vmatprep.subr.bf16.mxu0 %v4576
    %4939 = vmatpush1.bf16.msra.mxu0 %v4575
    %4940 = vmatprep.subr.bf16.mxu0 %v4572
    %4941 = vmatpush1.bf16.msra.mxu0 %v4571
    %4942 = vmatprep.subr.bf16.mxu0 %v4568
    %4943 = vmatpush1.bf16.msra.mxu0 %v4567
    %4944 = vmatprep.subr.bf16.mxu0 %v4564
    %4945 = vmatpush1.bf16.msra.mxu0 %v4563
    %4946 = vmatprep.subr.bf16.mxu0 %v4560
    %4947 = vmatpush1.bf16.msra.mxu0 %v4559
    %4948 = vmatprep.subr.bf16.mxu0 %v4620
    %4949 = vmatpush2.bf16.msra.mxu0 %v4619
    %4950 = vmatprep.subr.bf16.mxu0 %v4616
    %4951 = vmatpush2.bf16.msra.mxu0 %v4615
    %4952 = vmatprep.subr.bf16.mxu0 %v4612
    %4953 = vmatpush2.bf16.msra.mxu0 %v4611
    %4954 = vmatprep.subr.bf16.mxu0 %v4608
    %4955 = vmatpush2.bf16.msra.mxu0 %v4607
    %4956 = vmatprep.subr.bf16.mxu0 %v4604
    %4957 = vmatpush2.bf16.msra.mxu0 %v4603
    %4958 = vmatprep.subr.bf16.mxu0 %v4600
    %4959 = vmatpush2.bf16.msra.mxu0 %v4599
    %4960 = vmatprep.subr.bf16.mxu0 %v4596
    %4961 = vmatpush2.bf16.msra.mxu0 %v4595
    %4962 = vmatprep.subr.bf16.mxu0 %v4592
    %4963 = vmatpush2.bf16.msra.mxu0 %v4591
    %4964 = vmatprep.mubr.bf16.mxu0 %v4088
    %4965 = vmatmul.mubr.bf16.gmra.mxu0 %v4085
    %v4966 = vpop.f32.mrf.mxu0
    %v4967 = vadd.f32 %v4906, %v4966
    %v4968 = vpop.f32.mrf.mxu0
    %v4969 = vadd.f32 %v4908, %v4968
    %v4970 = vpop.f32.mrf.mxu0
    %v4971 = vadd.f32 %v4910, %v4970
    %v4972 = vpop.f32.mrf.mxu0
    %v4973 = vadd.f32 %v4912, %v4972
    %4974 = vmatprep.mubr.bf16.mxu0 %v4096
    %4975 = vmatmul.mubr.bf16.gmra.mxu0 %v4094
    %v4976 = vpop.f32.mrf.mxu0
    %v4977 = vadd.f32 %v4916, %v4976
    %v4978 = vpop.f32.mrf.mxu0
    %v4979 = vadd.f32 %v4918, %v4978
    %v4980 = vpop.f32.mrf.mxu0
    %v4981 = vadd.f32 %v4920, %v4980
    %v4982 = vpop.f32.mrf.mxu0
    %v4983 = vadd.f32 %v4922, %v4982
    %4984 = vmatprep.mubr.bf16.mxu0 %v4095
    %4985 = vmatmul.mubr.bf16.gmra.mxu0 %v4093
    %v4986 = vpop.f32.mrf.mxu0
    %v4987 = vadd.f32 %v4926, %v4986
    %v4988 = vpop.f32.mrf.mxu0
    %v4989 = vadd.f32 %v4928, %v4988
    %v4990 = vpop.f32.mrf.mxu0
    %v4991 = vpop.f32.mrf.mxu0
    %4992 = vdwg.mxu0
    %v4993 = vadd.f32 %v3771, %v4845
    %v4994 = vadd.f32 %v3773, %v4847
    %v4995 = vadd.f32 %v3893, %v4967
    %v4996 = vadd.f32 %v3895, %v4969
    %v4997 = vadd.f32 %v3775, %v4849
    %v4998 = vadd.f32 %v3777, %v4851
    %v4999 = vadd.f32 %v3897, %v4971
    %v5000 = vadd.f32 %v3899, %v4973
    %v5001 = vadd.f32 %v3781, %v4855
    %v5002 = vadd.f32 %v3783, %v4857
    %v5003 = vadd.f32 %v3903, %v4977
    %v5004 = vadd.f32 %v3905, %v4979
    %v5005 = vadd.f32 %v3785, %v4859
    %v5006 = vadd.f32 %v3787, %v4861
    %v5007 = vadd.f32 %v3907, %v4981
    %v5008 = vadd.f32 %v3909, %v4983
    %v5009 = vadd.f32 %v3791, %v4865
    %v5010 = vadd.f32 %v3793, %v4867
    %v5011 = vadd.f32 %v3913, %v4987
    %v5012 = vadd.f32 %v3915, %v4989
    %s5013 = scalar_lea.vmem [#allocation8], 8
    %v5014 = vld [vmem:[%s5013] sm:$0xf]
    %v5015 = vld [vmem:[#allocation3] sm:$0xff]
    %v5016 = vld [vmem:[#allocation3 + $0x8] sm:$0xff]
    %v5017 = vld [vmem:[#allocation3 + $0x10] sm:$0xff]
    %v5018 = vld [vmem:[#allocation3 + $0x18] sm:$0xff]
    %v5019 = vld [vmem:[#allocation3 + $0x20] sm:$0xff]
    %v5020 = vld [vmem:[#allocation3 + $0x28] sm:$0xff]
    %v5021 = vld [vmem:[#allocation3 + $0x30] sm:$0xff]
    %v5022 = vld [vmem:[#allocation3 + $0x38] sm:$0xff]
    %v5023 = vld [vmem:[#allocation3 + $0x40] sm:$0xff]
    %v5024 = vld [vmem:[#allocation3 + $0x48] sm:$0xff]
    %v5025 = vld [vmem:[#allocation3 + $0x50] sm:$0xff]
    %v5026 = vld [vmem:[#allocation3 + $0x58] sm:$0xff]
    %v5027 = vld [vmem:[#allocation3 + $0x60] sm:$0xff]
    %v5028 = vld [vmem:[#allocation3 + $0x68] sm:$0xff]
    %v5029 = vld [vmem:[#allocation3 + $0x70] sm:$0xff]
    %v5030 = vld [vmem:[#allocation3 + $0x78] sm:$0xff]
    %v5031 = vld [vmem:[#allocation3 + $0x80] sm:$0x3]
    %v5032 = vld [vmem:[#allocation3 + $0x88] sm:$0x3]
    %v5033 = vld [vmem:[#allocation3 + $0x90] sm:$0x3]
    %v5034 = vld [vmem:[#allocation3 + $0x98] sm:$0x3]
    %v5036 = vlaneseq
    %v5037 = vshrl.u32 %v5036, 7
    %v5038 = vsub.s32 0, %v5037
    %v5039 = vrot.slane %v5014, %v5038
    %v5040 = vlaneseq
    %v5041 = vshrl.u32 %v5040, 7
    %v5042 = vsub.s32 1, %v5041
    %v5043 = vrot.slane %v5014, %v5042
    %v5044 = vlaneseq
    %v5045 = vshrl.u32 %v5044, 7
    %v5046 = vsub.s32 2, %v5045
    %v5047 = vrot.slane %v5014, %v5046
    %v5048 = vlaneseq
    %v5049 = vshrl.u32 %v5048, 7
    %v5050 = vsub.s32 3, %v5049
    %v5051 = vrot.slane %v5014, %v5050
    %v5056 = vadd.f32 %v4993, %v5039
    %v5057 = vadd.f32 %v4994, %v5043
    %v5058 = vadd.f32 %v4995, %v5047
    %v5059 = vadd.f32 %v4996, %v5051
    %v5060 = vadd.f32 %v4997, %v5039
    %v5061 = vadd.f32 %v4998, %v5043
    %v5062 = vadd.f32 %v4999, %v5047
    %v5063 = vadd.f32 %v5000, %v5051
    %v5064 = vadd.f32 %v5001, %v5039
    %v5065 = vadd.f32 %v5002, %v5043
    %v5066 = vadd.f32 %v5003, %v5047
    %v5067 = vadd.f32 %v5004, %v5051
    %v5068 = vadd.f32 %v5005, %v5039
    %v5069 = vadd.f32 %v5006, %v5043
    %v5070 = vadd.f32 %v5007, %v5047
    %v5071 = vadd.f32 %v5008, %v5051
    %v5072 = vadd.f32 %v5009, %v5039
    %v5073 = vadd.f32 %v5010, %v5043
    %v5074 = vadd.f32 %v5011, %v5047
    %v5075 = vadd.f32 %v5012, %v5051
    %v5076 = vadd.f32 %v5056, %v5015
    %v5077 = vadd.f32 %v5057, %v5016
    %v5078 = vadd.f32 %v5058, %v5017
    %v5079 = vadd.f32 %v5059, %v5018
    %v5080 = vadd.f32 %v5060, %v5019
    %v5081 = vadd.f32 %v5061, %v5020
    %v5082 = vadd.f32 %v5062, %v5021
    %v5083 = vadd.f32 %v5063, %v5022
    %v5084 = vadd.f32 %v5064, %v5023
    %v5085 = vadd.f32 %v5065, %v5024
    %v5086 = vadd.f32 %v5066, %v5025
    %v5087 = vadd.f32 %v5067, %v5026
    %v5088 = vadd.f32 %v5068, %v5027
    %v5089 = vadd.f32 %v5069, %v5028
    %v5090 = vadd.f32 %v5070, %v5029
    %v5091 = vadd.f32 %v5071, %v5030
    %v5092 = vadd.f32 %v5072, %v5031
    %v5093 = vadd.f32 %v5073, %v5032
    %v5094 = vadd.f32 %v5074, %v5033
    %v5095 = vadd.f32 %v5075, %v5034
    %v5096 = vmax.f32 %v5076, 0.0
    %v5097 = vmax.f32 %v5077, 0.0
    %v5098 = vmax.f32 %v5078, 0.0
    %v5099 = vmax.f32 %v5079, 0.0
    %v5100 = vmax.f32 %v5080, 0.0
    %v5101 = vmax.f32 %v5081, 0.0
    %v5102 = vmax.f32 %v5082, 0.0
    %v5103 = vmax.f32 %v5083, 0.0
    %v5104 = vmax.f32 %v5084, 0.0
    %v5105 = vmax.f32 %v5085, 0.0
    %v5106 = vmax.f32 %v5086, 0.0
    %v5107 = vmax.f32 %v5087, 0.0
    %v5108 = vmax.f32 %v5088, 0.0
    %v5109 = vmax.f32 %v5089, 0.0
    %v5110 = vmax.f32 %v5090, 0.0
    %v5111 = vmax.f32 %v5091, 0.0
    %v5112 = vmax.f32 %v5092, 0.0
    %v5113 = vmax.f32 %v5093, 0.0
    %v5114 = vmax.f32 %v5094, 0.0
    %v5115 = vmax.f32 %v5095, 0.0
    %v5136 = vrot.slane %v5096, 7
    %v5137 = vrot.slane %v5097, 7
    %v5138 = vrot.slane %v5098, 7
    %v5139 = vrot.slane %v5099, 7
    %v5140 = vrot.slane %v5100, 7
    %v5141 = vsel %vm1660, %v5136, %v5140
    %v5142 = vrot.slane %v5101, 7
    %v5143 = vsel %vm1660, %v5137, %v5142
    %v5144 = vrot.slane %v5102, 7
    %v5145 = vsel %vm1660, %v5138, %v5144
    %v5146 = vrot.slane %v5103, 7
    %v5147 = vsel %vm1660, %v5139, %v5146
    %v5148 = vrot.slane %v5104, 7
    %v5149 = vsel %vm1660, %v5140, %v5148
    %v5150 = vrot.slane %v5105, 7
    %v5151 = vsel %vm1660, %v5142, %v5150
    %v5152 = vrot.slane %v5106, 7
    %v5153 = vsel %vm1660, %v5144, %v5152
    %v5154 = vrot.slane %v5107, 7
    %v5155 = vsel %vm1660, %v5146, %v5154
    %v5156 = vrot.slane %v5108, 7
    %v5157 = vsel %vm1660, %v5148, %v5156
    %v5158 = vrot.slane %v5109, 7
    %v5159 = vsel %vm1660, %v5150, %v5158
    %v5160 = vrot.slane %v5110, 7
    %v5161 = vsel %vm1660, %v5152, %v5160
    %v5162 = vrot.slane %v5111, 7
    %v5163 = vsel %vm1660, %v5154, %v5162
    %v5164 = vrot.slane %v5112, 7
    %v5165 = vsel %vm1660, %v5156, %v5164
    %v5166 = vrot.slane %v5113, 7
    %v5167 = vsel %vm1660, %v5158, %v5166
    %v5168 = vrot.slane %v5114, 7
    %v5169 = vsel %vm1660, %v5160, %v5168
    %v5170 = vrot.slane %v5115, 7
    %v5171 = vsel %vm1660, %v5162, %v5170
    %5192 = vst [vmem:[#allocation2] sm:$0xfe] %v5136
    %5193 = vst [vmem:[#allocation2 + $0x8] sm:$0xfe] %v5137
    %5194 = vst [vmem:[#allocation2 + $0x10] sm:$0xfe] %v5138
    %5195 = vst [vmem:[#allocation2 + $0x18] sm:$0xfe] %v5139
    %5196 = vst [vmem:[#allocation2 + $0x20] sm:$0xff] %v5141
    %5197 = vst [vmem:[#allocation2 + $0x28] sm:$0xff] %v5143
    %5198 = vst [vmem:[#allocation2 + $0x30] sm:$0xff] %v5145
    %5199 = vst [vmem:[#allocation2 + $0x38] sm:$0xff] %v5147
    %5200 = vst [vmem:[#allocation2 + $0x40] sm:$0xff] %v5149
    %5201 = vst [vmem:[#allocation2 + $0x48] sm:$0xff] %v5151
    %5202 = vst [vmem:[#allocation2 + $0x50] sm:$0xff] %v5153
    %5203 = vst [vmem:[#allocation2 + $0x58] sm:$0xff] %v5155
    %5204 = vst [vmem:[#allocation2 + $0x60] sm:$0xff] %v5157
    %5205 = vst [vmem:[#allocation2 + $0x68] sm:$0xff] %v5159
    %5206 = vst [vmem:[#allocation2 + $0x70] sm:$0xff] %v5161
    %5207 = vst [vmem:[#allocation2 + $0x78] sm:$0xff] %v5163
    %5208 = vst [vmem:[#allocation2 + $0x80] sm:$0x7] %v5165
    %5209 = vst [vmem:[#allocation2 + $0x88] sm:$0x7] %v5167
    %5210 = vst [vmem:[#allocation2 + $0x90] sm:$0x7] %v5169
    %5211 = vst [vmem:[#allocation2 + $0x98] sm:$0x7] %v5171
    %5212 = vst [vmem:[#allocation2 + $0x40] sm:$0x6] 0.0
    %5213 = vst [vmem:[#allocation2 + $0x48] sm:$0x6] 0.0
    %5214 = vst [vmem:[#allocation2 + $0x50] sm:$0x6] 0.0
    %5215 = vst [vmem:[#allocation2 + $0x58] sm:$0x6] 0.0
    %5216 = vst [vmem:[#allocation3] sm:$0xff] %v5096
    %5217 = vst [vmem:[#allocation3 + $0x8] sm:$0xff] %v5097
    %5218 = vst [vmem:[#allocation3 + $0x10] sm:$0xff] %v5098
    %5219 = vst [vmem:[#allocation3 + $0x18] sm:$0xff] %v5099
    %5220 = vst [vmem:[#allocation3 + $0x20] sm:$0xff] %v5100
    %5221 = vst [vmem:[#allocation3 + $0x28] sm:$0xff] %v5101
    %5222 = vst [vmem:[#allocation3 + $0x30] sm:$0xff] %v5102
    %5223 = vst [vmem:[#allocation3 + $0x38] sm:$0xff] %v5103
    %5224 = vst [vmem:[#allocation3 + $0x40] sm:$0xff] %v5104
    %5225 = vst [vmem:[#allocation3 + $0x48] sm:$0xff] %v5105
    %5226 = vst [vmem:[#allocation3 + $0x50] sm:$0xff] %v5106
    %5227 = vst [vmem:[#allocation3 + $0x58] sm:$0xff] %v5107
    %5228 = vst [vmem:[#allocation3 + $0x60] sm:$0xff] %v5108
    %5229 = vst [vmem:[#allocation3 + $0x68] sm:$0xff] %v5109
    %5230 = vst [vmem:[#allocation3 + $0x70] sm:$0xff] %v5110
    %5231 = vst [vmem:[#allocation3 + $0x78] sm:$0xff] %v5111
    %5232 = vst [vmem:[#allocation3 + $0x80] sm:$0x3] %v5112
    %5233 = vst [vmem:[#allocation3 + $0x88] sm:$0x3] %v5113
    %5234 = vst [vmem:[#allocation3 + $0x90] sm:$0x3] %v5114
    %5235 = vst [vmem:[#allocation3 + $0x98] sm:$0x3] %v5115
    %v5236 = vld [vmem:[#allocation2] sm:$0xff]
    %v5237 = vld [vmem:[#allocation2 + $0x8] sm:$0xff]
    %v5238 = vld [vmem:[#allocation2 + $0x10] sm:$0xff]
    %v5239 = vld [vmem:[#allocation2 + $0x18] sm:$0xff]
    %v5240 = vld [vmem:[#allocation2 + $0x20] sm:$0xff]
    %v5241 = vld [vmem:[#allocation2 + $0x28] sm:$0xff]
    %v5242 = vld [vmem:[#allocation2 + $0x30] sm:$0xff]
    %v5243 = vld [vmem:[#allocation2 + $0x38] sm:$0xff]
    %v5244 = vld [vmem:[#allocation2 + $0x40] sm:$0xff]
    %v5245 = vld [vmem:[#allocation2 + $0x48] sm:$0xff]
    %v5246 = vld [vmem:[#allocation2 + $0x50] sm:$0xff]
    %v5247 = vld [vmem:[#allocation2 + $0x58] sm:$0xff]
    %v5248 = vld [vmem:[#allocation2 + $0x60] sm:$0xff]
    %v5249 = vld [vmem:[#allocation2 + $0x68] sm:$0xff]
    %v5250 = vld [vmem:[#allocation2 + $0x70] sm:$0xff]
    %v5251 = vld [vmem:[#allocation2 + $0x78] sm:$0xff]
    %v5252 = vld [vmem:[#allocation2 + $0x80] sm:$0x3]
    %v5253 = vld [vmem:[#allocation2 + $0x88] sm:$0x3]
    %v5254 = vld [vmem:[#allocation2 + $0x90] sm:$0x3]
    %v5255 = vld [vmem:[#allocation2 + $0x98] sm:$0x3]
    %v5256 = vpack.c.bf16 %v5240, %v5236
    %v5257 = vpack.c.bf16 %v5241, %v5237
    %v5258 = vpack.c.bf16 %v5242, %v5238
    %v5259 = vpack.c.bf16 %v5243, %v5239
    %v5260 = vpack.c.bf16 %v5248, %v5244
    %v5261 = vpack.c.bf16 %v5249, %v5245
    %v5262 = vpack.c.bf16 %v5250, %v5246
    %v5263 = vpack.c.bf16 %v5251, %v5247
    %v5264 = vpack.c.bf16 %v5252, %v5252
    %v5265 = vpack.c.bf16 %v5253, %v5253
    %v5266 = vpack.c.bf16 %v5254, %v5254
    %v5267 = vpack.c.bf16 %v5255, %v5255
    %s5268 = scalar_lea.vmem [#allocation6], 3072
    %v5269 = vld [vmem:[%s5268] sm:$0xff]
    %v5270 = vld [vmem:[%s5268 + $0x8] sm:$0xff]
    %v5271 = vld [vmem:[%s5268 + $0x10] sm:$0xff]
    %v5272 = vld [vmem:[%s5268 + $0x18] sm:$0xff]
    %v5273 = vld [vmem:[%s5268 + $0x20] sm:$0xff]
    %v5274 = vld [vmem:[%s5268 + $0x28] sm:$0xff]
    %v5275 = vld [vmem:[%s5268 + $0x30] sm:$0xff]
    %v5276 = vld [vmem:[%s5268 + $0x38] sm:$0xff]
    %v5277 = vld [vmem:[%s5268 + $0x40] sm:$0xff]
    %v5278 = vld [vmem:[%s5268 + $0x48] sm:$0xff]
    %v5279 = vld [vmem:[%s5268 + $0x50] sm:$0xff]
    %v5280 = vld [vmem:[%s5268 + $0x58] sm:$0xff]
    %v5281 = vld [vmem:[%s5268 + $0x60] sm:$0xff]
    %v5282 = vld [vmem:[%s5268 + $0x68] sm:$0xff]
    %v5283 = vld [vmem:[%s5268 + $0x70] sm:$0xff]
    %v5284 = vld [vmem:[%s5268 + $0x78] sm:$0xff]
    %v5285 = vld [vmem:[%s5268 + $0x80] sm:$0xff]
    %v5286 = vld [vmem:[%s5268 + $0x88] sm:$0xff]
    %v5287 = vld [vmem:[%s5268 + $0x90] sm:$0xff]
    %v5288 = vld [vmem:[%s5268 + $0x98] sm:$0xff]
    %v5289 = vld [vmem:[%s5268 + $0xa0] sm:$0xff]
    %v5290 = vld [vmem:[%s5268 + $0xa8] sm:$0xff]
    %v5291 = vld [vmem:[%s5268 + $0xb0] sm:$0xff]
    %v5292 = vld [vmem:[%s5268 + $0xb8] sm:$0xff]
    %v5293 = vld [vmem:[%s5268 + $0xc0] sm:$0xff]
    %v5294 = vld [vmem:[%s5268 + $0xc8] sm:$0xff]
    %v5295 = vld [vmem:[%s5268 + $0xd0] sm:$0xff]
    %v5296 = vld [vmem:[%s5268 + $0xd8] sm:$0xff]
    %v5297 = vld [vmem:[%s5268 + $0xe0] sm:$0xff]
    %v5298 = vld [vmem:[%s5268 + $0xe8] sm:$0xff]
    %v5299 = vld [vmem:[%s5268 + $0xf0] sm:$0xff]
    %v5300 = vld [vmem:[%s5268 + $0xf8] sm:$0xff]
    %v5301 = vld [vmem:[%s5268 + $0x100] sm:$0xff]
    %v5302 = vld [vmem:[%s5268 + $0x108] sm:$0xff]
    %v5303 = vld [vmem:[%s5268 + $0x110] sm:$0xff]
    %v5304 = vld [vmem:[%s5268 + $0x118] sm:$0xff]
    %v5305 = vld [vmem:[%s5268 + $0x120] sm:$0xff]
    %v5306 = vld [vmem:[%s5268 + $0x128] sm:$0xff]
    %v5307 = vld [vmem:[%s5268 + $0x130] sm:$0xff]
    %v5308 = vld [vmem:[%s5268 + $0x138] sm:$0xff]
    %v5309 = vld [vmem:[%s5268 + $0x140] sm:$0xff]
    %v5310 = vld [vmem:[%s5268 + $0x148] sm:$0xff]
    %v5311 = vld [vmem:[%s5268 + $0x150] sm:$0xff]
    %v5312 = vld [vmem:[%s5268 + $0x158] sm:$0xff]
    %v5313 = vld [vmem:[%s5268 + $0x160] sm:$0xff]
    %v5314 = vld [vmem:[%s5268 + $0x168] sm:$0xff]
    %v5315 = vld [vmem:[%s5268 + $0x170] sm:$0xff]
    %v5316 = vld [vmem:[%s5268 + $0x178] sm:$0xff]
    %v5317 = vld [vmem:[%s5268 + $0x180] sm:$0xff]
    %v5318 = vld [vmem:[%s5268 + $0x188] sm:$0xff]
    %v5319 = vld [vmem:[%s5268 + $0x190] sm:$0xff]
    %v5320 = vld [vmem:[%s5268 + $0x198] sm:$0xff]
    %v5321 = vld [vmem:[%s5268 + $0x1a0] sm:$0xff]
    %v5322 = vld [vmem:[%s5268 + $0x1a8] sm:$0xff]
    %v5323 = vld [vmem:[%s5268 + $0x1b0] sm:$0xff]
    %v5324 = vld [vmem:[%s5268 + $0x1b8] sm:$0xff]
    %v5325 = vld [vmem:[%s5268 + $0x1c0] sm:$0xff]
    %v5326 = vld [vmem:[%s5268 + $0x1c8] sm:$0xff]
    %v5327 = vld [vmem:[%s5268 + $0x1d0] sm:$0xff]
    %v5328 = vld [vmem:[%s5268 + $0x1d8] sm:$0xff]
    %v5329 = vld [vmem:[%s5268 + $0x1e0] sm:$0xff]
    %v5330 = vld [vmem:[%s5268 + $0x1e8] sm:$0xff]
    %v5331 = vld [vmem:[%s5268 + $0x1f0] sm:$0xff]
    %v5332 = vld [vmem:[%s5268 + $0x1f8] sm:$0xff]
    %v5333 = vld [vmem:[%s5268 + $0x200] sm:$0xff]
    %v5334 = vld [vmem:[%s5268 + $0x208] sm:$0xff]
    %v5335 = vld [vmem:[%s5268 + $0x210] sm:$0xff]
    %v5336 = vld [vmem:[%s5268 + $0x218] sm:$0xff]
    %v5337 = vld [vmem:[%s5268 + $0x220] sm:$0xff]
    %v5338 = vld [vmem:[%s5268 + $0x228] sm:$0xff]
    %v5339 = vld [vmem:[%s5268 + $0x230] sm:$0xff]
    %v5340 = vld [vmem:[%s5268 + $0x238] sm:$0xff]
    %v5341 = vld [vmem:[%s5268 + $0x240] sm:$0xff]
    %v5342 = vld [vmem:[%s5268 + $0x248] sm:$0xff]
    %v5343 = vld [vmem:[%s5268 + $0x250] sm:$0xff]
    %v5344 = vld [vmem:[%s5268 + $0x258] sm:$0xff]
    %v5345 = vld [vmem:[%s5268 + $0x260] sm:$0xff]
    %v5346 = vld [vmem:[%s5268 + $0x268] sm:$0xff]
    %v5347 = vld [vmem:[%s5268 + $0x270] sm:$0xff]
    %v5348 = vld [vmem:[%s5268 + $0x278] sm:$0xff]
    %v5349 = vld [vmem:[%s5268 + $0x280] sm:$0xff]
    %v5350 = vld [vmem:[%s5268 + $0x288] sm:$0xff]
    %v5351 = vld [vmem:[%s5268 + $0x290] sm:$0xff]
    %v5352 = vld [vmem:[%s5268 + $0x298] sm:$0xff]
    %v5353 = vld [vmem:[%s5268 + $0x2a0] sm:$0xff]
    %v5354 = vld [vmem:[%s5268 + $0x2a8] sm:$0xff]
    %v5355 = vld [vmem:[%s5268 + $0x2b0] sm:$0xff]
    %v5356 = vld [vmem:[%s5268 + $0x2b8] sm:$0xff]
    %v5357 = vld [vmem:[%s5268 + $0x2c0] sm:$0xff]
    %v5358 = vld [vmem:[%s5268 + $0x2c8] sm:$0xff]
    %v5359 = vld [vmem:[%s5268 + $0x2d0] sm:$0xff]
    %v5360 = vld [vmem:[%s5268 + $0x2d8] sm:$0xff]
    %v5361 = vld [vmem:[%s5268 + $0x2e0] sm:$0xff]
    %v5362 = vld [vmem:[%s5268 + $0x2e8] sm:$0xff]
    %v5363 = vld [vmem:[%s5268 + $0x2f0] sm:$0xff]
    %v5364 = vld [vmem:[%s5268 + $0x2f8] sm:$0xff]
    %v5365 = vld [vmem:[%s5268 + $0x300] sm:$0xff]
    %v5366 = vld [vmem:[%s5268 + $0x308] sm:$0xff]
    %v5367 = vld [vmem:[%s5268 + $0x310] sm:$0xff]
    %v5368 = vld [vmem:[%s5268 + $0x318] sm:$0xff]
    %v5369 = vld [vmem:[%s5268 + $0x320] sm:$0xff]
    %v5370 = vld [vmem:[%s5268 + $0x328] sm:$0xff]
    %v5371 = vld [vmem:[%s5268 + $0x330] sm:$0xff]
    %v5372 = vld [vmem:[%s5268 + $0x338] sm:$0xff]
    %v5373 = vld [vmem:[%s5268 + $0x340] sm:$0xff]
    %v5374 = vld [vmem:[%s5268 + $0x348] sm:$0xff]
    %v5375 = vld [vmem:[%s5268 + $0x350] sm:$0xff]
    %v5376 = vld [vmem:[%s5268 + $0x358] sm:$0xff]
    %v5377 = vld [vmem:[%s5268 + $0x360] sm:$0xff]
    %v5378 = vld [vmem:[%s5268 + $0x368] sm:$0xff]
    %v5379 = vld [vmem:[%s5268 + $0x370] sm:$0xff]
    %v5380 = vld [vmem:[%s5268 + $0x378] sm:$0xff]
    %v5381 = vld [vmem:[%s5268 + $0x380] sm:$0xff]
    %v5382 = vld [vmem:[%s5268 + $0x388] sm:$0xff]
    %v5383 = vld [vmem:[%s5268 + $0x390] sm:$0xff]
    %v5384 = vld [vmem:[%s5268 + $0x398] sm:$0xff]
    %v5385 = vld [vmem:[%s5268 + $0x3a0] sm:$0xff]
    %v5386 = vld [vmem:[%s5268 + $0x3a8] sm:$0xff]
    %v5387 = vld [vmem:[%s5268 + $0x3b0] sm:$0xff]
    %v5388 = vld [vmem:[%s5268 + $0x3b8] sm:$0xff]
    %v5389 = vld [vmem:[%s5268 + $0x3c0] sm:$0xff]
    %v5390 = vld [vmem:[%s5268 + $0x3c8] sm:$0xff]
    %v5391 = vld [vmem:[%s5268 + $0x3d0] sm:$0xff]
    %v5392 = vld [vmem:[%s5268 + $0x3d8] sm:$0xff]
    %v5393 = vld [vmem:[%s5268 + $0x3e0] sm:$0xff]
    %v5394 = vld [vmem:[%s5268 + $0x3e8] sm:$0xff]
    %v5395 = vld [vmem:[%s5268 + $0x3f0] sm:$0xff]
    %v5396 = vld [vmem:[%s5268 + $0x3f8] sm:$0xff]
    %v5397 = vld [vmem:[#allocation2] sm:$0xfe]
    %v5398 = vld [vmem:[#allocation2 + $0x8] sm:$0xfe]
    %v5399 = vld [vmem:[#allocation2 + $0x10] sm:$0xfe]
    %v5400 = vld [vmem:[#allocation2 + $0x18] sm:$0xfe]
    %v5401 = vld [vmem:[#allocation2 + $0x80] sm:$0x7]
    %v5402 = vld [vmem:[#allocation2 + $0x88] sm:$0x7]
    %v5403 = vld [vmem:[#allocation2 + $0x90] sm:$0x7]
    %v5404 = vld [vmem:[#allocation2 + $0x98] sm:$0x7]
    %v5405 = vpack.c.bf16 %v5240, %v5397
    %v5406 = vpack.c.bf16 %v5241, %v5398
    %v5407 = vpack.c.bf16 %v5242, %v5399
    %v5408 = vpack.c.bf16 %v5243, %v5400
    %v5409 = vpack.c.bf16 %v5401, %v5401
    %v5410 = vpack.c.bf16 %v5402, %v5402
    %v5411 = vpack.c.bf16 %v5403, %v5403
    %v5412 = vpack.c.bf16 %v5404, %v5404
    %s5413 = scalar_lea.vmem [#allocation6], 4096
    %v5414 = vld [vmem:[%s5413] sm:$0xff]
    %v5415 = vld [vmem:[%s5413 + $0x8] sm:$0xff]
    %v5416 = vld [vmem:[%s5413 + $0x10] sm:$0xff]
    %v5417 = vld [vmem:[%s5413 + $0x18] sm:$0xff]
    %v5418 = vld [vmem:[%s5413 + $0x20] sm:$0xff]
    %v5419 = vld [vmem:[%s5413 + $0x28] sm:$0xff]
    %v5420 = vld [vmem:[%s5413 + $0x30] sm:$0xff]
    %v5421 = vld [vmem:[%s5413 + $0x38] sm:$0xff]
    %v5422 = vld [vmem:[%s5413 + $0x40] sm:$0xff]
    %v5423 = vld [vmem:[%s5413 + $0x48] sm:$0xff]
    %v5424 = vld [vmem:[%s5413 + $0x50] sm:$0xff]
    %v5425 = vld [vmem:[%s5413 + $0x58] sm:$0xff]
    %v5426 = vld [vmem:[%s5413 + $0x60] sm:$0xff]
    %v5427 = vld [vmem:[%s5413 + $0x68] sm:$0xff]
    %v5428 = vld [vmem:[%s5413 + $0x70] sm:$0xff]
    %v5429 = vld [vmem:[%s5413 + $0x78] sm:$0xff]
    %v5430 = vld [vmem:[%s5413 + $0x80] sm:$0xff]
    %v5431 = vld [vmem:[%s5413 + $0x88] sm:$0xff]
    %v5432 = vld [vmem:[%s5413 + $0x90] sm:$0xff]
    %v5433 = vld [vmem:[%s5413 + $0x98] sm:$0xff]
    %v5434 = vld [vmem:[%s5413 + $0xa0] sm:$0xff]
    %v5435 = vld [vmem:[%s5413 + $0xa8] sm:$0xff]
    %v5436 = vld [vmem:[%s5413 + $0xb0] sm:$0xff]
    %v5437 = vld [vmem:[%s5413 + $0xb8] sm:$0xff]
    %v5438 = vld [vmem:[%s5413 + $0xc0] sm:$0xff]
    %v5439 = vld [vmem:[%s5413 + $0xc8] sm:$0xff]
    %v5440 = vld [vmem:[%s5413 + $0xd0] sm:$0xff]
    %v5441 = vld [vmem:[%s5413 + $0xd8] sm:$0xff]
    %v5442 = vld [vmem:[%s5413 + $0xe0] sm:$0xff]
    %v5443 = vld [vmem:[%s5413 + $0xe8] sm:$0xff]
    %v5444 = vld [vmem:[%s5413 + $0xf0] sm:$0xff]
    %v5445 = vld [vmem:[%s5413 + $0xf8] sm:$0xff]
    %v5446 = vld [vmem:[%s5413 + $0x100] sm:$0xff]
    %v5447 = vld [vmem:[%s5413 + $0x108] sm:$0xff]
    %v5448 = vld [vmem:[%s5413 + $0x110] sm:$0xff]
    %v5449 = vld [vmem:[%s5413 + $0x118] sm:$0xff]
    %v5450 = vld [vmem:[%s5413 + $0x120] sm:$0xff]
    %v5451 = vld [vmem:[%s5413 + $0x128] sm:$0xff]
    %v5452 = vld [vmem:[%s5413 + $0x130] sm:$0xff]
    %v5453 = vld [vmem:[%s5413 + $0x138] sm:$0xff]
    %v5454 = vld [vmem:[%s5413 + $0x140] sm:$0xff]
    %v5455 = vld [vmem:[%s5413 + $0x148] sm:$0xff]
    %v5456 = vld [vmem:[%s5413 + $0x150] sm:$0xff]
    %v5457 = vld [vmem:[%s5413 + $0x158] sm:$0xff]
    %v5458 = vld [vmem:[%s5413 + $0x160] sm:$0xff]
    %v5459 = vld [vmem:[%s5413 + $0x168] sm:$0xff]
    %v5460 = vld [vmem:[%s5413 + $0x170] sm:$0xff]
    %v5461 = vld [vmem:[%s5413 + $0x178] sm:$0xff]
    %v5462 = vld [vmem:[%s5413 + $0x180] sm:$0xff]
    %v5463 = vld [vmem:[%s5413 + $0x188] sm:$0xff]
    %v5464 = vld [vmem:[%s5413 + $0x190] sm:$0xff]
    %v5465 = vld [vmem:[%s5413 + $0x198] sm:$0xff]
    %v5466 = vld [vmem:[%s5413 + $0x1a0] sm:$0xff]
    %v5467 = vld [vmem:[%s5413 + $0x1a8] sm:$0xff]
    %v5468 = vld [vmem:[%s5413 + $0x1b0] sm:$0xff]
    %v5469 = vld [vmem:[%s5413 + $0x1b8] sm:$0xff]
    %v5470 = vld [vmem:[%s5413 + $0x1c0] sm:$0xff]
    %v5471 = vld [vmem:[%s5413 + $0x1c8] sm:$0xff]
    %v5472 = vld [vmem:[%s5413 + $0x1d0] sm:$0xff]
    %v5473 = vld [vmem:[%s5413 + $0x1d8] sm:$0xff]
    %v5474 = vld [vmem:[%s5413 + $0x1e0] sm:$0xff]
    %v5475 = vld [vmem:[%s5413 + $0x1e8] sm:$0xff]
    %v5476 = vld [vmem:[%s5413 + $0x1f0] sm:$0xff]
    %v5477 = vld [vmem:[%s5413 + $0x1f8] sm:$0xff]
    %v5478 = vld [vmem:[%s5413 + $0x200] sm:$0xff]
    %v5479 = vld [vmem:[%s5413 + $0x208] sm:$0xff]
    %v5480 = vld [vmem:[%s5413 + $0x210] sm:$0xff]
    %v5481 = vld [vmem:[%s5413 + $0x218] sm:$0xff]
    %v5482 = vld [vmem:[%s5413 + $0x220] sm:$0xff]
    %v5483 = vld [vmem:[%s5413 + $0x228] sm:$0xff]
    %v5484 = vld [vmem:[%s5413 + $0x230] sm:$0xff]
    %v5485 = vld [vmem:[%s5413 + $0x238] sm:$0xff]
    %v5486 = vld [vmem:[%s5413 + $0x240] sm:$0xff]
    %v5487 = vld [vmem:[%s5413 + $0x248] sm:$0xff]
    %v5488 = vld [vmem:[%s5413 + $0x250] sm:$0xff]
    %v5489 = vld [vmem:[%s5413 + $0x258] sm:$0xff]
    %v5490 = vld [vmem:[%s5413 + $0x260] sm:$0xff]
    %v5491 = vld [vmem:[%s5413 + $0x268] sm:$0xff]
    %v5492 = vld [vmem:[%s5413 + $0x270] sm:$0xff]
    %v5493 = vld [vmem:[%s5413 + $0x278] sm:$0xff]
    %v5494 = vld [vmem:[%s5413 + $0x280] sm:$0xff]
    %v5495 = vld [vmem:[%s5413 + $0x288] sm:$0xff]
    %v5496 = vld [vmem:[%s5413 + $0x290] sm:$0xff]
    %v5497 = vld [vmem:[%s5413 + $0x298] sm:$0xff]
    %v5498 = vld [vmem:[%s5413 + $0x2a0] sm:$0xff]
    %v5499 = vld [vmem:[%s5413 + $0x2a8] sm:$0xff]
    %v5500 = vld [vmem:[%s5413 + $0x2b0] sm:$0xff]
    %v5501 = vld [vmem:[%s5413 + $0x2b8] sm:$0xff]
    %v5502 = vld [vmem:[%s5413 + $0x2c0] sm:$0xff]
    %v5503 = vld [vmem:[%s5413 + $0x2c8] sm:$0xff]
    %v5504 = vld [vmem:[%s5413 + $0x2d0] sm:$0xff]
    %v5505 = vld [vmem:[%s5413 + $0x2d8] sm:$0xff]
    %v5506 = vld [vmem:[%s5413 + $0x2e0] sm:$0xff]
    %v5507 = vld [vmem:[%s5413 + $0x2e8] sm:$0xff]
    %v5508 = vld [vmem:[%s5413 + $0x2f0] sm:$0xff]
    %v5509 = vld [vmem:[%s5413 + $0x2f8] sm:$0xff]
    %v5510 = vld [vmem:[%s5413 + $0x300] sm:$0xff]
    %v5511 = vld [vmem:[%s5413 + $0x308] sm:$0xff]
    %v5512 = vld [vmem:[%s5413 + $0x310] sm:$0xff]
    %v5513 = vld [vmem:[%s5413 + $0x318] sm:$0xff]
    %v5514 = vld [vmem:[%s5413 + $0x320] sm:$0xff]
    %v5515 = vld [vmem:[%s5413 + $0x328] sm:$0xff]
    %v5516 = vld [vmem:[%s5413 + $0x330] sm:$0xff]
    %v5517 = vld [vmem:[%s5413 + $0x338] sm:$0xff]
    %v5518 = vld [vmem:[%s5413 + $0x340] sm:$0xff]
    %v5519 = vld [vmem:[%s5413 + $0x348] sm:$0xff]
    %v5520 = vld [vmem:[%s5413 + $0x350] sm:$0xff]
    %v5521 = vld [vmem:[%s5413 + $0x358] sm:$0xff]
    %v5522 = vld [vmem:[%s5413 + $0x360] sm:$0xff]
    %v5523 = vld [vmem:[%s5413 + $0x368] sm:$0xff]
    %v5524 = vld [vmem:[%s5413 + $0x370] sm:$0xff]
    %v5525 = vld [vmem:[%s5413 + $0x378] sm:$0xff]
    %v5526 = vld [vmem:[%s5413 + $0x380] sm:$0xff]
    %v5527 = vld [vmem:[%s5413 + $0x388] sm:$0xff]
    %v5528 = vld [vmem:[%s5413 + $0x390] sm:$0xff]
    %v5529 = vld [vmem:[%s5413 + $0x398] sm:$0xff]
    %v5530 = vld [vmem:[%s5413 + $0x3a0] sm:$0xff]
    %v5531 = vld [vmem:[%s5413 + $0x3a8] sm:$0xff]
    %v5532 = vld [vmem:[%s5413 + $0x3b0] sm:$0xff]
    %v5533 = vld [vmem:[%s5413 + $0x3b8] sm:$0xff]
    %v5534 = vld [vmem:[%s5413 + $0x3c0] sm:$0xff]
    %v5535 = vld [vmem:[%s5413 + $0x3c8] sm:$0xff]
    %v5536 = vld [vmem:[%s5413 + $0x3d0] sm:$0xff]
    %v5537 = vld [vmem:[%s5413 + $0x3d8] sm:$0xff]
    %v5538 = vld [vmem:[%s5413 + $0x3e0] sm:$0xff]
    %v5539 = vld [vmem:[%s5413 + $0x3e8] sm:$0xff]
    %v5540 = vld [vmem:[%s5413 + $0x3f0] sm:$0xff]
    %v5541 = vld [vmem:[%s5413 + $0x3f8] sm:$0xff]
    %v5543 = vshrl.u32 %v5405, 16
    %v5545 = vshll.u32 %v5405, 16
    %v5547 = vrot.slane %v5545, 1
    %v5548 = vor.u32 %v5543, %v5547
    %v5550 = vshll.u32 %v5260, 16
    %v5552 = vrot.slane %v5550, 1
    %v5553 = vsel %vm2046, %v5548, %v5552
    %v5555 = vshrl.u32 %v5406, 16
    %v5557 = vshll.u32 %v5406, 16
    %v5559 = vrot.slane %v5557, 1
    %v5560 = vor.u32 %v5555, %v5559
    %v5562 = vshll.u32 %v5261, 16
    %v5564 = vrot.slane %v5562, 1
    %v5565 = vsel %vm2046, %v5560, %v5564
    %v5567 = vshrl.u32 %v5407, 16
    %v5569 = vshll.u32 %v5407, 16
    %v5571 = vrot.slane %v5569, 1
    %v5572 = vor.u32 %v5567, %v5571
    %v5574 = vshll.u32 %v5262, 16
    %v5576 = vrot.slane %v5574, 1
    %v5577 = vsel %vm2046, %v5572, %v5576
    %v5579 = vshrl.u32 %v5408, 16
    %v5581 = vshll.u32 %v5408, 16
    %v5583 = vrot.slane %v5581, 1
    %v5584 = vor.u32 %v5579, %v5583
    %v5586 = vshll.u32 %v5263, 16
    %v5588 = vrot.slane %v5586, 1
    %v5589 = vsel %vm2046, %v5584, %v5588
    %v5590 = vshrl.u32 %v5260, 16
    %v5592 = vor.u32 %v5590, %v5552
    %v5594 = vshll.u32 %v5409, 16
    %v5596 = vrot.slane %v5594, 1
    %v5597 = vsel %vm2046, %v5592, %v5596
    %v5598 = vshrl.u32 %v5261, 16
    %v5600 = vor.u32 %v5598, %v5564
    %v5602 = vshll.u32 %v5410, 16
    %v5604 = vrot.slane %v5602, 1
    %v5605 = vsel %vm2046, %v5600, %v5604
    %v5606 = vshrl.u32 %v5262, 16
    %v5608 = vor.u32 %v5606, %v5576
    %v5610 = vshll.u32 %v5411, 16
    %v5612 = vrot.slane %v5610, 1
    %v5613 = vsel %vm2046, %v5608, %v5612
    %v5614 = vshrl.u32 %v5263, 16
    %v5616 = vor.u32 %v5614, %v5588
    %v5618 = vshll.u32 %v5412, 16
    %v5620 = vrot.slane %v5618, 1
    %v5621 = vsel %vm2046, %v5616, %v5620
    %v5622 = vshrl.u32 %v5409, 16
    %v5624 = vor.u32 %v5622, %v5596
    %v5625 = vshrl.u32 %v5410, 16
    %v5627 = vor.u32 %v5625, %v5604
    %v5628 = vshrl.u32 %v5411, 16
    %v5630 = vor.u32 %v5628, %v5612
    %v5631 = vshrl.u32 %v5412, 16
    %v5633 = vor.u32 %v5631, %v5620
    %v5774 = vunpack.c.l.b16 %v5414
    %v5775 = vunpack.c.h.b16 %v5414
    %v5776 = vunpack.c.l.b16 %v5415
    %v5777 = vunpack.c.h.b16 %v5415
    %v5778 = vunpack.c.l.b16 %v5416
    %v5779 = vunpack.c.h.b16 %v5416
    %v5780 = vunpack.c.l.b16 %v5417
    %v5781 = vunpack.c.h.b16 %v5417
    %v5782 = vunpack.c.l.b16 %v5418
    %v5783 = vunpack.c.h.b16 %v5418
    %v5784 = vunpack.c.l.b16 %v5419
    %v5785 = vunpack.c.h.b16 %v5419
    %v5786 = vunpack.c.l.b16 %v5420
    %v5787 = vunpack.c.h.b16 %v5420
    %v5788 = vunpack.c.l.b16 %v5421
    %v5789 = vunpack.c.h.b16 %v5421
    %v5790 = vunpack.c.l.b16 %v5422
    %v5791 = vunpack.c.h.b16 %v5422
    %v5792 = vunpack.c.l.b16 %v5423
    %v5793 = vunpack.c.h.b16 %v5423
    %v5794 = vunpack.c.l.b16 %v5424
    %v5795 = vunpack.c.h.b16 %v5424
    %v5796 = vunpack.c.l.b16 %v5425
    %v5797 = vunpack.c.h.b16 %v5425
    %v5798 = vunpack.c.l.b16 %v5426
    %v5799 = vunpack.c.h.b16 %v5426
    %v5800 = vunpack.c.l.b16 %v5427
    %v5801 = vunpack.c.h.b16 %v5427
    %v5802 = vunpack.c.l.b16 %v5428
    %v5803 = vunpack.c.h.b16 %v5428
    %v5804 = vunpack.c.l.b16 %v5429
    %v5805 = vunpack.c.h.b16 %v5429
    %v5806 = vunpack.c.l.b16 %v5430
    %v5807 = vunpack.c.h.b16 %v5430
    %v5808 = vunpack.c.l.b16 %v5431
    %v5809 = vunpack.c.h.b16 %v5431
    %v5810 = vunpack.c.l.b16 %v5432
    %v5811 = vunpack.c.h.b16 %v5432
    %v5812 = vunpack.c.l.b16 %v5433
    %v5813 = vunpack.c.h.b16 %v5433
    %v5814 = vunpack.c.l.b16 %v5434
    %v5815 = vunpack.c.h.b16 %v5434
    %v5816 = vunpack.c.l.b16 %v5435
    %v5817 = vunpack.c.h.b16 %v5435
    %v5818 = vunpack.c.l.b16 %v5436
    %v5819 = vunpack.c.h.b16 %v5436
    %v5820 = vunpack.c.l.b16 %v5437
    %v5821 = vunpack.c.h.b16 %v5437
    %v5822 = vunpack.c.l.b16 %v5438
    %v5823 = vunpack.c.h.b16 %v5438
    %v5824 = vunpack.c.l.b16 %v5439
    %v5825 = vunpack.c.h.b16 %v5439
    %v5826 = vunpack.c.l.b16 %v5440
    %v5827 = vunpack.c.h.b16 %v5440
    %v5828 = vunpack.c.l.b16 %v5441
    %v5829 = vunpack.c.h.b16 %v5441
    %v5830 = vunpack.c.l.b16 %v5442
    %v5831 = vunpack.c.h.b16 %v5442
    %v5832 = vunpack.c.l.b16 %v5443
    %v5833 = vunpack.c.h.b16 %v5443
    %v5834 = vunpack.c.l.b16 %v5444
    %v5835 = vunpack.c.h.b16 %v5444
    %v5836 = vunpack.c.l.b16 %v5445
    %v5837 = vunpack.c.h.b16 %v5445
    %v5838 = vunpack.c.l.b16 %v5446
    %v5839 = vunpack.c.h.b16 %v5446
    %v5840 = vunpack.c.l.b16 %v5447
    %v5841 = vunpack.c.h.b16 %v5447
    %v5842 = vunpack.c.l.b16 %v5448
    %v5843 = vunpack.c.h.b16 %v5448
    %v5844 = vunpack.c.l.b16 %v5449
    %v5845 = vunpack.c.h.b16 %v5449
    %v5846 = vunpack.c.l.b16 %v5450
    %v5847 = vunpack.c.h.b16 %v5450
    %v5848 = vunpack.c.l.b16 %v5451
    %v5849 = vunpack.c.h.b16 %v5451
    %v5850 = vunpack.c.l.b16 %v5452
    %v5851 = vunpack.c.h.b16 %v5452
    %v5852 = vunpack.c.l.b16 %v5453
    %v5853 = vunpack.c.h.b16 %v5453
    %v5854 = vunpack.c.l.b16 %v5454
    %v5855 = vunpack.c.h.b16 %v5454
    %v5856 = vunpack.c.l.b16 %v5455
    %v5857 = vunpack.c.h.b16 %v5455
    %v5858 = vunpack.c.l.b16 %v5456
    %v5859 = vunpack.c.h.b16 %v5456
    %v5860 = vunpack.c.l.b16 %v5457
    %v5861 = vunpack.c.h.b16 %v5457
    %v5862 = vunpack.c.l.b16 %v5458
    %v5863 = vunpack.c.h.b16 %v5458
    %v5864 = vunpack.c.l.b16 %v5459
    %v5865 = vunpack.c.h.b16 %v5459
    %v5866 = vunpack.c.l.b16 %v5460
    %v5867 = vunpack.c.h.b16 %v5460
    %v5868 = vunpack.c.l.b16 %v5461
    %v5869 = vunpack.c.h.b16 %v5461
    %v5870 = vunpack.c.l.b16 %v5462
    %v5871 = vunpack.c.h.b16 %v5462
    %v5872 = vunpack.c.l.b16 %v5463
    %v5873 = vunpack.c.h.b16 %v5463
    %v5874 = vunpack.c.l.b16 %v5464
    %v5875 = vunpack.c.h.b16 %v5464
    %v5876 = vunpack.c.l.b16 %v5465
    %v5877 = vunpack.c.h.b16 %v5465
    %v5878 = vunpack.c.l.b16 %v5466
    %v5879 = vunpack.c.h.b16 %v5466
    %v5880 = vunpack.c.l.b16 %v5467
    %v5881 = vunpack.c.h.b16 %v5467
    %v5882 = vunpack.c.l.b16 %v5468
    %v5883 = vunpack.c.h.b16 %v5468
    %v5884 = vunpack.c.l.b16 %v5469
    %v5885 = vunpack.c.h.b16 %v5469
    %v5886 = vunpack.c.l.b16 %v5470
    %v5887 = vunpack.c.h.b16 %v5470
    %v5888 = vunpack.c.l.b16 %v5471
    %v5889 = vunpack.c.h.b16 %v5471
    %v5890 = vunpack.c.l.b16 %v5472
    %v5891 = vunpack.c.h.b16 %v5472
    %v5892 = vunpack.c.l.b16 %v5473
    %v5893 = vunpack.c.h.b16 %v5473
    %v5894 = vunpack.c.l.b16 %v5474
    %v5895 = vunpack.c.h.b16 %v5474
    %v5896 = vunpack.c.l.b16 %v5475
    %v5897 = vunpack.c.h.b16 %v5475
    %v5898 = vunpack.c.l.b16 %v5476
    %v5899 = vunpack.c.h.b16 %v5476
    %v5900 = vunpack.c.l.b16 %v5477
    %v5901 = vunpack.c.h.b16 %v5477
    %v5902 = vunpack.c.l.b16 %v5478
    %v5903 = vunpack.c.h.b16 %v5478
    %v5904 = vunpack.c.l.b16 %v5479
    %v5905 = vunpack.c.h.b16 %v5479
    %v5906 = vunpack.c.l.b16 %v5480
    %v5907 = vunpack.c.h.b16 %v5480
    %v5908 = vunpack.c.l.b16 %v5481
    %v5909 = vunpack.c.h.b16 %v5481
    %v5910 = vunpack.c.l.b16 %v5482
    %v5911 = vunpack.c.h.b16 %v5482
    %v5912 = vunpack.c.l.b16 %v5483
    %v5913 = vunpack.c.h.b16 %v5483
    %v5914 = vunpack.c.l.b16 %v5484
    %v5915 = vunpack.c.h.b16 %v5484
    %v5916 = vunpack.c.l.b16 %v5485
    %v5917 = vunpack.c.h.b16 %v5485
    %v5918 = vunpack.c.l.b16 %v5486
    %v5919 = vunpack.c.h.b16 %v5486
    %v5920 = vunpack.c.l.b16 %v5487
    %v5921 = vunpack.c.h.b16 %v5487
    %v5922 = vunpack.c.l.b16 %v5488
    %v5923 = vunpack.c.h.b16 %v5488
    %v5924 = vunpack.c.l.b16 %v5489
    %v5925 = vunpack.c.h.b16 %v5489
    %v5926 = vunpack.c.l.b16 %v5490
    %v5927 = vunpack.c.h.b16 %v5490
    %v5928 = vunpack.c.l.b16 %v5491
    %v5929 = vunpack.c.h.b16 %v5491
    %v5930 = vunpack.c.l.b16 %v5492
    %v5931 = vunpack.c.h.b16 %v5492
    %v5932 = vunpack.c.l.b16 %v5493
    %v5933 = vunpack.c.h.b16 %v5493
    %v5934 = vunpack.c.l.b16 %v5494
    %v5935 = vunpack.c.h.b16 %v5494
    %v5936 = vunpack.c.l.b16 %v5495
    %v5937 = vunpack.c.h.b16 %v5495
    %v5938 = vunpack.c.l.b16 %v5496
    %v5939 = vunpack.c.h.b16 %v5496
    %v5940 = vunpack.c.l.b16 %v5497
    %v5941 = vunpack.c.h.b16 %v5497
    %v5942 = vunpack.c.l.b16 %v5498
    %v5943 = vunpack.c.h.b16 %v5498
    %v5944 = vunpack.c.l.b16 %v5499
    %v5945 = vunpack.c.h.b16 %v5499
    %v5946 = vunpack.c.l.b16 %v5500
    %v5947 = vunpack.c.h.b16 %v5500
    %v5948 = vunpack.c.l.b16 %v5501
    %v5949 = vunpack.c.h.b16 %v5501
    %v5950 = vunpack.c.l.b16 %v5502
    %v5951 = vunpack.c.h.b16 %v5502
    %v5952 = vunpack.c.l.b16 %v5503
    %v5953 = vunpack.c.h.b16 %v5503
    %v5954 = vunpack.c.l.b16 %v5504
    %v5955 = vunpack.c.h.b16 %v5504
    %v5956 = vunpack.c.l.b16 %v5505
    %v5957 = vunpack.c.h.b16 %v5505
    %v5958 = vunpack.c.l.b16 %v5506
    %v5959 = vunpack.c.h.b16 %v5506
    %v5960 = vunpack.c.l.b16 %v5507
    %v5961 = vunpack.c.h.b16 %v5507
    %v5962 = vunpack.c.l.b16 %v5508
    %v5963 = vunpack.c.h.b16 %v5508
    %v5964 = vunpack.c.l.b16 %v5509
    %v5965 = vunpack.c.h.b16 %v5509
    %v5966 = vunpack.c.l.b16 %v5510
    %v5967 = vunpack.c.h.b16 %v5510
    %v5968 = vunpack.c.l.b16 %v5511
    %v5969 = vunpack.c.h.b16 %v5511
    %v5970 = vunpack.c.l.b16 %v5512
    %v5971 = vunpack.c.h.b16 %v5512
    %v5972 = vunpack.c.l.b16 %v5513
    %v5973 = vunpack.c.h.b16 %v5513
    %v5974 = vunpack.c.l.b16 %v5514
    %v5975 = vunpack.c.h.b16 %v5514
    %v5976 = vunpack.c.l.b16 %v5515
    %v5977 = vunpack.c.h.b16 %v5515
    %v5978 = vunpack.c.l.b16 %v5516
    %v5979 = vunpack.c.h.b16 %v5516
    %v5980 = vunpack.c.l.b16 %v5517
    %v5981 = vunpack.c.h.b16 %v5517
    %v5982 = vunpack.c.l.b16 %v5518
    %v5983 = vunpack.c.h.b16 %v5518
    %v5984 = vunpack.c.l.b16 %v5519
    %v5985 = vunpack.c.h.b16 %v5519
    %v5986 = vunpack.c.l.b16 %v5520
    %v5987 = vunpack.c.h.b16 %v5520
    %v5988 = vunpack.c.l.b16 %v5521
    %v5989 = vunpack.c.h.b16 %v5521
    %v5990 = vunpack.c.l.b16 %v5522
    %v5991 = vunpack.c.h.b16 %v5522
    %v5992 = vunpack.c.l.b16 %v5523
    %v5993 = vunpack.c.h.b16 %v5523
    %v5994 = vunpack.c.l.b16 %v5524
    %v5995 = vunpack.c.h.b16 %v5524
    %v5996 = vunpack.c.l.b16 %v5525
    %v5997 = vunpack.c.h.b16 %v5525
    %v5998 = vunpack.c.l.b16 %v5526
    %v5999 = vunpack.c.h.b16 %v5526
    %v6000 = vunpack.c.l.b16 %v5527
    %v6001 = vunpack.c.h.b16 %v5527
    %v6002 = vunpack.c.l.b16 %v5528
    %v6003 = vunpack.c.h.b16 %v5528
    %v6004 = vunpack.c.l.b16 %v5529
    %v6005 = vunpack.c.h.b16 %v5529
    %v6006 = vunpack.c.l.b16 %v5530
    %v6007 = vunpack.c.h.b16 %v5530
    %v6008 = vunpack.c.l.b16 %v5531
    %v6009 = vunpack.c.h.b16 %v5531
    %v6010 = vunpack.c.l.b16 %v5532
    %v6011 = vunpack.c.h.b16 %v5532
    %v6012 = vunpack.c.l.b16 %v5533
    %v6013 = vunpack.c.h.b16 %v5533
    %v6014 = vunpack.c.l.b16 %v5534
    %v6015 = vunpack.c.h.b16 %v5534
    %v6016 = vunpack.c.l.b16 %v5535
    %v6017 = vunpack.c.h.b16 %v5535
    %v6018 = vunpack.c.l.b16 %v5536
    %v6019 = vunpack.c.h.b16 %v5536
    %v6020 = vunpack.c.l.b16 %v5537
    %v6021 = vunpack.c.h.b16 %v5537
    %v6022 = vunpack.c.l.b16 %v5538
    %v6023 = vunpack.c.h.b16 %v5538
    %v6024 = vunpack.c.l.b16 %v5539
    %v6025 = vunpack.c.h.b16 %v5539
    %v6026 = vunpack.c.l.b16 %v5540
    %v6027 = vunpack.c.h.b16 %v5540
    %v6028 = vunpack.c.l.b16 %v5541
    %v6029 = vunpack.c.h.b16 %v5541
    %v6030 = vpack.c.b16 %v5778, %v5774
    %v6031 = vpack.c.b16 %v5779, %v5775
    %v6032 = vpack.c.b16 %v5780, %v5776
    %v6033 = vpack.c.b16 %v5781, %v5777
    %v6034 = vpack.c.b16 %v5786, %v5782
    %v6035 = vpack.c.b16 %v5787, %v5783
    %v6036 = vpack.c.b16 %v5788, %v5784
    %v6037 = vpack.c.b16 %v5789, %v5785
    %v6038 = vpack.c.b16 %v5794, %v5790
    %v6039 = vpack.c.b16 %v5795, %v5791
    %v6040 = vpack.c.b16 %v5796, %v5792
    %v6041 = vpack.c.b16 %v5797, %v5793
    %v6042 = vpack.c.b16 %v5802, %v5798
    %v6043 = vpack.c.b16 %v5803, %v5799
    %v6044 = vpack.c.b16 %v5804, %v5800
    %v6045 = vpack.c.b16 %v5805, %v5801
    %v6046 = vpack.c.b16 %v5810, %v5806
    %v6047 = vpack.c.b16 %v5811, %v5807
    %v6048 = vpack.c.b16 %v5812, %v5808
    %v6049 = vpack.c.b16 %v5813, %v5809
    %v6050 = vpack.c.b16 %v5818, %v5814
    %v6051 = vpack.c.b16 %v5819, %v5815
    %v6052 = vpack.c.b16 %v5820, %v5816
    %v6053 = vpack.c.b16 %v5821, %v5817
    %v6054 = vpack.c.b16 %v5826, %v5822
    %v6055 = vpack.c.b16 %v5827, %v5823
    %v6056 = vpack.c.b16 %v5828, %v5824
    %v6057 = vpack.c.b16 %v5829, %v5825
    %v6058 = vpack.c.b16 %v5834, %v5830
    %v6059 = vpack.c.b16 %v5835, %v5831
    %v6060 = vpack.c.b16 %v5836, %v5832
    %v6061 = vpack.c.b16 %v5837, %v5833
    %v6062 = vpack.c.b16 %v5842, %v5838
    %v6063 = vpack.c.b16 %v5843, %v5839
    %v6064 = vpack.c.b16 %v5844, %v5840
    %v6065 = vpack.c.b16 %v5845, %v5841
    %v6066 = vpack.c.b16 %v5850, %v5846
    %v6067 = vpack.c.b16 %v5851, %v5847
    %v6068 = vpack.c.b16 %v5852, %v5848
    %v6069 = vpack.c.b16 %v5853, %v5849
    %v6070 = vpack.c.b16 %v5858, %v5854
    %v6071 = vpack.c.b16 %v5859, %v5855
    %v6072 = vpack.c.b16 %v5860, %v5856
    %v6073 = vpack.c.b16 %v5861, %v5857
    %v6074 = vpack.c.b16 %v5866, %v5862
    %v6075 = vpack.c.b16 %v5867, %v5863
    %v6076 = vpack.c.b16 %v5868, %v5864
    %v6077 = vpack.c.b16 %v5869, %v5865
    %v6078 = vpack.c.b16 %v5874, %v5870
    %v6079 = vpack.c.b16 %v5875, %v5871
    %v6080 = vpack.c.b16 %v5876, %v5872
    %v6081 = vpack.c.b16 %v5877, %v5873
    %v6082 = vpack.c.b16 %v5882, %v5878
    %v6083 = vpack.c.b16 %v5883, %v5879
    %v6084 = vpack.c.b16 %v5884, %v5880
    %v6085 = vpack.c.b16 %v5885, %v5881
    %v6086 = vpack.c.b16 %v5890, %v5886
    %v6087 = vpack.c.b16 %v5891, %v5887
    %v6088 = vpack.c.b16 %v5892, %v5888
    %v6089 = vpack.c.b16 %v5893, %v5889
    %v6090 = vpack.c.b16 %v5898, %v5894
    %v6091 = vpack.c.b16 %v5899, %v5895
    %v6092 = vpack.c.b16 %v5900, %v5896
    %v6093 = vpack.c.b16 %v5901, %v5897
    %v6094 = vpack.c.b16 %v5906, %v5902
    %v6095 = vpack.c.b16 %v5907, %v5903
    %v6096 = vpack.c.b16 %v5908, %v5904
    %v6097 = vpack.c.b16 %v5909, %v5905
    %v6098 = vpack.c.b16 %v5914, %v5910
    %v6099 = vpack.c.b16 %v5915, %v5911
    %v6100 = vpack.c.b16 %v5916, %v5912
    %v6101 = vpack.c.b16 %v5917, %v5913
    %v6102 = vpack.c.b16 %v5922, %v5918
    %v6103 = vpack.c.b16 %v5923, %v5919
    %v6104 = vpack.c.b16 %v5924, %v5920
    %v6105 = vpack.c.b16 %v5925, %v5921
    %v6106 = vpack.c.b16 %v5930, %v5926
    %v6107 = vpack.c.b16 %v5931, %v5927
    %v6108 = vpack.c.b16 %v5932, %v5928
    %v6109 = vpack.c.b16 %v5933, %v5929
    %v6110 = vpack.c.b16 %v5938, %v5934
    %v6111 = vpack.c.b16 %v5939, %v5935
    %v6112 = vpack.c.b16 %v5940, %v5936
    %v6113 = vpack.c.b16 %v5941, %v5937
    %v6114 = vpack.c.b16 %v5946, %v5942
    %v6115 = vpack.c.b16 %v5947, %v5943
    %v6116 = vpack.c.b16 %v5948, %v5944
    %v6117 = vpack.c.b16 %v5949, %v5945
    %v6118 = vpack.c.b16 %v5954, %v5950
    %v6119 = vpack.c.b16 %v5955, %v5951
    %v6120 = vpack.c.b16 %v5956, %v5952
    %v6121 = vpack.c.b16 %v5957, %v5953
    %v6122 = vpack.c.b16 %v5962, %v5958
    %v6123 = vpack.c.b16 %v5963, %v5959
    %v6124 = vpack.c.b16 %v5964, %v5960
    %v6125 = vpack.c.b16 %v5965, %v5961
    %v6126 = vpack.c.b16 %v5970, %v5966
    %v6127 = vpack.c.b16 %v5971, %v5967
    %v6128 = vpack.c.b16 %v5972, %v5968
    %v6129 = vpack.c.b16 %v5973, %v5969
    %v6130 = vpack.c.b16 %v5978, %v5974
    %v6131 = vpack.c.b16 %v5979, %v5975
    %v6132 = vpack.c.b16 %v5980, %v5976
    %v6133 = vpack.c.b16 %v5981, %v5977
    %v6134 = vpack.c.b16 %v5986, %v5982
    %v6135 = vpack.c.b16 %v5987, %v5983
    %v6136 = vpack.c.b16 %v5988, %v5984
    %v6137 = vpack.c.b16 %v5989, %v5985
    %v6138 = vpack.c.b16 %v5994, %v5990
    %v6139 = vpack.c.b16 %v5995, %v5991
    %v6140 = vpack.c.b16 %v5996, %v5992
    %v6141 = vpack.c.b16 %v5997, %v5993
    %v6142 = vpack.c.b16 %v6002, %v5998
    %v6143 = vpack.c.b16 %v6003, %v5999
    %v6144 = vpack.c.b16 %v6004, %v6000
    %v6145 = vpack.c.b16 %v6005, %v6001
    %v6146 = vpack.c.b16 %v6010, %v6006
    %v6147 = vpack.c.b16 %v6011, %v6007
    %v6148 = vpack.c.b16 %v6012, %v6008
    %v6149 = vpack.c.b16 %v6013, %v6009
    %v6150 = vpack.c.b16 %v6018, %v6014
    %v6151 = vpack.c.b16 %v6019, %v6015
    %v6152 = vpack.c.b16 %v6020, %v6016
    %v6153 = vpack.c.b16 %v6021, %v6017
    %v6154 = vpack.c.b16 %v6026, %v6022
    %v6155 = vpack.c.b16 %v6027, %v6023
    %v6156 = vpack.c.b16 %v6028, %v6024
    %v6157 = vpack.c.b16 %v6029, %v6025
    %6286 = vmatprep.subr.bf16.mxu0 %v6059
    %6287 = vmatpush1.bf16.msra.mxu0 %v6058
    %6288 = vmatprep.subr.bf16.mxu0 %v6055
    %6289 = vmatpush1.bf16.msra.mxu0 %v6054
    %6290 = vmatprep.subr.bf16.mxu0 %v6051
    %6291 = vmatpush1.bf16.msra.mxu0 %v6050
    %6292 = vmatprep.subr.bf16.mxu0 %v6047
    %6293 = vmatpush1.bf16.msra.mxu0 %v6046
    %6294 = vmatprep.subr.bf16.mxu0 %v6043
    %6295 = vmatpush1.bf16.msra.mxu0 %v6042
    %6296 = vmatprep.subr.bf16.mxu0 %v6039
    %6297 = vmatpush1.bf16.msra.mxu0 %v6038
    %6298 = vmatprep.subr.bf16.mxu0 %v6035
    %6299 = vmatpush1.bf16.msra.mxu0 %v6034
    %6300 = vmatprep.subr.bf16.mxu0 %v6031
    %6301 = vmatpush1.bf16.msra.mxu0 %v6030
    %6302 = vmatprep.subr.bf16.mxu0 %v6091
    %6303 = vmatpush2.bf16.msra.mxu0 %v6090
    %6304 = vmatprep.subr.bf16.mxu0 %v6087
    %6305 = vmatpush2.bf16.msra.mxu0 %v6086
    %6306 = vmatprep.subr.bf16.mxu0 %v6083
    %6307 = vmatpush2.bf16.msra.mxu0 %v6082
    %6308 = vmatprep.subr.bf16.mxu0 %v6079
    %6309 = vmatpush2.bf16.msra.mxu0 %v6078
    %6310 = vmatprep.subr.bf16.mxu0 %v6075
    %6311 = vmatpush2.bf16.msra.mxu0 %v6074
    %6312 = vmatprep.subr.bf16.mxu0 %v6071
    %6313 = vmatpush2.bf16.msra.mxu0 %v6070
    %6314 = vmatprep.subr.bf16.mxu0 %v6067
    %6315 = vmatpush2.bf16.msra.mxu0 %v6066
    %6316 = vmatprep.subr.bf16.mxu0 %v6063
    %6317 = vmatpush2.bf16.msra.mxu0 %v6062
    %6318 = vmatprep.mubr.bf16.mxu0 %v5565
    %6319 = vmatmul.mubr.bf16.gmra.mxu0 %v5553
    %v6320 = vpop.f32.mrf.mxu0
    %v6321 = vadd.f32 0.0, %v6320
    %v6322 = vpop.f32.mrf.mxu0
    %v6323 = vadd.f32 0.0, %v6322
    %v6324 = vpop.f32.mrf.mxu0
    %v6325 = vadd.f32 0.0, %v6324
    %v6326 = vpop.f32.mrf.mxu0
    %v6327 = vadd.f32 0.0, %v6326
    %6328 = vmatprep.mubr.bf16.mxu0 %v5605
    %6329 = vmatmul.mubr.bf16.gmra.mxu0 %v5597
    %v6330 = vpop.f32.mrf.mxu0
    %v6331 = vadd.f32 0.0, %v6330
    %v6332 = vpop.f32.mrf.mxu0
    %v6333 = vadd.f32 0.0, %v6332
    %v6334 = vpop.f32.mrf.mxu0
    %v6335 = vadd.f32 0.0, %v6334
    %v6336 = vpop.f32.mrf.mxu0
    %v6337 = vadd.f32 0.0, %v6336
    %6338 = vmatprep.mubr.bf16.mxu0 %v5627
    %6339 = vmatmul.mubr.bf16.gmra.mxu0 %v5624
    %v6340 = vpop.f32.mrf.mxu0
    %v6341 = vadd.f32 0.0, %v6340
    %v6342 = vpop.f32.mrf.mxu0
    %v6343 = vadd.f32 0.0, %v6342
    %v6344 = vpop.f32.mrf.mxu0
    %v6345 = vpop.f32.mrf.mxu0
    %6346 = vdwg.mxu0
    %6347 = vmatprep.subr.bf16.mxu0 %v6123
    %6348 = vmatpush1.bf16.msra.mxu0 %v6122
    %6349 = vmatprep.subr.bf16.mxu0 %v6119
    %6350 = vmatpush1.bf16.msra.mxu0 %v6118
    %6351 = vmatprep.subr.bf16.mxu0 %v6115
    %6352 = vmatpush1.bf16.msra.mxu0 %v6114
    %6353 = vmatprep.subr.bf16.mxu0 %v6111
    %6354 = vmatpush1.bf16.msra.mxu0 %v6110
    %6355 = vmatprep.subr.bf16.mxu0 %v6107
    %6356 = vmatpush1.bf16.msra.mxu0 %v6106
    %6357 = vmatprep.subr.bf16.mxu0 %v6103
    %6358 = vmatpush1.bf16.msra.mxu0 %v6102
    %6359 = vmatprep.subr.bf16.mxu0 %v6099
    %6360 = vmatpush1.bf16.msra.mxu0 %v6098
    %6361 = vmatprep.subr.bf16.mxu0 %v6095
    %6362 = vmatpush1.bf16.msra.mxu0 %v6094
    %6363 = vmatprep.subr.bf16.mxu0 %v6155
    %6364 = vmatpush2.bf16.msra.mxu0 %v6154
    %6365 = vmatprep.subr.bf16.mxu0 %v6151
    %6366 = vmatpush2.bf16.msra.mxu0 %v6150
    %6367 = vmatprep.subr.bf16.mxu0 %v6147
    %6368 = vmatpush2.bf16.msra.mxu0 %v6146
    %6369 = vmatprep.subr.bf16.mxu0 %v6143
    %6370 = vmatpush2.bf16.msra.mxu0 %v6142
    %6371 = vmatprep.subr.bf16.mxu0 %v6139
    %6372 = vmatpush2.bf16.msra.mxu0 %v6138
    %6373 = vmatprep.subr.bf16.mxu0 %v6135
    %6374 = vmatpush2.bf16.msra.mxu0 %v6134
    %6375 = vmatprep.subr.bf16.mxu0 %v6131
    %6376 = vmatpush2.bf16.msra.mxu0 %v6130
    %6377 = vmatprep.subr.bf16.mxu0 %v6127
    %6378 = vmatpush2.bf16.msra.mxu0 %v6126
    %6379 = vmatprep.mubr.bf16.mxu0 %v5589
    %6380 = vmatmul.mubr.bf16.gmra.mxu0 %v5577
    %v6381 = vpop.f32.mrf.mxu0
    %v6382 = vadd.f32 %v6321, %v6381
    %v6383 = vpop.f32.mrf.mxu0
    %v6384 = vadd.f32 %v6323, %v6383
    %v6385 = vpop.f32.mrf.mxu0
    %v6386 = vadd.f32 %v6325, %v6385
    %v6387 = vpop.f32.mrf.mxu0
    %v6388 = vadd.f32 %v6327, %v6387
    %6389 = vmatprep.mubr.bf16.mxu0 %v5621
    %6390 = vmatmul.mubr.bf16.gmra.mxu0 %v5613
    %v6391 = vpop.f32.mrf.mxu0
    %v6392 = vadd.f32 %v6331, %v6391
    %v6393 = vpop.f32.mrf.mxu0
    %v6394 = vadd.f32 %v6333, %v6393
    %v6395 = vpop.f32.mrf.mxu0
    %v6396 = vadd.f32 %v6335, %v6395
    %v6397 = vpop.f32.mrf.mxu0
    %v6398 = vadd.f32 %v6337, %v6397
    %6399 = vmatprep.mubr.bf16.mxu0 %v5633
    %6400 = vmatmul.mubr.bf16.gmra.mxu0 %v5630
    %v6401 = vpop.f32.mrf.mxu0
    %v6402 = vadd.f32 %v6341, %v6401
    %v6403 = vpop.f32.mrf.mxu0
    %v6404 = vadd.f32 %v6343, %v6403
    %v6405 = vpop.f32.mrf.mxu0
    %v6406 = vpop.f32.mrf.mxu0
    %6407 = vdwg.mxu0
    %6408 = vmatprep.subr.bf16.mxu0 %v6061
    %6409 = vmatpush1.bf16.msra.mxu0 %v6060
    %6410 = vmatprep.subr.bf16.mxu0 %v6057
    %6411 = vmatpush1.bf16.msra.mxu0 %v6056
    %6412 = vmatprep.subr.bf16.mxu0 %v6053
    %6413 = vmatpush1.bf16.msra.mxu0 %v6052
    %6414 = vmatprep.subr.bf16.mxu0 %v6049
    %6415 = vmatpush1.bf16.msra.mxu0 %v6048
    %6416 = vmatprep.subr.bf16.mxu0 %v6045
    %6417 = vmatpush1.bf16.msra.mxu0 %v6044
    %6418 = vmatprep.subr.bf16.mxu0 %v6041
    %6419 = vmatpush1.bf16.msra.mxu0 %v6040
    %6420 = vmatprep.subr.bf16.mxu0 %v6037
    %6421 = vmatpush1.bf16.msra.mxu0 %v6036
    %6422 = vmatprep.subr.bf16.mxu0 %v6033
    %6423 = vmatpush1.bf16.msra.mxu0 %v6032
    %6424 = vmatprep.subr.bf16.mxu0 %v6093
    %6425 = vmatpush2.bf16.msra.mxu0 %v6092
    %6426 = vmatprep.subr.bf16.mxu0 %v6089
    %6427 = vmatpush2.bf16.msra.mxu0 %v6088
    %6428 = vmatprep.subr.bf16.mxu0 %v6085
    %6429 = vmatpush2.bf16.msra.mxu0 %v6084
    %6430 = vmatprep.subr.bf16.mxu0 %v6081
    %6431 = vmatpush2.bf16.msra.mxu0 %v6080
    %6432 = vmatprep.subr.bf16.mxu0 %v6077
    %6433 = vmatpush2.bf16.msra.mxu0 %v6076
    %6434 = vmatprep.subr.bf16.mxu0 %v6073
    %6435 = vmatpush2.bf16.msra.mxu0 %v6072
    %6436 = vmatprep.subr.bf16.mxu0 %v6069
    %6437 = vmatpush2.bf16.msra.mxu0 %v6068
    %6438 = vmatprep.subr.bf16.mxu0 %v6065
    %6439 = vmatpush2.bf16.msra.mxu0 %v6064
    %6440 = vmatprep.mubr.bf16.mxu0 %v5565
    %6441 = vmatmul.mubr.bf16.gmra.mxu0 %v5553
    %v6442 = vpop.f32.mrf.mxu0
    %v6443 = vadd.f32 0.0, %v6442
    %v6444 = vpop.f32.mrf.mxu0
    %v6445 = vadd.f32 0.0, %v6444
    %v6446 = vpop.f32.mrf.mxu0
    %v6447 = vadd.f32 0.0, %v6446
    %v6448 = vpop.f32.mrf.mxu0
    %v6449 = vadd.f32 0.0, %v6448
    %6450 = vmatprep.mubr.bf16.mxu0 %v5605
    %6451 = vmatmul.mubr.bf16.gmra.mxu0 %v5597
    %v6452 = vpop.f32.mrf.mxu0
    %v6453 = vadd.f32 0.0, %v6452
    %v6454 = vpop.f32.mrf.mxu0
    %v6455 = vadd.f32 0.0, %v6454
    %v6456 = vpop.f32.mrf.mxu0
    %v6457 = vadd.f32 0.0, %v6456
    %v6458 = vpop.f32.mrf.mxu0
    %v6459 = vadd.f32 0.0, %v6458
    %6460 = vmatprep.mubr.bf16.mxu0 %v5627
    %6461 = vmatmul.mubr.bf16.gmra.mxu0 %v5624
    %v6462 = vpop.f32.mrf.mxu0
    %v6463 = vadd.f32 0.0, %v6462
    %v6464 = vpop.f32.mrf.mxu0
    %v6465 = vadd.f32 0.0, %v6464
    %v6466 = vpop.f32.mrf.mxu0
    %v6467 = vpop.f32.mrf.mxu0
    %6468 = vdwg.mxu0
    %6469 = vmatprep.subr.bf16.mxu0 %v6125
    %6470 = vmatpush1.bf16.msra.mxu0 %v6124
    %6471 = vmatprep.subr.bf16.mxu0 %v6121
    %6472 = vmatpush1.bf16.msra.mxu0 %v6120
    %6473 = vmatprep.subr.bf16.mxu0 %v6117
    %6474 = vmatpush1.bf16.msra.mxu0 %v6116
    %6475 = vmatprep.subr.bf16.mxu0 %v6113
    %6476 = vmatpush1.bf16.msra.mxu0 %v6112
    %6477 = vmatprep.subr.bf16.mxu0 %v6109
    %6478 = vmatpush1.bf16.msra.mxu0 %v6108
    %6479 = vmatprep.subr.bf16.mxu0 %v6105
    %6480 = vmatpush1.bf16.msra.mxu0 %v6104
    %6481 = vmatprep.subr.bf16.mxu0 %v6101
    %6482 = vmatpush1.bf16.msra.mxu0 %v6100
    %6483 = vmatprep.subr.bf16.mxu0 %v6097
    %6484 = vmatpush1.bf16.msra.mxu0 %v6096
    %6485 = vmatprep.subr.bf16.mxu0 %v6157
    %6486 = vmatpush2.bf16.msra.mxu0 %v6156
    %6487 = vmatprep.subr.bf16.mxu0 %v6153
    %6488 = vmatpush2.bf16.msra.mxu0 %v6152
    %6489 = vmatprep.subr.bf16.mxu0 %v6149
    %6490 = vmatpush2.bf16.msra.mxu0 %v6148
    %6491 = vmatprep.subr.bf16.mxu0 %v6145
    %6492 = vmatpush2.bf16.msra.mxu0 %v6144
    %6493 = vmatprep.subr.bf16.mxu0 %v6141
    %6494 = vmatpush2.bf16.msra.mxu0 %v6140
    %6495 = vmatprep.subr.bf16.mxu0 %v6137
    %6496 = vmatpush2.bf16.msra.mxu0 %v6136
    %6497 = vmatprep.subr.bf16.mxu0 %v6133
    %6498 = vmatpush2.bf16.msra.mxu0 %v6132
    %6499 = vmatprep.subr.bf16.mxu0 %v6129
    %6500 = vmatpush2.bf16.msra.mxu0 %v6128
    %6501 = vmatprep.mubr.bf16.mxu0 %v5589
    %6502 = vmatmul.mubr.bf16.gmra.mxu0 %v5577
    %v6503 = vpop.f32.mrf.mxu0
    %v6504 = vadd.f32 %v6443, %v6503
    %v6505 = vpop.f32.mrf.mxu0
    %v6506 = vadd.f32 %v6445, %v6505
    %v6507 = vpop.f32.mrf.mxu0
    %v6508 = vadd.f32 %v6447, %v6507
    %v6509 = vpop.f32.mrf.mxu0
    %v6510 = vadd.f32 %v6449, %v6509
    %6511 = vmatprep.mubr.bf16.mxu0 %v5621
    %6512 = vmatmul.mubr.bf16.gmra.mxu0 %v5613
    %v6513 = vpop.f32.mrf.mxu0
    %v6514 = vadd.f32 %v6453, %v6513
    %v6515 = vpop.f32.mrf.mxu0
    %v6516 = vadd.f32 %v6455, %v6515
    %v6517 = vpop.f32.mrf.mxu0
    %v6518 = vadd.f32 %v6457, %v6517
    %v6519 = vpop.f32.mrf.mxu0
    %v6520 = vadd.f32 %v6459, %v6519
    %6521 = vmatprep.mubr.bf16.mxu0 %v5633
    %6522 = vmatmul.mubr.bf16.gmra.mxu0 %v5630
    %v6523 = vpop.f32.mrf.mxu0
    %v6524 = vadd.f32 %v6463, %v6523
    %v6525 = vpop.f32.mrf.mxu0
    %v6526 = vadd.f32 %v6465, %v6525
    %v6527 = vpop.f32.mrf.mxu0
    %v6528 = vpop.f32.mrf.mxu0
    %6529 = vdwg.mxu0
    %v6658 = vunpack.c.l.b16 %v5269
    %v6659 = vunpack.c.h.b16 %v5269
    %v6660 = vunpack.c.l.b16 %v5270
    %v6661 = vunpack.c.h.b16 %v5270
    %v6662 = vunpack.c.l.b16 %v5271
    %v6663 = vunpack.c.h.b16 %v5271
    %v6664 = vunpack.c.l.b16 %v5272
    %v6665 = vunpack.c.h.b16 %v5272
    %v6666 = vunpack.c.l.b16 %v5273
    %v6667 = vunpack.c.h.b16 %v5273
    %v6668 = vunpack.c.l.b16 %v5274
    %v6669 = vunpack.c.h.b16 %v5274
    %v6670 = vunpack.c.l.b16 %v5275
    %v6671 = vunpack.c.h.b16 %v5275
    %v6672 = vunpack.c.l.b16 %v5276
    %v6673 = vunpack.c.h.b16 %v5276
    %v6674 = vunpack.c.l.b16 %v5277
    %v6675 = vunpack.c.h.b16 %v5277
    %v6676 = vunpack.c.l.b16 %v5278
    %v6677 = vunpack.c.h.b16 %v5278
    %v6678 = vunpack.c.l.b16 %v5279
    %v6679 = vunpack.c.h.b16 %v5279
    %v6680 = vunpack.c.l.b16 %v5280
    %v6681 = vunpack.c.h.b16 %v5280
    %v6682 = vunpack.c.l.b16 %v5281
    %v6683 = vunpack.c.h.b16 %v5281
    %v6684 = vunpack.c.l.b16 %v5282
    %v6685 = vunpack.c.h.b16 %v5282
    %v6686 = vunpack.c.l.b16 %v5283
    %v6687 = vunpack.c.h.b16 %v5283
    %v6688 = vunpack.c.l.b16 %v5284
    %v6689 = vunpack.c.h.b16 %v5284
    %v6690 = vunpack.c.l.b16 %v5285
    %v6691 = vunpack.c.h.b16 %v5285
    %v6692 = vunpack.c.l.b16 %v5286
    %v6693 = vunpack.c.h.b16 %v5286
    %v6694 = vunpack.c.l.b16 %v5287
    %v6695 = vunpack.c.h.b16 %v5287
    %v6696 = vunpack.c.l.b16 %v5288
    %v6697 = vunpack.c.h.b16 %v5288
    %v6698 = vunpack.c.l.b16 %v5289
    %v6699 = vunpack.c.h.b16 %v5289
    %v6700 = vunpack.c.l.b16 %v5290
    %v6701 = vunpack.c.h.b16 %v5290
    %v6702 = vunpack.c.l.b16 %v5291
    %v6703 = vunpack.c.h.b16 %v5291
    %v6704 = vunpack.c.l.b16 %v5292
    %v6705 = vunpack.c.h.b16 %v5292
    %v6706 = vunpack.c.l.b16 %v5293
    %v6707 = vunpack.c.h.b16 %v5293
    %v6708 = vunpack.c.l.b16 %v5294
    %v6709 = vunpack.c.h.b16 %v5294
    %v6710 = vunpack.c.l.b16 %v5295
    %v6711 = vunpack.c.h.b16 %v5295
    %v6712 = vunpack.c.l.b16 %v5296
    %v6713 = vunpack.c.h.b16 %v5296
    %v6714 = vunpack.c.l.b16 %v5297
    %v6715 = vunpack.c.h.b16 %v5297
    %v6716 = vunpack.c.l.b16 %v5298
    %v6717 = vunpack.c.h.b16 %v5298
    %v6718 = vunpack.c.l.b16 %v5299
    %v6719 = vunpack.c.h.b16 %v5299
    %v6720 = vunpack.c.l.b16 %v5300
    %v6721 = vunpack.c.h.b16 %v5300
    %v6722 = vunpack.c.l.b16 %v5301
    %v6723 = vunpack.c.h.b16 %v5301
    %v6724 = vunpack.c.l.b16 %v5302
    %v6725 = vunpack.c.h.b16 %v5302
    %v6726 = vunpack.c.l.b16 %v5303
    %v6727 = vunpack.c.h.b16 %v5303
    %v6728 = vunpack.c.l.b16 %v5304
    %v6729 = vunpack.c.h.b16 %v5304
    %v6730 = vunpack.c.l.b16 %v5305
    %v6731 = vunpack.c.h.b16 %v5305
    %v6732 = vunpack.c.l.b16 %v5306
    %v6733 = vunpack.c.h.b16 %v5306
    %v6734 = vunpack.c.l.b16 %v5307
    %v6735 = vunpack.c.h.b16 %v5307
    %v6736 = vunpack.c.l.b16 %v5308
    %v6737 = vunpack.c.h.b16 %v5308
    %v6738 = vunpack.c.l.b16 %v5309
    %v6739 = vunpack.c.h.b16 %v5309
    %v6740 = vunpack.c.l.b16 %v5310
    %v6741 = vunpack.c.h.b16 %v5310
    %v6742 = vunpack.c.l.b16 %v5311
    %v6743 = vunpack.c.h.b16 %v5311
    %v6744 = vunpack.c.l.b16 %v5312
    %v6745 = vunpack.c.h.b16 %v5312
    %v6746 = vunpack.c.l.b16 %v5313
    %v6747 = vunpack.c.h.b16 %v5313
    %v6748 = vunpack.c.l.b16 %v5314
    %v6749 = vunpack.c.h.b16 %v5314
    %v6750 = vunpack.c.l.b16 %v5315
    %v6751 = vunpack.c.h.b16 %v5315
    %v6752 = vunpack.c.l.b16 %v5316
    %v6753 = vunpack.c.h.b16 %v5316
    %v6754 = vunpack.c.l.b16 %v5317
    %v6755 = vunpack.c.h.b16 %v5317
    %v6756 = vunpack.c.l.b16 %v5318
    %v6757 = vunpack.c.h.b16 %v5318
    %v6758 = vunpack.c.l.b16 %v5319
    %v6759 = vunpack.c.h.b16 %v5319
    %v6760 = vunpack.c.l.b16 %v5320
    %v6761 = vunpack.c.h.b16 %v5320
    %v6762 = vunpack.c.l.b16 %v5321
    %v6763 = vunpack.c.h.b16 %v5321
    %v6764 = vunpack.c.l.b16 %v5322
    %v6765 = vunpack.c.h.b16 %v5322
    %v6766 = vunpack.c.l.b16 %v5323
    %v6767 = vunpack.c.h.b16 %v5323
    %v6768 = vunpack.c.l.b16 %v5324
    %v6769 = vunpack.c.h.b16 %v5324
    %v6770 = vunpack.c.l.b16 %v5325
    %v6771 = vunpack.c.h.b16 %v5325
    %v6772 = vunpack.c.l.b16 %v5326
    %v6773 = vunpack.c.h.b16 %v5326
    %v6774 = vunpack.c.l.b16 %v5327
    %v6775 = vunpack.c.h.b16 %v5327
    %v6776 = vunpack.c.l.b16 %v5328
    %v6777 = vunpack.c.h.b16 %v5328
    %v6778 = vunpack.c.l.b16 %v5329
    %v6779 = vunpack.c.h.b16 %v5329
    %v6780 = vunpack.c.l.b16 %v5330
    %v6781 = vunpack.c.h.b16 %v5330
    %v6782 = vunpack.c.l.b16 %v5331
    %v6783 = vunpack.c.h.b16 %v5331
    %v6784 = vunpack.c.l.b16 %v5332
    %v6785 = vunpack.c.h.b16 %v5332
    %v6786 = vunpack.c.l.b16 %v5333
    %v6787 = vunpack.c.h.b16 %v5333
    %v6788 = vunpack.c.l.b16 %v5334
    %v6789 = vunpack.c.h.b16 %v5334
    %v6790 = vunpack.c.l.b16 %v5335
    %v6791 = vunpack.c.h.b16 %v5335
    %v6792 = vunpack.c.l.b16 %v5336
    %v6793 = vunpack.c.h.b16 %v5336
    %v6794 = vunpack.c.l.b16 %v5337
    %v6795 = vunpack.c.h.b16 %v5337
    %v6796 = vunpack.c.l.b16 %v5338
    %v6797 = vunpack.c.h.b16 %v5338
    %v6798 = vunpack.c.l.b16 %v5339
    %v6799 = vunpack.c.h.b16 %v5339
    %v6800 = vunpack.c.l.b16 %v5340
    %v6801 = vunpack.c.h.b16 %v5340
    %v6802 = vunpack.c.l.b16 %v5341
    %v6803 = vunpack.c.h.b16 %v5341
    %v6804 = vunpack.c.l.b16 %v5342
    %v6805 = vunpack.c.h.b16 %v5342
    %v6806 = vunpack.c.l.b16 %v5343
    %v6807 = vunpack.c.h.b16 %v5343
    %v6808 = vunpack.c.l.b16 %v5344
    %v6809 = vunpack.c.h.b16 %v5344
    %v6810 = vunpack.c.l.b16 %v5345
    %v6811 = vunpack.c.h.b16 %v5345
    %v6812 = vunpack.c.l.b16 %v5346
    %v6813 = vunpack.c.h.b16 %v5346
    %v6814 = vunpack.c.l.b16 %v5347
    %v6815 = vunpack.c.h.b16 %v5347
    %v6816 = vunpack.c.l.b16 %v5348
    %v6817 = vunpack.c.h.b16 %v5348
    %v6818 = vunpack.c.l.b16 %v5349
    %v6819 = vunpack.c.h.b16 %v5349
    %v6820 = vunpack.c.l.b16 %v5350
    %v6821 = vunpack.c.h.b16 %v5350
    %v6822 = vunpack.c.l.b16 %v5351
    %v6823 = vunpack.c.h.b16 %v5351
    %v6824 = vunpack.c.l.b16 %v5352
    %v6825 = vunpack.c.h.b16 %v5352
    %v6826 = vunpack.c.l.b16 %v5353
    %v6827 = vunpack.c.h.b16 %v5353
    %v6828 = vunpack.c.l.b16 %v5354
    %v6829 = vunpack.c.h.b16 %v5354
    %v6830 = vunpack.c.l.b16 %v5355
    %v6831 = vunpack.c.h.b16 %v5355
    %v6832 = vunpack.c.l.b16 %v5356
    %v6833 = vunpack.c.h.b16 %v5356
    %v6834 = vunpack.c.l.b16 %v5357
    %v6835 = vunpack.c.h.b16 %v5357
    %v6836 = vunpack.c.l.b16 %v5358
    %v6837 = vunpack.c.h.b16 %v5358
    %v6838 = vunpack.c.l.b16 %v5359
    %v6839 = vunpack.c.h.b16 %v5359
    %v6840 = vunpack.c.l.b16 %v5360
    %v6841 = vunpack.c.h.b16 %v5360
    %v6842 = vunpack.c.l.b16 %v5361
    %v6843 = vunpack.c.h.b16 %v5361
    %v6844 = vunpack.c.l.b16 %v5362
    %v6845 = vunpack.c.h.b16 %v5362
    %v6846 = vunpack.c.l.b16 %v5363
    %v6847 = vunpack.c.h.b16 %v5363
    %v6848 = vunpack.c.l.b16 %v5364
    %v6849 = vunpack.c.h.b16 %v5364
    %v6850 = vunpack.c.l.b16 %v5365
    %v6851 = vunpack.c.h.b16 %v5365
    %v6852 = vunpack.c.l.b16 %v5366
    %v6853 = vunpack.c.h.b16 %v5366
    %v6854 = vunpack.c.l.b16 %v5367
    %v6855 = vunpack.c.h.b16 %v5367
    %v6856 = vunpack.c.l.b16 %v5368
    %v6857 = vunpack.c.h.b16 %v5368
    %v6858 = vunpack.c.l.b16 %v5369
    %v6859 = vunpack.c.h.b16 %v5369
    %v6860 = vunpack.c.l.b16 %v5370
    %v6861 = vunpack.c.h.b16 %v5370
    %v6862 = vunpack.c.l.b16 %v5371
    %v6863 = vunpack.c.h.b16 %v5371
    %v6864 = vunpack.c.l.b16 %v5372
    %v6865 = vunpack.c.h.b16 %v5372
    %v6866 = vunpack.c.l.b16 %v5373
    %v6867 = vunpack.c.h.b16 %v5373
    %v6868 = vunpack.c.l.b16 %v5374
    %v6869 = vunpack.c.h.b16 %v5374
    %v6870 = vunpack.c.l.b16 %v5375
    %v6871 = vunpack.c.h.b16 %v5375
    %v6872 = vunpack.c.l.b16 %v5376
    %v6873 = vunpack.c.h.b16 %v5376
    %v6874 = vunpack.c.l.b16 %v5377
    %v6875 = vunpack.c.h.b16 %v5377
    %v6876 = vunpack.c.l.b16 %v5378
    %v6877 = vunpack.c.h.b16 %v5378
    %v6878 = vunpack.c.l.b16 %v5379
    %v6879 = vunpack.c.h.b16 %v5379
    %v6880 = vunpack.c.l.b16 %v5380
    %v6881 = vunpack.c.h.b16 %v5380
    %v6882 = vunpack.c.l.b16 %v5381
    %v6883 = vunpack.c.h.b16 %v5381
    %v6884 = vunpack.c.l.b16 %v5382
    %v6885 = vunpack.c.h.b16 %v5382
    %v6886 = vunpack.c.l.b16 %v5383
    %v6887 = vunpack.c.h.b16 %v5383
    %v6888 = vunpack.c.l.b16 %v5384
    %v6889 = vunpack.c.h.b16 %v5384
    %v6890 = vunpack.c.l.b16 %v5385
    %v6891 = vunpack.c.h.b16 %v5385
    %v6892 = vunpack.c.l.b16 %v5386
    %v6893 = vunpack.c.h.b16 %v5386
    %v6894 = vunpack.c.l.b16 %v5387
    %v6895 = vunpack.c.h.b16 %v5387
    %v6896 = vunpack.c.l.b16 %v5388
    %v6897 = vunpack.c.h.b16 %v5388
    %v6898 = vunpack.c.l.b16 %v5389
    %v6899 = vunpack.c.h.b16 %v5389
    %v6900 = vunpack.c.l.b16 %v5390
    %v6901 = vunpack.c.h.b16 %v5390
    %v6902 = vunpack.c.l.b16 %v5391
    %v6903 = vunpack.c.h.b16 %v5391
    %v6904 = vunpack.c.l.b16 %v5392
    %v6905 = vunpack.c.h.b16 %v5392
    %v6906 = vunpack.c.l.b16 %v5393
    %v6907 = vunpack.c.h.b16 %v5393
    %v6908 = vunpack.c.l.b16 %v5394
    %v6909 = vunpack.c.h.b16 %v5394
    %v6910 = vunpack.c.l.b16 %v5395
    %v6911 = vunpack.c.h.b16 %v5395
    %v6912 = vunpack.c.l.b16 %v5396
    %v6913 = vunpack.c.h.b16 %v5396
    %v6914 = vpack.c.b16 %v6662, %v6658
    %v6915 = vpack.c.b16 %v6663, %v6659
    %v6916 = vpack.c.b16 %v6664, %v6660
    %v6917 = vpack.c.b16 %v6665, %v6661
    %v6918 = vpack.c.b16 %v6670, %v6666
    %v6919 = vpack.c.b16 %v6671, %v6667
    %v6920 = vpack.c.b16 %v6672, %v6668
    %v6921 = vpack.c.b16 %v6673, %v6669
    %v6922 = vpack.c.b16 %v6678, %v6674
    %v6923 = vpack.c.b16 %v6679, %v6675
    %v6924 = vpack.c.b16 %v6680, %v6676
    %v6925 = vpack.c.b16 %v6681, %v6677
    %v6926 = vpack.c.b16 %v6686, %v6682
    %v6927 = vpack.c.b16 %v6687, %v6683
    %v6928 = vpack.c.b16 %v6688, %v6684
    %v6929 = vpack.c.b16 %v6689, %v6685
    %v6930 = vpack.c.b16 %v6694, %v6690
    %v6931 = vpack.c.b16 %v6695, %v6691
    %v6932 = vpack.c.b16 %v6696, %v6692
    %v6933 = vpack.c.b16 %v6697, %v6693
    %v6934 = vpack.c.b16 %v6702, %v6698
    %v6935 = vpack.c.b16 %v6703, %v6699
    %v6936 = vpack.c.b16 %v6704, %v6700
    %v6937 = vpack.c.b16 %v6705, %v6701
    %v6938 = vpack.c.b16 %v6710, %v6706
    %v6939 = vpack.c.b16 %v6711, %v6707
    %v6940 = vpack.c.b16 %v6712, %v6708
    %v6941 = vpack.c.b16 %v6713, %v6709
    %v6942 = vpack.c.b16 %v6718, %v6714
    %v6943 = vpack.c.b16 %v6719, %v6715
    %v6944 = vpack.c.b16 %v6720, %v6716
    %v6945 = vpack.c.b16 %v6721, %v6717
    %v6946 = vpack.c.b16 %v6726, %v6722
    %v6947 = vpack.c.b16 %v6727, %v6723
    %v6948 = vpack.c.b16 %v6728, %v6724
    %v6949 = vpack.c.b16 %v6729, %v6725
    %v6950 = vpack.c.b16 %v6734, %v6730
    %v6951 = vpack.c.b16 %v6735, %v6731
    %v6952 = vpack.c.b16 %v6736, %v6732
    %v6953 = vpack.c.b16 %v6737, %v6733
    %v6954 = vpack.c.b16 %v6742, %v6738
    %v6955 = vpack.c.b16 %v6743, %v6739
    %v6956 = vpack.c.b16 %v6744, %v6740
    %v6957 = vpack.c.b16 %v6745, %v6741
    %v6958 = vpack.c.b16 %v6750, %v6746
    %v6959 = vpack.c.b16 %v6751, %v6747
    %v6960 = vpack.c.b16 %v6752, %v6748
    %v6961 = vpack.c.b16 %v6753, %v6749
    %v6962 = vpack.c.b16 %v6758, %v6754
    %v6963 = vpack.c.b16 %v6759, %v6755
    %v6964 = vpack.c.b16 %v6760, %v6756
    %v6965 = vpack.c.b16 %v6761, %v6757
    %v6966 = vpack.c.b16 %v6766, %v6762
    %v6967 = vpack.c.b16 %v6767, %v6763
    %v6968 = vpack.c.b16 %v6768, %v6764
    %v6969 = vpack.c.b16 %v6769, %v6765
    %v6970 = vpack.c.b16 %v6774, %v6770
    %v6971 = vpack.c.b16 %v6775, %v6771
    %v6972 = vpack.c.b16 %v6776, %v6772
    %v6973 = vpack.c.b16 %v6777, %v6773
    %v6974 = vpack.c.b16 %v6782, %v6778
    %v6975 = vpack.c.b16 %v6783, %v6779
    %v6976 = vpack.c.b16 %v6784, %v6780
    %v6977 = vpack.c.b16 %v6785, %v6781
    %v6978 = vpack.c.b16 %v6790, %v6786
    %v6979 = vpack.c.b16 %v6791, %v6787
    %v6980 = vpack.c.b16 %v6792, %v6788
    %v6981 = vpack.c.b16 %v6793, %v6789
    %v6982 = vpack.c.b16 %v6798, %v6794
    %v6983 = vpack.c.b16 %v6799, %v6795
    %v6984 = vpack.c.b16 %v6800, %v6796
    %v6985 = vpack.c.b16 %v6801, %v6797
    %v6986 = vpack.c.b16 %v6806, %v6802
    %v6987 = vpack.c.b16 %v6807, %v6803
    %v6988 = vpack.c.b16 %v6808, %v6804
    %v6989 = vpack.c.b16 %v6809, %v6805
    %v6990 = vpack.c.b16 %v6814, %v6810
    %v6991 = vpack.c.b16 %v6815, %v6811
    %v6992 = vpack.c.b16 %v6816, %v6812
    %v6993 = vpack.c.b16 %v6817, %v6813
    %v6994 = vpack.c.b16 %v6822, %v6818
    %v6995 = vpack.c.b16 %v6823, %v6819
    %v6996 = vpack.c.b16 %v6824, %v6820
    %v6997 = vpack.c.b16 %v6825, %v6821
    %v6998 = vpack.c.b16 %v6830, %v6826
    %v6999 = vpack.c.b16 %v6831, %v6827
    %v7000 = vpack.c.b16 %v6832, %v6828
    %v7001 = vpack.c.b16 %v6833, %v6829
    %v7002 = vpack.c.b16 %v6838, %v6834
    %v7003 = vpack.c.b16 %v6839, %v6835
    %v7004 = vpack.c.b16 %v6840, %v6836
    %v7005 = vpack.c.b16 %v6841, %v6837
    %v7006 = vpack.c.b16 %v6846, %v6842
    %v7007 = vpack.c.b16 %v6847, %v6843
    %v7008 = vpack.c.b16 %v6848, %v6844
    %v7009 = vpack.c.b16 %v6849, %v6845
    %v7010 = vpack.c.b16 %v6854, %v6850
    %v7011 = vpack.c.b16 %v6855, %v6851
    %v7012 = vpack.c.b16 %v6856, %v6852
    %v7013 = vpack.c.b16 %v6857, %v6853
    %v7014 = vpack.c.b16 %v6862, %v6858
    %v7015 = vpack.c.b16 %v6863, %v6859
    %v7016 = vpack.c.b16 %v6864, %v6860
    %v7017 = vpack.c.b16 %v6865, %v6861
    %v7018 = vpack.c.b16 %v6870, %v6866
    %v7019 = vpack.c.b16 %v6871, %v6867
    %v7020 = vpack.c.b16 %v6872, %v6868
    %v7021 = vpack.c.b16 %v6873, %v6869
    %v7022 = vpack.c.b16 %v6878, %v6874
    %v7023 = vpack.c.b16 %v6879, %v6875
    %v7024 = vpack.c.b16 %v6880, %v6876
    %v7025 = vpack.c.b16 %v6881, %v6877
    %v7026 = vpack.c.b16 %v6886, %v6882
    %v7027 = vpack.c.b16 %v6887, %v6883
    %v7028 = vpack.c.b16 %v6888, %v6884
    %v7029 = vpack.c.b16 %v6889, %v6885
    %v7030 = vpack.c.b16 %v6894, %v6890
    %v7031 = vpack.c.b16 %v6895, %v6891
    %v7032 = vpack.c.b16 %v6896, %v6892
    %v7033 = vpack.c.b16 %v6897, %v6893
    %v7034 = vpack.c.b16 %v6902, %v6898
    %v7035 = vpack.c.b16 %v6903, %v6899
    %v7036 = vpack.c.b16 %v6904, %v6900
    %v7037 = vpack.c.b16 %v6905, %v6901
    %v7038 = vpack.c.b16 %v6910, %v6906
    %v7039 = vpack.c.b16 %v6911, %v6907
    %v7040 = vpack.c.b16 %v6912, %v6908
    %v7041 = vpack.c.b16 %v6913, %v6909
    %7170 = vmatprep.subr.bf16.mxu0 %v6943
    %7171 = vmatpush1.bf16.msra.mxu0 %v6942
    %7172 = vmatprep.subr.bf16.mxu0 %v6939
    %7173 = vmatpush1.bf16.msra.mxu0 %v6938
    %7174 = vmatprep.subr.bf16.mxu0 %v6935
    %7175 = vmatpush1.bf16.msra.mxu0 %v6934
    %7176 = vmatprep.subr.bf16.mxu0 %v6931
    %7177 = vmatpush1.bf16.msra.mxu0 %v6930
    %7178 = vmatprep.subr.bf16.mxu0 %v6927
    %7179 = vmatpush1.bf16.msra.mxu0 %v6926
    %7180 = vmatprep.subr.bf16.mxu0 %v6923
    %7181 = vmatpush1.bf16.msra.mxu0 %v6922
    %7182 = vmatprep.subr.bf16.mxu0 %v6919
    %7183 = vmatpush1.bf16.msra.mxu0 %v6918
    %7184 = vmatprep.subr.bf16.mxu0 %v6915
    %7185 = vmatpush1.bf16.msra.mxu0 %v6914
    %7186 = vmatprep.subr.bf16.mxu0 %v6975
    %7187 = vmatpush2.bf16.msra.mxu0 %v6974
    %7188 = vmatprep.subr.bf16.mxu0 %v6971
    %7189 = vmatpush2.bf16.msra.mxu0 %v6970
    %7190 = vmatprep.subr.bf16.mxu0 %v6967
    %7191 = vmatpush2.bf16.msra.mxu0 %v6966
    %7192 = vmatprep.subr.bf16.mxu0 %v6963
    %7193 = vmatpush2.bf16.msra.mxu0 %v6962
    %7194 = vmatprep.subr.bf16.mxu0 %v6959
    %7195 = vmatpush2.bf16.msra.mxu0 %v6958
    %7196 = vmatprep.subr.bf16.mxu0 %v6955
    %7197 = vmatpush2.bf16.msra.mxu0 %v6954
    %7198 = vmatprep.subr.bf16.mxu0 %v6951
    %7199 = vmatpush2.bf16.msra.mxu0 %v6950
    %7200 = vmatprep.subr.bf16.mxu0 %v6947
    %7201 = vmatpush2.bf16.msra.mxu0 %v6946
    %7202 = vmatprep.mubr.bf16.mxu0 %v5257
    %7203 = vmatmul.mubr.bf16.gmra.mxu0 %v5256
    %v7204 = vpop.f32.mrf.mxu0
    %v7205 = vadd.f32 %v6382, %v7204
    %v7206 = vpop.f32.mrf.mxu0
    %v7207 = vadd.f32 %v6384, %v7206
    %v7208 = vpop.f32.mrf.mxu0
    %v7209 = vadd.f32 %v6386, %v7208
    %v7210 = vpop.f32.mrf.mxu0
    %v7211 = vadd.f32 %v6388, %v7210
    %7212 = vmatprep.mubr.bf16.mxu0 %v5261
    %7213 = vmatmul.mubr.bf16.gmra.mxu0 %v5260
    %v7214 = vpop.f32.mrf.mxu0
    %v7215 = vadd.f32 %v6392, %v7214
    %v7216 = vpop.f32.mrf.mxu0
    %v7217 = vadd.f32 %v6394, %v7216
    %v7218 = vpop.f32.mrf.mxu0
    %v7219 = vadd.f32 %v6396, %v7218
    %v7220 = vpop.f32.mrf.mxu0
    %v7221 = vadd.f32 %v6398, %v7220
    %7222 = vmatprep.mubr.bf16.mxu0 %v5265
    %7223 = vmatmul.mubr.bf16.gmra.mxu0 %v5264
    %v7224 = vpop.f32.mrf.mxu0
    %v7225 = vadd.f32 %v6402, %v7224
    %v7226 = vpop.f32.mrf.mxu0
    %v7227 = vadd.f32 %v6404, %v7226
    %v7228 = vpop.f32.mrf.mxu0
    %v7229 = vpop.f32.mrf.mxu0
    %7230 = vdwg.mxu0
    %7231 = vmatprep.subr.bf16.mxu0 %v7007
    %7232 = vmatpush1.bf16.msra.mxu0 %v7006
    %7233 = vmatprep.subr.bf16.mxu0 %v7003
    %7234 = vmatpush1.bf16.msra.mxu0 %v7002
    %7235 = vmatprep.subr.bf16.mxu0 %v6999
    %7236 = vmatpush1.bf16.msra.mxu0 %v6998
    %7237 = vmatprep.subr.bf16.mxu0 %v6995
    %7238 = vmatpush1.bf16.msra.mxu0 %v6994
    %7239 = vmatprep.subr.bf16.mxu0 %v6991
    %7240 = vmatpush1.bf16.msra.mxu0 %v6990
    %7241 = vmatprep.subr.bf16.mxu0 %v6987
    %7242 = vmatpush1.bf16.msra.mxu0 %v6986
    %7243 = vmatprep.subr.bf16.mxu0 %v6983
    %7244 = vmatpush1.bf16.msra.mxu0 %v6982
    %7245 = vmatprep.subr.bf16.mxu0 %v6979
    %7246 = vmatpush1.bf16.msra.mxu0 %v6978
    %7247 = vmatprep.subr.bf16.mxu0 %v7039
    %7248 = vmatpush2.bf16.msra.mxu0 %v7038
    %7249 = vmatprep.subr.bf16.mxu0 %v7035
    %7250 = vmatpush2.bf16.msra.mxu0 %v7034
    %7251 = vmatprep.subr.bf16.mxu0 %v7031
    %7252 = vmatpush2.bf16.msra.mxu0 %v7030
    %7253 = vmatprep.subr.bf16.mxu0 %v7027
    %7254 = vmatpush2.bf16.msra.mxu0 %v7026
    %7255 = vmatprep.subr.bf16.mxu0 %v7023
    %7256 = vmatpush2.bf16.msra.mxu0 %v7022
    %7257 = vmatprep.subr.bf16.mxu0 %v7019
    %7258 = vmatpush2.bf16.msra.mxu0 %v7018
    %7259 = vmatprep.subr.bf16.mxu0 %v7015
    %7260 = vmatpush2.bf16.msra.mxu0 %v7014
    %7261 = vmatprep.subr.bf16.mxu0 %v7011
    %7262 = vmatpush2.bf16.msra.mxu0 %v7010
    %7263 = vmatprep.mubr.bf16.mxu0 %v5259
    %7264 = vmatmul.mubr.bf16.gmra.mxu0 %v5258
    %v7265 = vpop.f32.mrf.mxu0
    %v7266 = vadd.f32 %v7205, %v7265
    %v7267 = vpop.f32.mrf.mxu0
    %v7268 = vadd.f32 %v7207, %v7267
    %v7269 = vpop.f32.mrf.mxu0
    %v7270 = vadd.f32 %v7209, %v7269
    %v7271 = vpop.f32.mrf.mxu0
    %v7272 = vadd.f32 %v7211, %v7271
    %7273 = vmatprep.mubr.bf16.mxu0 %v5263
    %7274 = vmatmul.mubr.bf16.gmra.mxu0 %v5262
    %v7275 = vpop.f32.mrf.mxu0
    %v7276 = vadd.f32 %v7215, %v7275
    %v7277 = vpop.f32.mrf.mxu0
    %v7278 = vadd.f32 %v7217, %v7277
    %v7279 = vpop.f32.mrf.mxu0
    %v7280 = vadd.f32 %v7219, %v7279
    %v7281 = vpop.f32.mrf.mxu0
    %v7282 = vadd.f32 %v7221, %v7281
    %7283 = vmatprep.mubr.bf16.mxu0 %v5267
    %7284 = vmatmul.mubr.bf16.gmra.mxu0 %v5266
    %v7285 = vpop.f32.mrf.mxu0
    %v7286 = vadd.f32 %v7225, %v7285
    %v7287 = vpop.f32.mrf.mxu0
    %v7288 = vadd.f32 %v7227, %v7287
    %v7289 = vpop.f32.mrf.mxu0
    %v7290 = vpop.f32.mrf.mxu0
    %7291 = vdwg.mxu0
    %7292 = vmatprep.subr.bf16.mxu0 %v6945
    %7293 = vmatpush1.bf16.msra.mxu0 %v6944
    %7294 = vmatprep.subr.bf16.mxu0 %v6941
    %7295 = vmatpush1.bf16.msra.mxu0 %v6940
    %7296 = vmatprep.subr.bf16.mxu0 %v6937
    %7297 = vmatpush1.bf16.msra.mxu0 %v6936
    %7298 = vmatprep.subr.bf16.mxu0 %v6933
    %7299 = vmatpush1.bf16.msra.mxu0 %v6932
    %7300 = vmatprep.subr.bf16.mxu0 %v6929
    %7301 = vmatpush1.bf16.msra.mxu0 %v6928
    %7302 = vmatprep.subr.bf16.mxu0 %v6925
    %7303 = vmatpush1.bf16.msra.mxu0 %v6924
    %7304 = vmatprep.subr.bf16.mxu0 %v6921
    %7305 = vmatpush1.bf16.msra.mxu0 %v6920
    %7306 = vmatprep.subr.bf16.mxu0 %v6917
    %7307 = vmatpush1.bf16.msra.mxu0 %v6916
    %7308 = vmatprep.subr.bf16.mxu0 %v6977
    %7309 = vmatpush2.bf16.msra.mxu0 %v6976
    %7310 = vmatprep.subr.bf16.mxu0 %v6973
    %7311 = vmatpush2.bf16.msra.mxu0 %v6972
    %7312 = vmatprep.subr.bf16.mxu0 %v6969
    %7313 = vmatpush2.bf16.msra.mxu0 %v6968
    %7314 = vmatprep.subr.bf16.mxu0 %v6965
    %7315 = vmatpush2.bf16.msra.mxu0 %v6964
    %7316 = vmatprep.subr.bf16.mxu0 %v6961
    %7317 = vmatpush2.bf16.msra.mxu0 %v6960
    %7318 = vmatprep.subr.bf16.mxu0 %v6957
    %7319 = vmatpush2.bf16.msra.mxu0 %v6956
    %7320 = vmatprep.subr.bf16.mxu0 %v6953
    %7321 = vmatpush2.bf16.msra.mxu0 %v6952
    %7322 = vmatprep.subr.bf16.mxu0 %v6949
    %7323 = vmatpush2.bf16.msra.mxu0 %v6948
    %7324 = vmatprep.mubr.bf16.mxu0 %v5257
    %7325 = vmatmul.mubr.bf16.gmra.mxu0 %v5256
    %v7326 = vpop.f32.mrf.mxu0
    %v7327 = vadd.f32 %v6504, %v7326
    %v7328 = vpop.f32.mrf.mxu0
    %v7329 = vadd.f32 %v6506, %v7328
    %v7330 = vpop.f32.mrf.mxu0
    %v7331 = vadd.f32 %v6508, %v7330
    %v7332 = vpop.f32.mrf.mxu0
    %v7333 = vadd.f32 %v6510, %v7332
    %7334 = vmatprep.mubr.bf16.mxu0 %v5261
    %7335 = vmatmul.mubr.bf16.gmra.mxu0 %v5260
    %v7336 = vpop.f32.mrf.mxu0
    %v7337 = vadd.f32 %v6514, %v7336
    %v7338 = vpop.f32.mrf.mxu0
    %v7339 = vadd.f32 %v6516, %v7338
    %v7340 = vpop.f32.mrf.mxu0
    %v7341 = vadd.f32 %v6518, %v7340
    %v7342 = vpop.f32.mrf.mxu0
    %v7343 = vadd.f32 %v6520, %v7342
    %7344 = vmatprep.mubr.bf16.mxu0 %v5265
    %7345 = vmatmul.mubr.bf16.gmra.mxu0 %v5264
    %v7346 = vpop.f32.mrf.mxu0
    %v7347 = vadd.f32 %v6524, %v7346
    %v7348 = vpop.f32.mrf.mxu0
    %v7349 = vadd.f32 %v6526, %v7348
    %v7350 = vpop.f32.mrf.mxu0
    %v7351 = vpop.f32.mrf.mxu0
    %7352 = vdwg.mxu0
    %7353 = vmatprep.subr.bf16.mxu0 %v7009
    %7354 = vmatpush1.bf16.msra.mxu0 %v7008
    %7355 = vmatprep.subr.bf16.mxu0 %v7005
    %7356 = vmatpush1.bf16.msra.mxu0 %v7004
    %7357 = vmatprep.subr.bf16.mxu0 %v7001
    %7358 = vmatpush1.bf16.msra.mxu0 %v7000
    %7359 = vmatprep.subr.bf16.mxu0 %v6997
    %7360 = vmatpush1.bf16.msra.mxu0 %v6996
    %7361 = vmatprep.subr.bf16.mxu0 %v6993
    %7362 = vmatpush1.bf16.msra.mxu0 %v6992
    %7363 = vmatprep.subr.bf16.mxu0 %v6989
    %7364 = vmatpush1.bf16.msra.mxu0 %v6988
    %7365 = vmatprep.subr.bf16.mxu0 %v6985
    %7366 = vmatpush1.bf16.msra.mxu0 %v6984
    %7367 = vmatprep.subr.bf16.mxu0 %v6981
    %7368 = vmatpush1.bf16.msra.mxu0 %v6980
    %7369 = vmatprep.subr.bf16.mxu0 %v7041
    %7370 = vmatpush2.bf16.msra.mxu0 %v7040
    %7371 = vmatprep.subr.bf16.mxu0 %v7037
    %7372 = vmatpush2.bf16.msra.mxu0 %v7036
    %7373 = vmatprep.subr.bf16.mxu0 %v7033
    %7374 = vmatpush2.bf16.msra.mxu0 %v7032
    %7375 = vmatprep.subr.bf16.mxu0 %v7029
    %7376 = vmatpush2.bf16.msra.mxu0 %v7028
    %7377 = vmatprep.subr.bf16.mxu0 %v7025
    %7378 = vmatpush2.bf16.msra.mxu0 %v7024
    %7379 = vmatprep.subr.bf16.mxu0 %v7021
    %7380 = vmatpush2.bf16.msra.mxu0 %v7020
    %7381 = vmatprep.subr.bf16.mxu0 %v7017
    %7382 = vmatpush2.bf16.msra.mxu0 %v7016
    %7383 = vmatprep.subr.bf16.mxu0 %v7013
    %7384 = vmatpush2.bf16.msra.mxu0 %v7012
    %7385 = vmatprep.mubr.bf16.mxu0 %v5259
    %7386 = vmatmul.mubr.bf16.gmra.mxu0 %v5258
    %v7387 = vpop.f32.mrf.mxu0
    %v7388 = vadd.f32 %v7327, %v7387
    %v7389 = vpop.f32.mrf.mxu0
    %v7390 = vadd.f32 %v7329, %v7389
    %v7391 = vpop.f32.mrf.mxu0
    %v7392 = vadd.f32 %v7331, %v7391
    %v7393 = vpop.f32.mrf.mxu0
    %v7394 = vadd.f32 %v7333, %v7393
    %7395 = vmatprep.mubr.bf16.mxu0 %v5263
    %7396 = vmatmul.mubr.bf16.gmra.mxu0 %v5262
    %v7397 = vpop.f32.mrf.mxu0
    %v7398 = vadd.f32 %v7337, %v7397
    %v7399 = vpop.f32.mrf.mxu0
    %v7400 = vadd.f32 %v7339, %v7399
    %v7401 = vpop.f32.mrf.mxu0
    %v7402 = vadd.f32 %v7341, %v7401
    %v7403 = vpop.f32.mrf.mxu0
    %v7404 = vadd.f32 %v7343, %v7403
    %7405 = vmatprep.mubr.bf16.mxu0 %v5267
    %7406 = vmatmul.mubr.bf16.gmra.mxu0 %v5266
    %v7407 = vpop.f32.mrf.mxu0
    %v7408 = vadd.f32 %v7347, %v7407
    %v7409 = vpop.f32.mrf.mxu0
    %v7410 = vadd.f32 %v7349, %v7409
    %v7411 = vpop.f32.mrf.mxu0
    %v7412 = vpop.f32.mrf.mxu0
    %7413 = vdwg.mxu0
    %v7414 = vld [vmem:[#allocation2] sm:$0xfc]
    %v7415 = vld [vmem:[#allocation2 + $0x8] sm:$0xfc]
    %v7416 = vld [vmem:[#allocation2 + $0x10] sm:$0xfc]
    %v7417 = vld [vmem:[#allocation2 + $0x18] sm:$0xfc]
    %v7418 = vld [vmem:[#allocation2 + $0x80] sm:$0xf]
    %v7419 = vld [vmem:[#allocation2 + $0x88] sm:$0xf]
    %v7420 = vld [vmem:[#allocation2 + $0x90] sm:$0xf]
    %v7421 = vld [vmem:[#allocation2 + $0x98] sm:$0xf]
    %v7422 = vpack.c.bf16 %v5240, %v7414
    %v7423 = vpack.c.bf16 %v5241, %v7415
    %v7424 = vpack.c.bf16 %v5242, %v7416
    %v7425 = vpack.c.bf16 %v5243, %v7417
    %v7426 = vpack.c.bf16 %v7418, %v7418
    %v7427 = vpack.c.bf16 %v7419, %v7419
    %v7428 = vpack.c.bf16 %v7420, %v7420
    %v7429 = vpack.c.bf16 %v7421, %v7421
    %s7430 = scalar_lea.vmem [#allocation6], 5120
    %v7431 = vld [vmem:[%s7430] sm:$0xff]
    %v7432 = vld [vmem:[%s7430 + $0x8] sm:$0xff]
    %v7433 = vld [vmem:[%s7430 + $0x10] sm:$0xff]
    %v7434 = vld [vmem:[%s7430 + $0x18] sm:$0xff]
    %v7435 = vld [vmem:[%s7430 + $0x20] sm:$0xff]
    %v7436 = vld [vmem:[%s7430 + $0x28] sm:$0xff]
    %v7437 = vld [vmem:[%s7430 + $0x30] sm:$0xff]
    %v7438 = vld [vmem:[%s7430 + $0x38] sm:$0xff]
    %v7439 = vld [vmem:[%s7430 + $0x40] sm:$0xff]
    %v7440 = vld [vmem:[%s7430 + $0x48] sm:$0xff]
    %v7441 = vld [vmem:[%s7430 + $0x50] sm:$0xff]
    %v7442 = vld [vmem:[%s7430 + $0x58] sm:$0xff]
    %v7443 = vld [vmem:[%s7430 + $0x60] sm:$0xff]
    %v7444 = vld [vmem:[%s7430 + $0x68] sm:$0xff]
    %v7445 = vld [vmem:[%s7430 + $0x70] sm:$0xff]
    %v7446 = vld [vmem:[%s7430 + $0x78] sm:$0xff]
    %v7447 = vld [vmem:[%s7430 + $0x80] sm:$0xff]
    %v7448 = vld [vmem:[%s7430 + $0x88] sm:$0xff]
    %v7449 = vld [vmem:[%s7430 + $0x90] sm:$0xff]
    %v7450 = vld [vmem:[%s7430 + $0x98] sm:$0xff]
    %v7451 = vld [vmem:[%s7430 + $0xa0] sm:$0xff]
    %v7452 = vld [vmem:[%s7430 + $0xa8] sm:$0xff]
    %v7453 = vld [vmem:[%s7430 + $0xb0] sm:$0xff]
    %v7454 = vld [vmem:[%s7430 + $0xb8] sm:$0xff]
    %v7455 = vld [vmem:[%s7430 + $0xc0] sm:$0xff]
    %v7456 = vld [vmem:[%s7430 + $0xc8] sm:$0xff]
    %v7457 = vld [vmem:[%s7430 + $0xd0] sm:$0xff]
    %v7458 = vld [vmem:[%s7430 + $0xd8] sm:$0xff]
    %v7459 = vld [vmem:[%s7430 + $0xe0] sm:$0xff]
    %v7460 = vld [vmem:[%s7430 + $0xe8] sm:$0xff]
    %v7461 = vld [vmem:[%s7430 + $0xf0] sm:$0xff]
    %v7462 = vld [vmem:[%s7430 + $0xf8] sm:$0xff]
    %v7463 = vld [vmem:[%s7430 + $0x100] sm:$0xff]
    %v7464 = vld [vmem:[%s7430 + $0x108] sm:$0xff]
    %v7465 = vld [vmem:[%s7430 + $0x110] sm:$0xff]
    %v7466 = vld [vmem:[%s7430 + $0x118] sm:$0xff]
    %v7467 = vld [vmem:[%s7430 + $0x120] sm:$0xff]
    %v7468 = vld [vmem:[%s7430 + $0x128] sm:$0xff]
    %v7469 = vld [vmem:[%s7430 + $0x130] sm:$0xff]
    %v7470 = vld [vmem:[%s7430 + $0x138] sm:$0xff]
    %v7471 = vld [vmem:[%s7430 + $0x140] sm:$0xff]
    %v7472 = vld [vmem:[%s7430 + $0x148] sm:$0xff]
    %v7473 = vld [vmem:[%s7430 + $0x150] sm:$0xff]
    %v7474 = vld [vmem:[%s7430 + $0x158] sm:$0xff]
    %v7475 = vld [vmem:[%s7430 + $0x160] sm:$0xff]
    %v7476 = vld [vmem:[%s7430 + $0x168] sm:$0xff]
    %v7477 = vld [vmem:[%s7430 + $0x170] sm:$0xff]
    %v7478 = vld [vmem:[%s7430 + $0x178] sm:$0xff]
    %v7479 = vld [vmem:[%s7430 + $0x180] sm:$0xff]
    %v7480 = vld [vmem:[%s7430 + $0x188] sm:$0xff]
    %v7481 = vld [vmem:[%s7430 + $0x190] sm:$0xff]
    %v7482 = vld [vmem:[%s7430 + $0x198] sm:$0xff]
    %v7483 = vld [vmem:[%s7430 + $0x1a0] sm:$0xff]
    %v7484 = vld [vmem:[%s7430 + $0x1a8] sm:$0xff]
    %v7485 = vld [vmem:[%s7430 + $0x1b0] sm:$0xff]
    %v7486 = vld [vmem:[%s7430 + $0x1b8] sm:$0xff]
    %v7487 = vld [vmem:[%s7430 + $0x1c0] sm:$0xff]
    %v7488 = vld [vmem:[%s7430 + $0x1c8] sm:$0xff]
    %v7489 = vld [vmem:[%s7430 + $0x1d0] sm:$0xff]
    %v7490 = vld [vmem:[%s7430 + $0x1d8] sm:$0xff]
    %v7491 = vld [vmem:[%s7430 + $0x1e0] sm:$0xff]
    %v7492 = vld [vmem:[%s7430 + $0x1e8] sm:$0xff]
    %v7493 = vld [vmem:[%s7430 + $0x1f0] sm:$0xff]
    %v7494 = vld [vmem:[%s7430 + $0x1f8] sm:$0xff]
    %v7495 = vld [vmem:[%s7430 + $0x200] sm:$0xff]
    %v7496 = vld [vmem:[%s7430 + $0x208] sm:$0xff]
    %v7497 = vld [vmem:[%s7430 + $0x210] sm:$0xff]
    %v7498 = vld [vmem:[%s7430 + $0x218] sm:$0xff]
    %v7499 = vld [vmem:[%s7430 + $0x220] sm:$0xff]
    %v7500 = vld [vmem:[%s7430 + $0x228] sm:$0xff]
    %v7501 = vld [vmem:[%s7430 + $0x230] sm:$0xff]
    %v7502 = vld [vmem:[%s7430 + $0x238] sm:$0xff]
    %v7503 = vld [vmem:[%s7430 + $0x240] sm:$0xff]
    %v7504 = vld [vmem:[%s7430 + $0x248] sm:$0xff]
    %v7505 = vld [vmem:[%s7430 + $0x250] sm:$0xff]
    %v7506 = vld [vmem:[%s7430 + $0x258] sm:$0xff]
    %v7507 = vld [vmem:[%s7430 + $0x260] sm:$0xff]
    %v7508 = vld [vmem:[%s7430 + $0x268] sm:$0xff]
    %v7509 = vld [vmem:[%s7430 + $0x270] sm:$0xff]
    %v7510 = vld [vmem:[%s7430 + $0x278] sm:$0xff]
    %v7511 = vld [vmem:[%s7430 + $0x280] sm:$0xff]
    %v7512 = vld [vmem:[%s7430 + $0x288] sm:$0xff]
    %v7513 = vld [vmem:[%s7430 + $0x290] sm:$0xff]
    %v7514 = vld [vmem:[%s7430 + $0x298] sm:$0xff]
    %v7515 = vld [vmem:[%s7430 + $0x2a0] sm:$0xff]
    %v7516 = vld [vmem:[%s7430 + $0x2a8] sm:$0xff]
    %v7517 = vld [vmem:[%s7430 + $0x2b0] sm:$0xff]
    %v7518 = vld [vmem:[%s7430 + $0x2b8] sm:$0xff]
    %v7519 = vld [vmem:[%s7430 + $0x2c0] sm:$0xff]
    %v7520 = vld [vmem:[%s7430 + $0x2c8] sm:$0xff]
    %v7521 = vld [vmem:[%s7430 + $0x2d0] sm:$0xff]
    %v7522 = vld [vmem:[%s7430 + $0x2d8] sm:$0xff]
    %v7523 = vld [vmem:[%s7430 + $0x2e0] sm:$0xff]
    %v7524 = vld [vmem:[%s7430 + $0x2e8] sm:$0xff]
    %v7525 = vld [vmem:[%s7430 + $0x2f0] sm:$0xff]
    %v7526 = vld [vmem:[%s7430 + $0x2f8] sm:$0xff]
    %v7527 = vld [vmem:[%s7430 + $0x300] sm:$0xff]
    %v7528 = vld [vmem:[%s7430 + $0x308] sm:$0xff]
    %v7529 = vld [vmem:[%s7430 + $0x310] sm:$0xff]
    %v7530 = vld [vmem:[%s7430 + $0x318] sm:$0xff]
    %v7531 = vld [vmem:[%s7430 + $0x320] sm:$0xff]
    %v7532 = vld [vmem:[%s7430 + $0x328] sm:$0xff]
    %v7533 = vld [vmem:[%s7430 + $0x330] sm:$0xff]
    %v7534 = vld [vmem:[%s7430 + $0x338] sm:$0xff]
    %v7535 = vld [vmem:[%s7430 + $0x340] sm:$0xff]
    %v7536 = vld [vmem:[%s7430 + $0x348] sm:$0xff]
    %v7537 = vld [vmem:[%s7430 + $0x350] sm:$0xff]
    %v7538 = vld [vmem:[%s7430 + $0x358] sm:$0xff]
    %v7539 = vld [vmem:[%s7430 + $0x360] sm:$0xff]
    %v7540 = vld [vmem:[%s7430 + $0x368] sm:$0xff]
    %v7541 = vld [vmem:[%s7430 + $0x370] sm:$0xff]
    %v7542 = vld [vmem:[%s7430 + $0x378] sm:$0xff]
    %v7543 = vld [vmem:[%s7430 + $0x380] sm:$0xff]
    %v7544 = vld [vmem:[%s7430 + $0x388] sm:$0xff]
    %v7545 = vld [vmem:[%s7430 + $0x390] sm:$0xff]
    %v7546 = vld [vmem:[%s7430 + $0x398] sm:$0xff]
    %v7547 = vld [vmem:[%s7430 + $0x3a0] sm:$0xff]
    %v7548 = vld [vmem:[%s7430 + $0x3a8] sm:$0xff]
    %v7549 = vld [vmem:[%s7430 + $0x3b0] sm:$0xff]
    %v7550 = vld [vmem:[%s7430 + $0x3b8] sm:$0xff]
    %v7551 = vld [vmem:[%s7430 + $0x3c0] sm:$0xff]
    %v7552 = vld [vmem:[%s7430 + $0x3c8] sm:$0xff]
    %v7553 = vld [vmem:[%s7430 + $0x3d0] sm:$0xff]
    %v7554 = vld [vmem:[%s7430 + $0x3d8] sm:$0xff]
    %v7555 = vld [vmem:[%s7430 + $0x3e0] sm:$0xff]
    %v7556 = vld [vmem:[%s7430 + $0x3e8] sm:$0xff]
    %v7557 = vld [vmem:[%s7430 + $0x3f0] sm:$0xff]
    %v7558 = vld [vmem:[%s7430 + $0x3f8] sm:$0xff]
    %v7571 = vrot.slane %v7422, 1
    %v7572 = vrot.slane %v5260, 1
    %v7573 = vsel %vm4076, %v7571, %v7572
    %v7574 = vrot.slane %v7423, 1
    %v7575 = vrot.slane %v5261, 1
    %v7576 = vsel %vm4076, %v7574, %v7575
    %v7577 = vrot.slane %v7424, 1
    %v7578 = vrot.slane %v5262, 1
    %v7579 = vsel %vm4076, %v7577, %v7578
    %v7580 = vrot.slane %v7425, 1
    %v7581 = vrot.slane %v5263, 1
    %v7582 = vsel %vm4076, %v7580, %v7581
    %v7583 = vrot.slane %v7426, 1
    %v7584 = vsel %vm4076, %v7572, %v7583
    %v7585 = vrot.slane %v7427, 1
    %v7586 = vsel %vm4076, %v7575, %v7585
    %v7587 = vrot.slane %v7428, 1
    %v7588 = vsel %vm4076, %v7578, %v7587
    %v7589 = vrot.slane %v7429, 1
    %v7590 = vsel %vm4076, %v7581, %v7589
    %v7731 = vunpack.c.l.b16 %v7431
    %v7732 = vunpack.c.h.b16 %v7431
    %v7733 = vunpack.c.l.b16 %v7432
    %v7734 = vunpack.c.h.b16 %v7432
    %v7735 = vunpack.c.l.b16 %v7433
    %v7736 = vunpack.c.h.b16 %v7433
    %v7737 = vunpack.c.l.b16 %v7434
    %v7738 = vunpack.c.h.b16 %v7434
    %v7739 = vunpack.c.l.b16 %v7435
    %v7740 = vunpack.c.h.b16 %v7435
    %v7741 = vunpack.c.l.b16 %v7436
    %v7742 = vunpack.c.h.b16 %v7436
    %v7743 = vunpack.c.l.b16 %v7437
    %v7744 = vunpack.c.h.b16 %v7437
    %v7745 = vunpack.c.l.b16 %v7438
    %v7746 = vunpack.c.h.b16 %v7438
    %v7747 = vunpack.c.l.b16 %v7439
    %v7748 = vunpack.c.h.b16 %v7439
    %v7749 = vunpack.c.l.b16 %v7440
    %v7750 = vunpack.c.h.b16 %v7440
    %v7751 = vunpack.c.l.b16 %v7441
    %v7752 = vunpack.c.h.b16 %v7441
    %v7753 = vunpack.c.l.b16 %v7442
    %v7754 = vunpack.c.h.b16 %v7442
    %v7755 = vunpack.c.l.b16 %v7443
    %v7756 = vunpack.c.h.b16 %v7443
    %v7757 = vunpack.c.l.b16 %v7444
    %v7758 = vunpack.c.h.b16 %v7444
    %v7759 = vunpack.c.l.b16 %v7445
    %v7760 = vunpack.c.h.b16 %v7445
    %v7761 = vunpack.c.l.b16 %v7446
    %v7762 = vunpack.c.h.b16 %v7446
    %v7763 = vunpack.c.l.b16 %v7447
    %v7764 = vunpack.c.h.b16 %v7447
    %v7765 = vunpack.c.l.b16 %v7448
    %v7766 = vunpack.c.h.b16 %v7448
    %v7767 = vunpack.c.l.b16 %v7449
    %v7768 = vunpack.c.h.b16 %v7449
    %v7769 = vunpack.c.l.b16 %v7450
    %v7770 = vunpack.c.h.b16 %v7450
    %v7771 = vunpack.c.l.b16 %v7451
    %v7772 = vunpack.c.h.b16 %v7451
    %v7773 = vunpack.c.l.b16 %v7452
    %v7774 = vunpack.c.h.b16 %v7452
    %v7775 = vunpack.c.l.b16 %v7453
    %v7776 = vunpack.c.h.b16 %v7453
    %v7777 = vunpack.c.l.b16 %v7454
    %v7778 = vunpack.c.h.b16 %v7454
    %v7779 = vunpack.c.l.b16 %v7455
    %v7780 = vunpack.c.h.b16 %v7455
    %v7781 = vunpack.c.l.b16 %v7456
    %v7782 = vunpack.c.h.b16 %v7456
    %v7783 = vunpack.c.l.b16 %v7457
    %v7784 = vunpack.c.h.b16 %v7457
    %v7785 = vunpack.c.l.b16 %v7458
    %v7786 = vunpack.c.h.b16 %v7458
    %v7787 = vunpack.c.l.b16 %v7459
    %v7788 = vunpack.c.h.b16 %v7459
    %v7789 = vunpack.c.l.b16 %v7460
    %v7790 = vunpack.c.h.b16 %v7460
    %v7791 = vunpack.c.l.b16 %v7461
    %v7792 = vunpack.c.h.b16 %v7461
    %v7793 = vunpack.c.l.b16 %v7462
    %v7794 = vunpack.c.h.b16 %v7462
    %v7795 = vunpack.c.l.b16 %v7463
    %v7796 = vunpack.c.h.b16 %v7463
    %v7797 = vunpack.c.l.b16 %v7464
    %v7798 = vunpack.c.h.b16 %v7464
    %v7799 = vunpack.c.l.b16 %v7465
    %v7800 = vunpack.c.h.b16 %v7465
    %v7801 = vunpack.c.l.b16 %v7466
    %v7802 = vunpack.c.h.b16 %v7466
    %v7803 = vunpack.c.l.b16 %v7467
    %v7804 = vunpack.c.h.b16 %v7467
    %v7805 = vunpack.c.l.b16 %v7468
    %v7806 = vunpack.c.h.b16 %v7468
    %v7807 = vunpack.c.l.b16 %v7469
    %v7808 = vunpack.c.h.b16 %v7469
    %v7809 = vunpack.c.l.b16 %v7470
    %v7810 = vunpack.c.h.b16 %v7470
    %v7811 = vunpack.c.l.b16 %v7471
    %v7812 = vunpack.c.h.b16 %v7471
    %v7813 = vunpack.c.l.b16 %v7472
    %v7814 = vunpack.c.h.b16 %v7472
    %v7815 = vunpack.c.l.b16 %v7473
    %v7816 = vunpack.c.h.b16 %v7473
    %v7817 = vunpack.c.l.b16 %v7474
    %v7818 = vunpack.c.h.b16 %v7474
    %v7819 = vunpack.c.l.b16 %v7475
    %v7820 = vunpack.c.h.b16 %v7475
    %v7821 = vunpack.c.l.b16 %v7476
    %v7822 = vunpack.c.h.b16 %v7476
    %v7823 = vunpack.c.l.b16 %v7477
    %v7824 = vunpack.c.h.b16 %v7477
    %v7825 = vunpack.c.l.b16 %v7478
    %v7826 = vunpack.c.h.b16 %v7478
    %v7827 = vunpack.c.l.b16 %v7479
    %v7828 = vunpack.c.h.b16 %v7479
    %v7829 = vunpack.c.l.b16 %v7480
    %v7830 = vunpack.c.h.b16 %v7480
    %v7831 = vunpack.c.l.b16 %v7481
    %v7832 = vunpack.c.h.b16 %v7481
    %v7833 = vunpack.c.l.b16 %v7482
    %v7834 = vunpack.c.h.b16 %v7482
    %v7835 = vunpack.c.l.b16 %v7483
    %v7836 = vunpack.c.h.b16 %v7483
    %v7837 = vunpack.c.l.b16 %v7484
    %v7838 = vunpack.c.h.b16 %v7484
    %v7839 = vunpack.c.l.b16 %v7485
    %v7840 = vunpack.c.h.b16 %v7485
    %v7841 = vunpack.c.l.b16 %v7486
    %v7842 = vunpack.c.h.b16 %v7486
    %v7843 = vunpack.c.l.b16 %v7487
    %v7844 = vunpack.c.h.b16 %v7487
    %v7845 = vunpack.c.l.b16 %v7488
    %v7846 = vunpack.c.h.b16 %v7488
    %v7847 = vunpack.c.l.b16 %v7489
    %v7848 = vunpack.c.h.b16 %v7489
    %v7849 = vunpack.c.l.b16 %v7490
    %v7850 = vunpack.c.h.b16 %v7490
    %v7851 = vunpack.c.l.b16 %v7491
    %v7852 = vunpack.c.h.b16 %v7491
    %v7853 = vunpack.c.l.b16 %v7492
    %v7854 = vunpack.c.h.b16 %v7492
    %v7855 = vunpack.c.l.b16 %v7493
    %v7856 = vunpack.c.h.b16 %v7493
    %v7857 = vunpack.c.l.b16 %v7494
    %v7858 = vunpack.c.h.b16 %v7494
    %v7859 = vunpack.c.l.b16 %v7495
    %v7860 = vunpack.c.h.b16 %v7495
    %v7861 = vunpack.c.l.b16 %v7496
    %v7862 = vunpack.c.h.b16 %v7496
    %v7863 = vunpack.c.l.b16 %v7497
    %v7864 = vunpack.c.h.b16 %v7497
    %v7865 = vunpack.c.l.b16 %v7498
    %v7866 = vunpack.c.h.b16 %v7498
    %v7867 = vunpack.c.l.b16 %v7499
    %v7868 = vunpack.c.h.b16 %v7499
    %v7869 = vunpack.c.l.b16 %v7500
    %v7870 = vunpack.c.h.b16 %v7500
    %v7871 = vunpack.c.l.b16 %v7501
    %v7872 = vunpack.c.h.b16 %v7501
    %v7873 = vunpack.c.l.b16 %v7502
    %v7874 = vunpack.c.h.b16 %v7502
    %v7875 = vunpack.c.l.b16 %v7503
    %v7876 = vunpack.c.h.b16 %v7503
    %v7877 = vunpack.c.l.b16 %v7504
    %v7878 = vunpack.c.h.b16 %v7504
    %v7879 = vunpack.c.l.b16 %v7505
    %v7880 = vunpack.c.h.b16 %v7505
    %v7881 = vunpack.c.l.b16 %v7506
    %v7882 = vunpack.c.h.b16 %v7506
    %v7883 = vunpack.c.l.b16 %v7507
    %v7884 = vunpack.c.h.b16 %v7507
    %v7885 = vunpack.c.l.b16 %v7508
    %v7886 = vunpack.c.h.b16 %v7508
    %v7887 = vunpack.c.l.b16 %v7509
    %v7888 = vunpack.c.h.b16 %v7509
    %v7889 = vunpack.c.l.b16 %v7510
    %v7890 = vunpack.c.h.b16 %v7510
    %v7891 = vunpack.c.l.b16 %v7511
    %v7892 = vunpack.c.h.b16 %v7511
    %v7893 = vunpack.c.l.b16 %v7512
    %v7894 = vunpack.c.h.b16 %v7512
    %v7895 = vunpack.c.l.b16 %v7513
    %v7896 = vunpack.c.h.b16 %v7513
    %v7897 = vunpack.c.l.b16 %v7514
    %v7898 = vunpack.c.h.b16 %v7514
    %v7899 = vunpack.c.l.b16 %v7515
    %v7900 = vunpack.c.h.b16 %v7515
    %v7901 = vunpack.c.l.b16 %v7516
    %v7902 = vunpack.c.h.b16 %v7516
    %v7903 = vunpack.c.l.b16 %v7517
    %v7904 = vunpack.c.h.b16 %v7517
    %v7905 = vunpack.c.l.b16 %v7518
    %v7906 = vunpack.c.h.b16 %v7518
    %v7907 = vunpack.c.l.b16 %v7519
    %v7908 = vunpack.c.h.b16 %v7519
    %v7909 = vunpack.c.l.b16 %v7520
    %v7910 = vunpack.c.h.b16 %v7520
    %v7911 = vunpack.c.l.b16 %v7521
    %v7912 = vunpack.c.h.b16 %v7521
    %v7913 = vunpack.c.l.b16 %v7522
    %v7914 = vunpack.c.h.b16 %v7522
    %v7915 = vunpack.c.l.b16 %v7523
    %v7916 = vunpack.c.h.b16 %v7523
    %v7917 = vunpack.c.l.b16 %v7524
    %v7918 = vunpack.c.h.b16 %v7524
    %v7919 = vunpack.c.l.b16 %v7525
    %v7920 = vunpack.c.h.b16 %v7525
    %v7921 = vunpack.c.l.b16 %v7526
    %v7922 = vunpack.c.h.b16 %v7526
    %v7923 = vunpack.c.l.b16 %v7527
    %v7924 = vunpack.c.h.b16 %v7527
    %v7925 = vunpack.c.l.b16 %v7528
    %v7926 = vunpack.c.h.b16 %v7528
    %v7927 = vunpack.c.l.b16 %v7529
    %v7928 = vunpack.c.h.b16 %v7529
    %v7929 = vunpack.c.l.b16 %v7530
    %v7930 = vunpack.c.h.b16 %v7530
    %v7931 = vunpack.c.l.b16 %v7531
    %v7932 = vunpack.c.h.b16 %v7531
    %v7933 = vunpack.c.l.b16 %v7532
    %v7934 = vunpack.c.h.b16 %v7532
    %v7935 = vunpack.c.l.b16 %v7533
    %v7936 = vunpack.c.h.b16 %v7533
    %v7937 = vunpack.c.l.b16 %v7534
    %v7938 = vunpack.c.h.b16 %v7534
    %v7939 = vunpack.c.l.b16 %v7535
    %v7940 = vunpack.c.h.b16 %v7535
    %v7941 = vunpack.c.l.b16 %v7536
    %v7942 = vunpack.c.h.b16 %v7536
    %v7943 = vunpack.c.l.b16 %v7537
    %v7944 = vunpack.c.h.b16 %v7537
    %v7945 = vunpack.c.l.b16 %v7538
    %v7946 = vunpack.c.h.b16 %v7538
    %v7947 = vunpack.c.l.b16 %v7539
    %v7948 = vunpack.c.h.b16 %v7539
    %v7949 = vunpack.c.l.b16 %v7540
    %v7950 = vunpack.c.h.b16 %v7540
    %v7951 = vunpack.c.l.b16 %v7541
    %v7952 = vunpack.c.h.b16 %v7541
    %v7953 = vunpack.c.l.b16 %v7542
    %v7954 = vunpack.c.h.b16 %v7542
    %v7955 = vunpack.c.l.b16 %v7543
    %v7956 = vunpack.c.h.b16 %v7543
    %v7957 = vunpack.c.l.b16 %v7544
    %v7958 = vunpack.c.h.b16 %v7544
    %v7959 = vunpack.c.l.b16 %v7545
    %v7960 = vunpack.c.h.b16 %v7545
    %v7961 = vunpack.c.l.b16 %v7546
    %v7962 = vunpack.c.h.b16 %v7546
    %v7963 = vunpack.c.l.b16 %v7547
    %v7964 = vunpack.c.h.b16 %v7547
    %v7965 = vunpack.c.l.b16 %v7548
    %v7966 = vunpack.c.h.b16 %v7548
    %v7967 = vunpack.c.l.b16 %v7549
    %v7968 = vunpack.c.h.b16 %v7549
    %v7969 = vunpack.c.l.b16 %v7550
    %v7970 = vunpack.c.h.b16 %v7550
    %v7971 = vunpack.c.l.b16 %v7551
    %v7972 = vunpack.c.h.b16 %v7551
    %v7973 = vunpack.c.l.b16 %v7552
    %v7974 = vunpack.c.h.b16 %v7552
    %v7975 = vunpack.c.l.b16 %v7553
    %v7976 = vunpack.c.h.b16 %v7553
    %v7977 = vunpack.c.l.b16 %v7554
    %v7978 = vunpack.c.h.b16 %v7554
    %v7979 = vunpack.c.l.b16 %v7555
    %v7980 = vunpack.c.h.b16 %v7555
    %v7981 = vunpack.c.l.b16 %v7556
    %v7982 = vunpack.c.h.b16 %v7556
    %v7983 = vunpack.c.l.b16 %v7557
    %v7984 = vunpack.c.h.b16 %v7557
    %v7985 = vunpack.c.l.b16 %v7558
    %v7986 = vunpack.c.h.b16 %v7558
    %v7987 = vpack.c.b16 %v7735, %v7731
    %v7988 = vpack.c.b16 %v7736, %v7732
    %v7989 = vpack.c.b16 %v7737, %v7733
    %v7990 = vpack.c.b16 %v7738, %v7734
    %v7991 = vpack.c.b16 %v7743, %v7739
    %v7992 = vpack.c.b16 %v7744, %v7740
    %v7993 = vpack.c.b16 %v7745, %v7741
    %v7994 = vpack.c.b16 %v7746, %v7742
    %v7995 = vpack.c.b16 %v7751, %v7747
    %v7996 = vpack.c.b16 %v7752, %v7748
    %v7997 = vpack.c.b16 %v7753, %v7749
    %v7998 = vpack.c.b16 %v7754, %v7750
    %v7999 = vpack.c.b16 %v7759, %v7755
    %v8000 = vpack.c.b16 %v7760, %v7756
    %v8001 = vpack.c.b16 %v7761, %v7757
    %v8002 = vpack.c.b16 %v7762, %v7758
    %v8003 = vpack.c.b16 %v7767, %v7763
    %v8004 = vpack.c.b16 %v7768, %v7764
    %v8005 = vpack.c.b16 %v7769, %v7765
    %v8006 = vpack.c.b16 %v7770, %v7766
    %v8007 = vpack.c.b16 %v7775, %v7771
    %v8008 = vpack.c.b16 %v7776, %v7772
    %v8009 = vpack.c.b16 %v7777, %v7773
    %v8010 = vpack.c.b16 %v7778, %v7774
    %v8011 = vpack.c.b16 %v7783, %v7779
    %v8012 = vpack.c.b16 %v7784, %v7780
    %v8013 = vpack.c.b16 %v7785, %v7781
    %v8014 = vpack.c.b16 %v7786, %v7782
    %v8015 = vpack.c.b16 %v7791, %v7787
    %v8016 = vpack.c.b16 %v7792, %v7788
    %v8017 = vpack.c.b16 %v7793, %v7789
    %v8018 = vpack.c.b16 %v7794, %v7790
    %v8019 = vpack.c.b16 %v7799, %v7795
    %v8020 = vpack.c.b16 %v7800, %v7796
    %v8021 = vpack.c.b16 %v7801, %v7797
    %v8022 = vpack.c.b16 %v7802, %v7798
    %v8023 = vpack.c.b16 %v7807, %v7803
    %v8024 = vpack.c.b16 %v7808, %v7804
    %v8025 = vpack.c.b16 %v7809, %v7805
    %v8026 = vpack.c.b16 %v7810, %v7806
    %v8027 = vpack.c.b16 %v7815, %v7811
    %v8028 = vpack.c.b16 %v7816, %v7812
    %v8029 = vpack.c.b16 %v7817, %v7813
    %v8030 = vpack.c.b16 %v7818, %v7814
    %v8031 = vpack.c.b16 %v7823, %v7819
    %v8032 = vpack.c.b16 %v7824, %v7820
    %v8033 = vpack.c.b16 %v7825, %v7821
    %v8034 = vpack.c.b16 %v7826, %v7822
    %v8035 = vpack.c.b16 %v7831, %v7827
    %v8036 = vpack.c.b16 %v7832, %v7828
    %v8037 = vpack.c.b16 %v7833, %v7829
    %v8038 = vpack.c.b16 %v7834, %v7830
    %v8039 = vpack.c.b16 %v7839, %v7835
    %v8040 = vpack.c.b16 %v7840, %v7836
    %v8041 = vpack.c.b16 %v7841, %v7837
    %v8042 = vpack.c.b16 %v7842, %v7838
    %v8043 = vpack.c.b16 %v7847, %v7843
    %v8044 = vpack.c.b16 %v7848, %v7844
    %v8045 = vpack.c.b16 %v7849, %v7845
    %v8046 = vpack.c.b16 %v7850, %v7846
    %v8047 = vpack.c.b16 %v7855, %v7851
    %v8048 = vpack.c.b16 %v7856, %v7852
    %v8049 = vpack.c.b16 %v7857, %v7853
    %v8050 = vpack.c.b16 %v7858, %v7854
    %v8051 = vpack.c.b16 %v7863, %v7859
    %v8052 = vpack.c.b16 %v7864, %v7860
    %v8053 = vpack.c.b16 %v7865, %v7861
    %v8054 = vpack.c.b16 %v7866, %v7862
    %v8055 = vpack.c.b16 %v7871, %v7867
    %v8056 = vpack.c.b16 %v7872, %v7868
    %v8057 = vpack.c.b16 %v7873, %v7869
    %v8058 = vpack.c.b16 %v7874, %v7870
    %v8059 = vpack.c.b16 %v7879, %v7875
    %v8060 = vpack.c.b16 %v7880, %v7876
    %v8061 = vpack.c.b16 %v7881, %v7877
    %v8062 = vpack.c.b16 %v7882, %v7878
    %v8063 = vpack.c.b16 %v7887, %v7883
    %v8064 = vpack.c.b16 %v7888, %v7884
    %v8065 = vpack.c.b16 %v7889, %v7885
    %v8066 = vpack.c.b16 %v7890, %v7886
    %v8067 = vpack.c.b16 %v7895, %v7891
    %v8068 = vpack.c.b16 %v7896, %v7892
    %v8069 = vpack.c.b16 %v7897, %v7893
    %v8070 = vpack.c.b16 %v7898, %v7894
    %v8071 = vpack.c.b16 %v7903, %v7899
    %v8072 = vpack.c.b16 %v7904, %v7900
    %v8073 = vpack.c.b16 %v7905, %v7901
    %v8074 = vpack.c.b16 %v7906, %v7902
    %v8075 = vpack.c.b16 %v7911, %v7907
    %v8076 = vpack.c.b16 %v7912, %v7908
    %v8077 = vpack.c.b16 %v7913, %v7909
    %v8078 = vpack.c.b16 %v7914, %v7910
    %v8079 = vpack.c.b16 %v7919, %v7915
    %v8080 = vpack.c.b16 %v7920, %v7916
    %v8081 = vpack.c.b16 %v7921, %v7917
    %v8082 = vpack.c.b16 %v7922, %v7918
    %v8083 = vpack.c.b16 %v7927, %v7923
    %v8084 = vpack.c.b16 %v7928, %v7924
    %v8085 = vpack.c.b16 %v7929, %v7925
    %v8086 = vpack.c.b16 %v7930, %v7926
    %v8087 = vpack.c.b16 %v7935, %v7931
    %v8088 = vpack.c.b16 %v7936, %v7932
    %v8089 = vpack.c.b16 %v7937, %v7933
    %v8090 = vpack.c.b16 %v7938, %v7934
    %v8091 = vpack.c.b16 %v7943, %v7939
    %v8092 = vpack.c.b16 %v7944, %v7940
    %v8093 = vpack.c.b16 %v7945, %v7941
    %v8094 = vpack.c.b16 %v7946, %v7942
    %v8095 = vpack.c.b16 %v7951, %v7947
    %v8096 = vpack.c.b16 %v7952, %v7948
    %v8097 = vpack.c.b16 %v7953, %v7949
    %v8098 = vpack.c.b16 %v7954, %v7950
    %v8099 = vpack.c.b16 %v7959, %v7955
    %v8100 = vpack.c.b16 %v7960, %v7956
    %v8101 = vpack.c.b16 %v7961, %v7957
    %v8102 = vpack.c.b16 %v7962, %v7958
    %v8103 = vpack.c.b16 %v7967, %v7963
    %v8104 = vpack.c.b16 %v7968, %v7964
    %v8105 = vpack.c.b16 %v7969, %v7965
    %v8106 = vpack.c.b16 %v7970, %v7966
    %v8107 = vpack.c.b16 %v7975, %v7971
    %v8108 = vpack.c.b16 %v7976, %v7972
    %v8109 = vpack.c.b16 %v7977, %v7973
    %v8110 = vpack.c.b16 %v7978, %v7974
    %v8111 = vpack.c.b16 %v7983, %v7979
    %v8112 = vpack.c.b16 %v7984, %v7980
    %v8113 = vpack.c.b16 %v7985, %v7981
    %v8114 = vpack.c.b16 %v7986, %v7982
    %8243 = vmatprep.subr.bf16.mxu0 %v8016
    %8244 = vmatpush1.bf16.msra.mxu0 %v8015
    %8245 = vmatprep.subr.bf16.mxu0 %v8012
    %8246 = vmatpush1.bf16.msra.mxu0 %v8011
    %8247 = vmatprep.subr.bf16.mxu0 %v8008
    %8248 = vmatpush1.bf16.msra.mxu0 %v8007
    %8249 = vmatprep.subr.bf16.mxu0 %v8004
    %8250 = vmatpush1.bf16.msra.mxu0 %v8003
    %8251 = vmatprep.subr.bf16.mxu0 %v8000
    %8252 = vmatpush1.bf16.msra.mxu0 %v7999
    %8253 = vmatprep.subr.bf16.mxu0 %v7996
    %8254 = vmatpush1.bf16.msra.mxu0 %v7995
    %8255 = vmatprep.subr.bf16.mxu0 %v7992
    %8256 = vmatpush1.bf16.msra.mxu0 %v7991
    %8257 = vmatprep.subr.bf16.mxu0 %v7988
    %8258 = vmatpush1.bf16.msra.mxu0 %v7987
    %8259 = vmatprep.subr.bf16.mxu0 %v8048
    %8260 = vmatpush2.bf16.msra.mxu0 %v8047
    %8261 = vmatprep.subr.bf16.mxu0 %v8044
    %8262 = vmatpush2.bf16.msra.mxu0 %v8043
    %8263 = vmatprep.subr.bf16.mxu0 %v8040
    %8264 = vmatpush2.bf16.msra.mxu0 %v8039
    %8265 = vmatprep.subr.bf16.mxu0 %v8036
    %8266 = vmatpush2.bf16.msra.mxu0 %v8035
    %8267 = vmatprep.subr.bf16.mxu0 %v8032
    %8268 = vmatpush2.bf16.msra.mxu0 %v8031
    %8269 = vmatprep.subr.bf16.mxu0 %v8028
    %8270 = vmatpush2.bf16.msra.mxu0 %v8027
    %8271 = vmatprep.subr.bf16.mxu0 %v8024
    %8272 = vmatpush2.bf16.msra.mxu0 %v8023
    %8273 = vmatprep.subr.bf16.mxu0 %v8020
    %8274 = vmatpush2.bf16.msra.mxu0 %v8019
    %8275 = vmatprep.mubr.bf16.mxu0 %v7576
    %8276 = vmatmul.mubr.bf16.gmra.mxu0 %v7573
    %v8277 = vpop.f32.mrf.mxu0
    %v8278 = vadd.f32 0.0, %v8277
    %v8279 = vpop.f32.mrf.mxu0
    %v8280 = vadd.f32 0.0, %v8279
    %v8281 = vpop.f32.mrf.mxu0
    %v8282 = vadd.f32 0.0, %v8281
    %v8283 = vpop.f32.mrf.mxu0
    %v8284 = vadd.f32 0.0, %v8283
    %8285 = vmatprep.mubr.bf16.mxu0 %v7586
    %8286 = vmatmul.mubr.bf16.gmra.mxu0 %v7584
    %v8287 = vpop.f32.mrf.mxu0
    %v8288 = vadd.f32 0.0, %v8287
    %v8289 = vpop.f32.mrf.mxu0
    %v8290 = vadd.f32 0.0, %v8289
    %v8291 = vpop.f32.mrf.mxu0
    %v8292 = vadd.f32 0.0, %v8291
    %v8293 = vpop.f32.mrf.mxu0
    %v8294 = vadd.f32 0.0, %v8293
    %8295 = vmatprep.mubr.bf16.mxu0 %v7585
    %8296 = vmatmul.mubr.bf16.gmra.mxu0 %v7583
    %v8297 = vpop.f32.mrf.mxu0
    %v8298 = vadd.f32 0.0, %v8297
    %v8299 = vpop.f32.mrf.mxu0
    %v8300 = vadd.f32 0.0, %v8299
    %v8301 = vpop.f32.mrf.mxu0
    %v8302 = vpop.f32.mrf.mxu0
    %8303 = vdwg.mxu0
    %8304 = vmatprep.subr.bf16.mxu0 %v8080
    %8305 = vmatpush1.bf16.msra.mxu0 %v8079
    %8306 = vmatprep.subr.bf16.mxu0 %v8076
    %8307 = vmatpush1.bf16.msra.mxu0 %v8075
    %8308 = vmatprep.subr.bf16.mxu0 %v8072
    %8309 = vmatpush1.bf16.msra.mxu0 %v8071
    %8310 = vmatprep.subr.bf16.mxu0 %v8068
    %8311 = vmatpush1.bf16.msra.mxu0 %v8067
    %8312 = vmatprep.subr.bf16.mxu0 %v8064
    %8313 = vmatpush1.bf16.msra.mxu0 %v8063
    %8314 = vmatprep.subr.bf16.mxu0 %v8060
    %8315 = vmatpush1.bf16.msra.mxu0 %v8059
    %8316 = vmatprep.subr.bf16.mxu0 %v8056
    %8317 = vmatpush1.bf16.msra.mxu0 %v8055
    %8318 = vmatprep.subr.bf16.mxu0 %v8052
    %8319 = vmatpush1.bf16.msra.mxu0 %v8051
    %8320 = vmatprep.subr.bf16.mxu0 %v8112
    %8321 = vmatpush2.bf16.msra.mxu0 %v8111
    %8322 = vmatprep.subr.bf16.mxu0 %v8108
    %8323 = vmatpush2.bf16.msra.mxu0 %v8107
    %8324 = vmatprep.subr.bf16.mxu0 %v8104
    %8325 = vmatpush2.bf16.msra.mxu0 %v8103
    %8326 = vmatprep.subr.bf16.mxu0 %v8100
    %8327 = vmatpush2.bf16.msra.mxu0 %v8099
    %8328 = vmatprep.subr.bf16.mxu0 %v8096
    %8329 = vmatpush2.bf16.msra.mxu0 %v8095
    %8330 = vmatprep.subr.bf16.mxu0 %v8092
    %8331 = vmatpush2.bf16.msra.mxu0 %v8091
    %8332 = vmatprep.subr.bf16.mxu0 %v8088
    %8333 = vmatpush2.bf16.msra.mxu0 %v8087
    %8334 = vmatprep.subr.bf16.mxu0 %v8084
    %8335 = vmatpush2.bf16.msra.mxu0 %v8083
    %8336 = vmatprep.mubr.bf16.mxu0 %v7582
    %8337 = vmatmul.mubr.bf16.gmra.mxu0 %v7579
    %v8338 = vpop.f32.mrf.mxu0
    %v8339 = vadd.f32 %v8278, %v8338
    %v8340 = vpop.f32.mrf.mxu0
    %v8341 = vadd.f32 %v8280, %v8340
    %v8342 = vpop.f32.mrf.mxu0
    %v8343 = vadd.f32 %v8282, %v8342
    %v8344 = vpop.f32.mrf.mxu0
    %v8345 = vadd.f32 %v8284, %v8344
    %8346 = vmatprep.mubr.bf16.mxu0 %v7590
    %8347 = vmatmul.mubr.bf16.gmra.mxu0 %v7588
    %v8348 = vpop.f32.mrf.mxu0
    %v8349 = vadd.f32 %v8288, %v8348
    %v8350 = vpop.f32.mrf.mxu0
    %v8351 = vadd.f32 %v8290, %v8350
    %v8352 = vpop.f32.mrf.mxu0
    %v8353 = vadd.f32 %v8292, %v8352
    %v8354 = vpop.f32.mrf.mxu0
    %v8355 = vadd.f32 %v8294, %v8354
    %8356 = vmatprep.mubr.bf16.mxu0 %v7589
    %8357 = vmatmul.mubr.bf16.gmra.mxu0 %v7587
    %v8358 = vpop.f32.mrf.mxu0
    %v8359 = vadd.f32 %v8298, %v8358
    %v8360 = vpop.f32.mrf.mxu0
    %v8361 = vadd.f32 %v8300, %v8360
    %v8362 = vpop.f32.mrf.mxu0
    %v8363 = vpop.f32.mrf.mxu0
    %8364 = vdwg.mxu0
    %8365 = vmatprep.subr.bf16.mxu0 %v8018
    %8366 = vmatpush1.bf16.msra.mxu0 %v8017
    %8367 = vmatprep.subr.bf16.mxu0 %v8014
    %8368 = vmatpush1.bf16.msra.mxu0 %v8013
    %8369 = vmatprep.subr.bf16.mxu0 %v8010
    %8370 = vmatpush1.bf16.msra.mxu0 %v8009
    %8371 = vmatprep.subr.bf16.mxu0 %v8006
    %8372 = vmatpush1.bf16.msra.mxu0 %v8005
    %8373 = vmatprep.subr.bf16.mxu0 %v8002
    %8374 = vmatpush1.bf16.msra.mxu0 %v8001
    %8375 = vmatprep.subr.bf16.mxu0 %v7998
    %8376 = vmatpush1.bf16.msra.mxu0 %v7997
    %8377 = vmatprep.subr.bf16.mxu0 %v7994
    %8378 = vmatpush1.bf16.msra.mxu0 %v7993
    %8379 = vmatprep.subr.bf16.mxu0 %v7990
    %8380 = vmatpush1.bf16.msra.mxu0 %v7989
    %8381 = vmatprep.subr.bf16.mxu0 %v8050
    %8382 = vmatpush2.bf16.msra.mxu0 %v8049
    %8383 = vmatprep.subr.bf16.mxu0 %v8046
    %8384 = vmatpush2.bf16.msra.mxu0 %v8045
    %8385 = vmatprep.subr.bf16.mxu0 %v8042
    %8386 = vmatpush2.bf16.msra.mxu0 %v8041
    %8387 = vmatprep.subr.bf16.mxu0 %v8038
    %8388 = vmatpush2.bf16.msra.mxu0 %v8037
    %8389 = vmatprep.subr.bf16.mxu0 %v8034
    %8390 = vmatpush2.bf16.msra.mxu0 %v8033
    %8391 = vmatprep.subr.bf16.mxu0 %v8030
    %8392 = vmatpush2.bf16.msra.mxu0 %v8029
    %8393 = vmatprep.subr.bf16.mxu0 %v8026
    %8394 = vmatpush2.bf16.msra.mxu0 %v8025
    %8395 = vmatprep.subr.bf16.mxu0 %v8022
    %8396 = vmatpush2.bf16.msra.mxu0 %v8021
    %8397 = vmatprep.mubr.bf16.mxu0 %v7576
    %8398 = vmatmul.mubr.bf16.gmra.mxu0 %v7573
    %v8399 = vpop.f32.mrf.mxu0
    %v8400 = vadd.f32 0.0, %v8399
    %v8401 = vpop.f32.mrf.mxu0
    %v8402 = vadd.f32 0.0, %v8401
    %v8403 = vpop.f32.mrf.mxu0
    %v8404 = vadd.f32 0.0, %v8403
    %v8405 = vpop.f32.mrf.mxu0
    %v8406 = vadd.f32 0.0, %v8405
    %8407 = vmatprep.mubr.bf16.mxu0 %v7586
    %8408 = vmatmul.mubr.bf16.gmra.mxu0 %v7584
    %v8409 = vpop.f32.mrf.mxu0
    %v8410 = vadd.f32 0.0, %v8409
    %v8411 = vpop.f32.mrf.mxu0
    %v8412 = vadd.f32 0.0, %v8411
    %v8413 = vpop.f32.mrf.mxu0
    %v8414 = vadd.f32 0.0, %v8413
    %v8415 = vpop.f32.mrf.mxu0
    %v8416 = vadd.f32 0.0, %v8415
    %8417 = vmatprep.mubr.bf16.mxu0 %v7585
    %8418 = vmatmul.mubr.bf16.gmra.mxu0 %v7583
    %v8419 = vpop.f32.mrf.mxu0
    %v8420 = vadd.f32 0.0, %v8419
    %v8421 = vpop.f32.mrf.mxu0
    %v8422 = vadd.f32 0.0, %v8421
    %v8423 = vpop.f32.mrf.mxu0
    %v8424 = vpop.f32.mrf.mxu0
    %8425 = vdwg.mxu0
    %8426 = vmatprep.subr.bf16.mxu0 %v8082
    %8427 = vmatpush1.bf16.msra.mxu0 %v8081
    %8428 = vmatprep.subr.bf16.mxu0 %v8078
    %8429 = vmatpush1.bf16.msra.mxu0 %v8077
    %8430 = vmatprep.subr.bf16.mxu0 %v8074
    %8431 = vmatpush1.bf16.msra.mxu0 %v8073
    %8432 = vmatprep.subr.bf16.mxu0 %v8070
    %8433 = vmatpush1.bf16.msra.mxu0 %v8069
    %8434 = vmatprep.subr.bf16.mxu0 %v8066
    %8435 = vmatpush1.bf16.msra.mxu0 %v8065
    %8436 = vmatprep.subr.bf16.mxu0 %v8062
    %8437 = vmatpush1.bf16.msra.mxu0 %v8061
    %8438 = vmatprep.subr.bf16.mxu0 %v8058
    %8439 = vmatpush1.bf16.msra.mxu0 %v8057
    %8440 = vmatprep.subr.bf16.mxu0 %v8054
    %8441 = vmatpush1.bf16.msra.mxu0 %v8053
    %8442 = vmatprep.subr.bf16.mxu0 %v8114
    %8443 = vmatpush2.bf16.msra.mxu0 %v8113
    %8444 = vmatprep.subr.bf16.mxu0 %v8110
    %8445 = vmatpush2.bf16.msra.mxu0 %v8109
    %8446 = vmatprep.subr.bf16.mxu0 %v8106
    %8447 = vmatpush2.bf16.msra.mxu0 %v8105
    %8448 = vmatprep.subr.bf16.mxu0 %v8102
    %8449 = vmatpush2.bf16.msra.mxu0 %v8101
    %8450 = vmatprep.subr.bf16.mxu0 %v8098
    %8451 = vmatpush2.bf16.msra.mxu0 %v8097
    %8452 = vmatprep.subr.bf16.mxu0 %v8094
    %8453 = vmatpush2.bf16.msra.mxu0 %v8093
    %8454 = vmatprep.subr.bf16.mxu0 %v8090
    %8455 = vmatpush2.bf16.msra.mxu0 %v8089
    %8456 = vmatprep.subr.bf16.mxu0 %v8086
    %8457 = vmatpush2.bf16.msra.mxu0 %v8085
    %8458 = vmatprep.mubr.bf16.mxu0 %v7582
    %8459 = vmatmul.mubr.bf16.gmra.mxu0 %v7579
    %v8460 = vpop.f32.mrf.mxu0
    %v8461 = vadd.f32 %v8400, %v8460
    %v8462 = vpop.f32.mrf.mxu0
    %v8463 = vadd.f32 %v8402, %v8462
    %v8464 = vpop.f32.mrf.mxu0
    %v8465 = vadd.f32 %v8404, %v8464
    %v8466 = vpop.f32.mrf.mxu0
    %v8467 = vadd.f32 %v8406, %v8466
    %8468 = vmatprep.mubr.bf16.mxu0 %v7590
    %8469 = vmatmul.mubr.bf16.gmra.mxu0 %v7588
    %v8470 = vpop.f32.mrf.mxu0
    %v8471 = vadd.f32 %v8410, %v8470
    %v8472 = vpop.f32.mrf.mxu0
    %v8473 = vadd.f32 %v8412, %v8472
    %v8474 = vpop.f32.mrf.mxu0
    %v8475 = vadd.f32 %v8414, %v8474
    %v8476 = vpop.f32.mrf.mxu0
    %v8477 = vadd.f32 %v8416, %v8476
    %8478 = vmatprep.mubr.bf16.mxu0 %v7589
    %8479 = vmatmul.mubr.bf16.gmra.mxu0 %v7587
    %v8480 = vpop.f32.mrf.mxu0
    %v8481 = vadd.f32 %v8420, %v8480
    %v8482 = vpop.f32.mrf.mxu0
    %v8483 = vadd.f32 %v8422, %v8482
    %v8484 = vpop.f32.mrf.mxu0
    %v8485 = vpop.f32.mrf.mxu0
    %8486 = vdwg.mxu0
    %v8487 = vadd.f32 %v7266, %v8339
    %v8488 = vadd.f32 %v7268, %v8341
    %v8489 = vadd.f32 %v7388, %v8461
    %v8490 = vadd.f32 %v7390, %v8463
    %v8491 = vadd.f32 %v7270, %v8343
    %v8492 = vadd.f32 %v7272, %v8345
    %v8493 = vadd.f32 %v7392, %v8465
    %v8494 = vadd.f32 %v7394, %v8467
    %v8495 = vadd.f32 %v7276, %v8349
    %v8496 = vadd.f32 %v7278, %v8351
    %v8497 = vadd.f32 %v7398, %v8471
    %v8498 = vadd.f32 %v7400, %v8473
    %v8499 = vadd.f32 %v7280, %v8353
    %v8500 = vadd.f32 %v7282, %v8355
    %v8501 = vadd.f32 %v7402, %v8475
    %v8502 = vadd.f32 %v7404, %v8477
    %v8503 = vadd.f32 %v7286, %v8359
    %v8504 = vadd.f32 %v7288, %v8361
    %v8505 = vadd.f32 %v7408, %v8481
    %v8506 = vadd.f32 %v7410, %v8483
    %s8507 = scalar_lea.vmem [#allocation8], 12
    %v8508 = vld [vmem:[%s8507] sm:$0xf]
    %v8510 = vlaneseq
    %v8511 = vshrl.u32 %v8510, 7
    %v8512 = vsub.s32 0, %v8511
    %v8513 = vrot.slane %v8508, %v8512
    %v8514 = vlaneseq
    %v8515 = vshrl.u32 %v8514, 7
    %v8516 = vsub.s32 1, %v8515
    %v8517 = vrot.slane %v8508, %v8516
    %v8518 = vlaneseq
    %v8519 = vshrl.u32 %v8518, 7
    %v8520 = vsub.s32 2, %v8519
    %v8521 = vrot.slane %v8508, %v8520
    %v8522 = vlaneseq
    %v8523 = vshrl.u32 %v8522, 7
    %v8524 = vsub.s32 3, %v8523
    %v8525 = vrot.slane %v8508, %v8524
    %v8530 = vadd.f32 %v8487, %v8513
    %v8531 = vadd.f32 %v8488, %v8517
    %v8532 = vadd.f32 %v8489, %v8521
    %v8533 = vadd.f32 %v8490, %v8525
    %v8534 = vadd.f32 %v8491, %v8513
    %v8535 = vadd.f32 %v8492, %v8517
    %v8536 = vadd.f32 %v8493, %v8521
    %v8537 = vadd.f32 %v8494, %v8525
    %v8538 = vadd.f32 %v8495, %v8513
    %v8539 = vadd.f32 %v8496, %v8517
    %v8540 = vadd.f32 %v8497, %v8521
    %v8541 = vadd.f32 %v8498, %v8525
    %v8542 = vadd.f32 %v8499, %v8513
    %v8543 = vadd.f32 %v8500, %v8517
    %v8544 = vadd.f32 %v8501, %v8521
    %v8545 = vadd.f32 %v8502, %v8525
    %v8546 = vadd.f32 %v8503, %v8513
    %v8547 = vadd.f32 %v8504, %v8517
    %v8548 = vadd.f32 %v8505, %v8521
    %v8549 = vadd.f32 %v8506, %v8525
    %v8550 = vmax.f32 %v8530, 0.0
    %v8551 = vmax.f32 %v8531, 0.0
    %v8552 = vmax.f32 %v8532, 0.0
    %v8553 = vmax.f32 %v8533, 0.0
    %v8554 = vmax.f32 %v8534, 0.0
    %v8555 = vmax.f32 %v8535, 0.0
    %v8556 = vmax.f32 %v8536, 0.0
    %v8557 = vmax.f32 %v8537, 0.0
    %v8558 = vmax.f32 %v8538, 0.0
    %v8559 = vmax.f32 %v8539, 0.0
    %v8560 = vmax.f32 %v8540, 0.0
    %v8561 = vmax.f32 %v8541, 0.0
    %v8562 = vmax.f32 %v8542, 0.0
    %v8563 = vmax.f32 %v8543, 0.0
    %v8564 = vmax.f32 %v8544, 0.0
    %v8565 = vmax.f32 %v8545, 0.0
    %v8566 = vmax.f32 %v8546, 0.0
    %v8567 = vmax.f32 %v8547, 0.0
    %v8568 = vmax.f32 %v8548, 0.0
    %v8569 = vmax.f32 %v8549, 0.0
    %v8590 = vrot.slane %v8550, 7
    %v8591 = vrot.slane %v8551, 7
    %v8592 = vrot.slane %v8552, 7
    %v8593 = vrot.slane %v8553, 7
    %v8594 = vrot.slane %v8554, 7
    %v8595 = vsel %vm1660, %v8590, %v8594
    %v8596 = vrot.slane %v8555, 7
    %v8597 = vsel %vm1660, %v8591, %v8596
    %v8598 = vrot.slane %v8556, 7
    %v8599 = vsel %vm1660, %v8592, %v8598
    %v8600 = vrot.slane %v8557, 7
    %v8601 = vsel %vm1660, %v8593, %v8600
    %v8602 = vrot.slane %v8558, 7
    %v8603 = vsel %vm1660, %v8594, %v8602
    %v8604 = vrot.slane %v8559, 7
    %v8605 = vsel %vm1660, %v8596, %v8604
    %v8606 = vrot.slane %v8560, 7
    %v8607 = vsel %vm1660, %v8598, %v8606
    %v8608 = vrot.slane %v8561, 7
    %v8609 = vsel %vm1660, %v8600, %v8608
    %v8610 = vrot.slane %v8562, 7
    %v8611 = vsel %vm1660, %v8602, %v8610
    %v8612 = vrot.slane %v8563, 7
    %v8613 = vsel %vm1660, %v8604, %v8612
    %v8614 = vrot.slane %v8564, 7
    %v8615 = vsel %vm1660, %v8606, %v8614
    %v8616 = vrot.slane %v8565, 7
    %v8617 = vsel %vm1660, %v8608, %v8616
    %v8618 = vrot.slane %v8566, 7
    %v8619 = vsel %vm1660, %v8610, %v8618
    %v8620 = vrot.slane %v8567, 7
    %v8621 = vsel %vm1660, %v8612, %v8620
    %v8622 = vrot.slane %v8568, 7
    %v8623 = vsel %vm1660, %v8614, %v8622
    %v8624 = vrot.slane %v8569, 7
    %v8625 = vsel %vm1660, %v8616, %v8624
    %8646 = vst [vmem:[#allocation2] sm:$0xfe] %v8590
    %8647 = vst [vmem:[#allocation2 + $0x8] sm:$0xfe] %v8591
    %8648 = vst [vmem:[#allocation2 + $0x10] sm:$0xfe] %v8592
    %8649 = vst [vmem:[#allocation2 + $0x18] sm:$0xfe] %v8593
    %8650 = vst [vmem:[#allocation2 + $0x20] sm:$0xff] %v8595
    %8651 = vst [vmem:[#allocation2 + $0x28] sm:$0xff] %v8597
    %8652 = vst [vmem:[#allocation2 + $0x30] sm:$0xff] %v8599
    %8653 = vst [vmem:[#allocation2 + $0x38] sm:$0xff] %v8601
    %8654 = vst [vmem:[#allocation2 + $0x40] sm:$0xff] %v8603
    %8655 = vst [vmem:[#allocation2 + $0x48] sm:$0xff] %v8605
    %8656 = vst [vmem:[#allocation2 + $0x50] sm:$0xff] %v8607
    %8657 = vst [vmem:[#allocation2 + $0x58] sm:$0xff] %v8609
    %8658 = vst [vmem:[#allocation2 + $0x60] sm:$0xff] %v8611
    %8659 = vst [vmem:[#allocation2 + $0x68] sm:$0xff] %v8613
    %8660 = vst [vmem:[#allocation2 + $0x70] sm:$0xff] %v8615
    %8661 = vst [vmem:[#allocation2 + $0x78] sm:$0xff] %v8617
    %8662 = vst [vmem:[#allocation2 + $0x80] sm:$0x7] %v8619
    %8663 = vst [vmem:[#allocation2 + $0x88] sm:$0x7] %v8621
    %8664 = vst [vmem:[#allocation2 + $0x90] sm:$0x7] %v8623
    %8665 = vst [vmem:[#allocation2 + $0x98] sm:$0x7] %v8625
    %8666 = vst [vmem:[#allocation2 + $0x40] sm:$0x6] 0.0
    %8667 = vst [vmem:[#allocation2 + $0x48] sm:$0x6] 0.0
    %8668 = vst [vmem:[#allocation2 + $0x50] sm:$0x6] 0.0
    %8669 = vst [vmem:[#allocation2 + $0x58] sm:$0x6] 0.0
    %v8670 = vld [vmem:[#allocation2] sm:$0xff]
    %v8671 = vld [vmem:[#allocation2 + $0x8] sm:$0xff]
    %v8672 = vld [vmem:[#allocation2 + $0x10] sm:$0xff]
    %v8673 = vld [vmem:[#allocation2 + $0x18] sm:$0xff]
    %v8674 = vld [vmem:[#allocation2 + $0x20] sm:$0xff]
    %v8675 = vld [vmem:[#allocation2 + $0x28] sm:$0xff]
    %v8676 = vld [vmem:[#allocation2 + $0x30] sm:$0xff]
    %v8677 = vld [vmem:[#allocation2 + $0x38] sm:$0xff]
    %v8678 = vld [vmem:[#allocation2 + $0x40] sm:$0xff]
    %v8679 = vld [vmem:[#allocation2 + $0x48] sm:$0xff]
    %v8680 = vld [vmem:[#allocation2 + $0x50] sm:$0xff]
    %v8681 = vld [vmem:[#allocation2 + $0x58] sm:$0xff]
    %v8682 = vld [vmem:[#allocation2 + $0x60] sm:$0xff]
    %v8683 = vld [vmem:[#allocation2 + $0x68] sm:$0xff]
    %v8684 = vld [vmem:[#allocation2 + $0x70] sm:$0xff]
    %v8685 = vld [vmem:[#allocation2 + $0x78] sm:$0xff]
    %v8686 = vld [vmem:[#allocation2 + $0x80] sm:$0x3]
    %v8687 = vld [vmem:[#allocation2 + $0x88] sm:$0x3]
    %v8688 = vld [vmem:[#allocation2 + $0x90] sm:$0x3]
    %v8689 = vld [vmem:[#allocation2 + $0x98] sm:$0x3]
    %v8690 = vpack.c.bf16 %v8674, %v8670
    %v8691 = vpack.c.bf16 %v8675, %v8671
    %v8692 = vpack.c.bf16 %v8676, %v8672
    %v8693 = vpack.c.bf16 %v8677, %v8673
    %v8694 = vpack.c.bf16 %v8682, %v8678
    %v8695 = vpack.c.bf16 %v8683, %v8679
    %v8696 = vpack.c.bf16 %v8684, %v8680
    %v8697 = vpack.c.bf16 %v8685, %v8681
    %v8698 = vpack.c.bf16 %v8686, %v8686
    %v8699 = vpack.c.bf16 %v8687, %v8687
    %v8700 = vpack.c.bf16 %v8688, %v8688
    %v8701 = vpack.c.bf16 %v8689, %v8689
    %s8702 = scalar_lea.vmem [#allocation6], 6144
    %v8703 = vld [vmem:[%s8702] sm:$0xff]
    %v8704 = vld [vmem:[%s8702 + $0x8] sm:$0xff]
    %v8705 = vld [vmem:[%s8702 + $0x10] sm:$0xff]
    %v8706 = vld [vmem:[%s8702 + $0x18] sm:$0xff]
    %v8707 = vld [vmem:[%s8702 + $0x20] sm:$0xff]
    %v8708 = vld [vmem:[%s8702 + $0x28] sm:$0xff]
    %v8709 = vld [vmem:[%s8702 + $0x30] sm:$0xff]
    %v8710 = vld [vmem:[%s8702 + $0x38] sm:$0xff]
    %v8711 = vld [vmem:[%s8702 + $0x40] sm:$0xff]
    %v8712 = vld [vmem:[%s8702 + $0x48] sm:$0xff]
    %v8713 = vld [vmem:[%s8702 + $0x50] sm:$0xff]
    %v8714 = vld [vmem:[%s8702 + $0x58] sm:$0xff]
    %v8715 = vld [vmem:[%s8702 + $0x60] sm:$0xff]
    %v8716 = vld [vmem:[%s8702 + $0x68] sm:$0xff]
    %v8717 = vld [vmem:[%s8702 + $0x70] sm:$0xff]
    %v8718 = vld [vmem:[%s8702 + $0x78] sm:$0xff]
    %v8719 = vld [vmem:[%s8702 + $0x80] sm:$0xff]
    %v8720 = vld [vmem:[%s8702 + $0x88] sm:$0xff]
    %v8721 = vld [vmem:[%s8702 + $0x90] sm:$0xff]
    %v8722 = vld [vmem:[%s8702 + $0x98] sm:$0xff]
    %v8723 = vld [vmem:[%s8702 + $0xa0] sm:$0xff]
    %v8724 = vld [vmem:[%s8702 + $0xa8] sm:$0xff]
    %v8725 = vld [vmem:[%s8702 + $0xb0] sm:$0xff]
    %v8726 = vld [vmem:[%s8702 + $0xb8] sm:$0xff]
    %v8727 = vld [vmem:[%s8702 + $0xc0] sm:$0xff]
    %v8728 = vld [vmem:[%s8702 + $0xc8] sm:$0xff]
    %v8729 = vld [vmem:[%s8702 + $0xd0] sm:$0xff]
    %v8730 = vld [vmem:[%s8702 + $0xd8] sm:$0xff]
    %v8731 = vld [vmem:[%s8702 + $0xe0] sm:$0xff]
    %v8732 = vld [vmem:[%s8702 + $0xe8] sm:$0xff]
    %v8733 = vld [vmem:[%s8702 + $0xf0] sm:$0xff]
    %v8734 = vld [vmem:[%s8702 + $0xf8] sm:$0xff]
    %v8735 = vld [vmem:[%s8702 + $0x100] sm:$0xff]
    %v8736 = vld [vmem:[%s8702 + $0x108] sm:$0xff]
    %v8737 = vld [vmem:[%s8702 + $0x110] sm:$0xff]
    %v8738 = vld [vmem:[%s8702 + $0x118] sm:$0xff]
    %v8739 = vld [vmem:[%s8702 + $0x120] sm:$0xff]
    %v8740 = vld [vmem:[%s8702 + $0x128] sm:$0xff]
    %v8741 = vld [vmem:[%s8702 + $0x130] sm:$0xff]
    %v8742 = vld [vmem:[%s8702 + $0x138] sm:$0xff]
    %v8743 = vld [vmem:[%s8702 + $0x140] sm:$0xff]
    %v8744 = vld [vmem:[%s8702 + $0x148] sm:$0xff]
    %v8745 = vld [vmem:[%s8702 + $0x150] sm:$0xff]
    %v8746 = vld [vmem:[%s8702 + $0x158] sm:$0xff]
    %v8747 = vld [vmem:[%s8702 + $0x160] sm:$0xff]
    %v8748 = vld [vmem:[%s8702 + $0x168] sm:$0xff]
    %v8749 = vld [vmem:[%s8702 + $0x170] sm:$0xff]
    %v8750 = vld [vmem:[%s8702 + $0x178] sm:$0xff]
    %v8751 = vld [vmem:[%s8702 + $0x180] sm:$0xff]
    %v8752 = vld [vmem:[%s8702 + $0x188] sm:$0xff]
    %v8753 = vld [vmem:[%s8702 + $0x190] sm:$0xff]
    %v8754 = vld [vmem:[%s8702 + $0x198] sm:$0xff]
    %v8755 = vld [vmem:[%s8702 + $0x1a0] sm:$0xff]
    %v8756 = vld [vmem:[%s8702 + $0x1a8] sm:$0xff]
    %v8757 = vld [vmem:[%s8702 + $0x1b0] sm:$0xff]
    %v8758 = vld [vmem:[%s8702 + $0x1b8] sm:$0xff]
    %v8759 = vld [vmem:[%s8702 + $0x1c0] sm:$0xff]
    %v8760 = vld [vmem:[%s8702 + $0x1c8] sm:$0xff]
    %v8761 = vld [vmem:[%s8702 + $0x1d0] sm:$0xff]
    %v8762 = vld [vmem:[%s8702 + $0x1d8] sm:$0xff]
    %v8763 = vld [vmem:[%s8702 + $0x1e0] sm:$0xff]
    %v8764 = vld [vmem:[%s8702 + $0x1e8] sm:$0xff]
    %v8765 = vld [vmem:[%s8702 + $0x1f0] sm:$0xff]
    %v8766 = vld [vmem:[%s8702 + $0x1f8] sm:$0xff]
    %v8767 = vld [vmem:[%s8702 + $0x200] sm:$0xff]
    %v8768 = vld [vmem:[%s8702 + $0x208] sm:$0xff]
    %v8769 = vld [vmem:[%s8702 + $0x210] sm:$0xff]
    %v8770 = vld [vmem:[%s8702 + $0x218] sm:$0xff]
    %v8771 = vld [vmem:[%s8702 + $0x220] sm:$0xff]
    %v8772 = vld [vmem:[%s8702 + $0x228] sm:$0xff]
    %v8773 = vld [vmem:[%s8702 + $0x230] sm:$0xff]
    %v8774 = vld [vmem:[%s8702 + $0x238] sm:$0xff]
    %v8775 = vld [vmem:[%s8702 + $0x240] sm:$0xff]
    %v8776 = vld [vmem:[%s8702 + $0x248] sm:$0xff]
    %v8777 = vld [vmem:[%s8702 + $0x250] sm:$0xff]
    %v8778 = vld [vmem:[%s8702 + $0x258] sm:$0xff]
    %v8779 = vld [vmem:[%s8702 + $0x260] sm:$0xff]
    %v8780 = vld [vmem:[%s8702 + $0x268] sm:$0xff]
    %v8781 = vld [vmem:[%s8702 + $0x270] sm:$0xff]
    %v8782 = vld [vmem:[%s8702 + $0x278] sm:$0xff]
    %v8783 = vld [vmem:[%s8702 + $0x280] sm:$0xff]
    %v8784 = vld [vmem:[%s8702 + $0x288] sm:$0xff]
    %v8785 = vld [vmem:[%s8702 + $0x290] sm:$0xff]
    %v8786 = vld [vmem:[%s8702 + $0x298] sm:$0xff]
    %v8787 = vld [vmem:[%s8702 + $0x2a0] sm:$0xff]
    %v8788 = vld [vmem:[%s8702 + $0x2a8] sm:$0xff]
    %v8789 = vld [vmem:[%s8702 + $0x2b0] sm:$0xff]
    %v8790 = vld [vmem:[%s8702 + $0x2b8] sm:$0xff]
    %v8791 = vld [vmem:[%s8702 + $0x2c0] sm:$0xff]
    %v8792 = vld [vmem:[%s8702 + $0x2c8] sm:$0xff]
    %v8793 = vld [vmem:[%s8702 + $0x2d0] sm:$0xff]
    %v8794 = vld [vmem:[%s8702 + $0x2d8] sm:$0xff]
    %v8795 = vld [vmem:[%s8702 + $0x2e0] sm:$0xff]
    %v8796 = vld [vmem:[%s8702 + $0x2e8] sm:$0xff]
    %v8797 = vld [vmem:[%s8702 + $0x2f0] sm:$0xff]
    %v8798 = vld [vmem:[%s8702 + $0x2f8] sm:$0xff]
    %v8799 = vld [vmem:[%s8702 + $0x300] sm:$0xff]
    %v8800 = vld [vmem:[%s8702 + $0x308] sm:$0xff]
    %v8801 = vld [vmem:[%s8702 + $0x310] sm:$0xff]
    %v8802 = vld [vmem:[%s8702 + $0x318] sm:$0xff]
    %v8803 = vld [vmem:[%s8702 + $0x320] sm:$0xff]
    %v8804 = vld [vmem:[%s8702 + $0x328] sm:$0xff]
    %v8805 = vld [vmem:[%s8702 + $0x330] sm:$0xff]
    %v8806 = vld [vmem:[%s8702 + $0x338] sm:$0xff]
    %v8807 = vld [vmem:[%s8702 + $0x340] sm:$0xff]
    %v8808 = vld [vmem:[%s8702 + $0x348] sm:$0xff]
    %v8809 = vld [vmem:[%s8702 + $0x350] sm:$0xff]
    %v8810 = vld [vmem:[%s8702 + $0x358] sm:$0xff]
    %v8811 = vld [vmem:[%s8702 + $0x360] sm:$0xff]
    %v8812 = vld [vmem:[%s8702 + $0x368] sm:$0xff]
    %v8813 = vld [vmem:[%s8702 + $0x370] sm:$0xff]
    %v8814 = vld [vmem:[%s8702 + $0x378] sm:$0xff]
    %v8815 = vld [vmem:[%s8702 + $0x380] sm:$0xff]
    %v8816 = vld [vmem:[%s8702 + $0x388] sm:$0xff]
    %v8817 = vld [vmem:[%s8702 + $0x390] sm:$0xff]
    %v8818 = vld [vmem:[%s8702 + $0x398] sm:$0xff]
    %v8819 = vld [vmem:[%s8702 + $0x3a0] sm:$0xff]
    %v8820 = vld [vmem:[%s8702 + $0x3a8] sm:$0xff]
    %v8821 = vld [vmem:[%s8702 + $0x3b0] sm:$0xff]
    %v8822 = vld [vmem:[%s8702 + $0x3b8] sm:$0xff]
    %v8823 = vld [vmem:[%s8702 + $0x3c0] sm:$0xff]
    %v8824 = vld [vmem:[%s8702 + $0x3c8] sm:$0xff]
    %v8825 = vld [vmem:[%s8702 + $0x3d0] sm:$0xff]
    %v8826 = vld [vmem:[%s8702 + $0x3d8] sm:$0xff]
    %v8827 = vld [vmem:[%s8702 + $0x3e0] sm:$0xff]
    %v8828 = vld [vmem:[%s8702 + $0x3e8] sm:$0xff]
    %v8829 = vld [vmem:[%s8702 + $0x3f0] sm:$0xff]
    %v8830 = vld [vmem:[%s8702 + $0x3f8] sm:$0xff]
    %v8831 = vld [vmem:[#allocation2] sm:$0xfe]
    %v8832 = vld [vmem:[#allocation2 + $0x8] sm:$0xfe]
    %v8833 = vld [vmem:[#allocation2 + $0x10] sm:$0xfe]
    %v8834 = vld [vmem:[#allocation2 + $0x18] sm:$0xfe]
    %v8835 = vld [vmem:[#allocation2 + $0x80] sm:$0x7]
    %v8836 = vld [vmem:[#allocation2 + $0x88] sm:$0x7]
    %v8837 = vld [vmem:[#allocation2 + $0x90] sm:$0x7]
    %v8838 = vld [vmem:[#allocation2 + $0x98] sm:$0x7]
    %v8839 = vpack.c.bf16 %v8674, %v8831
    %v8840 = vpack.c.bf16 %v8675, %v8832
    %v8841 = vpack.c.bf16 %v8676, %v8833
    %v8842 = vpack.c.bf16 %v8677, %v8834
    %v8843 = vpack.c.bf16 %v8835, %v8835
    %v8844 = vpack.c.bf16 %v8836, %v8836
    %v8845 = vpack.c.bf16 %v8837, %v8837
    %v8846 = vpack.c.bf16 %v8838, %v8838
    %s8847 = scalar_lea.vmem [#allocation6], 7168
    %v8848 = vld [vmem:[%s8847] sm:$0xff]
    %v8849 = vld [vmem:[%s8847 + $0x8] sm:$0xff]
    %v8850 = vld [vmem:[%s8847 + $0x10] sm:$0xff]
    %v8851 = vld [vmem:[%s8847 + $0x18] sm:$0xff]
    %v8852 = vld [vmem:[%s8847 + $0x20] sm:$0xff]
    %v8853 = vld [vmem:[%s8847 + $0x28] sm:$0xff]
    %v8854 = vld [vmem:[%s8847 + $0x30] sm:$0xff]
    %v8855 = vld [vmem:[%s8847 + $0x38] sm:$0xff]
    %v8856 = vld [vmem:[%s8847 + $0x40] sm:$0xff]
    %v8857 = vld [vmem:[%s8847 + $0x48] sm:$0xff]
    %v8858 = vld [vmem:[%s8847 + $0x50] sm:$0xff]
    %v8859 = vld [vmem:[%s8847 + $0x58] sm:$0xff]
    %v8860 = vld [vmem:[%s8847 + $0x60] sm:$0xff]
    %v8861 = vld [vmem:[%s8847 + $0x68] sm:$0xff]
    %v8862 = vld [vmem:[%s8847 + $0x70] sm:$0xff]
    %v8863 = vld [vmem:[%s8847 + $0x78] sm:$0xff]
    %v8864 = vld [vmem:[%s8847 + $0x80] sm:$0xff]
    %v8865 = vld [vmem:[%s8847 + $0x88] sm:$0xff]
    %v8866 = vld [vmem:[%s8847 + $0x90] sm:$0xff]
    %v8867 = vld [vmem:[%s8847 + $0x98] sm:$0xff]
    %v8868 = vld [vmem:[%s8847 + $0xa0] sm:$0xff]
    %v8869 = vld [vmem:[%s8847 + $0xa8] sm:$0xff]
    %v8870 = vld [vmem:[%s8847 + $0xb0] sm:$0xff]
    %v8871 = vld [vmem:[%s8847 + $0xb8] sm:$0xff]
    %v8872 = vld [vmem:[%s8847 + $0xc0] sm:$0xff]
    %v8873 = vld [vmem:[%s8847 + $0xc8] sm:$0xff]
    %v8874 = vld [vmem:[%s8847 + $0xd0] sm:$0xff]
    %v8875 = vld [vmem:[%s8847 + $0xd8] sm:$0xff]
    %v8876 = vld [vmem:[%s8847 + $0xe0] sm:$0xff]
    %v8877 = vld [vmem:[%s8847 + $0xe8] sm:$0xff]
    %v8878 = vld [vmem:[%s8847 + $0xf0] sm:$0xff]
    %v8879 = vld [vmem:[%s8847 + $0xf8] sm:$0xff]
    %v8880 = vld [vmem:[%s8847 + $0x100] sm:$0xff]
    %v8881 = vld [vmem:[%s8847 + $0x108] sm:$0xff]
    %v8882 = vld [vmem:[%s8847 + $0x110] sm:$0xff]
    %v8883 = vld [vmem:[%s8847 + $0x118] sm:$0xff]
    %v8884 = vld [vmem:[%s8847 + $0x120] sm:$0xff]
    %v8885 = vld [vmem:[%s8847 + $0x128] sm:$0xff]
    %v8886 = vld [vmem:[%s8847 + $0x130] sm:$0xff]
    %v8887 = vld [vmem:[%s8847 + $0x138] sm:$0xff]
    %v8888 = vld [vmem:[%s8847 + $0x140] sm:$0xff]
    %v8889 = vld [vmem:[%s8847 + $0x148] sm:$0xff]
    %v8890 = vld [vmem:[%s8847 + $0x150] sm:$0xff]
    %v8891 = vld [vmem:[%s8847 + $0x158] sm:$0xff]
    %v8892 = vld [vmem:[%s8847 + $0x160] sm:$0xff]
    %v8893 = vld [vmem:[%s8847 + $0x168] sm:$0xff]
    %v8894 = vld [vmem:[%s8847 + $0x170] sm:$0xff]
    %v8895 = vld [vmem:[%s8847 + $0x178] sm:$0xff]
    %v8896 = vld [vmem:[%s8847 + $0x180] sm:$0xff]
    %v8897 = vld [vmem:[%s8847 + $0x188] sm:$0xff]
    %v8898 = vld [vmem:[%s8847 + $0x190] sm:$0xff]
    %v8899 = vld [vmem:[%s8847 + $0x198] sm:$0xff]
    %v8900 = vld [vmem:[%s8847 + $0x1a0] sm:$0xff]
    %v8901 = vld [vmem:[%s8847 + $0x1a8] sm:$0xff]
    %v8902 = vld [vmem:[%s8847 + $0x1b0] sm:$0xff]
    %v8903 = vld [vmem:[%s8847 + $0x1b8] sm:$0xff]
    %v8904 = vld [vmem:[%s8847 + $0x1c0] sm:$0xff]
    %v8905 = vld [vmem:[%s8847 + $0x1c8] sm:$0xff]
    %v8906 = vld [vmem:[%s8847 + $0x1d0] sm:$0xff]
    %v8907 = vld [vmem:[%s8847 + $0x1d8] sm:$0xff]
    %v8908 = vld [vmem:[%s8847 + $0x1e0] sm:$0xff]
    %v8909 = vld [vmem:[%s8847 + $0x1e8] sm:$0xff]
    %v8910 = vld [vmem:[%s8847 + $0x1f0] sm:$0xff]
    %v8911 = vld [vmem:[%s8847 + $0x1f8] sm:$0xff]
    %v8912 = vld [vmem:[%s8847 + $0x200] sm:$0xff]
    %v8913 = vld [vmem:[%s8847 + $0x208] sm:$0xff]
    %v8914 = vld [vmem:[%s8847 + $0x210] sm:$0xff]
    %v8915 = vld [vmem:[%s8847 + $0x218] sm:$0xff]
    %v8916 = vld [vmem:[%s8847 + $0x220] sm:$0xff]
    %v8917 = vld [vmem:[%s8847 + $0x228] sm:$0xff]
    %v8918 = vld [vmem:[%s8847 + $0x230] sm:$0xff]
    %v8919 = vld [vmem:[%s8847 + $0x238] sm:$0xff]
    %v8920 = vld [vmem:[%s8847 + $0x240] sm:$0xff]
    %v8921 = vld [vmem:[%s8847 + $0x248] sm:$0xff]
    %v8922 = vld [vmem:[%s8847 + $0x250] sm:$0xff]
    %v8923 = vld [vmem:[%s8847 + $0x258] sm:$0xff]
    %v8924 = vld [vmem:[%s8847 + $0x260] sm:$0xff]
    %v8925 = vld [vmem:[%s8847 + $0x268] sm:$0xff]
    %v8926 = vld [vmem:[%s8847 + $0x270] sm:$0xff]
    %v8927 = vld [vmem:[%s8847 + $0x278] sm:$0xff]
    %v8928 = vld [vmem:[%s8847 + $0x280] sm:$0xff]
    %v8929 = vld [vmem:[%s8847 + $0x288] sm:$0xff]
    %v8930 = vld [vmem:[%s8847 + $0x290] sm:$0xff]
    %v8931 = vld [vmem:[%s8847 + $0x298] sm:$0xff]
    %v8932 = vld [vmem:[%s8847 + $0x2a0] sm:$0xff]
    %v8933 = vld [vmem:[%s8847 + $0x2a8] sm:$0xff]
    %v8934 = vld [vmem:[%s8847 + $0x2b0] sm:$0xff]
    %v8935 = vld [vmem:[%s8847 + $0x2b8] sm:$0xff]
    %v8936 = vld [vmem:[%s8847 + $0x2c0] sm:$0xff]
    %v8937 = vld [vmem:[%s8847 + $0x2c8] sm:$0xff]
    %v8938 = vld [vmem:[%s8847 + $0x2d0] sm:$0xff]
    %v8939 = vld [vmem:[%s8847 + $0x2d8] sm:$0xff]
    %v8940 = vld [vmem:[%s8847 + $0x2e0] sm:$0xff]
    %v8941 = vld [vmem:[%s8847 + $0x2e8] sm:$0xff]
    %v8942 = vld [vmem:[%s8847 + $0x2f0] sm:$0xff]
    %v8943 = vld [vmem:[%s8847 + $0x2f8] sm:$0xff]
    %v8944 = vld [vmem:[%s8847 + $0x300] sm:$0xff]
    %v8945 = vld [vmem:[%s8847 + $0x308] sm:$0xff]
    %v8946 = vld [vmem:[%s8847 + $0x310] sm:$0xff]
    %v8947 = vld [vmem:[%s8847 + $0x318] sm:$0xff]
    %v8948 = vld [vmem:[%s8847 + $0x320] sm:$0xff]
    %v8949 = vld [vmem:[%s8847 + $0x328] sm:$0xff]
    %v8950 = vld [vmem:[%s8847 + $0x330] sm:$0xff]
    %v8951 = vld [vmem:[%s8847 + $0x338] sm:$0xff]
    %v8952 = vld [vmem:[%s8847 + $0x340] sm:$0xff]
    %v8953 = vld [vmem:[%s8847 + $0x348] sm:$0xff]
    %v8954 = vld [vmem:[%s8847 + $0x350] sm:$0xff]
    %v8955 = vld [vmem:[%s8847 + $0x358] sm:$0xff]
    %v8956 = vld [vmem:[%s8847 + $0x360] sm:$0xff]
    %v8957 = vld [vmem:[%s8847 + $0x368] sm:$0xff]
    %v8958 = vld [vmem:[%s8847 + $0x370] sm:$0xff]
    %v8959 = vld [vmem:[%s8847 + $0x378] sm:$0xff]
    %v8960 = vld [vmem:[%s8847 + $0x380] sm:$0xff]
    %v8961 = vld [vmem:[%s8847 + $0x388] sm:$0xff]
    %v8962 = vld [vmem:[%s8847 + $0x390] sm:$0xff]
    %v8963 = vld [vmem:[%s8847 + $0x398] sm:$0xff]
    %v8964 = vld [vmem:[%s8847 + $0x3a0] sm:$0xff]
    %v8965 = vld [vmem:[%s8847 + $0x3a8] sm:$0xff]
    %v8966 = vld [vmem:[%s8847 + $0x3b0] sm:$0xff]
    %v8967 = vld [vmem:[%s8847 + $0x3b8] sm:$0xff]
    %v8968 = vld [vmem:[%s8847 + $0x3c0] sm:$0xff]
    %v8969 = vld [vmem:[%s8847 + $0x3c8] sm:$0xff]
    %v8970 = vld [vmem:[%s8847 + $0x3d0] sm:$0xff]
    %v8971 = vld [vmem:[%s8847 + $0x3d8] sm:$0xff]
    %v8972 = vld [vmem:[%s8847 + $0x3e0] sm:$0xff]
    %v8973 = vld [vmem:[%s8847 + $0x3e8] sm:$0xff]
    %v8974 = vld [vmem:[%s8847 + $0x3f0] sm:$0xff]
    %v8975 = vld [vmem:[%s8847 + $0x3f8] sm:$0xff]
    %v8977 = vshrl.u32 %v8839, 16
    %v8979 = vshll.u32 %v8839, 16
    %v8981 = vrot.slane %v8979, 1
    %v8982 = vor.u32 %v8977, %v8981
    %v8984 = vshll.u32 %v8694, 16
    %v8986 = vrot.slane %v8984, 1
    %v8987 = vsel %vm2046, %v8982, %v8986
    %v8989 = vshrl.u32 %v8840, 16
    %v8991 = vshll.u32 %v8840, 16
    %v8993 = vrot.slane %v8991, 1
    %v8994 = vor.u32 %v8989, %v8993
    %v8996 = vshll.u32 %v8695, 16
    %v8998 = vrot.slane %v8996, 1
    %v8999 = vsel %vm2046, %v8994, %v8998
    %v9001 = vshrl.u32 %v8841, 16
    %v9003 = vshll.u32 %v8841, 16
    %v9005 = vrot.slane %v9003, 1
    %v9006 = vor.u32 %v9001, %v9005
    %v9008 = vshll.u32 %v8696, 16
    %v9010 = vrot.slane %v9008, 1
    %v9011 = vsel %vm2046, %v9006, %v9010
    %v9013 = vshrl.u32 %v8842, 16
    %v9015 = vshll.u32 %v8842, 16
    %v9017 = vrot.slane %v9015, 1
    %v9018 = vor.u32 %v9013, %v9017
    %v9020 = vshll.u32 %v8697, 16
    %v9022 = vrot.slane %v9020, 1
    %v9023 = vsel %vm2046, %v9018, %v9022
    %v9024 = vshrl.u32 %v8694, 16
    %v9026 = vor.u32 %v9024, %v8986
    %v9028 = vshll.u32 %v8843, 16
    %v9030 = vrot.slane %v9028, 1
    %v9031 = vsel %vm2046, %v9026, %v9030
    %v9032 = vshrl.u32 %v8695, 16
    %v9034 = vor.u32 %v9032, %v8998
    %v9036 = vshll.u32 %v8844, 16
    %v9038 = vrot.slane %v9036, 1
    %v9039 = vsel %vm2046, %v9034, %v9038
    %v9040 = vshrl.u32 %v8696, 16
    %v9042 = vor.u32 %v9040, %v9010
    %v9044 = vshll.u32 %v8845, 16
    %v9046 = vrot.slane %v9044, 1
    %v9047 = vsel %vm2046, %v9042, %v9046
    %v9048 = vshrl.u32 %v8697, 16
    %v9050 = vor.u32 %v9048, %v9022
    %v9052 = vshll.u32 %v8846, 16
    %v9054 = vrot.slane %v9052, 1
    %v9055 = vsel %vm2046, %v9050, %v9054
    %v9056 = vshrl.u32 %v8843, 16
    %v9058 = vor.u32 %v9056, %v9030
    %v9059 = vshrl.u32 %v8844, 16
    %v9061 = vor.u32 %v9059, %v9038
    %v9062 = vshrl.u32 %v8845, 16
    %v9064 = vor.u32 %v9062, %v9046
    %v9065 = vshrl.u32 %v8846, 16
    %v9067 = vor.u32 %v9065, %v9054
    %v9208 = vunpack.c.l.b16 %v8848
    %v9209 = vunpack.c.h.b16 %v8848
    %v9210 = vunpack.c.l.b16 %v8849
    %v9211 = vunpack.c.h.b16 %v8849
    %v9212 = vunpack.c.l.b16 %v8850
    %v9213 = vunpack.c.h.b16 %v8850
    %v9214 = vunpack.c.l.b16 %v8851
    %v9215 = vunpack.c.h.b16 %v8851
    %v9216 = vunpack.c.l.b16 %v8852
    %v9217 = vunpack.c.h.b16 %v8852
    %v9218 = vunpack.c.l.b16 %v8853
    %v9219 = vunpack.c.h.b16 %v8853
    %v9220 = vunpack.c.l.b16 %v8854
    %v9221 = vunpack.c.h.b16 %v8854
    %v9222 = vunpack.c.l.b16 %v8855
    %v9223 = vunpack.c.h.b16 %v8855
    %v9224 = vunpack.c.l.b16 %v8856
    %v9225 = vunpack.c.h.b16 %v8856
    %v9226 = vunpack.c.l.b16 %v8857
    %v9227 = vunpack.c.h.b16 %v8857
    %v9228 = vunpack.c.l.b16 %v8858
    %v9229 = vunpack.c.h.b16 %v8858
    %v9230 = vunpack.c.l.b16 %v8859
    %v9231 = vunpack.c.h.b16 %v8859
    %v9232 = vunpack.c.l.b16 %v8860
    %v9233 = vunpack.c.h.b16 %v8860
    %v9234 = vunpack.c.l.b16 %v8861
    %v9235 = vunpack.c.h.b16 %v8861
    %v9236 = vunpack.c.l.b16 %v8862
    %v9237 = vunpack.c.h.b16 %v8862
    %v9238 = vunpack.c.l.b16 %v8863
    %v9239 = vunpack.c.h.b16 %v8863
    %v9240 = vunpack.c.l.b16 %v8864
    %v9241 = vunpack.c.h.b16 %v8864
    %v9242 = vunpack.c.l.b16 %v8865
    %v9243 = vunpack.c.h.b16 %v8865
    %v9244 = vunpack.c.l.b16 %v8866
    %v9245 = vunpack.c.h.b16 %v8866
    %v9246 = vunpack.c.l.b16 %v8867
    %v9247 = vunpack.c.h.b16 %v8867
    %v9248 = vunpack.c.l.b16 %v8868
    %v9249 = vunpack.c.h.b16 %v8868
    %v9250 = vunpack.c.l.b16 %v8869
    %v9251 = vunpack.c.h.b16 %v8869
    %v9252 = vunpack.c.l.b16 %v8870
    %v9253 = vunpack.c.h.b16 %v8870
    %v9254 = vunpack.c.l.b16 %v8871
    %v9255 = vunpack.c.h.b16 %v8871
    %v9256 = vunpack.c.l.b16 %v8872
    %v9257 = vunpack.c.h.b16 %v8872
    %v9258 = vunpack.c.l.b16 %v8873
    %v9259 = vunpack.c.h.b16 %v8873
    %v9260 = vunpack.c.l.b16 %v8874
    %v9261 = vunpack.c.h.b16 %v8874
    %v9262 = vunpack.c.l.b16 %v8875
    %v9263 = vunpack.c.h.b16 %v8875
    %v9264 = vunpack.c.l.b16 %v8876
    %v9265 = vunpack.c.h.b16 %v8876
    %v9266 = vunpack.c.l.b16 %v8877
    %v9267 = vunpack.c.h.b16 %v8877
    %v9268 = vunpack.c.l.b16 %v8878
    %v9269 = vunpack.c.h.b16 %v8878
    %v9270 = vunpack.c.l.b16 %v8879
    %v9271 = vunpack.c.h.b16 %v8879
    %v9272 = vunpack.c.l.b16 %v8880
    %v9273 = vunpack.c.h.b16 %v8880
    %v9274 = vunpack.c.l.b16 %v8881
    %v9275 = vunpack.c.h.b16 %v8881
    %v9276 = vunpack.c.l.b16 %v8882
    %v9277 = vunpack.c.h.b16 %v8882
    %v9278 = vunpack.c.l.b16 %v8883
    %v9279 = vunpack.c.h.b16 %v8883
    %v9280 = vunpack.c.l.b16 %v8884
    %v9281 = vunpack.c.h.b16 %v8884
    %v9282 = vunpack.c.l.b16 %v8885
    %v9283 = vunpack.c.h.b16 %v8885
    %v9284 = vunpack.c.l.b16 %v8886
    %v9285 = vunpack.c.h.b16 %v8886
    %v9286 = vunpack.c.l.b16 %v8887
    %v9287 = vunpack.c.h.b16 %v8887
    %v9288 = vunpack.c.l.b16 %v8888
    %v9289 = vunpack.c.h.b16 %v8888
    %v9290 = vunpack.c.l.b16 %v8889
    %v9291 = vunpack.c.h.b16 %v8889
    %v9292 = vunpack.c.l.b16 %v8890
    %v9293 = vunpack.c.h.b16 %v8890
    %v9294 = vunpack.c.l.b16 %v8891
    %v9295 = vunpack.c.h.b16 %v8891
    %v9296 = vunpack.c.l.b16 %v8892
    %v9297 = vunpack.c.h.b16 %v8892
    %v9298 = vunpack.c.l.b16 %v8893
    %v9299 = vunpack.c.h.b16 %v8893
    %v9300 = vunpack.c.l.b16 %v8894
    %v9301 = vunpack.c.h.b16 %v8894
    %v9302 = vunpack.c.l.b16 %v8895
    %v9303 = vunpack.c.h.b16 %v8895
    %v9304 = vunpack.c.l.b16 %v8896
    %v9305 = vunpack.c.h.b16 %v8896
    %v9306 = vunpack.c.l.b16 %v8897
    %v9307 = vunpack.c.h.b16 %v8897
    %v9308 = vunpack.c.l.b16 %v8898
    %v9309 = vunpack.c.h.b16 %v8898
    %v9310 = vunpack.c.l.b16 %v8899
    %v9311 = vunpack.c.h.b16 %v8899
    %v9312 = vunpack.c.l.b16 %v8900
    %v9313 = vunpack.c.h.b16 %v8900
    %v9314 = vunpack.c.l.b16 %v8901
    %v9315 = vunpack.c.h.b16 %v8901
    %v9316 = vunpack.c.l.b16 %v8902
    %v9317 = vunpack.c.h.b16 %v8902
    %v9318 = vunpack.c.l.b16 %v8903
    %v9319 = vunpack.c.h.b16 %v8903
    %v9320 = vunpack.c.l.b16 %v8904
    %v9321 = vunpack.c.h.b16 %v8904
    %v9322 = vunpack.c.l.b16 %v8905
    %v9323 = vunpack.c.h.b16 %v8905
    %v9324 = vunpack.c.l.b16 %v8906
    %v9325 = vunpack.c.h.b16 %v8906
    %v9326 = vunpack.c.l.b16 %v8907
    %v9327 = vunpack.c.h.b16 %v8907
    %v9328 = vunpack.c.l.b16 %v8908
    %v9329 = vunpack.c.h.b16 %v8908
    %v9330 = vunpack.c.l.b16 %v8909
    %v9331 = vunpack.c.h.b16 %v8909
    %v9332 = vunpack.c.l.b16 %v8910
    %v9333 = vunpack.c.h.b16 %v8910
    %v9334 = vunpack.c.l.b16 %v8911
    %v9335 = vunpack.c.h.b16 %v8911
    %v9336 = vunpack.c.l.b16 %v8912
    %v9337 = vunpack.c.h.b16 %v8912
    %v9338 = vunpack.c.l.b16 %v8913
    %v9339 = vunpack.c.h.b16 %v8913
    %v9340 = vunpack.c.l.b16 %v8914
    %v9341 = vunpack.c.h.b16 %v8914
    %v9342 = vunpack.c.l.b16 %v8915
    %v9343 = vunpack.c.h.b16 %v8915
    %v9344 = vunpack.c.l.b16 %v8916
    %v9345 = vunpack.c.h.b16 %v8916
    %v9346 = vunpack.c.l.b16 %v8917
    %v9347 = vunpack.c.h.b16 %v8917
    %v9348 = vunpack.c.l.b16 %v8918
    %v9349 = vunpack.c.h.b16 %v8918
    %v9350 = vunpack.c.l.b16 %v8919
    %v9351 = vunpack.c.h.b16 %v8919
    %v9352 = vunpack.c.l.b16 %v8920
    %v9353 = vunpack.c.h.b16 %v8920
    %v9354 = vunpack.c.l.b16 %v8921
    %v9355 = vunpack.c.h.b16 %v8921
    %v9356 = vunpack.c.l.b16 %v8922
    %v9357 = vunpack.c.h.b16 %v8922
    %v9358 = vunpack.c.l.b16 %v8923
    %v9359 = vunpack.c.h.b16 %v8923
    %v9360 = vunpack.c.l.b16 %v8924
    %v9361 = vunpack.c.h.b16 %v8924
    %v9362 = vunpack.c.l.b16 %v8925
    %v9363 = vunpack.c.h.b16 %v8925
    %v9364 = vunpack.c.l.b16 %v8926
    %v9365 = vunpack.c.h.b16 %v8926
    %v9366 = vunpack.c.l.b16 %v8927
    %v9367 = vunpack.c.h.b16 %v8927
    %v9368 = vunpack.c.l.b16 %v8928
    %v9369 = vunpack.c.h.b16 %v8928
    %v9370 = vunpack.c.l.b16 %v8929
    %v9371 = vunpack.c.h.b16 %v8929
    %v9372 = vunpack.c.l.b16 %v8930
    %v9373 = vunpack.c.h.b16 %v8930
    %v9374 = vunpack.c.l.b16 %v8931
    %v9375 = vunpack.c.h.b16 %v8931
    %v9376 = vunpack.c.l.b16 %v8932
    %v9377 = vunpack.c.h.b16 %v8932
    %v9378 = vunpack.c.l.b16 %v8933
    %v9379 = vunpack.c.h.b16 %v8933
    %v9380 = vunpack.c.l.b16 %v8934
    %v9381 = vunpack.c.h.b16 %v8934
    %v9382 = vunpack.c.l.b16 %v8935
    %v9383 = vunpack.c.h.b16 %v8935
    %v9384 = vunpack.c.l.b16 %v8936
    %v9385 = vunpack.c.h.b16 %v8936
    %v9386 = vunpack.c.l.b16 %v8937
    %v9387 = vunpack.c.h.b16 %v8937
    %v9388 = vunpack.c.l.b16 %v8938
    %v9389 = vunpack.c.h.b16 %v8938
    %v9390 = vunpack.c.l.b16 %v8939
    %v9391 = vunpack.c.h.b16 %v8939
    %v9392 = vunpack.c.l.b16 %v8940
    %v9393 = vunpack.c.h.b16 %v8940
    %v9394 = vunpack.c.l.b16 %v8941
    %v9395 = vunpack.c.h.b16 %v8941
    %v9396 = vunpack.c.l.b16 %v8942
    %v9397 = vunpack.c.h.b16 %v8942
    %v9398 = vunpack.c.l.b16 %v8943
    %v9399 = vunpack.c.h.b16 %v8943
    %v9400 = vunpack.c.l.b16 %v8944
    %v9401 = vunpack.c.h.b16 %v8944
    %v9402 = vunpack.c.l.b16 %v8945
    %v9403 = vunpack.c.h.b16 %v8945
    %v9404 = vunpack.c.l.b16 %v8946
    %v9405 = vunpack.c.h.b16 %v8946
    %v9406 = vunpack.c.l.b16 %v8947
    %v9407 = vunpack.c.h.b16 %v8947
    %v9408 = vunpack.c.l.b16 %v8948
    %v9409 = vunpack.c.h.b16 %v8948
    %v9410 = vunpack.c.l.b16 %v8949
    %v9411 = vunpack.c.h.b16 %v8949
    %v9412 = vunpack.c.l.b16 %v8950
    %v9413 = vunpack.c.h.b16 %v8950
    %v9414 = vunpack.c.l.b16 %v8951
    %v9415 = vunpack.c.h.b16 %v8951
    %v9416 = vunpack.c.l.b16 %v8952
    %v9417 = vunpack.c.h.b16 %v8952
    %v9418 = vunpack.c.l.b16 %v8953
    %v9419 = vunpack.c.h.b16 %v8953
    %v9420 = vunpack.c.l.b16 %v8954
    %v9421 = vunpack.c.h.b16 %v8954
    %v9422 = vunpack.c.l.b16 %v8955
    %v9423 = vunpack.c.h.b16 %v8955
    %v9424 = vunpack.c.l.b16 %v8956
    %v9425 = vunpack.c.h.b16 %v8956
    %v9426 = vunpack.c.l.b16 %v8957
    %v9427 = vunpack.c.h.b16 %v8957
    %v9428 = vunpack.c.l.b16 %v8958
    %v9429 = vunpack.c.h.b16 %v8958
    %v9430 = vunpack.c.l.b16 %v8959
    %v9431 = vunpack.c.h.b16 %v8959
    %v9432 = vunpack.c.l.b16 %v8960
    %v9433 = vunpack.c.h.b16 %v8960
    %v9434 = vunpack.c.l.b16 %v8961
    %v9435 = vunpack.c.h.b16 %v8961
    %v9436 = vunpack.c.l.b16 %v8962
    %v9437 = vunpack.c.h.b16 %v8962
    %v9438 = vunpack.c.l.b16 %v8963
    %v9439 = vunpack.c.h.b16 %v8963
    %v9440 = vunpack.c.l.b16 %v8964
    %v9441 = vunpack.c.h.b16 %v8964
    %v9442 = vunpack.c.l.b16 %v8965
    %v9443 = vunpack.c.h.b16 %v8965
    %v9444 = vunpack.c.l.b16 %v8966
    %v9445 = vunpack.c.h.b16 %v8966
    %v9446 = vunpack.c.l.b16 %v8967
    %v9447 = vunpack.c.h.b16 %v8967
    %v9448 = vunpack.c.l.b16 %v8968
    %v9449 = vunpack.c.h.b16 %v8968
    %v9450 = vunpack.c.l.b16 %v8969
    %v9451 = vunpack.c.h.b16 %v8969
    %v9452 = vunpack.c.l.b16 %v8970
    %v9453 = vunpack.c.h.b16 %v8970
    %v9454 = vunpack.c.l.b16 %v8971
    %v9455 = vunpack.c.h.b16 %v8971
    %v9456 = vunpack.c.l.b16 %v8972
    %v9457 = vunpack.c.h.b16 %v8972
    %v9458 = vunpack.c.l.b16 %v8973
    %v9459 = vunpack.c.h.b16 %v8973
    %v9460 = vunpack.c.l.b16 %v8974
    %v9461 = vunpack.c.h.b16 %v8974
    %v9462 = vunpack.c.l.b16 %v8975
    %v9463 = vunpack.c.h.b16 %v8975
    %v9464 = vpack.c.b16 %v9212, %v9208
    %v9465 = vpack.c.b16 %v9213, %v9209
    %v9466 = vpack.c.b16 %v9214, %v9210
    %v9467 = vpack.c.b16 %v9215, %v9211
    %v9468 = vpack.c.b16 %v9220, %v9216
    %v9469 = vpack.c.b16 %v9221, %v9217
    %v9470 = vpack.c.b16 %v9222, %v9218
    %v9471 = vpack.c.b16 %v9223, %v9219
    %v9472 = vpack.c.b16 %v9228, %v9224
    %v9473 = vpack.c.b16 %v9229, %v9225
    %v9474 = vpack.c.b16 %v9230, %v9226
    %v9475 = vpack.c.b16 %v9231, %v9227
    %v9476 = vpack.c.b16 %v9236, %v9232
    %v9477 = vpack.c.b16 %v9237, %v9233
    %v9478 = vpack.c.b16 %v9238, %v9234
    %v9479 = vpack.c.b16 %v9239, %v9235
    %v9480 = vpack.c.b16 %v9244, %v9240
    %v9481 = vpack.c.b16 %v9245, %v9241
    %v9482 = vpack.c.b16 %v9246, %v9242
    %v9483 = vpack.c.b16 %v9247, %v9243
    %v9484 = vpack.c.b16 %v9252, %v9248
    %v9485 = vpack.c.b16 %v9253, %v9249
    %v9486 = vpack.c.b16 %v9254, %v9250
    %v9487 = vpack.c.b16 %v9255, %v9251
    %v9488 = vpack.c.b16 %v9260, %v9256
    %v9489 = vpack.c.b16 %v9261, %v9257
    %v9490 = vpack.c.b16 %v9262, %v9258
    %v9491 = vpack.c.b16 %v9263, %v9259
    %v9492 = vpack.c.b16 %v9268, %v9264
    %v9493 = vpack.c.b16 %v9269, %v9265
    %v9494 = vpack.c.b16 %v9270, %v9266
    %v9495 = vpack.c.b16 %v9271, %v9267
    %v9496 = vpack.c.b16 %v9276, %v9272
    %v9497 = vpack.c.b16 %v9277, %v9273
    %v9498 = vpack.c.b16 %v9278, %v9274
    %v9499 = vpack.c.b16 %v9279, %v9275
    %v9500 = vpack.c.b16 %v9284, %v9280
    %v9501 = vpack.c.b16 %v9285, %v9281
    %v9502 = vpack.c.b16 %v9286, %v9282
    %v9503 = vpack.c.b16 %v9287, %v9283
    %v9504 = vpack.c.b16 %v9292, %v9288
    %v9505 = vpack.c.b16 %v9293, %v9289
    %v9506 = vpack.c.b16 %v9294, %v9290
    %v9507 = vpack.c.b16 %v9295, %v9291
    %v9508 = vpack.c.b16 %v9300, %v9296
    %v9509 = vpack.c.b16 %v9301, %v9297
    %v9510 = vpack.c.b16 %v9302, %v9298
    %v9511 = vpack.c.b16 %v9303, %v9299
    %v9512 = vpack.c.b16 %v9308, %v9304
    %v9513 = vpack.c.b16 %v9309, %v9305
    %v9514 = vpack.c.b16 %v9310, %v9306
    %v9515 = vpack.c.b16 %v9311, %v9307
    %v9516 = vpack.c.b16 %v9316, %v9312
    %v9517 = vpack.c.b16 %v9317, %v9313
    %v9518 = vpack.c.b16 %v9318, %v9314
    %v9519 = vpack.c.b16 %v9319, %v9315
    %v9520 = vpack.c.b16 %v9324, %v9320
    %v9521 = vpack.c.b16 %v9325, %v9321
    %v9522 = vpack.c.b16 %v9326, %v9322
    %v9523 = vpack.c.b16 %v9327, %v9323
    %v9524 = vpack.c.b16 %v9332, %v9328
    %v9525 = vpack.c.b16 %v9333, %v9329
    %v9526 = vpack.c.b16 %v9334, %v9330
    %v9527 = vpack.c.b16 %v9335, %v9331
    %v9528 = vpack.c.b16 %v9340, %v9336
    %v9529 = vpack.c.b16 %v9341, %v9337
    %v9530 = vpack.c.b16 %v9342, %v9338
    %v9531 = vpack.c.b16 %v9343, %v9339
    %v9532 = vpack.c.b16 %v9348, %v9344
    %v9533 = vpack.c.b16 %v9349, %v9345
    %v9534 = vpack.c.b16 %v9350, %v9346
    %v9535 = vpack.c.b16 %v9351, %v9347
    %v9536 = vpack.c.b16 %v9356, %v9352
    %v9537 = vpack.c.b16 %v9357, %v9353
    %v9538 = vpack.c.b16 %v9358, %v9354
    %v9539 = vpack.c.b16 %v9359, %v9355
    %v9540 = vpack.c.b16 %v9364, %v9360
    %v9541 = vpack.c.b16 %v9365, %v9361
    %v9542 = vpack.c.b16 %v9366, %v9362
    %v9543 = vpack.c.b16 %v9367, %v9363
    %v9544 = vpack.c.b16 %v9372, %v9368
    %v9545 = vpack.c.b16 %v9373, %v9369
    %v9546 = vpack.c.b16 %v9374, %v9370
    %v9547 = vpack.c.b16 %v9375, %v9371
    %v9548 = vpack.c.b16 %v9380, %v9376
    %v9549 = vpack.c.b16 %v9381, %v9377
    %v9550 = vpack.c.b16 %v9382, %v9378
    %v9551 = vpack.c.b16 %v9383, %v9379
    %v9552 = vpack.c.b16 %v9388, %v9384
    %v9553 = vpack.c.b16 %v9389, %v9385
    %v9554 = vpack.c.b16 %v9390, %v9386
    %v9555 = vpack.c.b16 %v9391, %v9387
    %v9556 = vpack.c.b16 %v9396, %v9392
    %v9557 = vpack.c.b16 %v9397, %v9393
    %v9558 = vpack.c.b16 %v9398, %v9394
    %v9559 = vpack.c.b16 %v9399, %v9395
    %v9560 = vpack.c.b16 %v9404, %v9400
    %v9561 = vpack.c.b16 %v9405, %v9401
    %v9562 = vpack.c.b16 %v9406, %v9402
    %v9563 = vpack.c.b16 %v9407, %v9403
    %v9564 = vpack.c.b16 %v9412, %v9408
    %v9565 = vpack.c.b16 %v9413, %v9409
    %v9566 = vpack.c.b16 %v9414, %v9410
    %v9567 = vpack.c.b16 %v9415, %v9411
    %v9568 = vpack.c.b16 %v9420, %v9416
    %v9569 = vpack.c.b16 %v9421, %v9417
    %v9570 = vpack.c.b16 %v9422, %v9418
    %v9571 = vpack.c.b16 %v9423, %v9419
    %v9572 = vpack.c.b16 %v9428, %v9424
    %v9573 = vpack.c.b16 %v9429, %v9425
    %v9574 = vpack.c.b16 %v9430, %v9426
    %v9575 = vpack.c.b16 %v9431, %v9427
    %v9576 = vpack.c.b16 %v9436, %v9432
    %v9577 = vpack.c.b16 %v9437, %v9433
    %v9578 = vpack.c.b16 %v9438, %v9434
    %v9579 = vpack.c.b16 %v9439, %v9435
    %v9580 = vpack.c.b16 %v9444, %v9440
    %v9581 = vpack.c.b16 %v9445, %v9441
    %v9582 = vpack.c.b16 %v9446, %v9442
    %v9583 = vpack.c.b16 %v9447, %v9443
    %v9584 = vpack.c.b16 %v9452, %v9448
    %v9585 = vpack.c.b16 %v9453, %v9449
    %v9586 = vpack.c.b16 %v9454, %v9450
    %v9587 = vpack.c.b16 %v9455, %v9451
    %v9588 = vpack.c.b16 %v9460, %v9456
    %v9589 = vpack.c.b16 %v9461, %v9457
    %v9590 = vpack.c.b16 %v9462, %v9458
    %v9591 = vpack.c.b16 %v9463, %v9459
    %9720 = vmatprep.subr.bf16.mxu0 %v9493
    %9721 = vmatpush1.bf16.msra.mxu0 %v9492
    %9722 = vmatprep.subr.bf16.mxu0 %v9489
    %9723 = vmatpush1.bf16.msra.mxu0 %v9488
    %9724 = vmatprep.subr.bf16.mxu0 %v9485
    %9725 = vmatpush1.bf16.msra.mxu0 %v9484
    %9726 = vmatprep.subr.bf16.mxu0 %v9481
    %9727 = vmatpush1.bf16.msra.mxu0 %v9480
    %9728 = vmatprep.subr.bf16.mxu0 %v9477
    %9729 = vmatpush1.bf16.msra.mxu0 %v9476
    %9730 = vmatprep.subr.bf16.mxu0 %v9473
    %9731 = vmatpush1.bf16.msra.mxu0 %v9472
    %9732 = vmatprep.subr.bf16.mxu0 %v9469
    %9733 = vmatpush1.bf16.msra.mxu0 %v9468
    %9734 = vmatprep.subr.bf16.mxu0 %v9465
    %9735 = vmatpush1.bf16.msra.mxu0 %v9464
    %9736 = vmatprep.subr.bf16.mxu0 %v9525
    %9737 = vmatpush2.bf16.msra.mxu0 %v9524
    %9738 = vmatprep.subr.bf16.mxu0 %v9521
    %9739 = vmatpush2.bf16.msra.mxu0 %v9520
    %9740 = vmatprep.subr.bf16.mxu0 %v9517
    %9741 = vmatpush2.bf16.msra.mxu0 %v9516
    %9742 = vmatprep.subr.bf16.mxu0 %v9513
    %9743 = vmatpush2.bf16.msra.mxu0 %v9512
    %9744 = vmatprep.subr.bf16.mxu0 %v9509
    %9745 = vmatpush2.bf16.msra.mxu0 %v9508
    %9746 = vmatprep.subr.bf16.mxu0 %v9505
    %9747 = vmatpush2.bf16.msra.mxu0 %v9504
    %9748 = vmatprep.subr.bf16.mxu0 %v9501
    %9749 = vmatpush2.bf16.msra.mxu0 %v9500
    %9750 = vmatprep.subr.bf16.mxu0 %v9497
    %9751 = vmatpush2.bf16.msra.mxu0 %v9496
    %9752 = vmatprep.mubr.bf16.mxu0 %v8999
    %9753 = vmatmul.mubr.bf16.gmra.mxu0 %v8987
    %v9754 = vpop.f32.mrf.mxu0
    %v9755 = vadd.f32 0.0, %v9754
    %v9756 = vpop.f32.mrf.mxu0
    %v9757 = vadd.f32 0.0, %v9756
    %v9758 = vpop.f32.mrf.mxu0
    %v9759 = vadd.f32 0.0, %v9758
    %v9760 = vpop.f32.mrf.mxu0
    %v9761 = vadd.f32 0.0, %v9760
    %9762 = vmatprep.mubr.bf16.mxu0 %v9039
    %9763 = vmatmul.mubr.bf16.gmra.mxu0 %v9031
    %v9764 = vpop.f32.mrf.mxu0
    %v9765 = vadd.f32 0.0, %v9764
    %v9766 = vpop.f32.mrf.mxu0
    %v9767 = vadd.f32 0.0, %v9766
    %v9768 = vpop.f32.mrf.mxu0
    %v9769 = vadd.f32 0.0, %v9768
    %v9770 = vpop.f32.mrf.mxu0
    %v9771 = vadd.f32 0.0, %v9770
    %9772 = vmatprep.mubr.bf16.mxu0 %v9061
    %9773 = vmatmul.mubr.bf16.gmra.mxu0 %v9058
    %v9774 = vpop.f32.mrf.mxu0
    %v9775 = vadd.f32 0.0, %v9774
    %v9776 = vpop.f32.mrf.mxu0
    %v9777 = vadd.f32 0.0, %v9776
    %v9778 = vpop.f32.mrf.mxu0
    %v9779 = vpop.f32.mrf.mxu0
    %9780 = vdwg.mxu0
    %9781 = vmatprep.subr.bf16.mxu0 %v9557
    %9782 = vmatpush1.bf16.msra.mxu0 %v9556
    %9783 = vmatprep.subr.bf16.mxu0 %v9553
    %9784 = vmatpush1.bf16.msra.mxu0 %v9552
    %9785 = vmatprep.subr.bf16.mxu0 %v9549
    %9786 = vmatpush1.bf16.msra.mxu0 %v9548
    %9787 = vmatprep.subr.bf16.mxu0 %v9545
    %9788 = vmatpush1.bf16.msra.mxu0 %v9544
    %9789 = vmatprep.subr.bf16.mxu0 %v9541
    %9790 = vmatpush1.bf16.msra.mxu0 %v9540
    %9791 = vmatprep.subr.bf16.mxu0 %v9537
    %9792 = vmatpush1.bf16.msra.mxu0 %v9536
    %9793 = vmatprep.subr.bf16.mxu0 %v9533
    %9794 = vmatpush1.bf16.msra.mxu0 %v9532
    %9795 = vmatprep.subr.bf16.mxu0 %v9529
    %9796 = vmatpush1.bf16.msra.mxu0 %v9528
    %9797 = vmatprep.subr.bf16.mxu0 %v9589
    %9798 = vmatpush2.bf16.msra.mxu0 %v9588
    %9799 = vmatprep.subr.bf16.mxu0 %v9585
    %9800 = vmatpush2.bf16.msra.mxu0 %v9584
    %9801 = vmatprep.subr.bf16.mxu0 %v9581
    %9802 = vmatpush2.bf16.msra.mxu0 %v9580
    %9803 = vmatprep.subr.bf16.mxu0 %v9577
    %9804 = vmatpush2.bf16.msra.mxu0 %v9576
    %9805 = vmatprep.subr.bf16.mxu0 %v9573
    %9806 = vmatpush2.bf16.msra.mxu0 %v9572
    %9807 = vmatprep.subr.bf16.mxu0 %v9569
    %9808 = vmatpush2.bf16.msra.mxu0 %v9568
    %9809 = vmatprep.subr.bf16.mxu0 %v9565
    %9810 = vmatpush2.bf16.msra.mxu0 %v9564
    %9811 = vmatprep.subr.bf16.mxu0 %v9561
    %9812 = vmatpush2.bf16.msra.mxu0 %v9560
    %9813 = vmatprep.mubr.bf16.mxu0 %v9023
    %9814 = vmatmul.mubr.bf16.gmra.mxu0 %v9011
    %v9815 = vpop.f32.mrf.mxu0
    %v9816 = vadd.f32 %v9755, %v9815
    %v9817 = vpop.f32.mrf.mxu0
    %v9818 = vadd.f32 %v9757, %v9817
    %v9819 = vpop.f32.mrf.mxu0
    %v9820 = vadd.f32 %v9759, %v9819
    %v9821 = vpop.f32.mrf.mxu0
    %v9822 = vadd.f32 %v9761, %v9821
    %9823 = vmatprep.mubr.bf16.mxu0 %v9055
    %9824 = vmatmul.mubr.bf16.gmra.mxu0 %v9047
    %v9825 = vpop.f32.mrf.mxu0
    %v9826 = vadd.f32 %v9765, %v9825
    %v9827 = vpop.f32.mrf.mxu0
    %v9828 = vadd.f32 %v9767, %v9827
    %v9829 = vpop.f32.mrf.mxu0
    %v9830 = vadd.f32 %v9769, %v9829
    %v9831 = vpop.f32.mrf.mxu0
    %v9832 = vadd.f32 %v9771, %v9831
    %9833 = vmatprep.mubr.bf16.mxu0 %v9067
    %9834 = vmatmul.mubr.bf16.gmra.mxu0 %v9064
    %v9835 = vpop.f32.mrf.mxu0
    %v9836 = vadd.f32 %v9775, %v9835
    %v9837 = vpop.f32.mrf.mxu0
    %v9838 = vadd.f32 %v9777, %v9837
    %v9839 = vpop.f32.mrf.mxu0
    %v9840 = vpop.f32.mrf.mxu0
    %9841 = vdwg.mxu0
    %9842 = vmatprep.subr.bf16.mxu0 %v9495
    %9843 = vmatpush1.bf16.msra.mxu0 %v9494
    %9844 = vmatprep.subr.bf16.mxu0 %v9491
    %9845 = vmatpush1.bf16.msra.mxu0 %v9490
    %9846 = vmatprep.subr.bf16.mxu0 %v9487
    %9847 = vmatpush1.bf16.msra.mxu0 %v9486
    %9848 = vmatprep.subr.bf16.mxu0 %v9483
    %9849 = vmatpush1.bf16.msra.mxu0 %v9482
    %9850 = vmatprep.subr.bf16.mxu0 %v9479
    %9851 = vmatpush1.bf16.msra.mxu0 %v9478
    %9852 = vmatprep.subr.bf16.mxu0 %v9475
    %9853 = vmatpush1.bf16.msra.mxu0 %v9474
    %9854 = vmatprep.subr.bf16.mxu0 %v9471
    %9855 = vmatpush1.bf16.msra.mxu0 %v9470
    %9856 = vmatprep.subr.bf16.mxu0 %v9467
    %9857 = vmatpush1.bf16.msra.mxu0 %v9466
    %9858 = vmatprep.subr.bf16.mxu0 %v9527
    %9859 = vmatpush2.bf16.msra.mxu0 %v9526
    %9860 = vmatprep.subr.bf16.mxu0 %v9523
    %9861 = vmatpush2.bf16.msra.mxu0 %v9522
    %9862 = vmatprep.subr.bf16.mxu0 %v9519
    %9863 = vmatpush2.bf16.msra.mxu0 %v9518
    %9864 = vmatprep.subr.bf16.mxu0 %v9515
    %9865 = vmatpush2.bf16.msra.mxu0 %v9514
    %9866 = vmatprep.subr.bf16.mxu0 %v9511
    %9867 = vmatpush2.bf16.msra.mxu0 %v9510
    %9868 = vmatprep.subr.bf16.mxu0 %v9507
    %9869 = vmatpush2.bf16.msra.mxu0 %v9506
    %9870 = vmatprep.subr.bf16.mxu0 %v9503
    %9871 = vmatpush2.bf16.msra.mxu0 %v9502
    %9872 = vmatprep.subr.bf16.mxu0 %v9499
    %9873 = vmatpush2.bf16.msra.mxu0 %v9498
    %9874 = vmatprep.mubr.bf16.mxu0 %v8999
    %9875 = vmatmul.mubr.bf16.gmra.mxu0 %v8987
    %v9876 = vpop.f32.mrf.mxu0
    %v9877 = vadd.f32 0.0, %v9876
    %v9878 = vpop.f32.mrf.mxu0
    %v9879 = vadd.f32 0.0, %v9878
    %v9880 = vpop.f32.mrf.mxu0
    %v9881 = vadd.f32 0.0, %v9880
    %v9882 = vpop.f32.mrf.mxu0
    %v9883 = vadd.f32 0.0, %v9882
    %9884 = vmatprep.mubr.bf16.mxu0 %v9039
    %9885 = vmatmul.mubr.bf16.gmra.mxu0 %v9031
    %v9886 = vpop.f32.mrf.mxu0
    %v9887 = vadd.f32 0.0, %v9886
    %v9888 = vpop.f32.mrf.mxu0
    %v9889 = vadd.f32 0.0, %v9888
    %v9890 = vpop.f32.mrf.mxu0
    %v9891 = vadd.f32 0.0, %v9890
    %v9892 = vpop.f32.mrf.mxu0
    %v9893 = vadd.f32 0.0, %v9892
    %9894 = vmatprep.mubr.bf16.mxu0 %v9061
    %9895 = vmatmul.mubr.bf16.gmra.mxu0 %v9058
    %v9896 = vpop.f32.mrf.mxu0
    %v9897 = vadd.f32 0.0, %v9896
    %v9898 = vpop.f32.mrf.mxu0
    %v9899 = vadd.f32 0.0, %v9898
    %v9900 = vpop.f32.mrf.mxu0
    %v9901 = vpop.f32.mrf.mxu0
    %9902 = vdwg.mxu0
    %9903 = vmatprep.subr.bf16.mxu0 %v9559
    %9904 = vmatpush1.bf16.msra.mxu0 %v9558
    %9905 = vmatprep.subr.bf16.mxu0 %v9555
    %9906 = vmatpush1.bf16.msra.mxu0 %v9554
    %9907 = vmatprep.subr.bf16.mxu0 %v9551
    %9908 = vmatpush1.bf16.msra.mxu0 %v9550
    %9909 = vmatprep.subr.bf16.mxu0 %v9547
    %9910 = vmatpush1.bf16.msra.mxu0 %v9546
    %9911 = vmatprep.subr.bf16.mxu0 %v9543
    %9912 = vmatpush1.bf16.msra.mxu0 %v9542
    %9913 = vmatprep.subr.bf16.mxu0 %v9539
    %9914 = vmatpush1.bf16.msra.mxu0 %v9538
    %9915 = vmatprep.subr.bf16.mxu0 %v9535
    %9916 = vmatpush1.bf16.msra.mxu0 %v9534
    %9917 = vmatprep.subr.bf16.mxu0 %v9531
    %9918 = vmatpush1.bf16.msra.mxu0 %v9530
    %9919 = vmatprep.subr.bf16.mxu0 %v9591
    %9920 = vmatpush2.bf16.msra.mxu0 %v9590
    %9921 = vmatprep.subr.bf16.mxu0 %v9587
    %9922 = vmatpush2.bf16.msra.mxu0 %v9586
    %9923 = vmatprep.subr.bf16.mxu0 %v9583
    %9924 = vmatpush2.bf16.msra.mxu0 %v9582
    %9925 = vmatprep.subr.bf16.mxu0 %v9579
    %9926 = vmatpush2.bf16.msra.mxu0 %v9578
    %9927 = vmatprep.subr.bf16.mxu0 %v9575
    %9928 = vmatpush2.bf16.msra.mxu0 %v9574
    %9929 = vmatprep.subr.bf16.mxu0 %v9571
    %9930 = vmatpush2.bf16.msra.mxu0 %v9570
    %9931 = vmatprep.subr.bf16.mxu0 %v9567
    %9932 = vmatpush2.bf16.msra.mxu0 %v9566
    %9933 = vmatprep.subr.bf16.mxu0 %v9563
    %9934 = vmatpush2.bf16.msra.mxu0 %v9562
    %9935 = vmatprep.mubr.bf16.mxu0 %v9023
    %9936 = vmatmul.mubr.bf16.gmra.mxu0 %v9011
    %v9937 = vpop.f32.mrf.mxu0
    %v9938 = vadd.f32 %v9877, %v9937
    %v9939 = vpop.f32.mrf.mxu0
    %v9940 = vadd.f32 %v9879, %v9939
    %v9941 = vpop.f32.mrf.mxu0
    %v9942 = vadd.f32 %v9881, %v9941
    %v9943 = vpop.f32.mrf.mxu0
    %v9944 = vadd.f32 %v9883, %v9943
    %9945 = vmatprep.mubr.bf16.mxu0 %v9055
    %9946 = vmatmul.mubr.bf16.gmra.mxu0 %v9047
    %v9947 = vpop.f32.mrf.mxu0
    %v9948 = vadd.f32 %v9887, %v9947
    %v9949 = vpop.f32.mrf.mxu0
    %v9950 = vadd.f32 %v9889, %v9949
    %v9951 = vpop.f32.mrf.mxu0
    %v9952 = vadd.f32 %v9891, %v9951
    %v9953 = vpop.f32.mrf.mxu0
    %v9954 = vadd.f32 %v9893, %v9953
    %9955 = vmatprep.mubr.bf16.mxu0 %v9067
    %9956 = vmatmul.mubr.bf16.gmra.mxu0 %v9064
    %v9957 = vpop.f32.mrf.mxu0
    %v9958 = vadd.f32 %v9897, %v9957
    %v9959 = vpop.f32.mrf.mxu0
    %v9960 = vadd.f32 %v9899, %v9959
    %v9961 = vpop.f32.mrf.mxu0
    %v9962 = vpop.f32.mrf.mxu0
    %9963 = vdwg.mxu0
    %v10092 = vunpack.c.l.b16 %v8703
    %v10093 = vunpack.c.h.b16 %v8703
    %v10094 = vunpack.c.l.b16 %v8704
    %v10095 = vunpack.c.h.b16 %v8704
    %v10096 = vunpack.c.l.b16 %v8705
    %v10097 = vunpack.c.h.b16 %v8705
    %v10098 = vunpack.c.l.b16 %v8706
    %v10099 = vunpack.c.h.b16 %v8706
    %v10100 = vunpack.c.l.b16 %v8707
    %v10101 = vunpack.c.h.b16 %v8707
    %v10102 = vunpack.c.l.b16 %v8708
    %v10103 = vunpack.c.h.b16 %v8708
    %v10104 = vunpack.c.l.b16 %v8709
    %v10105 = vunpack.c.h.b16 %v8709
    %v10106 = vunpack.c.l.b16 %v8710
    %v10107 = vunpack.c.h.b16 %v8710
    %v10108 = vunpack.c.l.b16 %v8711
    %v10109 = vunpack.c.h.b16 %v8711
    %v10110 = vunpack.c.l.b16 %v8712
    %v10111 = vunpack.c.h.b16 %v8712
    %v10112 = vunpack.c.l.b16 %v8713
    %v10113 = vunpack.c.h.b16 %v8713
    %v10114 = vunpack.c.l.b16 %v8714
    %v10115 = vunpack.c.h.b16 %v8714
    %v10116 = vunpack.c.l.b16 %v8715
    %v10117 = vunpack.c.h.b16 %v8715
    %v10118 = vunpack.c.l.b16 %v8716
    %v10119 = vunpack.c.h.b16 %v8716
    %v10120 = vunpack.c.l.b16 %v8717
    %v10121 = vunpack.c.h.b16 %v8717
    %v10122 = vunpack.c.l.b16 %v8718
    %v10123 = vunpack.c.h.b16 %v8718
    %v10124 = vunpack.c.l.b16 %v8719
    %v10125 = vunpack.c.h.b16 %v8719
    %v10126 = vunpack.c.l.b16 %v8720
    %v10127 = vunpack.c.h.b16 %v8720
    %v10128 = vunpack.c.l.b16 %v8721
    %v10129 = vunpack.c.h.b16 %v8721
    %v10130 = vunpack.c.l.b16 %v8722
    %v10131 = vunpack.c.h.b16 %v8722
    %v10132 = vunpack.c.l.b16 %v8723
    %v10133 = vunpack.c.h.b16 %v8723
    %v10134 = vunpack.c.l.b16 %v8724
    %v10135 = vunpack.c.h.b16 %v8724
    %v10136 = vunpack.c.l.b16 %v8725
    %v10137 = vunpack.c.h.b16 %v8725
    %v10138 = vunpack.c.l.b16 %v8726
    %v10139 = vunpack.c.h.b16 %v8726
    %v10140 = vunpack.c.l.b16 %v8727
    %v10141 = vunpack.c.h.b16 %v8727
    %v10142 = vunpack.c.l.b16 %v8728
    %v10143 = vunpack.c.h.b16 %v8728
    %v10144 = vunpack.c.l.b16 %v8729
    %v10145 = vunpack.c.h.b16 %v8729
    %v10146 = vunpack.c.l.b16 %v8730
    %v10147 = vunpack.c.h.b16 %v8730
    %v10148 = vunpack.c.l.b16 %v8731
    %v10149 = vunpack.c.h.b16 %v8731
    %v10150 = vunpack.c.l.b16 %v8732
    %v10151 = vunpack.c.h.b16 %v8732
    %v10152 = vunpack.c.l.b16 %v8733
    %v10153 = vunpack.c.h.b16 %v8733
    %v10154 = vunpack.c.l.b16 %v8734
    %v10155 = vunpack.c.h.b16 %v8734
    %v10156 = vunpack.c.l.b16 %v8735
    %v10157 = vunpack.c.h.b16 %v8735
    %v10158 = vunpack.c.l.b16 %v8736
    %v10159 = vunpack.c.h.b16 %v8736
    %v10160 = vunpack.c.l.b16 %v8737
    %v10161 = vunpack.c.h.b16 %v8737
    %v10162 = vunpack.c.l.b16 %v8738
    %v10163 = vunpack.c.h.b16 %v8738
    %v10164 = vunpack.c.l.b16 %v8739
    %v10165 = vunpack.c.h.b16 %v8739
    %v10166 = vunpack.c.l.b16 %v8740
    %v10167 = vunpack.c.h.b16 %v8740
    %v10168 = vunpack.c.l.b16 %v8741
    %v10169 = vunpack.c.h.b16 %v8741
    %v10170 = vunpack.c.l.b16 %v8742
    %v10171 = vunpack.c.h.b16 %v8742
    %v10172 = vunpack.c.l.b16 %v8743
    %v10173 = vunpack.c.h.b16 %v8743
    %v10174 = vunpack.c.l.b16 %v8744
    %v10175 = vunpack.c.h.b16 %v8744
    %v10176 = vunpack.c.l.b16 %v8745
    %v10177 = vunpack.c.h.b16 %v8745
    %v10178 = vunpack.c.l.b16 %v8746
    %v10179 = vunpack.c.h.b16 %v8746
    %v10180 = vunpack.c.l.b16 %v8747
    %v10181 = vunpack.c.h.b16 %v8747
    %v10182 = vunpack.c.l.b16 %v8748
    %v10183 = vunpack.c.h.b16 %v8748
    %v10184 = vunpack.c.l.b16 %v8749
    %v10185 = vunpack.c.h.b16 %v8749
    %v10186 = vunpack.c.l.b16 %v8750
    %v10187 = vunpack.c.h.b16 %v8750
    %v10188 = vunpack.c.l.b16 %v8751
    %v10189 = vunpack.c.h.b16 %v8751
    %v10190 = vunpack.c.l.b16 %v8752
    %v10191 = vunpack.c.h.b16 %v8752
    %v10192 = vunpack.c.l.b16 %v8753
    %v10193 = vunpack.c.h.b16 %v8753
    %v10194 = vunpack.c.l.b16 %v8754
    %v10195 = vunpack.c.h.b16 %v8754
    %v10196 = vunpack.c.l.b16 %v8755
    %v10197 = vunpack.c.h.b16 %v8755
    %v10198 = vunpack.c.l.b16 %v8756
    %v10199 = vunpack.c.h.b16 %v8756
    %v10200 = vunpack.c.l.b16 %v8757
    %v10201 = vunpack.c.h.b16 %v8757
    %v10202 = vunpack.c.l.b16 %v8758
    %v10203 = vunpack.c.h.b16 %v8758
    %v10204 = vunpack.c.l.b16 %v8759
    %v10205 = vunpack.c.h.b16 %v8759
    %v10206 = vunpack.c.l.b16 %v8760
    %v10207 = vunpack.c.h.b16 %v8760
    %v10208 = vunpack.c.l.b16 %v8761
    %v10209 = vunpack.c.h.b16 %v8761
    %v10210 = vunpack.c.l.b16 %v8762
    %v10211 = vunpack.c.h.b16 %v8762
    %v10212 = vunpack.c.l.b16 %v8763
    %v10213 = vunpack.c.h.b16 %v8763
    %v10214 = vunpack.c.l.b16 %v8764
    %v10215 = vunpack.c.h.b16 %v8764
    %v10216 = vunpack.c.l.b16 %v8765
    %v10217 = vunpack.c.h.b16 %v8765
    %v10218 = vunpack.c.l.b16 %v8766
    %v10219 = vunpack.c.h.b16 %v8766
    %v10220 = vunpack.c.l.b16 %v8767
    %v10221 = vunpack.c.h.b16 %v8767
    %v10222 = vunpack.c.l.b16 %v8768
    %v10223 = vunpack.c.h.b16 %v8768
    %v10224 = vunpack.c.l.b16 %v8769
    %v10225 = vunpack.c.h.b16 %v8769
    %v10226 = vunpack.c.l.b16 %v8770
    %v10227 = vunpack.c.h.b16 %v8770
    %v10228 = vunpack.c.l.b16 %v8771
    %v10229 = vunpack.c.h.b16 %v8771
    %v10230 = vunpack.c.l.b16 %v8772
    %v10231 = vunpack.c.h.b16 %v8772
    %v10232 = vunpack.c.l.b16 %v8773
    %v10233 = vunpack.c.h.b16 %v8773
    %v10234 = vunpack.c.l.b16 %v8774
    %v10235 = vunpack.c.h.b16 %v8774
    %v10236 = vunpack.c.l.b16 %v8775
    %v10237 = vunpack.c.h.b16 %v8775
    %v10238 = vunpack.c.l.b16 %v8776
    %v10239 = vunpack.c.h.b16 %v8776
    %v10240 = vunpack.c.l.b16 %v8777
    %v10241 = vunpack.c.h.b16 %v8777
    %v10242 = vunpack.c.l.b16 %v8778
    %v10243 = vunpack.c.h.b16 %v8778
    %v10244 = vunpack.c.l.b16 %v8779
    %v10245 = vunpack.c.h.b16 %v8779
    %v10246 = vunpack.c.l.b16 %v8780
    %v10247 = vunpack.c.h.b16 %v8780
    %v10248 = vunpack.c.l.b16 %v8781
    %v10249 = vunpack.c.h.b16 %v8781
    %v10250 = vunpack.c.l.b16 %v8782
    %v10251 = vunpack.c.h.b16 %v8782
    %v10252 = vunpack.c.l.b16 %v8783
    %v10253 = vunpack.c.h.b16 %v8783
    %v10254 = vunpack.c.l.b16 %v8784
    %v10255 = vunpack.c.h.b16 %v8784
    %v10256 = vunpack.c.l.b16 %v8785
    %v10257 = vunpack.c.h.b16 %v8785
    %v10258 = vunpack.c.l.b16 %v8786
    %v10259 = vunpack.c.h.b16 %v8786
    %v10260 = vunpack.c.l.b16 %v8787
    %v10261 = vunpack.c.h.b16 %v8787
    %v10262 = vunpack.c.l.b16 %v8788
    %v10263 = vunpack.c.h.b16 %v8788
    %v10264 = vunpack.c.l.b16 %v8789
    %v10265 = vunpack.c.h.b16 %v8789
    %v10266 = vunpack.c.l.b16 %v8790
    %v10267 = vunpack.c.h.b16 %v8790
    %v10268 = vunpack.c.l.b16 %v8791
    %v10269 = vunpack.c.h.b16 %v8791
    %v10270 = vunpack.c.l.b16 %v8792
    %v10271 = vunpack.c.h.b16 %v8792
    %v10272 = vunpack.c.l.b16 %v8793
    %v10273 = vunpack.c.h.b16 %v8793
    %v10274 = vunpack.c.l.b16 %v8794
    %v10275 = vunpack.c.h.b16 %v8794
    %v10276 = vunpack.c.l.b16 %v8795
    %v10277 = vunpack.c.h.b16 %v8795
    %v10278 = vunpack.c.l.b16 %v8796
    %v10279 = vunpack.c.h.b16 %v8796
    %v10280 = vunpack.c.l.b16 %v8797
    %v10281 = vunpack.c.h.b16 %v8797
    %v10282 = vunpack.c.l.b16 %v8798
    %v10283 = vunpack.c.h.b16 %v8798
    %v10284 = vunpack.c.l.b16 %v8799
    %v10285 = vunpack.c.h.b16 %v8799
    %v10286 = vunpack.c.l.b16 %v8800
    %v10287 = vunpack.c.h.b16 %v8800
    %v10288 = vunpack.c.l.b16 %v8801
    %v10289 = vunpack.c.h.b16 %v8801
    %v10290 = vunpack.c.l.b16 %v8802
    %v10291 = vunpack.c.h.b16 %v8802
    %v10292 = vunpack.c.l.b16 %v8803
    %v10293 = vunpack.c.h.b16 %v8803
    %v10294 = vunpack.c.l.b16 %v8804
    %v10295 = vunpack.c.h.b16 %v8804
    %v10296 = vunpack.c.l.b16 %v8805
    %v10297 = vunpack.c.h.b16 %v8805
    %v10298 = vunpack.c.l.b16 %v8806
    %v10299 = vunpack.c.h.b16 %v8806
    %v10300 = vunpack.c.l.b16 %v8807
    %v10301 = vunpack.c.h.b16 %v8807
    %v10302 = vunpack.c.l.b16 %v8808
    %v10303 = vunpack.c.h.b16 %v8808
    %v10304 = vunpack.c.l.b16 %v8809
    %v10305 = vunpack.c.h.b16 %v8809
    %v10306 = vunpack.c.l.b16 %v8810
    %v10307 = vunpack.c.h.b16 %v8810
    %v10308 = vunpack.c.l.b16 %v8811
    %v10309 = vunpack.c.h.b16 %v8811
    %v10310 = vunpack.c.l.b16 %v8812
    %v10311 = vunpack.c.h.b16 %v8812
    %v10312 = vunpack.c.l.b16 %v8813
    %v10313 = vunpack.c.h.b16 %v8813
    %v10314 = vunpack.c.l.b16 %v8814
    %v10315 = vunpack.c.h.b16 %v8814
    %v10316 = vunpack.c.l.b16 %v8815
    %v10317 = vunpack.c.h.b16 %v8815
    %v10318 = vunpack.c.l.b16 %v8816
    %v10319 = vunpack.c.h.b16 %v8816
    %v10320 = vunpack.c.l.b16 %v8817
    %v10321 = vunpack.c.h.b16 %v8817
    %v10322 = vunpack.c.l.b16 %v8818
    %v10323 = vunpack.c.h.b16 %v8818
    %v10324 = vunpack.c.l.b16 %v8819
    %v10325 = vunpack.c.h.b16 %v8819
    %v10326 = vunpack.c.l.b16 %v8820
    %v10327 = vunpack.c.h.b16 %v8820
    %v10328 = vunpack.c.l.b16 %v8821
    %v10329 = vunpack.c.h.b16 %v8821
    %v10330 = vunpack.c.l.b16 %v8822
    %v10331 = vunpack.c.h.b16 %v8822
    %v10332 = vunpack.c.l.b16 %v8823
    %v10333 = vunpack.c.h.b16 %v8823
    %v10334 = vunpack.c.l.b16 %v8824
    %v10335 = vunpack.c.h.b16 %v8824
    %v10336 = vunpack.c.l.b16 %v8825
    %v10337 = vunpack.c.h.b16 %v8825
    %v10338 = vunpack.c.l.b16 %v8826
    %v10339 = vunpack.c.h.b16 %v8826
    %v10340 = vunpack.c.l.b16 %v8827
    %v10341 = vunpack.c.h.b16 %v8827
    %v10342 = vunpack.c.l.b16 %v8828
    %v10343 = vunpack.c.h.b16 %v8828
    %v10344 = vunpack.c.l.b16 %v8829
    %v10345 = vunpack.c.h.b16 %v8829
    %v10346 = vunpack.c.l.b16 %v8830
    %v10347 = vunpack.c.h.b16 %v8830
    %v10348 = vpack.c.b16 %v10096, %v10092
    %v10349 = vpack.c.b16 %v10097, %v10093
    %v10350 = vpack.c.b16 %v10098, %v10094
    %v10351 = vpack.c.b16 %v10099, %v10095
    %v10352 = vpack.c.b16 %v10104, %v10100
    %v10353 = vpack.c.b16 %v10105, %v10101
    %v10354 = vpack.c.b16 %v10106, %v10102
    %v10355 = vpack.c.b16 %v10107, %v10103
    %v10356 = vpack.c.b16 %v10112, %v10108
    %v10357 = vpack.c.b16 %v10113, %v10109
    %v10358 = vpack.c.b16 %v10114, %v10110
    %v10359 = vpack.c.b16 %v10115, %v10111
    %v10360 = vpack.c.b16 %v10120, %v10116
    %v10361 = vpack.c.b16 %v10121, %v10117
    %v10362 = vpack.c.b16 %v10122, %v10118
    %v10363 = vpack.c.b16 %v10123, %v10119
    %v10364 = vpack.c.b16 %v10128, %v10124
    %v10365 = vpack.c.b16 %v10129, %v10125
    %v10366 = vpack.c.b16 %v10130, %v10126
    %v10367 = vpack.c.b16 %v10131, %v10127
    %v10368 = vpack.c.b16 %v10136, %v10132
    %v10369 = vpack.c.b16 %v10137, %v10133
    %v10370 = vpack.c.b16 %v10138, %v10134
    %v10371 = vpack.c.b16 %v10139, %v10135
    %v10372 = vpack.c.b16 %v10144, %v10140
    %v10373 = vpack.c.b16 %v10145, %v10141
    %v10374 = vpack.c.b16 %v10146, %v10142
    %v10375 = vpack.c.b16 %v10147, %v10143
    %v10376 = vpack.c.b16 %v10152, %v10148
    %v10377 = vpack.c.b16 %v10153, %v10149
    %v10378 = vpack.c.b16 %v10154, %v10150
    %v10379 = vpack.c.b16 %v10155, %v10151
    %v10380 = vpack.c.b16 %v10160, %v10156
    %v10381 = vpack.c.b16 %v10161, %v10157
    %v10382 = vpack.c.b16 %v10162, %v10158
    %v10383 = vpack.c.b16 %v10163, %v10159
    %v10384 = vpack.c.b16 %v10168, %v10164
    %v10385 = vpack.c.b16 %v10169, %v10165
    %v10386 = vpack.c.b16 %v10170, %v10166
    %v10387 = vpack.c.b16 %v10171, %v10167
    %v10388 = vpack.c.b16 %v10176, %v10172
    %v10389 = vpack.c.b16 %v10177, %v10173
    %v10390 = vpack.c.b16 %v10178, %v10174
    %v10391 = vpack.c.b16 %v10179, %v10175
    %v10392 = vpack.c.b16 %v10184, %v10180
    %v10393 = vpack.c.b16 %v10185, %v10181
    %v10394 = vpack.c.b16 %v10186, %v10182
    %v10395 = vpack.c.b16 %v10187, %v10183
    %v10396 = vpack.c.b16 %v10192, %v10188
    %v10397 = vpack.c.b16 %v10193, %v10189
    %v10398 = vpack.c.b16 %v10194, %v10190
    %v10399 = vpack.c.b16 %v10195, %v10191
    %v10400 = vpack.c.b16 %v10200, %v10196
    %v10401 = vpack.c.b16 %v10201, %v10197
    %v10402 = vpack.c.b16 %v10202, %v10198
    %v10403 = vpack.c.b16 %v10203, %v10199
    %v10404 = vpack.c.b16 %v10208, %v10204
    %v10405 = vpack.c.b16 %v10209, %v10205
    %v10406 = vpack.c.b16 %v10210, %v10206
    %v10407 = vpack.c.b16 %v10211, %v10207
    %v10408 = vpack.c.b16 %v10216, %v10212
    %v10409 = vpack.c.b16 %v10217, %v10213
    %v10410 = vpack.c.b16 %v10218, %v10214
    %v10411 = vpack.c.b16 %v10219, %v10215
    %v10412 = vpack.c.b16 %v10224, %v10220
    %v10413 = vpack.c.b16 %v10225, %v10221
    %v10414 = vpack.c.b16 %v10226, %v10222
    %v10415 = vpack.c.b16 %v10227, %v10223
    %v10416 = vpack.c.b16 %v10232, %v10228
    %v10417 = vpack.c.b16 %v10233, %v10229
    %v10418 = vpack.c.b16 %v10234, %v10230
    %v10419 = vpack.c.b16 %v10235, %v10231
    %v10420 = vpack.c.b16 %v10240, %v10236
    %v10421 = vpack.c.b16 %v10241, %v10237
    %v10422 = vpack.c.b16 %v10242, %v10238
    %v10423 = vpack.c.b16 %v10243, %v10239
    %v10424 = vpack.c.b16 %v10248, %v10244
    %v10425 = vpack.c.b16 %v10249, %v10245
    %v10426 = vpack.c.b16 %v10250, %v10246
    %v10427 = vpack.c.b16 %v10251, %v10247
    %v10428 = vpack.c.b16 %v10256, %v10252
    %v10429 = vpack.c.b16 %v10257, %v10253
    %v10430 = vpack.c.b16 %v10258, %v10254
    %v10431 = vpack.c.b16 %v10259, %v10255
    %v10432 = vpack.c.b16 %v10264, %v10260
    %v10433 = vpack.c.b16 %v10265, %v10261
    %v10434 = vpack.c.b16 %v10266, %v10262
    %v10435 = vpack.c.b16 %v10267, %v10263
    %v10436 = vpack.c.b16 %v10272, %v10268
    %v10437 = vpack.c.b16 %v10273, %v10269
    %v10438 = vpack.c.b16 %v10274, %v10270
    %v10439 = vpack.c.b16 %v10275, %v10271
    %v10440 = vpack.c.b16 %v10280, %v10276
    %v10441 = vpack.c.b16 %v10281, %v10277
    %v10442 = vpack.c.b16 %v10282, %v10278
    %v10443 = vpack.c.b16 %v10283, %v10279
    %v10444 = vpack.c.b16 %v10288, %v10284
    %v10445 = vpack.c.b16 %v10289, %v10285
    %v10446 = vpack.c.b16 %v10290, %v10286
    %v10447 = vpack.c.b16 %v10291, %v10287
    %v10448 = vpack.c.b16 %v10296, %v10292
    %v10449 = vpack.c.b16 %v10297, %v10293
    %v10450 = vpack.c.b16 %v10298, %v10294
    %v10451 = vpack.c.b16 %v10299, %v10295
    %v10452 = vpack.c.b16 %v10304, %v10300
    %v10453 = vpack.c.b16 %v10305, %v10301
    %v10454 = vpack.c.b16 %v10306, %v10302
    %v10455 = vpack.c.b16 %v10307, %v10303
    %v10456 = vpack.c.b16 %v10312, %v10308
    %v10457 = vpack.c.b16 %v10313, %v10309
    %v10458 = vpack.c.b16 %v10314, %v10310
    %v10459 = vpack.c.b16 %v10315, %v10311
    %v10460 = vpack.c.b16 %v10320, %v10316
    %v10461 = vpack.c.b16 %v10321, %v10317
    %v10462 = vpack.c.b16 %v10322, %v10318
    %v10463 = vpack.c.b16 %v10323, %v10319
    %v10464 = vpack.c.b16 %v10328, %v10324
    %v10465 = vpack.c.b16 %v10329, %v10325
    %v10466 = vpack.c.b16 %v10330, %v10326
    %v10467 = vpack.c.b16 %v10331, %v10327
    %v10468 = vpack.c.b16 %v10336, %v10332
    %v10469 = vpack.c.b16 %v10337, %v10333
    %v10470 = vpack.c.b16 %v10338, %v10334
    %v10471 = vpack.c.b16 %v10339, %v10335
    %v10472 = vpack.c.b16 %v10344, %v10340
    %v10473 = vpack.c.b16 %v10345, %v10341
    %v10474 = vpack.c.b16 %v10346, %v10342
    %v10475 = vpack.c.b16 %v10347, %v10343
    %10604 = vmatprep.subr.bf16.mxu0 %v10377
    %10605 = vmatpush1.bf16.msra.mxu0 %v10376
    %10606 = vmatprep.subr.bf16.mxu0 %v10373
    %10607 = vmatpush1.bf16.msra.mxu0 %v10372
    %10608 = vmatprep.subr.bf16.mxu0 %v10369
    %10609 = vmatpush1.bf16.msra.mxu0 %v10368
    %10610 = vmatprep.subr.bf16.mxu0 %v10365
    %10611 = vmatpush1.bf16.msra.mxu0 %v10364
    %10612 = vmatprep.subr.bf16.mxu0 %v10361
    %10613 = vmatpush1.bf16.msra.mxu0 %v10360
    %10614 = vmatprep.subr.bf16.mxu0 %v10357
    %10615 = vmatpush1.bf16.msra.mxu0 %v10356
    %10616 = vmatprep.subr.bf16.mxu0 %v10353
    %10617 = vmatpush1.bf16.msra.mxu0 %v10352
    %10618 = vmatprep.subr.bf16.mxu0 %v10349
    %10619 = vmatpush1.bf16.msra.mxu0 %v10348
    %10620 = vmatprep.subr.bf16.mxu0 %v10409
    %10621 = vmatpush2.bf16.msra.mxu0 %v10408
    %10622 = vmatprep.subr.bf16.mxu0 %v10405
    %10623 = vmatpush2.bf16.msra.mxu0 %v10404
    %10624 = vmatprep.subr.bf16.mxu0 %v10401
    %10625 = vmatpush2.bf16.msra.mxu0 %v10400
    %10626 = vmatprep.subr.bf16.mxu0 %v10397
    %10627 = vmatpush2.bf16.msra.mxu0 %v10396
    %10628 = vmatprep.subr.bf16.mxu0 %v10393
    %10629 = vmatpush2.bf16.msra.mxu0 %v10392
    %10630 = vmatprep.subr.bf16.mxu0 %v10389
    %10631 = vmatpush2.bf16.msra.mxu0 %v10388
    %10632 = vmatprep.subr.bf16.mxu0 %v10385
    %10633 = vmatpush2.bf16.msra.mxu0 %v10384
    %10634 = vmatprep.subr.bf16.mxu0 %v10381
    %10635 = vmatpush2.bf16.msra.mxu0 %v10380
    %10636 = vmatprep.mubr.bf16.mxu0 %v8691
    %10637 = vmatmul.mubr.bf16.gmra.mxu0 %v8690
    %v10638 = vpop.f32.mrf.mxu0
    %v10639 = vadd.f32 %v9816, %v10638
    %v10640 = vpop.f32.mrf.mxu0
    %v10641 = vadd.f32 %v9818, %v10640
    %v10642 = vpop.f32.mrf.mxu0
    %v10643 = vadd.f32 %v9820, %v10642
    %v10644 = vpop.f32.mrf.mxu0
    %v10645 = vadd.f32 %v9822, %v10644
    %10646 = vmatprep.mubr.bf16.mxu0 %v8695
    %10647 = vmatmul.mubr.bf16.gmra.mxu0 %v8694
    %v10648 = vpop.f32.mrf.mxu0
    %v10649 = vadd.f32 %v9826, %v10648
    %v10650 = vpop.f32.mrf.mxu0
    %v10651 = vadd.f32 %v9828, %v10650
    %v10652 = vpop.f32.mrf.mxu0
    %v10653 = vadd.f32 %v9830, %v10652
    %v10654 = vpop.f32.mrf.mxu0
    %v10655 = vadd.f32 %v9832, %v10654
    %10656 = vmatprep.mubr.bf16.mxu0 %v8699
    %10657 = vmatmul.mubr.bf16.gmra.mxu0 %v8698
    %v10658 = vpop.f32.mrf.mxu0
    %v10659 = vadd.f32 %v9836, %v10658
    %v10660 = vpop.f32.mrf.mxu0
    %v10661 = vadd.f32 %v9838, %v10660
    %v10662 = vpop.f32.mrf.mxu0
    %v10663 = vpop.f32.mrf.mxu0
    %10664 = vdwg.mxu0
    %10665 = vmatprep.subr.bf16.mxu0 %v10441
    %10666 = vmatpush1.bf16.msra.mxu0 %v10440
    %10667 = vmatprep.subr.bf16.mxu0 %v10437
    %10668 = vmatpush1.bf16.msra.mxu0 %v10436
    %10669 = vmatprep.subr.bf16.mxu0 %v10433
    %10670 = vmatpush1.bf16.msra.mxu0 %v10432
    %10671 = vmatprep.subr.bf16.mxu0 %v10429
    %10672 = vmatpush1.bf16.msra.mxu0 %v10428
    %10673 = vmatprep.subr.bf16.mxu0 %v10425
    %10674 = vmatpush1.bf16.msra.mxu0 %v10424
    %10675 = vmatprep.subr.bf16.mxu0 %v10421
    %10676 = vmatpush1.bf16.msra.mxu0 %v10420
    %10677 = vmatprep.subr.bf16.mxu0 %v10417
    %10678 = vmatpush1.bf16.msra.mxu0 %v10416
    %10679 = vmatprep.subr.bf16.mxu0 %v10413
    %10680 = vmatpush1.bf16.msra.mxu0 %v10412
    %10681 = vmatprep.subr.bf16.mxu0 %v10473
    %10682 = vmatpush2.bf16.msra.mxu0 %v10472
    %10683 = vmatprep.subr.bf16.mxu0 %v10469
    %10684 = vmatpush2.bf16.msra.mxu0 %v10468
    %10685 = vmatprep.subr.bf16.mxu0 %v10465
    %10686 = vmatpush2.bf16.msra.mxu0 %v10464
    %10687 = vmatprep.subr.bf16.mxu0 %v10461
    %10688 = vmatpush2.bf16.msra.mxu0 %v10460
    %10689 = vmatprep.subr.bf16.mxu0 %v10457
    %10690 = vmatpush2.bf16.msra.mxu0 %v10456
    %10691 = vmatprep.subr.bf16.mxu0 %v10453
    %10692 = vmatpush2.bf16.msra.mxu0 %v10452
    %10693 = vmatprep.subr.bf16.mxu0 %v10449
    %10694 = vmatpush2.bf16.msra.mxu0 %v10448
    %10695 = vmatprep.subr.bf16.mxu0 %v10445
    %10696 = vmatpush2.bf16.msra.mxu0 %v10444
    %10697 = vmatprep.mubr.bf16.mxu0 %v8693
    %10698 = vmatmul.mubr.bf16.gmra.mxu0 %v8692
    %v10699 = vpop.f32.mrf.mxu0
    %v10700 = vadd.f32 %v10639, %v10699
    %v10701 = vpop.f32.mrf.mxu0
    %v10702 = vadd.f32 %v10641, %v10701
    %v10703 = vpop.f32.mrf.mxu0
    %v10704 = vadd.f32 %v10643, %v10703
    %v10705 = vpop.f32.mrf.mxu0
    %v10706 = vadd.f32 %v10645, %v10705
    %10707 = vmatprep.mubr.bf16.mxu0 %v8697
    %10708 = vmatmul.mubr.bf16.gmra.mxu0 %v8696
    %v10709 = vpop.f32.mrf.mxu0
    %v10710 = vadd.f32 %v10649, %v10709
    %v10711 = vpop.f32.mrf.mxu0
    %v10712 = vadd.f32 %v10651, %v10711
    %v10713 = vpop.f32.mrf.mxu0
    %v10714 = vadd.f32 %v10653, %v10713
    %v10715 = vpop.f32.mrf.mxu0
    %v10716 = vadd.f32 %v10655, %v10715
    %10717 = vmatprep.mubr.bf16.mxu0 %v8701
    %10718 = vmatmul.mubr.bf16.gmra.mxu0 %v8700
    %v10719 = vpop.f32.mrf.mxu0
    %v10720 = vadd.f32 %v10659, %v10719
    %v10721 = vpop.f32.mrf.mxu0
    %v10722 = vadd.f32 %v10661, %v10721
    %v10723 = vpop.f32.mrf.mxu0
    %v10724 = vpop.f32.mrf.mxu0
    %10725 = vdwg.mxu0
    %10726 = vmatprep.subr.bf16.mxu0 %v10379
    %10727 = vmatpush1.bf16.msra.mxu0 %v10378
    %10728 = vmatprep.subr.bf16.mxu0 %v10375
    %10729 = vmatpush1.bf16.msra.mxu0 %v10374
    %10730 = vmatprep.subr.bf16.mxu0 %v10371
    %10731 = vmatpush1.bf16.msra.mxu0 %v10370
    %10732 = vmatprep.subr.bf16.mxu0 %v10367
    %10733 = vmatpush1.bf16.msra.mxu0 %v10366
    %10734 = vmatprep.subr.bf16.mxu0 %v10363
    %10735 = vmatpush1.bf16.msra.mxu0 %v10362
    %10736 = vmatprep.subr.bf16.mxu0 %v10359
    %10737 = vmatpush1.bf16.msra.mxu0 %v10358
    %10738 = vmatprep.subr.bf16.mxu0 %v10355
    %10739 = vmatpush1.bf16.msra.mxu0 %v10354
    %10740 = vmatprep.subr.bf16.mxu0 %v10351
    %10741 = vmatpush1.bf16.msra.mxu0 %v10350
    %10742 = vmatprep.subr.bf16.mxu0 %v10411
    %10743 = vmatpush2.bf16.msra.mxu0 %v10410
    %10744 = vmatprep.subr.bf16.mxu0 %v10407
    %10745 = vmatpush2.bf16.msra.mxu0 %v10406
    %10746 = vmatprep.subr.bf16.mxu0 %v10403
    %10747 = vmatpush2.bf16.msra.mxu0 %v10402
    %10748 = vmatprep.subr.bf16.mxu0 %v10399
    %10749 = vmatpush2.bf16.msra.mxu0 %v10398
    %10750 = vmatprep.subr.bf16.mxu0 %v10395
    %10751 = vmatpush2.bf16.msra.mxu0 %v10394
    %10752 = vmatprep.subr.bf16.mxu0 %v10391
    %10753 = vmatpush2.bf16.msra.mxu0 %v10390
    %10754 = vmatprep.subr.bf16.mxu0 %v10387
    %10755 = vmatpush2.bf16.msra.mxu0 %v10386
    %10756 = vmatprep.subr.bf16.mxu0 %v10383
    %10757 = vmatpush2.bf16.msra.mxu0 %v10382
    %10758 = vmatprep.mubr.bf16.mxu0 %v8691
    %10759 = vmatmul.mubr.bf16.gmra.mxu0 %v8690
    %v10760 = vpop.f32.mrf.mxu0
    %v10761 = vadd.f32 %v9938, %v10760
    %v10762 = vpop.f32.mrf.mxu0
    %v10763 = vadd.f32 %v9940, %v10762
    %v10764 = vpop.f32.mrf.mxu0
    %v10765 = vadd.f32 %v9942, %v10764
    %v10766 = vpop.f32.mrf.mxu0
    %v10767 = vadd.f32 %v9944, %v10766
    %10768 = vmatprep.mubr.bf16.mxu0 %v8695
    %10769 = vmatmul.mubr.bf16.gmra.mxu0 %v8694
    %v10770 = vpop.f32.mrf.mxu0
    %v10771 = vadd.f32 %v9948, %v10770
    %v10772 = vpop.f32.mrf.mxu0
    %v10773 = vadd.f32 %v9950, %v10772
    %v10774 = vpop.f32.mrf.mxu0
    %v10775 = vadd.f32 %v9952, %v10774
    %v10776 = vpop.f32.mrf.mxu0
    %v10777 = vadd.f32 %v9954, %v10776
    %10778 = vmatprep.mubr.bf16.mxu0 %v8699
    %10779 = vmatmul.mubr.bf16.gmra.mxu0 %v8698
    %v10780 = vpop.f32.mrf.mxu0
    %v10781 = vadd.f32 %v9958, %v10780
    %v10782 = vpop.f32.mrf.mxu0
    %v10783 = vadd.f32 %v9960, %v10782
    %v10784 = vpop.f32.mrf.mxu0
    %v10785 = vpop.f32.mrf.mxu0
    %10786 = vdwg.mxu0
    %10787 = vmatprep.subr.bf16.mxu0 %v10443
    %10788 = vmatpush1.bf16.msra.mxu0 %v10442
    %10789 = vmatprep.subr.bf16.mxu0 %v10439
    %10790 = vmatpush1.bf16.msra.mxu0 %v10438
    %10791 = vmatprep.subr.bf16.mxu0 %v10435
    %10792 = vmatpush1.bf16.msra.mxu0 %v10434
    %10793 = vmatprep.subr.bf16.mxu0 %v10431
    %10794 = vmatpush1.bf16.msra.mxu0 %v10430
    %10795 = vmatprep.subr.bf16.mxu0 %v10427
    %10796 = vmatpush1.bf16.msra.mxu0 %v10426
    %10797 = vmatprep.subr.bf16.mxu0 %v10423
    %10798 = vmatpush1.bf16.msra.mxu0 %v10422
    %10799 = vmatprep.subr.bf16.mxu0 %v10419
    %10800 = vmatpush1.bf16.msra.mxu0 %v10418
    %10801 = vmatprep.subr.bf16.mxu0 %v10415
    %10802 = vmatpush1.bf16.msra.mxu0 %v10414
    %10803 = vmatprep.subr.bf16.mxu0 %v10475
    %10804 = vmatpush2.bf16.msra.mxu0 %v10474
    %10805 = vmatprep.subr.bf16.mxu0 %v10471
    %10806 = vmatpush2.bf16.msra.mxu0 %v10470
    %10807 = vmatprep.subr.bf16.mxu0 %v10467
    %10808 = vmatpush2.bf16.msra.mxu0 %v10466
    %10809 = vmatprep.subr.bf16.mxu0 %v10463
    %10810 = vmatpush2.bf16.msra.mxu0 %v10462
    %10811 = vmatprep.subr.bf16.mxu0 %v10459
    %10812 = vmatpush2.bf16.msra.mxu0 %v10458
    %10813 = vmatprep.subr.bf16.mxu0 %v10455
    %10814 = vmatpush2.bf16.msra.mxu0 %v10454
    %10815 = vmatprep.subr.bf16.mxu0 %v10451
    %10816 = vmatpush2.bf16.msra.mxu0 %v10450
    %10817 = vmatprep.subr.bf16.mxu0 %v10447
    %10818 = vmatpush2.bf16.msra.mxu0 %v10446
    %10819 = vmatprep.mubr.bf16.mxu0 %v8693
    %10820 = vmatmul.mubr.bf16.gmra.mxu0 %v8692
    %v10821 = vpop.f32.mrf.mxu0
    %v10822 = vadd.f32 %v10761, %v10821
    %v10823 = vpop.f32.mrf.mxu0
    %v10824 = vadd.f32 %v10763, %v10823
    %v10825 = vpop.f32.mrf.mxu0
    %v10826 = vadd.f32 %v10765, %v10825
    %v10827 = vpop.f32.mrf.mxu0
    %v10828 = vadd.f32 %v10767, %v10827
    %10829 = vmatprep.mubr.bf16.mxu0 %v8697
    %10830 = vmatmul.mubr.bf16.gmra.mxu0 %v8696
    %v10831 = vpop.f32.mrf.mxu0
    %v10832 = vadd.f32 %v10771, %v10831
    %v10833 = vpop.f32.mrf.mxu0
    %v10834 = vadd.f32 %v10773, %v10833
    %v10835 = vpop.f32.mrf.mxu0
    %v10836 = vadd.f32 %v10775, %v10835
    %v10837 = vpop.f32.mrf.mxu0
    %v10838 = vadd.f32 %v10777, %v10837
    %10839 = vmatprep.mubr.bf16.mxu0 %v8701
    %10840 = vmatmul.mubr.bf16.gmra.mxu0 %v8700
    %v10841 = vpop.f32.mrf.mxu0
    %v10842 = vadd.f32 %v10781, %v10841
    %v10843 = vpop.f32.mrf.mxu0
    %v10844 = vadd.f32 %v10783, %v10843
    %v10845 = vpop.f32.mrf.mxu0
    %v10846 = vpop.f32.mrf.mxu0
    %10847 = vdwg.mxu0
    %v10848 = vld [vmem:[#allocation2] sm:$0xfc]
    %v10849 = vld [vmem:[#allocation2 + $0x8] sm:$0xfc]
    %v10850 = vld [vmem:[#allocation2 + $0x10] sm:$0xfc]
    %v10851 = vld [vmem:[#allocation2 + $0x18] sm:$0xfc]
    %v10852 = vld [vmem:[#allocation2 + $0x80] sm:$0xf]
    %v10853 = vld [vmem:[#allocation2 + $0x88] sm:$0xf]
    %v10854 = vld [vmem:[#allocation2 + $0x90] sm:$0xf]
    %v10855 = vld [vmem:[#allocation2 + $0x98] sm:$0xf]
    %v10856 = vpack.c.bf16 %v8674, %v10848
    %v10857 = vpack.c.bf16 %v8675, %v10849
    %v10858 = vpack.c.bf16 %v8676, %v10850
    %v10859 = vpack.c.bf16 %v8677, %v10851
    %v10860 = vpack.c.bf16 %v10852, %v10852
    %v10861 = vpack.c.bf16 %v10853, %v10853
    %v10862 = vpack.c.bf16 %v10854, %v10854
    %v10863 = vpack.c.bf16 %v10855, %v10855
    %s10864 = scalar_lea.vmem [#allocation6], 8192
    %v10865 = vld [vmem:[%s10864] sm:$0xff]
    %v10866 = vld [vmem:[%s10864 + $0x8] sm:$0xff]
    %v10867 = vld [vmem:[%s10864 + $0x10] sm:$0xff]
    %v10868 = vld [vmem:[%s10864 + $0x18] sm:$0xff]
    %v10869 = vld [vmem:[%s10864 + $0x20] sm:$0xff]
    %v10870 = vld [vmem:[%s10864 + $0x28] sm:$0xff]
    %v10871 = vld [vmem:[%s10864 + $0x30] sm:$0xff]
    %v10872 = vld [vmem:[%s10864 + $0x38] sm:$0xff]
    %v10873 = vld [vmem:[%s10864 + $0x40] sm:$0xff]
    %v10874 = vld [vmem:[%s10864 + $0x48] sm:$0xff]
    %v10875 = vld [vmem:[%s10864 + $0x50] sm:$0xff]
    %v10876 = vld [vmem:[%s10864 + $0x58] sm:$0xff]
    %v10877 = vld [vmem:[%s10864 + $0x60] sm:$0xff]
    %v10878 = vld [vmem:[%s10864 + $0x68] sm:$0xff]
    %v10879 = vld [vmem:[%s10864 + $0x70] sm:$0xff]
    %v10880 = vld [vmem:[%s10864 + $0x78] sm:$0xff]
    %v10881 = vld [vmem:[%s10864 + $0x80] sm:$0xff]
    %v10882 = vld [vmem:[%s10864 + $0x88] sm:$0xff]
    %v10883 = vld [vmem:[%s10864 + $0x90] sm:$0xff]
    %v10884 = vld [vmem:[%s10864 + $0x98] sm:$0xff]
    %v10885 = vld [vmem:[%s10864 + $0xa0] sm:$0xff]
    %v10886 = vld [vmem:[%s10864 + $0xa8] sm:$0xff]
    %v10887 = vld [vmem:[%s10864 + $0xb0] sm:$0xff]
    %v10888 = vld [vmem:[%s10864 + $0xb8] sm:$0xff]
    %v10889 = vld [vmem:[%s10864 + $0xc0] sm:$0xff]
    %v10890 = vld [vmem:[%s10864 + $0xc8] sm:$0xff]
    %v10891 = vld [vmem:[%s10864 + $0xd0] sm:$0xff]
    %v10892 = vld [vmem:[%s10864 + $0xd8] sm:$0xff]
    %v10893 = vld [vmem:[%s10864 + $0xe0] sm:$0xff]
    %v10894 = vld [vmem:[%s10864 + $0xe8] sm:$0xff]
    %v10895 = vld [vmem:[%s10864 + $0xf0] sm:$0xff]
    %v10896 = vld [vmem:[%s10864 + $0xf8] sm:$0xff]
    %v10897 = vld [vmem:[%s10864 + $0x100] sm:$0xff]
    %v10898 = vld [vmem:[%s10864 + $0x108] sm:$0xff]
    %v10899 = vld [vmem:[%s10864 + $0x110] sm:$0xff]
    %v10900 = vld [vmem:[%s10864 + $0x118] sm:$0xff]
    %v10901 = vld [vmem:[%s10864 + $0x120] sm:$0xff]
    %v10902 = vld [vmem:[%s10864 + $0x128] sm:$0xff]
    %v10903 = vld [vmem:[%s10864 + $0x130] sm:$0xff]
    %v10904 = vld [vmem:[%s10864 + $0x138] sm:$0xff]
    %v10905 = vld [vmem:[%s10864 + $0x140] sm:$0xff]
    %v10906 = vld [vmem:[%s10864 + $0x148] sm:$0xff]
    %v10907 = vld [vmem:[%s10864 + $0x150] sm:$0xff]
    %v10908 = vld [vmem:[%s10864 + $0x158] sm:$0xff]
    %v10909 = vld [vmem:[%s10864 + $0x160] sm:$0xff]
    %v10910 = vld [vmem:[%s10864 + $0x168] sm:$0xff]
    %v10911 = vld [vmem:[%s10864 + $0x170] sm:$0xff]
    %v10912 = vld [vmem:[%s10864 + $0x178] sm:$0xff]
    %v10913 = vld [vmem:[%s10864 + $0x180] sm:$0xff]
    %v10914 = vld [vmem:[%s10864 + $0x188] sm:$0xff]
    %v10915 = vld [vmem:[%s10864 + $0x190] sm:$0xff]
    %v10916 = vld [vmem:[%s10864 + $0x198] sm:$0xff]
    %v10917 = vld [vmem:[%s10864 + $0x1a0] sm:$0xff]
    %v10918 = vld [vmem:[%s10864 + $0x1a8] sm:$0xff]
    %v10919 = vld [vmem:[%s10864 + $0x1b0] sm:$0xff]
    %v10920 = vld [vmem:[%s10864 + $0x1b8] sm:$0xff]
    %v10921 = vld [vmem:[%s10864 + $0x1c0] sm:$0xff]
    %v10922 = vld [vmem:[%s10864 + $0x1c8] sm:$0xff]
    %v10923 = vld [vmem:[%s10864 + $0x1d0] sm:$0xff]
    %v10924 = vld [vmem:[%s10864 + $0x1d8] sm:$0xff]
    %v10925 = vld [vmem:[%s10864 + $0x1e0] sm:$0xff]
    %v10926 = vld [vmem:[%s10864 + $0x1e8] sm:$0xff]
    %v10927 = vld [vmem:[%s10864 + $0x1f0] sm:$0xff]
    %v10928 = vld [vmem:[%s10864 + $0x1f8] sm:$0xff]
    %v10929 = vld [vmem:[%s10864 + $0x200] sm:$0xff]
    %v10930 = vld [vmem:[%s10864 + $0x208] sm:$0xff]
    %v10931 = vld [vmem:[%s10864 + $0x210] sm:$0xff]
    %v10932 = vld [vmem:[%s10864 + $0x218] sm:$0xff]
    %v10933 = vld [vmem:[%s10864 + $0x220] sm:$0xff]
    %v10934 = vld [vmem:[%s10864 + $0x228] sm:$0xff]
    %v10935 = vld [vmem:[%s10864 + $0x230] sm:$0xff]
    %v10936 = vld [vmem:[%s10864 + $0x238] sm:$0xff]
    %v10937 = vld [vmem:[%s10864 + $0x240] sm:$0xff]
    %v10938 = vld [vmem:[%s10864 + $0x248] sm:$0xff]
    %v10939 = vld [vmem:[%s10864 + $0x250] sm:$0xff]
    %v10940 = vld [vmem:[%s10864 + $0x258] sm:$0xff]
    %v10941 = vld [vmem:[%s10864 + $0x260] sm:$0xff]
    %v10942 = vld [vmem:[%s10864 + $0x268] sm:$0xff]
    %v10943 = vld [vmem:[%s10864 + $0x270] sm:$0xff]
    %v10944 = vld [vmem:[%s10864 + $0x278] sm:$0xff]
    %v10945 = vld [vmem:[%s10864 + $0x280] sm:$0xff]
    %v10946 = vld [vmem:[%s10864 + $0x288] sm:$0xff]
    %v10947 = vld [vmem:[%s10864 + $0x290] sm:$0xff]
    %v10948 = vld [vmem:[%s10864 + $0x298] sm:$0xff]
    %v10949 = vld [vmem:[%s10864 + $0x2a0] sm:$0xff]
    %v10950 = vld [vmem:[%s10864 + $0x2a8] sm:$0xff]
    %v10951 = vld [vmem:[%s10864 + $0x2b0] sm:$0xff]
    %v10952 = vld [vmem:[%s10864 + $0x2b8] sm:$0xff]
    %v10953 = vld [vmem:[%s10864 + $0x2c0] sm:$0xff]
    %v10954 = vld [vmem:[%s10864 + $0x2c8] sm:$0xff]
    %v10955 = vld [vmem:[%s10864 + $0x2d0] sm:$0xff]
    %v10956 = vld [vmem:[%s10864 + $0x2d8] sm:$0xff]
    %v10957 = vld [vmem:[%s10864 + $0x2e0] sm:$0xff]
    %v10958 = vld [vmem:[%s10864 + $0x2e8] sm:$0xff]
    %v10959 = vld [vmem:[%s10864 + $0x2f0] sm:$0xff]
    %v10960 = vld [vmem:[%s10864 + $0x2f8] sm:$0xff]
    %v10961 = vld [vmem:[%s10864 + $0x300] sm:$0xff]
    %v10962 = vld [vmem:[%s10864 + $0x308] sm:$0xff]
    %v10963 = vld [vmem:[%s10864 + $0x310] sm:$0xff]
    %v10964 = vld [vmem:[%s10864 + $0x318] sm:$0xff]
    %v10965 = vld [vmem:[%s10864 + $0x320] sm:$0xff]
    %v10966 = vld [vmem:[%s10864 + $0x328] sm:$0xff]
    %v10967 = vld [vmem:[%s10864 + $0x330] sm:$0xff]
    %v10968 = vld [vmem:[%s10864 + $0x338] sm:$0xff]
    %v10969 = vld [vmem:[%s10864 + $0x340] sm:$0xff]
    %v10970 = vld [vmem:[%s10864 + $0x348] sm:$0xff]
    %v10971 = vld [vmem:[%s10864 + $0x350] sm:$0xff]
    %v10972 = vld [vmem:[%s10864 + $0x358] sm:$0xff]
    %v10973 = vld [vmem:[%s10864 + $0x360] sm:$0xff]
    %v10974 = vld [vmem:[%s10864 + $0x368] sm:$0xff]
    %v10975 = vld [vmem:[%s10864 + $0x370] sm:$0xff]
    %v10976 = vld [vmem:[%s10864 + $0x378] sm:$0xff]
    %v10977 = vld [vmem:[%s10864 + $0x380] sm:$0xff]
    %v10978 = vld [vmem:[%s10864 + $0x388] sm:$0xff]
    %v10979 = vld [vmem:[%s10864 + $0x390] sm:$0xff]
    %v10980 = vld [vmem:[%s10864 + $0x398] sm:$0xff]
    %v10981 = vld [vmem:[%s10864 + $0x3a0] sm:$0xff]
    %v10982 = vld [vmem:[%s10864 + $0x3a8] sm:$0xff]
    %v10983 = vld [vmem:[%s10864 + $0x3b0] sm:$0xff]
    %v10984 = vld [vmem:[%s10864 + $0x3b8] sm:$0xff]
    %v10985 = vld [vmem:[%s10864 + $0x3c0] sm:$0xff]
    %v10986 = vld [vmem:[%s10864 + $0x3c8] sm:$0xff]
    %v10987 = vld [vmem:[%s10864 + $0x3d0] sm:$0xff]
    %v10988 = vld [vmem:[%s10864 + $0x3d8] sm:$0xff]
    %v10989 = vld [vmem:[%s10864 + $0x3e0] sm:$0xff]
    %v10990 = vld [vmem:[%s10864 + $0x3e8] sm:$0xff]
    %v10991 = vld [vmem:[%s10864 + $0x3f0] sm:$0xff]
    %v10992 = vld [vmem:[%s10864 + $0x3f8] sm:$0xff]
    %v11005 = vrot.slane %v10856, 1
    %v11006 = vrot.slane %v8694, 1
    %v11007 = vsel %vm4076, %v11005, %v11006
    %v11008 = vrot.slane %v10857, 1
    %v11009 = vrot.slane %v8695, 1
    %v11010 = vsel %vm4076, %v11008, %v11009
    %v11011 = vrot.slane %v10858, 1
    %v11012 = vrot.slane %v8696, 1
    %v11013 = vsel %vm4076, %v11011, %v11012
    %v11014 = vrot.slane %v10859, 1
    %v11015 = vrot.slane %v8697, 1
    %v11016 = vsel %vm4076, %v11014, %v11015
    %v11017 = vrot.slane %v10860, 1
    %v11018 = vsel %vm4076, %v11006, %v11017
    %v11019 = vrot.slane %v10861, 1
    %v11020 = vsel %vm4076, %v11009, %v11019
    %v11021 = vrot.slane %v10862, 1
    %v11022 = vsel %vm4076, %v11012, %v11021
    %v11023 = vrot.slane %v10863, 1
    %v11024 = vsel %vm4076, %v11015, %v11023
    %v11165 = vunpack.c.l.b16 %v10865
    %v11166 = vunpack.c.h.b16 %v10865
    %v11167 = vunpack.c.l.b16 %v10866
    %v11168 = vunpack.c.h.b16 %v10866
    %v11169 = vunpack.c.l.b16 %v10867
    %v11170 = vunpack.c.h.b16 %v10867
    %v11171 = vunpack.c.l.b16 %v10868
    %v11172 = vunpack.c.h.b16 %v10868
    %v11173 = vunpack.c.l.b16 %v10869
    %v11174 = vunpack.c.h.b16 %v10869
    %v11175 = vunpack.c.l.b16 %v10870
    %v11176 = vunpack.c.h.b16 %v10870
    %v11177 = vunpack.c.l.b16 %v10871
    %v11178 = vunpack.c.h.b16 %v10871
    %v11179 = vunpack.c.l.b16 %v10872
    %v11180 = vunpack.c.h.b16 %v10872
    %v11181 = vunpack.c.l.b16 %v10873
    %v11182 = vunpack.c.h.b16 %v10873
    %v11183 = vunpack.c.l.b16 %v10874
    %v11184 = vunpack.c.h.b16 %v10874
    %v11185 = vunpack.c.l.b16 %v10875
    %v11186 = vunpack.c.h.b16 %v10875
    %v11187 = vunpack.c.l.b16 %v10876
    %v11188 = vunpack.c.h.b16 %v10876
    %v11189 = vunpack.c.l.b16 %v10877
    %v11190 = vunpack.c.h.b16 %v10877
    %v11191 = vunpack.c.l.b16 %v10878
    %v11192 = vunpack.c.h.b16 %v10878
    %v11193 = vunpack.c.l.b16 %v10879
    %v11194 = vunpack.c.h.b16 %v10879
    %v11195 = vunpack.c.l.b16 %v10880
    %v11196 = vunpack.c.h.b16 %v10880
    %v11197 = vunpack.c.l.b16 %v10881
    %v11198 = vunpack.c.h.b16 %v10881
    %v11199 = vunpack.c.l.b16 %v10882
    %v11200 = vunpack.c.h.b16 %v10882
    %v11201 = vunpack.c.l.b16 %v10883
    %v11202 = vunpack.c.h.b16 %v10883
    %v11203 = vunpack.c.l.b16 %v10884
    %v11204 = vunpack.c.h.b16 %v10884
    %v11205 = vunpack.c.l.b16 %v10885
    %v11206 = vunpack.c.h.b16 %v10885
    %v11207 = vunpack.c.l.b16 %v10886
    %v11208 = vunpack.c.h.b16 %v10886
    %v11209 = vunpack.c.l.b16 %v10887
    %v11210 = vunpack.c.h.b16 %v10887
    %v11211 = vunpack.c.l.b16 %v10888
    %v11212 = vunpack.c.h.b16 %v10888
    %v11213 = vunpack.c.l.b16 %v10889
    %v11214 = vunpack.c.h.b16 %v10889
    %v11215 = vunpack.c.l.b16 %v10890
    %v11216 = vunpack.c.h.b16 %v10890
    %v11217 = vunpack.c.l.b16 %v10891
    %v11218 = vunpack.c.h.b16 %v10891
    %v11219 = vunpack.c.l.b16 %v10892
    %v11220 = vunpack.c.h.b16 %v10892
    %v11221 = vunpack.c.l.b16 %v10893
    %v11222 = vunpack.c.h.b16 %v10893
    %v11223 = vunpack.c.l.b16 %v10894
    %v11224 = vunpack.c.h.b16 %v10894
    %v11225 = vunpack.c.l.b16 %v10895
    %v11226 = vunpack.c.h.b16 %v10895
    %v11227 = vunpack.c.l.b16 %v10896
    %v11228 = vunpack.c.h.b16 %v10896
    %v11229 = vunpack.c.l.b16 %v10897
    %v11230 = vunpack.c.h.b16 %v10897
    %v11231 = vunpack.c.l.b16 %v10898
    %v11232 = vunpack.c.h.b16 %v10898
    %v11233 = vunpack.c.l.b16 %v10899
    %v11234 = vunpack.c.h.b16 %v10899
    %v11235 = vunpack.c.l.b16 %v10900
    %v11236 = vunpack.c.h.b16 %v10900
    %v11237 = vunpack.c.l.b16 %v10901
    %v11238 = vunpack.c.h.b16 %v10901
    %v11239 = vunpack.c.l.b16 %v10902
    %v11240 = vunpack.c.h.b16 %v10902
    %v11241 = vunpack.c.l.b16 %v10903
    %v11242 = vunpack.c.h.b16 %v10903
    %v11243 = vunpack.c.l.b16 %v10904
    %v11244 = vunpack.c.h.b16 %v10904
    %v11245 = vunpack.c.l.b16 %v10905
    %v11246 = vunpack.c.h.b16 %v10905
    %v11247 = vunpack.c.l.b16 %v10906
    %v11248 = vunpack.c.h.b16 %v10906
    %v11249 = vunpack.c.l.b16 %v10907
    %v11250 = vunpack.c.h.b16 %v10907
    %v11251 = vunpack.c.l.b16 %v10908
    %v11252 = vunpack.c.h.b16 %v10908
    %v11253 = vunpack.c.l.b16 %v10909
    %v11254 = vunpack.c.h.b16 %v10909
    %v11255 = vunpack.c.l.b16 %v10910
    %v11256 = vunpack.c.h.b16 %v10910
    %v11257 = vunpack.c.l.b16 %v10911
    %v11258 = vunpack.c.h.b16 %v10911
    %v11259 = vunpack.c.l.b16 %v10912
    %v11260 = vunpack.c.h.b16 %v10912
    %v11261 = vunpack.c.l.b16 %v10913
    %v11262 = vunpack.c.h.b16 %v10913
    %v11263 = vunpack.c.l.b16 %v10914
    %v11264 = vunpack.c.h.b16 %v10914
    %v11265 = vunpack.c.l.b16 %v10915
    %v11266 = vunpack.c.h.b16 %v10915
    %v11267 = vunpack.c.l.b16 %v10916
    %v11268 = vunpack.c.h.b16 %v10916
    %v11269 = vunpack.c.l.b16 %v10917
    %v11270 = vunpack.c.h.b16 %v10917
    %v11271 = vunpack.c.l.b16 %v10918
    %v11272 = vunpack.c.h.b16 %v10918
    %v11273 = vunpack.c.l.b16 %v10919
    %v11274 = vunpack.c.h.b16 %v10919
    %v11275 = vunpack.c.l.b16 %v10920
    %v11276 = vunpack.c.h.b16 %v10920
    %v11277 = vunpack.c.l.b16 %v10921
    %v11278 = vunpack.c.h.b16 %v10921
    %v11279 = vunpack.c.l.b16 %v10922
    %v11280 = vunpack.c.h.b16 %v10922
    %v11281 = vunpack.c.l.b16 %v10923
    %v11282 = vunpack.c.h.b16 %v10923
    %v11283 = vunpack.c.l.b16 %v10924
    %v11284 = vunpack.c.h.b16 %v10924
    %v11285 = vunpack.c.l.b16 %v10925
    %v11286 = vunpack.c.h.b16 %v10925
    %v11287 = vunpack.c.l.b16 %v10926
    %v11288 = vunpack.c.h.b16 %v10926
    %v11289 = vunpack.c.l.b16 %v10927
    %v11290 = vunpack.c.h.b16 %v10927
    %v11291 = vunpack.c.l.b16 %v10928
    %v11292 = vunpack.c.h.b16 %v10928
    %v11293 = vunpack.c.l.b16 %v10929
    %v11294 = vunpack.c.h.b16 %v10929
    %v11295 = vunpack.c.l.b16 %v10930
    %v11296 = vunpack.c.h.b16 %v10930
    %v11297 = vunpack.c.l.b16 %v10931
    %v11298 = vunpack.c.h.b16 %v10931
    %v11299 = vunpack.c.l.b16 %v10932
    %v11300 = vunpack.c.h.b16 %v10932
    %v11301 = vunpack.c.l.b16 %v10933
    %v11302 = vunpack.c.h.b16 %v10933
    %v11303 = vunpack.c.l.b16 %v10934
    %v11304 = vunpack.c.h.b16 %v10934
    %v11305 = vunpack.c.l.b16 %v10935
    %v11306 = vunpack.c.h.b16 %v10935
    %v11307 = vunpack.c.l.b16 %v10936
    %v11308 = vunpack.c.h.b16 %v10936
    %v11309 = vunpack.c.l.b16 %v10937
    %v11310 = vunpack.c.h.b16 %v10937
    %v11311 = vunpack.c.l.b16 %v10938
    %v11312 = vunpack.c.h.b16 %v10938
    %v11313 = vunpack.c.l.b16 %v10939
    %v11314 = vunpack.c.h.b16 %v10939
    %v11315 = vunpack.c.l.b16 %v10940
    %v11316 = vunpack.c.h.b16 %v10940
    %v11317 = vunpack.c.l.b16 %v10941
    %v11318 = vunpack.c.h.b16 %v10941
    %v11319 = vunpack.c.l.b16 %v10942
    %v11320 = vunpack.c.h.b16 %v10942
    %v11321 = vunpack.c.l.b16 %v10943
    %v11322 = vunpack.c.h.b16 %v10943
    %v11323 = vunpack.c.l.b16 %v10944
    %v11324 = vunpack.c.h.b16 %v10944
    %v11325 = vunpack.c.l.b16 %v10945
    %v11326 = vunpack.c.h.b16 %v10945
    %v11327 = vunpack.c.l.b16 %v10946
    %v11328 = vunpack.c.h.b16 %v10946
    %v11329 = vunpack.c.l.b16 %v10947
    %v11330 = vunpack.c.h.b16 %v10947
    %v11331 = vunpack.c.l.b16 %v10948
    %v11332 = vunpack.c.h.b16 %v10948
    %v11333 = vunpack.c.l.b16 %v10949
    %v11334 = vunpack.c.h.b16 %v10949
    %v11335 = vunpack.c.l.b16 %v10950
    %v11336 = vunpack.c.h.b16 %v10950
    %v11337 = vunpack.c.l.b16 %v10951
    %v11338 = vunpack.c.h.b16 %v10951
    %v11339 = vunpack.c.l.b16 %v10952
    %v11340 = vunpack.c.h.b16 %v10952
    %v11341 = vunpack.c.l.b16 %v10953
    %v11342 = vunpack.c.h.b16 %v10953
    %v11343 = vunpack.c.l.b16 %v10954
    %v11344 = vunpack.c.h.b16 %v10954
    %v11345 = vunpack.c.l.b16 %v10955
    %v11346 = vunpack.c.h.b16 %v10955
    %v11347 = vunpack.c.l.b16 %v10956
    %v11348 = vunpack.c.h.b16 %v10956
    %v11349 = vunpack.c.l.b16 %v10957
    %v11350 = vunpack.c.h.b16 %v10957
    %v11351 = vunpack.c.l.b16 %v10958
    %v11352 = vunpack.c.h.b16 %v10958
    %v11353 = vunpack.c.l.b16 %v10959
    %v11354 = vunpack.c.h.b16 %v10959
    %v11355 = vunpack.c.l.b16 %v10960
    %v11356 = vunpack.c.h.b16 %v10960
    %v11357 = vunpack.c.l.b16 %v10961
    %v11358 = vunpack.c.h.b16 %v10961
    %v11359 = vunpack.c.l.b16 %v10962
    %v11360 = vunpack.c.h.b16 %v10962
    %v11361 = vunpack.c.l.b16 %v10963
    %v11362 = vunpack.c.h.b16 %v10963
    %v11363 = vunpack.c.l.b16 %v10964
    %v11364 = vunpack.c.h.b16 %v10964
    %v11365 = vunpack.c.l.b16 %v10965
    %v11366 = vunpack.c.h.b16 %v10965
    %v11367 = vunpack.c.l.b16 %v10966
    %v11368 = vunpack.c.h.b16 %v10966
    %v11369 = vunpack.c.l.b16 %v10967
    %v11370 = vunpack.c.h.b16 %v10967
    %v11371 = vunpack.c.l.b16 %v10968
    %v11372 = vunpack.c.h.b16 %v10968
    %v11373 = vunpack.c.l.b16 %v10969
    %v11374 = vunpack.c.h.b16 %v10969
    %v11375 = vunpack.c.l.b16 %v10970
    %v11376 = vunpack.c.h.b16 %v10970
    %v11377 = vunpack.c.l.b16 %v10971
    %v11378 = vunpack.c.h.b16 %v10971
    %v11379 = vunpack.c.l.b16 %v10972
    %v11380 = vunpack.c.h.b16 %v10972
    %v11381 = vunpack.c.l.b16 %v10973
    %v11382 = vunpack.c.h.b16 %v10973
    %v11383 = vunpack.c.l.b16 %v10974
    %v11384 = vunpack.c.h.b16 %v10974
    %v11385 = vunpack.c.l.b16 %v10975
    %v11386 = vunpack.c.h.b16 %v10975
    %v11387 = vunpack.c.l.b16 %v10976
    %v11388 = vunpack.c.h.b16 %v10976
    %v11389 = vunpack.c.l.b16 %v10977
    %v11390 = vunpack.c.h.b16 %v10977
    %v11391 = vunpack.c.l.b16 %v10978
    %v11392 = vunpack.c.h.b16 %v10978
    %v11393 = vunpack.c.l.b16 %v10979
    %v11394 = vunpack.c.h.b16 %v10979
    %v11395 = vunpack.c.l.b16 %v10980
    %v11396 = vunpack.c.h.b16 %v10980
    %v11397 = vunpack.c.l.b16 %v10981
    %v11398 = vunpack.c.h.b16 %v10981
    %v11399 = vunpack.c.l.b16 %v10982
    %v11400 = vunpack.c.h.b16 %v10982
    %v11401 = vunpack.c.l.b16 %v10983
    %v11402 = vunpack.c.h.b16 %v10983
    %v11403 = vunpack.c.l.b16 %v10984
    %v11404 = vunpack.c.h.b16 %v10984
    %v11405 = vunpack.c.l.b16 %v10985
    %v11406 = vunpack.c.h.b16 %v10985
    %v11407 = vunpack.c.l.b16 %v10986
    %v11408 = vunpack.c.h.b16 %v10986
    %v11409 = vunpack.c.l.b16 %v10987
    %v11410 = vunpack.c.h.b16 %v10987
    %v11411 = vunpack.c.l.b16 %v10988
    %v11412 = vunpack.c.h.b16 %v10988
    %v11413 = vunpack.c.l.b16 %v10989
    %v11414 = vunpack.c.h.b16 %v10989
    %v11415 = vunpack.c.l.b16 %v10990
    %v11416 = vunpack.c.h.b16 %v10990
    %v11417 = vunpack.c.l.b16 %v10991
    %v11418 = vunpack.c.h.b16 %v10991
    %v11419 = vunpack.c.l.b16 %v10992
    %v11420 = vunpack.c.h.b16 %v10992
    %v11421 = vpack.c.b16 %v11169, %v11165
    %v11422 = vpack.c.b16 %v11170, %v11166
    %v11423 = vpack.c.b16 %v11171, %v11167
    %v11424 = vpack.c.b16 %v11172, %v11168
    %v11425 = vpack.c.b16 %v11177, %v11173
    %v11426 = vpack.c.b16 %v11178, %v11174
    %v11427 = vpack.c.b16 %v11179, %v11175
    %v11428 = vpack.c.b16 %v11180, %v11176
    %v11429 = vpack.c.b16 %v11185, %v11181
    %v11430 = vpack.c.b16 %v11186, %v11182
    %v11431 = vpack.c.b16 %v11187, %v11183
    %v11432 = vpack.c.b16 %v11188, %v11184
    %v11433 = vpack.c.b16 %v11193, %v11189
    %v11434 = vpack.c.b16 %v11194, %v11190
    %v11435 = vpack.c.b16 %v11195, %v11191
    %v11436 = vpack.c.b16 %v11196, %v11192
    %v11437 = vpack.c.b16 %v11201, %v11197
    %v11438 = vpack.c.b16 %v11202, %v11198
    %v11439 = vpack.c.b16 %v11203, %v11199
    %v11440 = vpack.c.b16 %v11204, %v11200
    %v11441 = vpack.c.b16 %v11209, %v11205
    %v11442 = vpack.c.b16 %v11210, %v11206
    %v11443 = vpack.c.b16 %v11211, %v11207
    %v11444 = vpack.c.b16 %v11212, %v11208
    %v11445 = vpack.c.b16 %v11217, %v11213
    %v11446 = vpack.c.b16 %v11218, %v11214
    %v11447 = vpack.c.b16 %v11219, %v11215
    %v11448 = vpack.c.b16 %v11220, %v11216
    %v11449 = vpack.c.b16 %v11225, %v11221
    %v11450 = vpack.c.b16 %v11226, %v11222
    %v11451 = vpack.c.b16 %v11227, %v11223
    %v11452 = vpack.c.b16 %v11228, %v11224
    %v11453 = vpack.c.b16 %v11233, %v11229
    %v11454 = vpack.c.b16 %v11234, %v11230
    %v11455 = vpack.c.b16 %v11235, %v11231
    %v11456 = vpack.c.b16 %v11236, %v11232
    %v11457 = vpack.c.b16 %v11241, %v11237
    %v11458 = vpack.c.b16 %v11242, %v11238
    %v11459 = vpack.c.b16 %v11243, %v11239
    %v11460 = vpack.c.b16 %v11244, %v11240
    %v11461 = vpack.c.b16 %v11249, %v11245
    %v11462 = vpack.c.b16 %v11250, %v11246
    %v11463 = vpack.c.b16 %v11251, %v11247
    %v11464 = vpack.c.b16 %v11252, %v11248
    %v11465 = vpack.c.b16 %v11257, %v11253
    %v11466 = vpack.c.b16 %v11258, %v11254
    %v11467 = vpack.c.b16 %v11259, %v11255
    %v11468 = vpack.c.b16 %v11260, %v11256
    %v11469 = vpack.c.b16 %v11265, %v11261
    %v11470 = vpack.c.b16 %v11266, %v11262
    %v11471 = vpack.c.b16 %v11267, %v11263
    %v11472 = vpack.c.b16 %v11268, %v11264
    %v11473 = vpack.c.b16 %v11273, %v11269
    %v11474 = vpack.c.b16 %v11274, %v11270
    %v11475 = vpack.c.b16 %v11275, %v11271
    %v11476 = vpack.c.b16 %v11276, %v11272
    %v11477 = vpack.c.b16 %v11281, %v11277
    %v11478 = vpack.c.b16 %v11282, %v11278
    %v11479 = vpack.c.b16 %v11283, %v11279
    %v11480 = vpack.c.b16 %v11284, %v11280
    %v11481 = vpack.c.b16 %v11289, %v11285
    %v11482 = vpack.c.b16 %v11290, %v11286
    %v11483 = vpack.c.b16 %v11291, %v11287
    %v11484 = vpack.c.b16 %v11292, %v11288
    %v11485 = vpack.c.b16 %v11297, %v11293
    %v11486 = vpack.c.b16 %v11298, %v11294
    %v11487 = vpack.c.b16 %v11299, %v11295
    %v11488 = vpack.c.b16 %v11300, %v11296
    %v11489 = vpack.c.b16 %v11305, %v11301
    %v11490 = vpack.c.b16 %v11306, %v11302
    %v11491 = vpack.c.b16 %v11307, %v11303
    %v11492 = vpack.c.b16 %v11308, %v11304
    %v11493 = vpack.c.b16 %v11313, %v11309
    %v11494 = vpack.c.b16 %v11314, %v11310
    %v11495 = vpack.c.b16 %v11315, %v11311
    %v11496 = vpack.c.b16 %v11316, %v11312
    %v11497 = vpack.c.b16 %v11321, %v11317
    %v11498 = vpack.c.b16 %v11322, %v11318
    %v11499 = vpack.c.b16 %v11323, %v11319
    %v11500 = vpack.c.b16 %v11324, %v11320
    %v11501 = vpack.c.b16 %v11329, %v11325
    %v11502 = vpack.c.b16 %v11330, %v11326
    %v11503 = vpack.c.b16 %v11331, %v11327
    %v11504 = vpack.c.b16 %v11332, %v11328
    %v11505 = vpack.c.b16 %v11337, %v11333
    %v11506 = vpack.c.b16 %v11338, %v11334
    %v11507 = vpack.c.b16 %v11339, %v11335
    %v11508 = vpack.c.b16 %v11340, %v11336
    %v11509 = vpack.c.b16 %v11345, %v11341
    %v11510 = vpack.c.b16 %v11346, %v11342
    %v11511 = vpack.c.b16 %v11347, %v11343
    %v11512 = vpack.c.b16 %v11348, %v11344
    %v11513 = vpack.c.b16 %v11353, %v11349
    %v11514 = vpack.c.b16 %v11354, %v11350
    %v11515 = vpack.c.b16 %v11355, %v11351
    %v11516 = vpack.c.b16 %v11356, %v11352
    %v11517 = vpack.c.b16 %v11361, %v11357
    %v11518 = vpack.c.b16 %v11362, %v11358
    %v11519 = vpack.c.b16 %v11363, %v11359
    %v11520 = vpack.c.b16 %v11364, %v11360
    %v11521 = vpack.c.b16 %v11369, %v11365
    %v11522 = vpack.c.b16 %v11370, %v11366
    %v11523 = vpack.c.b16 %v11371, %v11367
    %v11524 = vpack.c.b16 %v11372, %v11368
    %v11525 = vpack.c.b16 %v11377, %v11373
    %v11526 = vpack.c.b16 %v11378, %v11374
    %v11527 = vpack.c.b16 %v11379, %v11375
    %v11528 = vpack.c.b16 %v11380, %v11376
    %v11529 = vpack.c.b16 %v11385, %v11381
    %v11530 = vpack.c.b16 %v11386, %v11382
    %v11531 = vpack.c.b16 %v11387, %v11383
    %v11532 = vpack.c.b16 %v11388, %v11384
    %v11533 = vpack.c.b16 %v11393, %v11389
    %v11534 = vpack.c.b16 %v11394, %v11390
    %v11535 = vpack.c.b16 %v11395, %v11391
    %v11536 = vpack.c.b16 %v11396, %v11392
    %v11537 = vpack.c.b16 %v11401, %v11397
    %v11538 = vpack.c.b16 %v11402, %v11398
    %v11539 = vpack.c.b16 %v11403, %v11399
    %v11540 = vpack.c.b16 %v11404, %v11400
    %v11541 = vpack.c.b16 %v11409, %v11405
    %v11542 = vpack.c.b16 %v11410, %v11406
    %v11543 = vpack.c.b16 %v11411, %v11407
    %v11544 = vpack.c.b16 %v11412, %v11408
    %v11545 = vpack.c.b16 %v11417, %v11413
    %v11546 = vpack.c.b16 %v11418, %v11414
    %v11547 = vpack.c.b16 %v11419, %v11415
    %v11548 = vpack.c.b16 %v11420, %v11416
    %11677 = vmatprep.subr.bf16.mxu0 %v11450
    %11678 = vmatpush1.bf16.msra.mxu0 %v11449
    %11679 = vmatprep.subr.bf16.mxu0 %v11446
    %11680 = vmatpush1.bf16.msra.mxu0 %v11445
    %11681 = vmatprep.subr.bf16.mxu0 %v11442
    %11682 = vmatpush1.bf16.msra.mxu0 %v11441
    %11683 = vmatprep.subr.bf16.mxu0 %v11438
    %11684 = vmatpush1.bf16.msra.mxu0 %v11437
    %11685 = vmatprep.subr.bf16.mxu0 %v11434
    %11686 = vmatpush1.bf16.msra.mxu0 %v11433
    %11687 = vmatprep.subr.bf16.mxu0 %v11430
    %11688 = vmatpush1.bf16.msra.mxu0 %v11429
    %11689 = vmatprep.subr.bf16.mxu0 %v11426
    %11690 = vmatpush1.bf16.msra.mxu0 %v11425
    %11691 = vmatprep.subr.bf16.mxu0 %v11422
    %11692 = vmatpush1.bf16.msra.mxu0 %v11421
    %11693 = vmatprep.subr.bf16.mxu0 %v11482
    %11694 = vmatpush2.bf16.msra.mxu0 %v11481
    %11695 = vmatprep.subr.bf16.mxu0 %v11478
    %11696 = vmatpush2.bf16.msra.mxu0 %v11477
    %11697 = vmatprep.subr.bf16.mxu0 %v11474
    %11698 = vmatpush2.bf16.msra.mxu0 %v11473
    %11699 = vmatprep.subr.bf16.mxu0 %v11470
    %11700 = vmatpush2.bf16.msra.mxu0 %v11469
    %11701 = vmatprep.subr.bf16.mxu0 %v11466
    %11702 = vmatpush2.bf16.msra.mxu0 %v11465
    %11703 = vmatprep.subr.bf16.mxu0 %v11462
    %11704 = vmatpush2.bf16.msra.mxu0 %v11461
    %11705 = vmatprep.subr.bf16.mxu0 %v11458
    %11706 = vmatpush2.bf16.msra.mxu0 %v11457
    %11707 = vmatprep.subr.bf16.mxu0 %v11454
    %11708 = vmatpush2.bf16.msra.mxu0 %v11453
    %11709 = vmatprep.mubr.bf16.mxu0 %v11010
    %11710 = vmatmul.mubr.bf16.gmra.mxu0 %v11007
    %v11711 = vpop.f32.mrf.mxu0
    %v11712 = vadd.f32 0.0, %v11711
    %v11713 = vpop.f32.mrf.mxu0
    %v11714 = vadd.f32 0.0, %v11713
    %v11715 = vpop.f32.mrf.mxu0
    %v11716 = vadd.f32 0.0, %v11715
    %v11717 = vpop.f32.mrf.mxu0
    %v11718 = vadd.f32 0.0, %v11717
    %11719 = vmatprep.mubr.bf16.mxu0 %v11020
    %11720 = vmatmul.mubr.bf16.gmra.mxu0 %v11018
    %v11721 = vpop.f32.mrf.mxu0
    %v11722 = vadd.f32 0.0, %v11721
    %v11723 = vpop.f32.mrf.mxu0
    %v11724 = vadd.f32 0.0, %v11723
    %v11725 = vpop.f32.mrf.mxu0
    %v11726 = vadd.f32 0.0, %v11725
    %v11727 = vpop.f32.mrf.mxu0
    %v11728 = vadd.f32 0.0, %v11727
    %11729 = vmatprep.mubr.bf16.mxu0 %v11019
    %11730 = vmatmul.mubr.bf16.gmra.mxu0 %v11017
    %v11731 = vpop.f32.mrf.mxu0
    %v11732 = vadd.f32 0.0, %v11731
    %v11733 = vpop.f32.mrf.mxu0
    %v11734 = vadd.f32 0.0, %v11733
    %v11735 = vpop.f32.mrf.mxu0
    %v11736 = vpop.f32.mrf.mxu0
    %11737 = vdwg.mxu0
    %11738 = vmatprep.subr.bf16.mxu0 %v11514
    %11739 = vmatpush1.bf16.msra.mxu0 %v11513
    %11740 = vmatprep.subr.bf16.mxu0 %v11510
    %11741 = vmatpush1.bf16.msra.mxu0 %v11509
    %11742 = vmatprep.subr.bf16.mxu0 %v11506
    %11743 = vmatpush1.bf16.msra.mxu0 %v11505
    %11744 = vmatprep.subr.bf16.mxu0 %v11502
    %11745 = vmatpush1.bf16.msra.mxu0 %v11501
    %11746 = vmatprep.subr.bf16.mxu0 %v11498
    %11747 = vmatpush1.bf16.msra.mxu0 %v11497
    %11748 = vmatprep.subr.bf16.mxu0 %v11494
    %11749 = vmatpush1.bf16.msra.mxu0 %v11493
    %11750 = vmatprep.subr.bf16.mxu0 %v11490
    %11751 = vmatpush1.bf16.msra.mxu0 %v11489
    %11752 = vmatprep.subr.bf16.mxu0 %v11486
    %11753 = vmatpush1.bf16.msra.mxu0 %v11485
    %11754 = vmatprep.subr.bf16.mxu0 %v11546
    %11755 = vmatpush2.bf16.msra.mxu0 %v11545
    %11756 = vmatprep.subr.bf16.mxu0 %v11542
    %11757 = vmatpush2.bf16.msra.mxu0 %v11541
    %11758 = vmatprep.subr.bf16.mxu0 %v11538
    %11759 = vmatpush2.bf16.msra.mxu0 %v11537
    %11760 = vmatprep.subr.bf16.mxu0 %v11534
    %11761 = vmatpush2.bf16.msra.mxu0 %v11533
    %11762 = vmatprep.subr.bf16.mxu0 %v11530
    %11763 = vmatpush2.bf16.msra.mxu0 %v11529
    %11764 = vmatprep.subr.bf16.mxu0 %v11526
    %11765 = vmatpush2.bf16.msra.mxu0 %v11525
    %11766 = vmatprep.subr.bf16.mxu0 %v11522
    %11767 = vmatpush2.bf16.msra.mxu0 %v11521
    %11768 = vmatprep.subr.bf16.mxu0 %v11518
    %11769 = vmatpush2.bf16.msra.mxu0 %v11517
    %11770 = vmatprep.mubr.bf16.mxu0 %v11016
    %11771 = vmatmul.mubr.bf16.gmra.mxu0 %v11013
    %v11772 = vpop.f32.mrf.mxu0
    %v11773 = vadd.f32 %v11712, %v11772
    %v11774 = vpop.f32.mrf.mxu0
    %v11775 = vadd.f32 %v11714, %v11774
    %v11776 = vpop.f32.mrf.mxu0
    %v11777 = vadd.f32 %v11716, %v11776
    %v11778 = vpop.f32.mrf.mxu0
    %v11779 = vadd.f32 %v11718, %v11778
    %11780 = vmatprep.mubr.bf16.mxu0 %v11024
    %11781 = vmatmul.mubr.bf16.gmra.mxu0 %v11022
    %v11782 = vpop.f32.mrf.mxu0
    %v11783 = vadd.f32 %v11722, %v11782
    %v11784 = vpop.f32.mrf.mxu0
    %v11785 = vadd.f32 %v11724, %v11784
    %v11786 = vpop.f32.mrf.mxu0
    %v11787 = vadd.f32 %v11726, %v11786
    %v11788 = vpop.f32.mrf.mxu0
    %v11789 = vadd.f32 %v11728, %v11788
    %11790 = vmatprep.mubr.bf16.mxu0 %v11023
    %11791 = vmatmul.mubr.bf16.gmra.mxu0 %v11021
    %v11792 = vpop.f32.mrf.mxu0
    %v11793 = vadd.f32 %v11732, %v11792
    %v11794 = vpop.f32.mrf.mxu0
    %v11795 = vadd.f32 %v11734, %v11794
    %v11796 = vpop.f32.mrf.mxu0
    %v11797 = vpop.f32.mrf.mxu0
    %11798 = vdwg.mxu0
    %11799 = vmatprep.subr.bf16.mxu0 %v11452
    %11800 = vmatpush1.bf16.msra.mxu0 %v11451
    %11801 = vmatprep.subr.bf16.mxu0 %v11448
    %11802 = vmatpush1.bf16.msra.mxu0 %v11447
    %11803 = vmatprep.subr.bf16.mxu0 %v11444
    %11804 = vmatpush1.bf16.msra.mxu0 %v11443
    %11805 = vmatprep.subr.bf16.mxu0 %v11440
    %11806 = vmatpush1.bf16.msra.mxu0 %v11439
    %11807 = vmatprep.subr.bf16.mxu0 %v11436
    %11808 = vmatpush1.bf16.msra.mxu0 %v11435
    %11809 = vmatprep.subr.bf16.mxu0 %v11432
    %11810 = vmatpush1.bf16.msra.mxu0 %v11431
    %11811 = vmatprep.subr.bf16.mxu0 %v11428
    %11812 = vmatpush1.bf16.msra.mxu0 %v11427
    %11813 = vmatprep.subr.bf16.mxu0 %v11424
    %11814 = vmatpush1.bf16.msra.mxu0 %v11423
    %11815 = vmatprep.subr.bf16.mxu0 %v11484
    %11816 = vmatpush2.bf16.msra.mxu0 %v11483
    %11817 = vmatprep.subr.bf16.mxu0 %v11480
    %11818 = vmatpush2.bf16.msra.mxu0 %v11479
    %11819 = vmatprep.subr.bf16.mxu0 %v11476
    %11820 = vmatpush2.bf16.msra.mxu0 %v11475
    %11821 = vmatprep.subr.bf16.mxu0 %v11472
    %11822 = vmatpush2.bf16.msra.mxu0 %v11471
    %11823 = vmatprep.subr.bf16.mxu0 %v11468
    %11824 = vmatpush2.bf16.msra.mxu0 %v11467
    %11825 = vmatprep.subr.bf16.mxu0 %v11464
    %11826 = vmatpush2.bf16.msra.mxu0 %v11463
    %11827 = vmatprep.subr.bf16.mxu0 %v11460
    %11828 = vmatpush2.bf16.msra.mxu0 %v11459
    %11829 = vmatprep.subr.bf16.mxu0 %v11456
    %11830 = vmatpush2.bf16.msra.mxu0 %v11455
    %11831 = vmatprep.mubr.bf16.mxu0 %v11010
    %11832 = vmatmul.mubr.bf16.gmra.mxu0 %v11007
    %v11833 = vpop.f32.mrf.mxu0
    %v11834 = vadd.f32 0.0, %v11833
    %v11835 = vpop.f32.mrf.mxu0
    %v11836 = vadd.f32 0.0, %v11835
    %v11837 = vpop.f32.mrf.mxu0
    %v11838 = vadd.f32 0.0, %v11837
    %v11839 = vpop.f32.mrf.mxu0
    %v11840 = vadd.f32 0.0, %v11839
    %11841 = vmatprep.mubr.bf16.mxu0 %v11020
    %11842 = vmatmul.mubr.bf16.gmra.mxu0 %v11018
    %v11843 = vpop.f32.mrf.mxu0
    %v11844 = vadd.f32 0.0, %v11843
    %v11845 = vpop.f32.mrf.mxu0
    %v11846 = vadd.f32 0.0, %v11845
    %v11847 = vpop.f32.mrf.mxu0
    %v11848 = vadd.f32 0.0, %v11847
    %v11849 = vpop.f32.mrf.mxu0
    %v11850 = vadd.f32 0.0, %v11849
    %11851 = vmatprep.mubr.bf16.mxu0 %v11019
    %11852 = vmatmul.mubr.bf16.gmra.mxu0 %v11017
    %v11853 = vpop.f32.mrf.mxu0
    %v11854 = vadd.f32 0.0, %v11853
    %v11855 = vpop.f32.mrf.mxu0
    %v11856 = vadd.f32 0.0, %v11855
    %v11857 = vpop.f32.mrf.mxu0
    %v11858 = vpop.f32.mrf.mxu0
    %11859 = vdwg.mxu0
    %11860 = vmatprep.subr.bf16.mxu0 %v11516
    %11861 = vmatpush1.bf16.msra.mxu0 %v11515
    %11862 = vmatprep.subr.bf16.mxu0 %v11512
    %11863 = vmatpush1.bf16.msra.mxu0 %v11511
    %11864 = vmatprep.subr.bf16.mxu0 %v11508
    %11865 = vmatpush1.bf16.msra.mxu0 %v11507
    %11866 = vmatprep.subr.bf16.mxu0 %v11504
    %11867 = vmatpush1.bf16.msra.mxu0 %v11503
    %11868 = vmatprep.subr.bf16.mxu0 %v11500
    %11869 = vmatpush1.bf16.msra.mxu0 %v11499
    %11870 = vmatprep.subr.bf16.mxu0 %v11496
    %11871 = vmatpush1.bf16.msra.mxu0 %v11495
    %11872 = vmatprep.subr.bf16.mxu0 %v11492
    %11873 = vmatpush1.bf16.msra.mxu0 %v11491
    %11874 = vmatprep.subr.bf16.mxu0 %v11488
    %11875 = vmatpush1.bf16.msra.mxu0 %v11487
    %11876 = vmatprep.subr.bf16.mxu0 %v11548
    %11877 = vmatpush2.bf16.msra.mxu0 %v11547
    %11878 = vmatprep.subr.bf16.mxu0 %v11544
    %11879 = vmatpush2.bf16.msra.mxu0 %v11543
    %11880 = vmatprep.subr.bf16.mxu0 %v11540
    %11881 = vmatpush2.bf16.msra.mxu0 %v11539
    %11882 = vmatprep.subr.bf16.mxu0 %v11536
    %11883 = vmatpush2.bf16.msra.mxu0 %v11535
    %11884 = vmatprep.subr.bf16.mxu0 %v11532
    %11885 = vmatpush2.bf16.msra.mxu0 %v11531
    %11886 = vmatprep.subr.bf16.mxu0 %v11528
    %11887 = vmatpush2.bf16.msra.mxu0 %v11527
    %11888 = vmatprep.subr.bf16.mxu0 %v11524
    %11889 = vmatpush2.bf16.msra.mxu0 %v11523
    %11890 = vmatprep.subr.bf16.mxu0 %v11520
    %11891 = vmatpush2.bf16.msra.mxu0 %v11519
    %11892 = vmatprep.mubr.bf16.mxu0 %v11016
    %11893 = vmatmul.mubr.bf16.gmra.mxu0 %v11013
    %v11894 = vpop.f32.mrf.mxu0
    %v11895 = vadd.f32 %v11834, %v11894
    %v11896 = vpop.f32.mrf.mxu0
    %v11897 = vadd.f32 %v11836, %v11896
    %v11898 = vpop.f32.mrf.mxu0
    %v11899 = vadd.f32 %v11838, %v11898
    %v11900 = vpop.f32.mrf.mxu0
    %v11901 = vadd.f32 %v11840, %v11900
    %11902 = vmatprep.mubr.bf16.mxu0 %v11024
    %11903 = vmatmul.mubr.bf16.gmra.mxu0 %v11022
    %v11904 = vpop.f32.mrf.mxu0
    %v11905 = vadd.f32 %v11844, %v11904
    %v11906 = vpop.f32.mrf.mxu0
    %v11907 = vadd.f32 %v11846, %v11906
    %v11908 = vpop.f32.mrf.mxu0
    %v11909 = vadd.f32 %v11848, %v11908
    %v11910 = vpop.f32.mrf.mxu0
    %v11911 = vadd.f32 %v11850, %v11910
    %11912 = vmatprep.mubr.bf16.mxu0 %v11023
    %11913 = vmatmul.mubr.bf16.gmra.mxu0 %v11021
    %v11914 = vpop.f32.mrf.mxu0
    %v11915 = vadd.f32 %v11854, %v11914
    %v11916 = vpop.f32.mrf.mxu0
    %v11917 = vadd.f32 %v11856, %v11916
    %v11918 = vpop.f32.mrf.mxu0
    %v11919 = vpop.f32.mrf.mxu0
    %11920 = vdwg.mxu0
    %v11921 = vadd.f32 %v10700, %v11773
    %v11922 = vadd.f32 %v10702, %v11775
    %v11923 = vadd.f32 %v10822, %v11895
    %v11924 = vadd.f32 %v10824, %v11897
    %v11925 = vadd.f32 %v10704, %v11777
    %v11926 = vadd.f32 %v10706, %v11779
    %v11927 = vadd.f32 %v10826, %v11899
    %v11928 = vadd.f32 %v10828, %v11901
    %v11929 = vadd.f32 %v10710, %v11783
    %v11930 = vadd.f32 %v10712, %v11785
    %v11931 = vadd.f32 %v10832, %v11905
    %v11932 = vadd.f32 %v10834, %v11907
    %v11933 = vadd.f32 %v10714, %v11787
    %v11934 = vadd.f32 %v10716, %v11789
    %v11935 = vadd.f32 %v10836, %v11909
    %v11936 = vadd.f32 %v10838, %v11911
    %v11937 = vadd.f32 %v10720, %v11793
    %v11938 = vadd.f32 %v10722, %v11795
    %v11939 = vadd.f32 %v10842, %v11915
    %v11940 = vadd.f32 %v10844, %v11917
    %s11941 = scalar_lea.vmem [#allocation8], 16
    %v11942 = vld [vmem:[%s11941] sm:$0xf]
    %v11943 = vld [vmem:[#allocation3] sm:$0xff]
    %v11944 = vld [vmem:[#allocation3 + $0x8] sm:$0xff]
    %v11945 = vld [vmem:[#allocation3 + $0x10] sm:$0xff]
    %v11946 = vld [vmem:[#allocation3 + $0x18] sm:$0xff]
    %v11947 = vld [vmem:[#allocation3 + $0x20] sm:$0xff]
    %v11948 = vld [vmem:[#allocation3 + $0x28] sm:$0xff]
    %v11949 = vld [vmem:[#allocation3 + $0x30] sm:$0xff]
    %v11950 = vld [vmem:[#allocation3 + $0x38] sm:$0xff]
    %v11951 = vld [vmem:[#allocation3 + $0x40] sm:$0xff]
    %v11952 = vld [vmem:[#allocation3 + $0x48] sm:$0xff]
    %v11953 = vld [vmem:[#allocation3 + $0x50] sm:$0xff]
    %v11954 = vld [vmem:[#allocation3 + $0x58] sm:$0xff]
    %v11955 = vld [vmem:[#allocation3 + $0x60] sm:$0xff]
    %v11956 = vld [vmem:[#allocation3 + $0x68] sm:$0xff]
    %v11957 = vld [vmem:[#allocation3 + $0x70] sm:$0xff]
    %v11958 = vld [vmem:[#allocation3 + $0x78] sm:$0xff]
    %v11959 = vld [vmem:[#allocation3 + $0x80] sm:$0x3]
    %v11960 = vld [vmem:[#allocation3 + $0x88] sm:$0x3]
    %v11961 = vld [vmem:[#allocation3 + $0x90] sm:$0x3]
    %v11962 = vld [vmem:[#allocation3 + $0x98] sm:$0x3]
    %v11964 = vlaneseq
    %v11965 = vshrl.u32 %v11964, 7
    %v11966 = vsub.s32 0, %v11965
    %v11967 = vrot.slane %v11942, %v11966
    %v11968 = vlaneseq
    %v11969 = vshrl.u32 %v11968, 7
    %v11970 = vsub.s32 1, %v11969
    %v11971 = vrot.slane %v11942, %v11970
    %v11972 = vlaneseq
    %v11973 = vshrl.u32 %v11972, 7
    %v11974 = vsub.s32 2, %v11973
    %v11975 = vrot.slane %v11942, %v11974
    %v11976 = vlaneseq
    %v11977 = vshrl.u32 %v11976, 7
    %v11978 = vsub.s32 3, %v11977
    %v11979 = vrot.slane %v11942, %v11978
    %v11984 = vadd.f32 %v11921, %v11967
    %v11985 = vadd.f32 %v11922, %v11971
    %v11986 = vadd.f32 %v11923, %v11975
    %v11987 = vadd.f32 %v11924, %v11979
    %v11988 = vadd.f32 %v11925, %v11967
    %v11989 = vadd.f32 %v11926, %v11971
    %v11990 = vadd.f32 %v11927, %v11975
    %v11991 = vadd.f32 %v11928, %v11979
    %v11992 = vadd.f32 %v11929, %v11967
    %v11993 = vadd.f32 %v11930, %v11971
    %v11994 = vadd.f32 %v11931, %v11975
    %v11995 = vadd.f32 %v11932, %v11979
    %v11996 = vadd.f32 %v11933, %v11967
    %v11997 = vadd.f32 %v11934, %v11971
    %v11998 = vadd.f32 %v11935, %v11975
    %v11999 = vadd.f32 %v11936, %v11979
    %v12000 = vadd.f32 %v11937, %v11967
    %v12001 = vadd.f32 %v11938, %v11971
    %v12002 = vadd.f32 %v11939, %v11975
    %v12003 = vadd.f32 %v11940, %v11979
    %v12004 = vadd.f32 %v11984, %v11943
    %v12005 = vadd.f32 %v11985, %v11944
    %v12006 = vadd.f32 %v11986, %v11945
    %v12007 = vadd.f32 %v11987, %v11946
    %v12008 = vadd.f32 %v11988, %v11947
    %v12009 = vadd.f32 %v11989, %v11948
    %v12010 = vadd.f32 %v11990, %v11949
    %v12011 = vadd.f32 %v11991, %v11950
    %v12012 = vadd.f32 %v11992, %v11951
    %v12013 = vadd.f32 %v11993, %v11952
    %v12014 = vadd.f32 %v11994, %v11953
    %v12015 = vadd.f32 %v11995, %v11954
    %v12016 = vadd.f32 %v11996, %v11955
    %v12017 = vadd.f32 %v11997, %v11956
    %v12018 = vadd.f32 %v11998, %v11957
    %v12019 = vadd.f32 %v11999, %v11958
    %v12020 = vadd.f32 %v12000, %v11959
    %v12021 = vadd.f32 %v12001, %v11960
    %v12022 = vadd.f32 %v12002, %v11961
    %v12023 = vadd.f32 %v12003, %v11962
    %v12024 = vmax.f32 %v12004, 0.0
    %v12025 = vmax.f32 %v12005, 0.0
    %v12026 = vmax.f32 %v12006, 0.0
    %v12027 = vmax.f32 %v12007, 0.0
    %v12028 = vmax.f32 %v12008, 0.0
    %v12029 = vmax.f32 %v12009, 0.0
    %v12030 = vmax.f32 %v12010, 0.0
    %v12031 = vmax.f32 %v12011, 0.0
    %v12032 = vmax.f32 %v12012, 0.0
    %v12033 = vmax.f32 %v12013, 0.0
    %v12034 = vmax.f32 %v12014, 0.0
    %v12035 = vmax.f32 %v12015, 0.0
    %v12036 = vmax.f32 %v12016, 0.0
    %v12037 = vmax.f32 %v12017, 0.0
    %v12038 = vmax.f32 %v12018, 0.0
    %v12039 = vmax.f32 %v12019, 0.0
    %v12040 = vmax.f32 %v12020, 0.0
    %v12041 = vmax.f32 %v12021, 0.0
    %v12042 = vmax.f32 %v12022, 0.0
    %v12043 = vmax.f32 %v12023, 0.0
    %v12064 = vrot.slane %v12024, 7
    %v12065 = vrot.slane %v12025, 7
    %v12066 = vrot.slane %v12026, 7
    %v12067 = vrot.slane %v12027, 7
    %v12068 = vrot.slane %v12028, 7
    %v12069 = vsel %vm1660, %v12064, %v12068
    %v12070 = vrot.slane %v12029, 7
    %v12071 = vsel %vm1660, %v12065, %v12070
    %v12072 = vrot.slane %v12030, 7
    %v12073 = vsel %vm1660, %v12066, %v12072
    %v12074 = vrot.slane %v12031, 7
    %v12075 = vsel %vm1660, %v12067, %v12074
    %v12076 = vrot.slane %v12032, 7
    %v12077 = vsel %vm1660, %v12068, %v12076
    %v12078 = vrot.slane %v12033, 7
    %v12079 = vsel %vm1660, %v12070, %v12078
    %v12080 = vrot.slane %v12034, 7
    %v12081 = vsel %vm1660, %v12072, %v12080
    %v12082 = vrot.slane %v12035, 7
    %v12083 = vsel %vm1660, %v12074, %v12082
    %v12084 = vrot.slane %v12036, 7
    %v12085 = vsel %vm1660, %v12076, %v12084
    %v12086 = vrot.slane %v12037, 7
    %v12087 = vsel %vm1660, %v12078, %v12086
    %v12088 = vrot.slane %v12038, 7
    %v12089 = vsel %vm1660, %v12080, %v12088
    %v12090 = vrot.slane %v12039, 7
    %v12091 = vsel %vm1660, %v12082, %v12090
    %v12092 = vrot.slane %v12040, 7
    %v12093 = vsel %vm1660, %v12084, %v12092
    %v12094 = vrot.slane %v12041, 7
    %v12095 = vsel %vm1660, %v12086, %v12094
    %v12096 = vrot.slane %v12042, 7
    %v12097 = vsel %vm1660, %v12088, %v12096
    %v12098 = vrot.slane %v12043, 7
    %v12099 = vsel %vm1660, %v12090, %v12098
    %12120 = vst [vmem:[#allocation2] sm:$0xfe] %v12064
    %12121 = vst [vmem:[#allocation2 + $0x8] sm:$0xfe] %v12065
    %12122 = vst [vmem:[#allocation2 + $0x10] sm:$0xfe] %v12066
    %12123 = vst [vmem:[#allocation2 + $0x18] sm:$0xfe] %v12067
    %12124 = vst [vmem:[#allocation2 + $0x20] sm:$0xff] %v12069
    %12125 = vst [vmem:[#allocation2 + $0x28] sm:$0xff] %v12071
    %12126 = vst [vmem:[#allocation2 + $0x30] sm:$0xff] %v12073
    %12127 = vst [vmem:[#allocation2 + $0x38] sm:$0xff] %v12075
    %12128 = vst [vmem:[#allocation2 + $0x40] sm:$0xff] %v12077
    %12129 = vst [vmem:[#allocation2 + $0x48] sm:$0xff] %v12079
    %12130 = vst [vmem:[#allocation2 + $0x50] sm:$0xff] %v12081
    %12131 = vst [vmem:[#allocation2 + $0x58] sm:$0xff] %v12083
    %12132 = vst [vmem:[#allocation2 + $0x60] sm:$0xff] %v12085
    %12133 = vst [vmem:[#allocation2 + $0x68] sm:$0xff] %v12087
    %12134 = vst [vmem:[#allocation2 + $0x70] sm:$0xff] %v12089
    %12135 = vst [vmem:[#allocation2 + $0x78] sm:$0xff] %v12091
    %12136 = vst [vmem:[#allocation2 + $0x80] sm:$0x7] %v12093
    %12137 = vst [vmem:[#allocation2 + $0x88] sm:$0x7] %v12095
    %12138 = vst [vmem:[#allocation2 + $0x90] sm:$0x7] %v12097
    %12139 = vst [vmem:[#allocation2 + $0x98] sm:$0x7] %v12099
    %12140 = vst [vmem:[#allocation2 + $0x40] sm:$0x6] 0.0
    %12141 = vst [vmem:[#allocation2 + $0x48] sm:$0x6] 0.0
    %12142 = vst [vmem:[#allocation2 + $0x50] sm:$0x6] 0.0
    %12143 = vst [vmem:[#allocation2 + $0x58] sm:$0x6] 0.0
    %v12144 = vld [vmem:[#allocation2] sm:$0xff]
    %v12145 = vld [vmem:[#allocation2 + $0x8] sm:$0xff]
    %v12146 = vld [vmem:[#allocation2 + $0x10] sm:$0xff]
    %v12147 = vld [vmem:[#allocation2 + $0x18] sm:$0xff]
    %v12148 = vld [vmem:[#allocation2 + $0x20] sm:$0xff]
    %v12149 = vld [vmem:[#allocation2 + $0x28] sm:$0xff]
    %v12150 = vld [vmem:[#allocation2 + $0x30] sm:$0xff]
    %v12151 = vld [vmem:[#allocation2 + $0x38] sm:$0xff]
    %v12152 = vld [vmem:[#allocation2 + $0x40] sm:$0xff]
    %v12153 = vld [vmem:[#allocation2 + $0x48] sm:$0xff]
    %v12154 = vld [vmem:[#allocation2 + $0x50] sm:$0xff]
    %v12155 = vld [vmem:[#allocation2 + $0x58] sm:$0xff]
    %v12156 = vld [vmem:[#allocation2 + $0x60] sm:$0xff]
    %v12157 = vld [vmem:[#allocation2 + $0x68] sm:$0xff]
    %v12158 = vld [vmem:[#allocation2 + $0x70] sm:$0xff]
    %v12159 = vld [vmem:[#allocation2 + $0x78] sm:$0xff]
    %v12160 = vld [vmem:[#allocation2 + $0x80] sm:$0x3]
    %v12161 = vld [vmem:[#allocation2 + $0x88] sm:$0x3]
    %v12162 = vld [vmem:[#allocation2 + $0x90] sm:$0x3]
    %v12163 = vld [vmem:[#allocation2 + $0x98] sm:$0x3]
    %v12164 = vpack.c.bf16 %v12148, %v12144
    %v12165 = vpack.c.bf16 %v12149, %v12145
    %v12166 = vpack.c.bf16 %v12150, %v12146
    %v12167 = vpack.c.bf16 %v12151, %v12147
    %v12168 = vpack.c.bf16 %v12156, %v12152
    %v12169 = vpack.c.bf16 %v12157, %v12153
    %v12170 = vpack.c.bf16 %v12158, %v12154
    %v12171 = vpack.c.bf16 %v12159, %v12155
    %v12172 = vpack.c.bf16 %v12160, %v12160
    %v12173 = vpack.c.bf16 %v12161, %v12161
    %v12174 = vpack.c.bf16 %v12162, %v12162
    %v12175 = vpack.c.bf16 %v12163, %v12163
    %v12176 = vld [vmem:[#allocation9] sm:$0xf]
    %v12177 = vld [vmem:[#allocation9 + $0x4] sm:$0xf]
    %v12178 = vld [vmem:[#allocation9 + $0x8] sm:$0xf]
    %v12179 = vld [vmem:[#allocation9 + $0xc] sm:$0xf]
    %v12180 = vld [vmem:[#allocation9 + $0x10] sm:$0xf]
    %v12181 = vld [vmem:[#allocation9 + $0x14] sm:$0xf]
    %v12182 = vld [vmem:[#allocation9 + $0x18] sm:$0xf]
    %v12183 = vld [vmem:[#allocation9 + $0x1c] sm:$0xf]
    %v12184 = vld [vmem:[#allocation9 + $0x20] sm:$0xf]
    %v12185 = vld [vmem:[#allocation9 + $0x24] sm:$0xf]
    %v12186 = vld [vmem:[#allocation9 + $0x28] sm:$0xf]
    %v12187 = vld [vmem:[#allocation9 + $0x2c] sm:$0xf]
    %v12188 = vld [vmem:[#allocation9 + $0x30] sm:$0xf]
    %v12189 = vld [vmem:[#allocation9 + $0x34] sm:$0xf]
    %v12190 = vld [vmem:[#allocation9 + $0x38] sm:$0xf]
    %v12191 = vld [vmem:[#allocation9 + $0x3c] sm:$0xf]
    %v12192 = vld [vmem:[#allocation9 + $0x40] sm:$0xf]
    %v12193 = vld [vmem:[#allocation9 + $0x44] sm:$0xf]
    %v12194 = vld [vmem:[#allocation9 + $0x48] sm:$0xf]
    %v12195 = vld [vmem:[#allocation9 + $0x4c] sm:$0xf]
    %v12196 = vld [vmem:[#allocation9 + $0x50] sm:$0xf]
    %v12197 = vld [vmem:[#allocation9 + $0x54] sm:$0xf]
    %v12198 = vld [vmem:[#allocation9 + $0x58] sm:$0xf]
    %v12199 = vld [vmem:[#allocation9 + $0x5c] sm:$0xf]
    %v12200 = vld [vmem:[#allocation9 + $0x60] sm:$0xf]
    %v12201 = vld [vmem:[#allocation9 + $0x64] sm:$0xf]
    %v12202 = vld [vmem:[#allocation9 + $0x68] sm:$0xf]
    %v12203 = vld [vmem:[#allocation9 + $0x6c] sm:$0xf]
    %v12204 = vld [vmem:[#allocation9 + $0x70] sm:$0xf]
    %v12205 = vld [vmem:[#allocation9 + $0x74] sm:$0xf]
    %v12206 = vld [vmem:[#allocation9 + $0x78] sm:$0xf]
    %v12207 = vld [vmem:[#allocation9 + $0x7c] sm:$0xf]
    %v12208 = vld [vmem:[#allocation9 + $0x80] sm:$0xf]
    %v12209 = vld [vmem:[#allocation9 + $0x84] sm:$0xf]
    %v12210 = vld [vmem:[#allocation9 + $0x88] sm:$0xf]
    %v12211 = vld [vmem:[#allocation9 + $0x8c] sm:$0xf]
    %v12212 = vld [vmem:[#allocation9 + $0x90] sm:$0xf]
    %v12213 = vld [vmem:[#allocation9 + $0x94] sm:$0xf]
    %v12214 = vld [vmem:[#allocation9 + $0x98] sm:$0xf]
    %v12215 = vld [vmem:[#allocation9 + $0x9c] sm:$0xf]
    %v12216 = vld [vmem:[#allocation9 + $0xa0] sm:$0xf]
    %v12217 = vld [vmem:[#allocation9 + $0xa4] sm:$0xf]
    %v12218 = vld [vmem:[#allocation9 + $0xa8] sm:$0xf]
    %v12219 = vld [vmem:[#allocation9 + $0xac] sm:$0xf]
    %v12220 = vld [vmem:[#allocation9 + $0xb0] sm:$0xf]
    %v12221 = vld [vmem:[#allocation9 + $0xb4] sm:$0xf]
    %v12222 = vld [vmem:[#allocation9 + $0xb8] sm:$0xf]
    %v12223 = vld [vmem:[#allocation9 + $0xbc] sm:$0xf]
    %v12224 = vld [vmem:[#allocation9 + $0xc0] sm:$0xf]
    %v12225 = vld [vmem:[#allocation9 + $0xc4] sm:$0xf]
    %v12226 = vld [vmem:[#allocation9 + $0xc8] sm:$0xf]
    %v12227 = vld [vmem:[#allocation9 + $0xcc] sm:$0xf]
    %v12228 = vld [vmem:[#allocation9 + $0xd0] sm:$0xf]
    %v12229 = vld [vmem:[#allocation9 + $0xd4] sm:$0xf]
    %v12230 = vld [vmem:[#allocation9 + $0xd8] sm:$0xf]
    %v12231 = vld [vmem:[#allocation9 + $0xdc] sm:$0xf]
    %v12232 = vld [vmem:[#allocation9 + $0xe0] sm:$0xf]
    %v12233 = vld [vmem:[#allocation9 + $0xe4] sm:$0xf]
    %v12234 = vld [vmem:[#allocation9 + $0xe8] sm:$0xf]
    %v12235 = vld [vmem:[#allocation9 + $0xec] sm:$0xf]
    %v12236 = vld [vmem:[#allocation9 + $0xf0] sm:$0xf]
    %v12237 = vld [vmem:[#allocation9 + $0xf4] sm:$0xf]
    %v12238 = vld [vmem:[#allocation9 + $0xf8] sm:$0xf]
    %v12239 = vld [vmem:[#allocation9 + $0xfc] sm:$0xf]
    %v12240 = vld [vmem:[#allocation2] sm:$0xfe]
    %v12241 = vld [vmem:[#allocation2 + $0x8] sm:$0xfe]
    %v12242 = vld [vmem:[#allocation2 + $0x10] sm:$0xfe]
    %v12243 = vld [vmem:[#allocation2 + $0x18] sm:$0xfe]
    %v12244 = vld [vmem:[#allocation2 + $0x80] sm:$0x7]
    %v12245 = vld [vmem:[#allocation2 + $0x88] sm:$0x7]
    %v12246 = vld [vmem:[#allocation2 + $0x90] sm:$0x7]
    %v12247 = vld [vmem:[#allocation2 + $0x98] sm:$0x7]
    %v12248 = vpack.c.bf16 %v12148, %v12240
    %v12249 = vpack.c.bf16 %v12149, %v12241
    %v12250 = vpack.c.bf16 %v12150, %v12242
    %v12251 = vpack.c.bf16 %v12151, %v12243
    %v12252 = vpack.c.bf16 %v12244, %v12244
    %v12253 = vpack.c.bf16 %v12245, %v12245
    %v12254 = vpack.c.bf16 %v12246, %v12246
    %v12255 = vpack.c.bf16 %v12247, %v12247
    %s12256 = scalar_lea.vmem [#allocation9], 256
    %v12257 = vld [vmem:[%s12256] sm:$0xf]
    %v12258 = vld [vmem:[%s12256 + $0x4] sm:$0xf]
    %v12259 = vld [vmem:[%s12256 + $0x8] sm:$0xf]
    %v12260 = vld [vmem:[%s12256 + $0xc] sm:$0xf]
    %v12261 = vld [vmem:[%s12256 + $0x10] sm:$0xf]
    %v12262 = vld [vmem:[%s12256 + $0x14] sm:$0xf]
    %v12263 = vld [vmem:[%s12256 + $0x18] sm:$0xf]
    %v12264 = vld [vmem:[%s12256 + $0x1c] sm:$0xf]
    %v12265 = vld [vmem:[%s12256 + $0x20] sm:$0xf]
    %v12266 = vld [vmem:[%s12256 + $0x24] sm:$0xf]
    %v12267 = vld [vmem:[%s12256 + $0x28] sm:$0xf]
    %v12268 = vld [vmem:[%s12256 + $0x2c] sm:$0xf]
    %v12269 = vld [vmem:[%s12256 + $0x30] sm:$0xf]
    %v12270 = vld [vmem:[%s12256 + $0x34] sm:$0xf]
    %v12271 = vld [vmem:[%s12256 + $0x38] sm:$0xf]
    %v12272 = vld [vmem:[%s12256 + $0x3c] sm:$0xf]
    %v12273 = vld [vmem:[%s12256 + $0x40] sm:$0xf]
    %v12274 = vld [vmem:[%s12256 + $0x44] sm:$0xf]
    %v12275 = vld [vmem:[%s12256 + $0x48] sm:$0xf]
    %v12276 = vld [vmem:[%s12256 + $0x4c] sm:$0xf]
    %v12277 = vld [vmem:[%s12256 + $0x50] sm:$0xf]
    %v12278 = vld [vmem:[%s12256 + $0x54] sm:$0xf]
    %v12279 = vld [vmem:[%s12256 + $0x58] sm:$0xf]
    %v12280 = vld [vmem:[%s12256 + $0x5c] sm:$0xf]
    %v12281 = vld [vmem:[%s12256 + $0x60] sm:$0xf]
    %v12282 = vld [vmem:[%s12256 + $0x64] sm:$0xf]
    %v12283 = vld [vmem:[%s12256 + $0x68] sm:$0xf]
    %v12284 = vld [vmem:[%s12256 + $0x6c] sm:$0xf]
    %v12285 = vld [vmem:[%s12256 + $0x70] sm:$0xf]
    %v12286 = vld [vmem:[%s12256 + $0x74] sm:$0xf]
    %v12287 = vld [vmem:[%s12256 + $0x78] sm:$0xf]
    %v12288 = vld [vmem:[%s12256 + $0x7c] sm:$0xf]
    %v12289 = vld [vmem:[%s12256 + $0x80] sm:$0xf]
    %v12290 = vld [vmem:[%s12256 + $0x84] sm:$0xf]
    %v12291 = vld [vmem:[%s12256 + $0x88] sm:$0xf]
    %v12292 = vld [vmem:[%s12256 + $0x8c] sm:$0xf]
    %v12293 = vld [vmem:[%s12256 + $0x90] sm:$0xf]
    %v12294 = vld [vmem:[%s12256 + $0x94] sm:$0xf]
    %v12295 = vld [vmem:[%s12256 + $0x98] sm:$0xf]
    %v12296 = vld [vmem:[%s12256 + $0x9c] sm:$0xf]
    %v12297 = vld [vmem:[%s12256 + $0xa0] sm:$0xf]
    %v12298 = vld [vmem:[%s12256 + $0xa4] sm:$0xf]
    %v12299 = vld [vmem:[%s12256 + $0xa8] sm:$0xf]
    %v12300 = vld [vmem:[%s12256 + $0xac] sm:$0xf]
    %v12301 = vld [vmem:[%s12256 + $0xb0] sm:$0xf]
    %v12302 = vld [vmem:[%s12256 + $0xb4] sm:$0xf]
    %v12303 = vld [vmem:[%s12256 + $0xb8] sm:$0xf]
    %v12304 = vld [vmem:[%s12256 + $0xbc] sm:$0xf]
    %v12305 = vld [vmem:[%s12256 + $0xc0] sm:$0xf]
    %v12306 = vld [vmem:[%s12256 + $0xc4] sm:$0xf]
    %v12307 = vld [vmem:[%s12256 + $0xc8] sm:$0xf]
    %v12308 = vld [vmem:[%s12256 + $0xcc] sm:$0xf]
    %v12309 = vld [vmem:[%s12256 + $0xd0] sm:$0xf]
    %v12310 = vld [vmem:[%s12256 + $0xd4] sm:$0xf]
    %v12311 = vld [vmem:[%s12256 + $0xd8] sm:$0xf]
    %v12312 = vld [vmem:[%s12256 + $0xdc] sm:$0xf]
    %v12313 = vld [vmem:[%s12256 + $0xe0] sm:$0xf]
    %v12314 = vld [vmem:[%s12256 + $0xe4] sm:$0xf]
    %v12315 = vld [vmem:[%s12256 + $0xe8] sm:$0xf]
    %v12316 = vld [vmem:[%s12256 + $0xec] sm:$0xf]
    %v12317 = vld [vmem:[%s12256 + $0xf0] sm:$0xf]
    %v12318 = vld [vmem:[%s12256 + $0xf4] sm:$0xf]
    %v12319 = vld [vmem:[%s12256 + $0xf8] sm:$0xf]
    %v12320 = vld [vmem:[%s12256 + $0xfc] sm:$0xf]
    %v12322 = vshrl.u32 %v12248, 16
    %v12324 = vshll.u32 %v12248, 16
    %v12326 = vrot.slane %v12324, 1
    %v12327 = vor.u32 %v12322, %v12326
    %v12329 = vshll.u32 %v12168, 16
    %v12331 = vrot.slane %v12329, 1
    %v12332 = vsel %vm2046, %v12327, %v12331
    %v12334 = vshrl.u32 %v12249, 16
    %v12336 = vshll.u32 %v12249, 16
    %v12338 = vrot.slane %v12336, 1
    %v12339 = vor.u32 %v12334, %v12338
    %v12341 = vshll.u32 %v12169, 16
    %v12343 = vrot.slane %v12341, 1
    %v12344 = vsel %vm2046, %v12339, %v12343
    %v12346 = vshrl.u32 %v12250, 16
    %v12348 = vshll.u32 %v12250, 16
    %v12350 = vrot.slane %v12348, 1
    %v12351 = vor.u32 %v12346, %v12350
    %v12353 = vshll.u32 %v12170, 16
    %v12355 = vrot.slane %v12353, 1
    %v12356 = vsel %vm2046, %v12351, %v12355
    %v12358 = vshrl.u32 %v12251, 16
    %v12360 = vshll.u32 %v12251, 16
    %v12362 = vrot.slane %v12360, 1
    %v12363 = vor.u32 %v12358, %v12362
    %v12365 = vshll.u32 %v12171, 16
    %v12367 = vrot.slane %v12365, 1
    %v12368 = vsel %vm2046, %v12363, %v12367
    %v12369 = vshrl.u32 %v12168, 16
    %v12371 = vor.u32 %v12369, %v12331
    %v12373 = vshll.u32 %v12252, 16
    %v12375 = vrot.slane %v12373, 1
    %v12376 = vsel %vm2046, %v12371, %v12375
    %v12377 = vshrl.u32 %v12169, 16
    %v12379 = vor.u32 %v12377, %v12343
    %v12381 = vshll.u32 %v12253, 16
    %v12383 = vrot.slane %v12381, 1
    %v12384 = vsel %vm2046, %v12379, %v12383
    %v12385 = vshrl.u32 %v12170, 16
    %v12387 = vor.u32 %v12385, %v12355
    %v12389 = vshll.u32 %v12254, 16
    %v12391 = vrot.slane %v12389, 1
    %v12392 = vsel %vm2046, %v12387, %v12391
    %v12393 = vshrl.u32 %v12171, 16
    %v12395 = vor.u32 %v12393, %v12367
    %v12397 = vshll.u32 %v12255, 16
    %v12399 = vrot.slane %v12397, 1
    %v12400 = vsel %vm2046, %v12395, %v12399
    %v12401 = vshrl.u32 %v12252, 16
    %v12403 = vor.u32 %v12401, %v12375
    %v12404 = vshrl.u32 %v12253, 16
    %v12406 = vor.u32 %v12404, %v12383
    %v12407 = vshrl.u32 %v12254, 16
    %v12409 = vor.u32 %v12407, %v12391
    %v12410 = vshrl.u32 %v12255, 16
    %v12412 = vor.u32 %v12410, %v12399
    %v12489 = vunpack.c.l.b16 %v12257
    %v12490 = vunpack.c.l.b16 %v12258
    %v12491 = vunpack.c.l.b16 %v12259
    %v12492 = vunpack.c.l.b16 %v12260
    %v12493 = vunpack.c.l.b16 %v12261
    %v12494 = vunpack.c.l.b16 %v12262
    %v12495 = vunpack.c.l.b16 %v12263
    %v12496 = vunpack.c.l.b16 %v12264
    %v12497 = vunpack.c.l.b16 %v12265
    %v12498 = vunpack.c.l.b16 %v12266
    %v12499 = vunpack.c.l.b16 %v12267
    %v12500 = vunpack.c.l.b16 %v12268
    %v12501 = vunpack.c.l.b16 %v12269
    %v12502 = vunpack.c.l.b16 %v12270
    %v12503 = vunpack.c.l.b16 %v12271
    %v12504 = vunpack.c.l.b16 %v12272
    %v12505 = vunpack.c.l.b16 %v12273
    %v12506 = vunpack.c.l.b16 %v12274
    %v12507 = vunpack.c.l.b16 %v12275
    %v12508 = vunpack.c.l.b16 %v12276
    %v12509 = vunpack.c.l.b16 %v12277
    %v12510 = vunpack.c.l.b16 %v12278
    %v12511 = vunpack.c.l.b16 %v12279
    %v12512 = vunpack.c.l.b16 %v12280
    %v12513 = vunpack.c.l.b16 %v12281
    %v12514 = vunpack.c.l.b16 %v12282
    %v12515 = vunpack.c.l.b16 %v12283
    %v12516 = vunpack.c.l.b16 %v12284
    %v12517 = vunpack.c.l.b16 %v12285
    %v12518 = vunpack.c.l.b16 %v12286
    %v12519 = vunpack.c.l.b16 %v12287
    %v12520 = vunpack.c.l.b16 %v12288
    %v12521 = vunpack.c.l.b16 %v12289
    %v12522 = vunpack.c.l.b16 %v12290
    %v12523 = vunpack.c.l.b16 %v12291
    %v12524 = vunpack.c.l.b16 %v12292
    %v12525 = vunpack.c.l.b16 %v12293
    %v12526 = vunpack.c.l.b16 %v12294
    %v12527 = vunpack.c.l.b16 %v12295
    %v12528 = vunpack.c.l.b16 %v12296
    %v12529 = vunpack.c.l.b16 %v12297
    %v12530 = vunpack.c.l.b16 %v12298
    %v12531 = vunpack.c.l.b16 %v12299
    %v12532 = vunpack.c.l.b16 %v12300
    %v12533 = vunpack.c.l.b16 %v12301
    %v12534 = vunpack.c.l.b16 %v12302
    %v12535 = vunpack.c.l.b16 %v12303
    %v12536 = vunpack.c.l.b16 %v12304
    %v12537 = vunpack.c.l.b16 %v12305
    %v12538 = vunpack.c.l.b16 %v12306
    %v12539 = vunpack.c.l.b16 %v12307
    %v12540 = vunpack.c.l.b16 %v12308
    %v12541 = vunpack.c.l.b16 %v12309
    %v12542 = vunpack.c.l.b16 %v12310
    %v12543 = vunpack.c.l.b16 %v12311
    %v12544 = vunpack.c.l.b16 %v12312
    %v12545 = vunpack.c.l.b16 %v12313
    %v12546 = vunpack.c.l.b16 %v12314
    %v12547 = vunpack.c.l.b16 %v12315
    %v12548 = vunpack.c.l.b16 %v12316
    %v12549 = vunpack.c.l.b16 %v12317
    %v12550 = vunpack.c.l.b16 %v12318
    %v12551 = vunpack.c.l.b16 %v12319
    %v12552 = vunpack.c.l.b16 %v12320
    %v12553 = vpack.c.b16 %v12490, %v12489
    %v12554 = vpack.c.b16 %v12492, %v12491
    %v12555 = vpack.c.b16 %v12494, %v12493
    %v12556 = vpack.c.b16 %v12496, %v12495
    %v12557 = vpack.c.b16 %v12498, %v12497
    %v12558 = vpack.c.b16 %v12500, %v12499
    %v12559 = vpack.c.b16 %v12502, %v12501
    %v12560 = vpack.c.b16 %v12504, %v12503
    %v12561 = vpack.c.b16 %v12506, %v12505
    %v12562 = vpack.c.b16 %v12508, %v12507
    %v12563 = vpack.c.b16 %v12510, %v12509
    %v12564 = vpack.c.b16 %v12512, %v12511
    %v12565 = vpack.c.b16 %v12514, %v12513
    %v12566 = vpack.c.b16 %v12516, %v12515
    %v12567 = vpack.c.b16 %v12518, %v12517
    %v12568 = vpack.c.b16 %v12520, %v12519
    %v12569 = vpack.c.b16 %v12522, %v12521
    %v12570 = vpack.c.b16 %v12524, %v12523
    %v12571 = vpack.c.b16 %v12526, %v12525
    %v12572 = vpack.c.b16 %v12528, %v12527
    %v12573 = vpack.c.b16 %v12530, %v12529
    %v12574 = vpack.c.b16 %v12532, %v12531
    %v12575 = vpack.c.b16 %v12534, %v12533
    %v12576 = vpack.c.b16 %v12536, %v12535
    %v12577 = vpack.c.b16 %v12538, %v12537
    %v12578 = vpack.c.b16 %v12540, %v12539
    %v12579 = vpack.c.b16 %v12542, %v12541
    %v12580 = vpack.c.b16 %v12544, %v12543
    %v12581 = vpack.c.b16 %v12546, %v12545
    %v12582 = vpack.c.b16 %v12548, %v12547
    %v12583 = vpack.c.b16 %v12550, %v12549
    %v12584 = vpack.c.b16 %v12552, %v12551
    %12617 = vmatprep.subr.bf16.mxu0 0
    %12618 = vmatpush1.bf16.msra.mxu0 %v12560
    %12619 = vmatprep.subr.bf16.mxu0 0
    %12620 = vmatpush1.bf16.msra.mxu0 %v12559
    %12621 = vmatprep.subr.bf16.mxu0 0
    %12622 = vmatpush1.bf16.msra.mxu0 %v12558
    %12623 = vmatprep.subr.bf16.mxu0 0
    %12624 = vmatpush1.bf16.msra.mxu0 %v12557
    %12625 = vmatprep.subr.bf16.mxu0 0
    %12626 = vmatpush1.bf16.msra.mxu0 %v12556
    %12627 = vmatprep.subr.bf16.mxu0 0
    %12628 = vmatpush1.bf16.msra.mxu0 %v12555
    %12629 = vmatprep.subr.bf16.mxu0 0
    %12630 = vmatpush1.bf16.msra.mxu0 %v12554
    %12631 = vmatprep.subr.bf16.mxu0 0
    %12632 = vmatpush1.bf16.msra.mxu0 %v12553
    %12633 = vmatprep.subr.bf16.mxu0 0
    %12634 = vmatpush2.bf16.msra.mxu0 %v12568
    %12635 = vmatprep.subr.bf16.mxu0 0
    %12636 = vmatpush2.bf16.msra.mxu0 %v12567
    %12637 = vmatprep.subr.bf16.mxu0 0
    %12638 = vmatpush2.bf16.msra.mxu0 %v12566
    %12639 = vmatprep.subr.bf16.mxu0 0
    %12640 = vmatpush2.bf16.msra.mxu0 %v12565
    %12641 = vmatprep.subr.bf16.mxu0 0
    %12642 = vmatpush2.bf16.msra.mxu0 %v12564
    %12643 = vmatprep.subr.bf16.mxu0 0
    %12644 = vmatpush2.bf16.msra.mxu0 %v12563
    %12645 = vmatprep.subr.bf16.mxu0 0
    %12646 = vmatpush2.bf16.msra.mxu0 %v12562
    %12647 = vmatprep.subr.bf16.mxu0 0
    %12648 = vmatpush2.bf16.msra.mxu0 %v12561
    %12649 = vmatprep.mubr.bf16.mxu0 %v12344
    %12650 = vmatmul.mubr.bf16.gmra.mxu0 %v12332
    %v12651 = vpop.f32.mrf.mxu0
    %v12652 = vadd.f32 0.0, %v12651
    %v12653 = vpop.f32.mrf.mxu0
    %v12654 = vpop.f32.mrf.mxu0
    %v12655 = vadd.f32 0.0, %v12654
    %v12656 = vpop.f32.mrf.mxu0
    %12657 = vmatprep.mubr.bf16.mxu0 %v12384
    %12658 = vmatmul.mubr.bf16.gmra.mxu0 %v12376
    %v12659 = vpop.f32.mrf.mxu0
    %v12660 = vadd.f32 0.0, %v12659
    %v12661 = vpop.f32.mrf.mxu0
    %v12662 = vpop.f32.mrf.mxu0
    %v12663 = vadd.f32 0.0, %v12662
    %v12664 = vpop.f32.mrf.mxu0
    %12665 = vmatprep.mubr.bf16.mxu0 %v12406
    %12666 = vmatmul.mubr.bf16.gmra.mxu0 %v12403
    %v12667 = vpop.f32.mrf.mxu0
    %v12668 = vadd.f32 0.0, %v12667
    %v12669 = vpop.f32.mrf.mxu0
    %v12670 = vpop.f32.mrf.mxu0
    %v12671 = vpop.f32.mrf.mxu0
    %12672 = vdwg.mxu0
    %12673 = vmatprep.subr.bf16.mxu0 0
    %12674 = vmatpush1.bf16.msra.mxu0 %v12576
    %12675 = vmatprep.subr.bf16.mxu0 0
    %12676 = vmatpush1.bf16.msra.mxu0 %v12575
    %12677 = vmatprep.subr.bf16.mxu0 0
    %12678 = vmatpush1.bf16.msra.mxu0 %v12574
    %12679 = vmatprep.subr.bf16.mxu0 0
    %12680 = vmatpush1.bf16.msra.mxu0 %v12573
    %12681 = vmatprep.subr.bf16.mxu0 0
    %12682 = vmatpush1.bf16.msra.mxu0 %v12572
    %12683 = vmatprep.subr.bf16.mxu0 0
    %12684 = vmatpush1.bf16.msra.mxu0 %v12571
    %12685 = vmatprep.subr.bf16.mxu0 0
    %12686 = vmatpush1.bf16.msra.mxu0 %v12570
    %12687 = vmatprep.subr.bf16.mxu0 0
    %12688 = vmatpush1.bf16.msra.mxu0 %v12569
    %12689 = vmatprep.subr.bf16.mxu0 0
    %12690 = vmatpush2.bf16.msra.mxu0 %v12584
    %12691 = vmatprep.subr.bf16.mxu0 0
    %12692 = vmatpush2.bf16.msra.mxu0 %v12583
    %12693 = vmatprep.subr.bf16.mxu0 0
    %12694 = vmatpush2.bf16.msra.mxu0 %v12582
    %12695 = vmatprep.subr.bf16.mxu0 0
    %12696 = vmatpush2.bf16.msra.mxu0 %v12581
    %12697 = vmatprep.subr.bf16.mxu0 0
    %12698 = vmatpush2.bf16.msra.mxu0 %v12580
    %12699 = vmatprep.subr.bf16.mxu0 0
    %12700 = vmatpush2.bf16.msra.mxu0 %v12579
    %12701 = vmatprep.subr.bf16.mxu0 0
    %12702 = vmatpush2.bf16.msra.mxu0 %v12578
    %12703 = vmatprep.subr.bf16.mxu0 0
    %12704 = vmatpush2.bf16.msra.mxu0 %v12577
    %12705 = vmatprep.mubr.bf16.mxu0 %v12368
    %12706 = vmatmul.mubr.bf16.gmra.mxu0 %v12356
    %v12707 = vpop.f32.mrf.mxu0
    %v12708 = vadd.f32 %v12652, %v12707
    %v12709 = vpop.f32.mrf.mxu0
    %v12710 = vpop.f32.mrf.mxu0
    %v12711 = vadd.f32 %v12655, %v12710
    %v12712 = vpop.f32.mrf.mxu0
    %12713 = vmatprep.mubr.bf16.mxu0 %v12400
    %12714 = vmatmul.mubr.bf16.gmra.mxu0 %v12392
    %v12715 = vpop.f32.mrf.mxu0
    %v12716 = vadd.f32 %v12660, %v12715
    %v12717 = vpop.f32.mrf.mxu0
    %v12718 = vpop.f32.mrf.mxu0
    %v12719 = vadd.f32 %v12663, %v12718
    %v12720 = vpop.f32.mrf.mxu0
    %12721 = vmatprep.mubr.bf16.mxu0 %v12412
    %12722 = vmatmul.mubr.bf16.gmra.mxu0 %v12409
    %v12723 = vpop.f32.mrf.mxu0
    %v12724 = vadd.f32 %v12668, %v12723
    %v12725 = vpop.f32.mrf.mxu0
    %v12726 = vpop.f32.mrf.mxu0
    %v12727 = vpop.f32.mrf.mxu0
    %12728 = vdwg.mxu0
    %v12793 = vunpack.c.l.b16 %v12176
    %v12794 = vunpack.c.l.b16 %v12177
    %v12795 = vunpack.c.l.b16 %v12178
    %v12796 = vunpack.c.l.b16 %v12179
    %v12797 = vunpack.c.l.b16 %v12180
    %v12798 = vunpack.c.l.b16 %v12181
    %v12799 = vunpack.c.l.b16 %v12182
    %v12800 = vunpack.c.l.b16 %v12183
    %v12801 = vunpack.c.l.b16 %v12184
    %v12802 = vunpack.c.l.b16 %v12185
    %v12803 = vunpack.c.l.b16 %v12186
    %v12804 = vunpack.c.l.b16 %v12187
    %v12805 = vunpack.c.l.b16 %v12188
    %v12806 = vunpack.c.l.b16 %v12189
    %v12807 = vunpack.c.l.b16 %v12190
    %v12808 = vunpack.c.l.b16 %v12191
    %v12809 = vunpack.c.l.b16 %v12192
    %v12810 = vunpack.c.l.b16 %v12193
    %v12811 = vunpack.c.l.b16 %v12194
    %v12812 = vunpack.c.l.b16 %v12195
    %v12813 = vunpack.c.l.b16 %v12196
    %v12814 = vunpack.c.l.b16 %v12197
    %v12815 = vunpack.c.l.b16 %v12198
    %v12816 = vunpack.c.l.b16 %v12199
    %v12817 = vunpack.c.l.b16 %v12200
    %v12818 = vunpack.c.l.b16 %v12201
    %v12819 = vunpack.c.l.b16 %v12202
    %v12820 = vunpack.c.l.b16 %v12203
    %v12821 = vunpack.c.l.b16 %v12204
    %v12822 = vunpack.c.l.b16 %v12205
    %v12823 = vunpack.c.l.b16 %v12206
    %v12824 = vunpack.c.l.b16 %v12207
    %v12825 = vunpack.c.l.b16 %v12208
    %v12826 = vunpack.c.l.b16 %v12209
    %v12827 = vunpack.c.l.b16 %v12210
    %v12828 = vunpack.c.l.b16 %v12211
    %v12829 = vunpack.c.l.b16 %v12212
    %v12830 = vunpack.c.l.b16 %v12213
    %v12831 = vunpack.c.l.b16 %v12214
    %v12832 = vunpack.c.l.b16 %v12215
    %v12833 = vunpack.c.l.b16 %v12216
    %v12834 = vunpack.c.l.b16 %v12217
    %v12835 = vunpack.c.l.b16 %v12218
    %v12836 = vunpack.c.l.b16 %v12219
    %v12837 = vunpack.c.l.b16 %v12220
    %v12838 = vunpack.c.l.b16 %v12221
    %v12839 = vunpack.c.l.b16 %v12222
    %v12840 = vunpack.c.l.b16 %v12223
    %v12841 = vunpack.c.l.b16 %v12224
    %v12842 = vunpack.c.l.b16 %v12225
    %v12843 = vunpack.c.l.b16 %v12226
    %v12844 = vunpack.c.l.b16 %v12227
    %v12845 = vunpack.c.l.b16 %v12228
    %v12846 = vunpack.c.l.b16 %v12229
    %v12847 = vunpack.c.l.b16 %v12230
    %v12848 = vunpack.c.l.b16 %v12231
    %v12849 = vunpack.c.l.b16 %v12232
    %v12850 = vunpack.c.l.b16 %v12233
    %v12851 = vunpack.c.l.b16 %v12234
    %v12852 = vunpack.c.l.b16 %v12235
    %v12853 = vunpack.c.l.b16 %v12236
    %v12854 = vunpack.c.l.b16 %v12237
    %v12855 = vunpack.c.l.b16 %v12238
    %v12856 = vunpack.c.l.b16 %v12239
    %v12857 = vpack.c.b16 %v12794, %v12793
    %v12858 = vpack.c.b16 %v12796, %v12795
    %v12859 = vpack.c.b16 %v12798, %v12797
    %v12860 = vpack.c.b16 %v12800, %v12799
    %v12861 = vpack.c.b16 %v12802, %v12801
    %v12862 = vpack.c.b16 %v12804, %v12803
    %v12863 = vpack.c.b16 %v12806, %v12805
    %v12864 = vpack.c.b16 %v12808, %v12807
    %v12865 = vpack.c.b16 %v12810, %v12809
    %v12866 = vpack.c.b16 %v12812, %v12811
    %v12867 = vpack.c.b16 %v12814, %v12813
    %v12868 = vpack.c.b16 %v12816, %v12815
    %v12869 = vpack.c.b16 %v12818, %v12817
    %v12870 = vpack.c.b16 %v12820, %v12819
    %v12871 = vpack.c.b16 %v12822, %v12821
    %v12872 = vpack.c.b16 %v12824, %v12823
    %v12873 = vpack.c.b16 %v12826, %v12825
    %v12874 = vpack.c.b16 %v12828, %v12827
    %v12875 = vpack.c.b16 %v12830, %v12829
    %v12876 = vpack.c.b16 %v12832, %v12831
    %v12877 = vpack.c.b16 %v12834, %v12833
    %v12878 = vpack.c.b16 %v12836, %v12835
    %v12879 = vpack.c.b16 %v12838, %v12837
    %v12880 = vpack.c.b16 %v12840, %v12839
    %v12881 = vpack.c.b16 %v12842, %v12841
    %v12882 = vpack.c.b16 %v12844, %v12843
    %v12883 = vpack.c.b16 %v12846, %v12845
    %v12884 = vpack.c.b16 %v12848, %v12847
    %v12885 = vpack.c.b16 %v12850, %v12849
    %v12886 = vpack.c.b16 %v12852, %v12851
    %v12887 = vpack.c.b16 %v12854, %v12853
    %v12888 = vpack.c.b16 %v12856, %v12855
    %12921 = vmatprep.subr.bf16.mxu0 0
    %12922 = vmatpush1.bf16.msra.mxu0 %v12864
    %12923 = vmatprep.subr.bf16.mxu0 0
    %12924 = vmatpush1.bf16.msra.mxu0 %v12863
    %12925 = vmatprep.subr.bf16.mxu0 0
    %12926 = vmatpush1.bf16.msra.mxu0 %v12862
    %12927 = vmatprep.subr.bf16.mxu0 0
    %12928 = vmatpush1.bf16.msra.mxu0 %v12861
    %12929 = vmatprep.subr.bf16.mxu0 0
    %12930 = vmatpush1.bf16.msra.mxu0 %v12860
    %12931 = vmatprep.subr.bf16.mxu0 0
    %12932 = vmatpush1.bf16.msra.mxu0 %v12859
    %12933 = vmatprep.subr.bf16.mxu0 0
    %12934 = vmatpush1.bf16.msra.mxu0 %v12858
    %12935 = vmatprep.subr.bf16.mxu0 0
    %12936 = vmatpush1.bf16.msra.mxu0 %v12857
    %12937 = vmatprep.subr.bf16.mxu0 0
    %12938 = vmatpush2.bf16.msra.mxu0 %v12872
    %12939 = vmatprep.subr.bf16.mxu0 0
    %12940 = vmatpush2.bf16.msra.mxu0 %v12871
    %12941 = vmatprep.subr.bf16.mxu0 0
    %12942 = vmatpush2.bf16.msra.mxu0 %v12870
    %12943 = vmatprep.subr.bf16.mxu0 0
    %12944 = vmatpush2.bf16.msra.mxu0 %v12869
    %12945 = vmatprep.subr.bf16.mxu0 0
    %12946 = vmatpush2.bf16.msra.mxu0 %v12868
    %12947 = vmatprep.subr.bf16.mxu0 0
    %12948 = vmatpush2.bf16.msra.mxu0 %v12867
    %12949 = vmatprep.subr.bf16.mxu0 0
    %12950 = vmatpush2.bf16.msra.mxu0 %v12866
    %12951 = vmatprep.subr.bf16.mxu0 0
    %12952 = vmatpush2.bf16.msra.mxu0 %v12865
    %12953 = vmatprep.mubr.bf16.mxu0 %v12165
    %12954 = vmatmul.mubr.bf16.gmra.mxu0 %v12164
    %v12955 = vpop.f32.mrf.mxu0
    %v12956 = vadd.f32 %v12708, %v12955
    %v12957 = vpop.f32.mrf.mxu0
    %v12958 = vpop.f32.mrf.mxu0
    %v12959 = vadd.f32 %v12711, %v12958
    %v12960 = vpop.f32.mrf.mxu0
    %12961 = vmatprep.mubr.bf16.mxu0 %v12169
    %12962 = vmatmul.mubr.bf16.gmra.mxu0 %v12168
    %v12963 = vpop.f32.mrf.mxu0
    %v12964 = vadd.f32 %v12716, %v12963
    %v12965 = vpop.f32.mrf.mxu0
    %v12966 = vpop.f32.mrf.mxu0
    %v12967 = vadd.f32 %v12719, %v12966
    %v12968 = vpop.f32.mrf.mxu0
    %12969 = vmatprep.mubr.bf16.mxu0 %v12173
    %12970 = vmatmul.mubr.bf16.gmra.mxu0 %v12172
    %v12971 = vpop.f32.mrf.mxu0
    %v12972 = vadd.f32 %v12724, %v12971
    %v12973 = vpop.f32.mrf.mxu0
    %v12974 = vpop.f32.mrf.mxu0
    %v12975 = vpop.f32.mrf.mxu0
    %12976 = vdwg.mxu0
    %12977 = vmatprep.subr.bf16.mxu0 0
    %12978 = vmatpush1.bf16.msra.mxu0 %v12880
    %12979 = vmatprep.subr.bf16.mxu0 0
    %12980 = vmatpush1.bf16.msra.mxu0 %v12879
    %12981 = vmatprep.subr.bf16.mxu0 0
    %12982 = vmatpush1.bf16.msra.mxu0 %v12878
    %12983 = vmatprep.subr.bf16.mxu0 0
    %12984 = vmatpush1.bf16.msra.mxu0 %v12877
    %12985 = vmatprep.subr.bf16.mxu0 0
    %12986 = vmatpush1.bf16.msra.mxu0 %v12876
    %12987 = vmatprep.subr.bf16.mxu0 0
    %12988 = vmatpush1.bf16.msra.mxu0 %v12875
    %12989 = vmatprep.subr.bf16.mxu0 0
    %12990 = vmatpush1.bf16.msra.mxu0 %v12874
    %12991 = vmatprep.subr.bf16.mxu0 0
    %12992 = vmatpush1.bf16.msra.mxu0 %v12873
    %12993 = vmatprep.subr.bf16.mxu0 0
    %12994 = vmatpush2.bf16.msra.mxu0 %v12888
    %12995 = vmatprep.subr.bf16.mxu0 0
    %12996 = vmatpush2.bf16.msra.mxu0 %v12887
    %12997 = vmatprep.subr.bf16.mxu0 0
    %12998 = vmatpush2.bf16.msra.mxu0 %v12886
    %12999 = vmatprep.subr.bf16.mxu0 0
    %13000 = vmatpush2.bf16.msra.mxu0 %v12885
    %13001 = vmatprep.subr.bf16.mxu0 0
    %13002 = vmatpush2.bf16.msra.mxu0 %v12884
    %13003 = vmatprep.subr.bf16.mxu0 0
    %13004 = vmatpush2.bf16.msra.mxu0 %v12883
    %13005 = vmatprep.subr.bf16.mxu0 0
    %13006 = vmatpush2.bf16.msra.mxu0 %v12882
    %13007 = vmatprep.subr.bf16.mxu0 0
    %13008 = vmatpush2.bf16.msra.mxu0 %v12881
    %13009 = vmatprep.mubr.bf16.mxu0 %v12167
    %13010 = vmatmul.mubr.bf16.gmra.mxu0 %v12166
    %v13011 = vpop.f32.mrf.mxu0
    %v13012 = vadd.f32 %v12956, %v13011
    %v13013 = vpop.f32.mrf.mxu0
    %v13014 = vpop.f32.mrf.mxu0
    %v13015 = vadd.f32 %v12959, %v13014
    %v13016 = vpop.f32.mrf.mxu0
    %13017 = vmatprep.mubr.bf16.mxu0 %v12171
    %13018 = vmatmul.mubr.bf16.gmra.mxu0 %v12170
    %v13019 = vpop.f32.mrf.mxu0
    %v13020 = vadd.f32 %v12964, %v13019
    %v13021 = vpop.f32.mrf.mxu0
    %v13022 = vpop.f32.mrf.mxu0
    %v13023 = vadd.f32 %v12967, %v13022
    %v13024 = vpop.f32.mrf.mxu0
    %13025 = vmatprep.mubr.bf16.mxu0 %v12175
    %13026 = vmatmul.mubr.bf16.gmra.mxu0 %v12174
    %v13027 = vpop.f32.mrf.mxu0
    %v13028 = vadd.f32 %v12972, %v13027
    %v13029 = vpop.f32.mrf.mxu0
    %v13030 = vpop.f32.mrf.mxu0
    %v13031 = vpop.f32.mrf.mxu0
    %13032 = vdwg.mxu0
    %v13033 = vld [vmem:[#allocation2] sm:$0xfc]
    %v13034 = vld [vmem:[#allocation2 + $0x8] sm:$0xfc]
    %v13035 = vld [vmem:[#allocation2 + $0x10] sm:$0xfc]
    %v13036 = vld [vmem:[#allocation2 + $0x18] sm:$0xfc]
    %v13037 = vld [vmem:[#allocation2 + $0x80] sm:$0xf]
    %v13038 = vld [vmem:[#allocation2 + $0x88] sm:$0xf]
    %v13039 = vld [vmem:[#allocation2 + $0x90] sm:$0xf]
    %v13040 = vld [vmem:[#allocation2 + $0x98] sm:$0xf]
    %v13041 = vpack.c.bf16 %v12148, %v13033
    %v13042 = vpack.c.bf16 %v12149, %v13034
    %v13043 = vpack.c.bf16 %v12150, %v13035
    %v13044 = vpack.c.bf16 %v12151, %v13036
    %v13045 = vpack.c.bf16 %v13037, %v13037
    %v13046 = vpack.c.bf16 %v13038, %v13038
    %v13047 = vpack.c.bf16 %v13039, %v13039
    %v13048 = vpack.c.bf16 %v13040, %v13040
    %s13049 = scalar_lea.vmem [#allocation9], 512
    %v13050 = vld [vmem:[%s13049] sm:$0xf]
    %v13051 = vld [vmem:[%s13049 + $0x4] sm:$0xf]
    %v13052 = vld [vmem:[%s13049 + $0x8] sm:$0xf]
    %v13053 = vld [vmem:[%s13049 + $0xc] sm:$0xf]
    %v13054 = vld [vmem:[%s13049 + $0x10] sm:$0xf]
    %v13055 = vld [vmem:[%s13049 + $0x14] sm:$0xf]
    %v13056 = vld [vmem:[%s13049 + $0x18] sm:$0xf]
    %v13057 = vld [vmem:[%s13049 + $0x1c] sm:$0xf]
    %v13058 = vld [vmem:[%s13049 + $0x20] sm:$0xf]
    %v13059 = vld [vmem:[%s13049 + $0x24] sm:$0xf]
    %v13060 = vld [vmem:[%s13049 + $0x28] sm:$0xf]
    %v13061 = vld [vmem:[%s13049 + $0x2c] sm:$0xf]
    %v13062 = vld [vmem:[%s13049 + $0x30] sm:$0xf]
    %v13063 = vld [vmem:[%s13049 + $0x34] sm:$0xf]
    %v13064 = vld [vmem:[%s13049 + $0x38] sm:$0xf]
    %v13065 = vld [vmem:[%s13049 + $0x3c] sm:$0xf]
    %v13066 = vld [vmem:[%s13049 + $0x40] sm:$0xf]
    %v13067 = vld [vmem:[%s13049 + $0x44] sm:$0xf]
    %v13068 = vld [vmem:[%s13049 + $0x48] sm:$0xf]
    %v13069 = vld [vmem:[%s13049 + $0x4c] sm:$0xf]
    %v13070 = vld [vmem:[%s13049 + $0x50] sm:$0xf]
    %v13071 = vld [vmem:[%s13049 + $0x54] sm:$0xf]
    %v13072 = vld [vmem:[%s13049 + $0x58] sm:$0xf]
    %v13073 = vld [vmem:[%s13049 + $0x5c] sm:$0xf]
    %v13074 = vld [vmem:[%s13049 + $0x60] sm:$0xf]
    %v13075 = vld [vmem:[%s13049 + $0x64] sm:$0xf]
    %v13076 = vld [vmem:[%s13049 + $0x68] sm:$0xf]
    %v13077 = vld [vmem:[%s13049 + $0x6c] sm:$0xf]
    %v13078 = vld [vmem:[%s13049 + $0x70] sm:$0xf]
    %v13079 = vld [vmem:[%s13049 + $0x74] sm:$0xf]
    %v13080 = vld [vmem:[%s13049 + $0x78] sm:$0xf]
    %v13081 = vld [vmem:[%s13049 + $0x7c] sm:$0xf]
    %v13082 = vld [vmem:[%s13049 + $0x80] sm:$0xf]
    %v13083 = vld [vmem:[%s13049 + $0x84] sm:$0xf]
    %v13084 = vld [vmem:[%s13049 + $0x88] sm:$0xf]
    %v13085 = vld [vmem:[%s13049 + $0x8c] sm:$0xf]
    %v13086 = vld [vmem:[%s13049 + $0x90] sm:$0xf]
    %v13087 = vld [vmem:[%s13049 + $0x94] sm:$0xf]
    %v13088 = vld [vmem:[%s13049 + $0x98] sm:$0xf]
    %v13089 = vld [vmem:[%s13049 + $0x9c] sm:$0xf]
    %v13090 = vld [vmem:[%s13049 + $0xa0] sm:$0xf]
    %v13091 = vld [vmem:[%s13049 + $0xa4] sm:$0xf]
    %v13092 = vld [vmem:[%s13049 + $0xa8] sm:$0xf]
    %v13093 = vld [vmem:[%s13049 + $0xac] sm:$0xf]
    %v13094 = vld [vmem:[%s13049 + $0xb0] sm:$0xf]
    %v13095 = vld [vmem:[%s13049 + $0xb4] sm:$0xf]
    %v13096 = vld [vmem:[%s13049 + $0xb8] sm:$0xf]
    %v13097 = vld [vmem:[%s13049 + $0xbc] sm:$0xf]
    %v13098 = vld [vmem:[%s13049 + $0xc0] sm:$0xf]
    %v13099 = vld [vmem:[%s13049 + $0xc4] sm:$0xf]
    %v13100 = vld [vmem:[%s13049 + $0xc8] sm:$0xf]
    %v13101 = vld [vmem:[%s13049 + $0xcc] sm:$0xf]
    %v13102 = vld [vmem:[%s13049 + $0xd0] sm:$0xf]
    %v13103 = vld [vmem:[%s13049 + $0xd4] sm:$0xf]
    %v13104 = vld [vmem:[%s13049 + $0xd8] sm:$0xf]
    %v13105 = vld [vmem:[%s13049 + $0xdc] sm:$0xf]
    %v13106 = vld [vmem:[%s13049 + $0xe0] sm:$0xf]
    %v13107 = vld [vmem:[%s13049 + $0xe4] sm:$0xf]
    %v13108 = vld [vmem:[%s13049 + $0xe8] sm:$0xf]
    %v13109 = vld [vmem:[%s13049 + $0xec] sm:$0xf]
    %v13110 = vld [vmem:[%s13049 + $0xf0] sm:$0xf]
    %v13111 = vld [vmem:[%s13049 + $0xf4] sm:$0xf]
    %v13112 = vld [vmem:[%s13049 + $0xf8] sm:$0xf]
    %v13113 = vld [vmem:[%s13049 + $0xfc] sm:$0xf]
    %v13126 = vrot.slane %v13041, 1
    %v13127 = vrot.slane %v12168, 1
    %v13128 = vsel %vm4076, %v13126, %v13127
    %v13129 = vrot.slane %v13042, 1
    %v13130 = vrot.slane %v12169, 1
    %v13131 = vsel %vm4076, %v13129, %v13130
    %v13132 = vrot.slane %v13043, 1
    %v13133 = vrot.slane %v12170, 1
    %v13134 = vsel %vm4076, %v13132, %v13133
    %v13135 = vrot.slane %v13044, 1
    %v13136 = vrot.slane %v12171, 1
    %v13137 = vsel %vm4076, %v13135, %v13136
    %v13138 = vrot.slane %v13045, 1
    %v13139 = vsel %vm4076, %v13127, %v13138
    %v13140 = vrot.slane %v13046, 1
    %v13141 = vsel %vm4076, %v13130, %v13140
    %v13142 = vrot.slane %v13047, 1
    %v13143 = vsel %vm4076, %v13133, %v13142
    %v13144 = vrot.slane %v13048, 1
    %v13145 = vsel %vm4076, %v13136, %v13144
    %v13222 = vunpack.c.l.b16 %v13050
    %v13223 = vunpack.c.l.b16 %v13051
    %v13224 = vunpack.c.l.b16 %v13052
    %v13225 = vunpack.c.l.b16 %v13053
    %v13226 = vunpack.c.l.b16 %v13054
    %v13227 = vunpack.c.l.b16 %v13055
    %v13228 = vunpack.c.l.b16 %v13056
    %v13229 = vunpack.c.l.b16 %v13057
    %v13230 = vunpack.c.l.b16 %v13058
    %v13231 = vunpack.c.l.b16 %v13059
    %v13232 = vunpack.c.l.b16 %v13060
    %v13233 = vunpack.c.l.b16 %v13061
    %v13234 = vunpack.c.l.b16 %v13062
    %v13235 = vunpack.c.l.b16 %v13063
    %v13236 = vunpack.c.l.b16 %v13064
    %v13237 = vunpack.c.l.b16 %v13065
    %v13238 = vunpack.c.l.b16 %v13066
    %v13239 = vunpack.c.l.b16 %v13067
    %v13240 = vunpack.c.l.b16 %v13068
    %v13241 = vunpack.c.l.b16 %v13069
    %v13242 = vunpack.c.l.b16 %v13070
    %v13243 = vunpack.c.l.b16 %v13071
    %v13244 = vunpack.c.l.b16 %v13072
    %v13245 = vunpack.c.l.b16 %v13073
    %v13246 = vunpack.c.l.b16 %v13074
    %v13247 = vunpack.c.l.b16 %v13075
    %v13248 = vunpack.c.l.b16 %v13076
    %v13249 = vunpack.c.l.b16 %v13077
    %v13250 = vunpack.c.l.b16 %v13078
    %v13251 = vunpack.c.l.b16 %v13079
    %v13252 = vunpack.c.l.b16 %v13080
    %v13253 = vunpack.c.l.b16 %v13081
    %v13254 = vunpack.c.l.b16 %v13082
    %v13255 = vunpack.c.l.b16 %v13083
    %v13256 = vunpack.c.l.b16 %v13084
    %v13257 = vunpack.c.l.b16 %v13085
    %v13258 = vunpack.c.l.b16 %v13086
    %v13259 = vunpack.c.l.b16 %v13087
    %v13260 = vunpack.c.l.b16 %v13088
    %v13261 = vunpack.c.l.b16 %v13089
    %v13262 = vunpack.c.l.b16 %v13090
    %v13263 = vunpack.c.l.b16 %v13091
    %v13264 = vunpack.c.l.b16 %v13092
    %v13265 = vunpack.c.l.b16 %v13093
    %v13266 = vunpack.c.l.b16 %v13094
    %v13267 = vunpack.c.l.b16 %v13095
    %v13268 = vunpack.c.l.b16 %v13096
    %v13269 = vunpack.c.l.b16 %v13097
    %v13270 = vunpack.c.l.b16 %v13098
    %v13271 = vunpack.c.l.b16 %v13099
    %v13272 = vunpack.c.l.b16 %v13100
    %v13273 = vunpack.c.l.b16 %v13101
    %v13274 = vunpack.c.l.b16 %v13102
    %v13275 = vunpack.c.l.b16 %v13103
    %v13276 = vunpack.c.l.b16 %v13104
    %v13277 = vunpack.c.l.b16 %v13105
    %v13278 = vunpack.c.l.b16 %v13106
    %v13279 = vunpack.c.l.b16 %v13107
    %v13280 = vunpack.c.l.b16 %v13108
    %v13281 = vunpack.c.l.b16 %v13109
    %v13282 = vunpack.c.l.b16 %v13110
    %v13283 = vunpack.c.l.b16 %v13111
    %v13284 = vunpack.c.l.b16 %v13112
    %v13285 = vunpack.c.l.b16 %v13113
    %v13286 = vpack.c.b16 %v13223, %v13222
    %v13287 = vpack.c.b16 %v13225, %v13224
    %v13288 = vpack.c.b16 %v13227, %v13226
    %v13289 = vpack.c.b16 %v13229, %v13228
    %v13290 = vpack.c.b16 %v13231, %v13230
    %v13291 = vpack.c.b16 %v13233, %v13232
    %v13292 = vpack.c.b16 %v13235, %v13234
    %v13293 = vpack.c.b16 %v13237, %v13236
    %v13294 = vpack.c.b16 %v13239, %v13238
    %v13295 = vpack.c.b16 %v13241, %v13240
    %v13296 = vpack.c.b16 %v13243, %v13242
    %v13297 = vpack.c.b16 %v13245, %v13244
    %v13298 = vpack.c.b16 %v13247, %v13246
    %v13299 = vpack.c.b16 %v13249, %v13248
    %v13300 = vpack.c.b16 %v13251, %v13250
    %v13301 = vpack.c.b16 %v13253, %v13252
    %v13302 = vpack.c.b16 %v13255, %v13254
    %v13303 = vpack.c.b16 %v13257, %v13256
    %v13304 = vpack.c.b16 %v13259, %v13258
    %v13305 = vpack.c.b16 %v13261, %v13260
    %v13306 = vpack.c.b16 %v13263, %v13262
    %v13307 = vpack.c.b16 %v13265, %v13264
    %v13308 = vpack.c.b16 %v13267, %v13266
    %v13309 = vpack.c.b16 %v13269, %v13268
    %v13310 = vpack.c.b16 %v13271, %v13270
    %v13311 = vpack.c.b16 %v13273, %v13272
    %v13312 = vpack.c.b16 %v13275, %v13274
    %v13313 = vpack.c.b16 %v13277, %v13276
    %v13314 = vpack.c.b16 %v13279, %v13278
    %v13315 = vpack.c.b16 %v13281, %v13280
    %v13316 = vpack.c.b16 %v13283, %v13282
    %v13317 = vpack.c.b16 %v13285, %v13284
    %13350 = vmatprep.subr.bf16.mxu0 0
    %13351 = vmatpush1.bf16.msra.mxu0 %v13293
    %13352 = vmatprep.subr.bf16.mxu0 0
    %13353 = vmatpush1.bf16.msra.mxu0 %v13292
    %13354 = vmatprep.subr.bf16.mxu0 0
    %13355 = vmatpush1.bf16.msra.mxu0 %v13291
    %13356 = vmatprep.subr.bf16.mxu0 0
    %13357 = vmatpush1.bf16.msra.mxu0 %v13290
    %13358 = vmatprep.subr.bf16.mxu0 0
    %13359 = vmatpush1.bf16.msra.mxu0 %v13289
    %13360 = vmatprep.subr.bf16.mxu0 0
    %13361 = vmatpush1.bf16.msra.mxu0 %v13288
    %13362 = vmatprep.subr.bf16.mxu0 0
    %13363 = vmatpush1.bf16.msra.mxu0 %v13287
    %13364 = vmatprep.subr.bf16.mxu0 0
    %13365 = vmatpush1.bf16.msra.mxu0 %v13286
    %13366 = vmatprep.subr.bf16.mxu0 0
    %13367 = vmatpush2.bf16.msra.mxu0 %v13301
    %13368 = vmatprep.subr.bf16.mxu0 0
    %13369 = vmatpush2.bf16.msra.mxu0 %v13300
    %13370 = vmatprep.subr.bf16.mxu0 0
    %13371 = vmatpush2.bf16.msra.mxu0 %v13299
    %13372 = vmatprep.subr.bf16.mxu0 0
    %13373 = vmatpush2.bf16.msra.mxu0 %v13298
    %13374 = vmatprep.subr.bf16.mxu0 0
    %13375 = vmatpush2.bf16.msra.mxu0 %v13297
    %13376 = vmatprep.subr.bf16.mxu0 0
    %13377 = vmatpush2.bf16.msra.mxu0 %v13296
    %13378 = vmatprep.subr.bf16.mxu0 0
    %13379 = vmatpush2.bf16.msra.mxu0 %v13295
    %13380 = vmatprep.subr.bf16.mxu0 0
    %13381 = vmatpush2.bf16.msra.mxu0 %v13294
    %13382 = vmatprep.mubr.bf16.mxu0 %v13131
    %13383 = vmatmul.mubr.bf16.gmra.mxu0 %v13128
    %v13384 = vpop.f32.mrf.mxu0
    %v13385 = vadd.f32 0.0, %v13384
    %v13386 = vpop.f32.mrf.mxu0
    %v13387 = vpop.f32.mrf.mxu0
    %v13388 = vadd.f32 0.0, %v13387
    %v13389 = vpop.f32.mrf.mxu0
    %13390 = vmatprep.mubr.bf16.mxu0 %v13141
    %13391 = vmatmul.mubr.bf16.gmra.mxu0 %v13139
    %v13392 = vpop.f32.mrf.mxu0
    %v13393 = vadd.f32 0.0, %v13392
    %v13394 = vpop.f32.mrf.mxu0
    %v13395 = vpop.f32.mrf.mxu0
    %v13396 = vadd.f32 0.0, %v13395
    %v13397 = vpop.f32.mrf.mxu0
    %13398 = vmatprep.mubr.bf16.mxu0 %v13140
    %13399 = vmatmul.mubr.bf16.gmra.mxu0 %v13138
    %v13400 = vpop.f32.mrf.mxu0
    %v13401 = vadd.f32 0.0, %v13400
    %v13402 = vpop.f32.mrf.mxu0
    %v13403 = vpop.f32.mrf.mxu0
    %v13404 = vpop.f32.mrf.mxu0
    %13405 = vdwg.mxu0
    %13406 = vmatprep.subr.bf16.mxu0 0
    %13407 = vmatpush1.bf16.msra.mxu0 %v13309
    %13408 = vmatprep.subr.bf16.mxu0 0
    %13409 = vmatpush1.bf16.msra.mxu0 %v13308
    %13410 = vmatprep.subr.bf16.mxu0 0
    %13411 = vmatpush1.bf16.msra.mxu0 %v13307
    %13412 = vmatprep.subr.bf16.mxu0 0
    %13413 = vmatpush1.bf16.msra.mxu0 %v13306
    %13414 = vmatprep.subr.bf16.mxu0 0
    %13415 = vmatpush1.bf16.msra.mxu0 %v13305
    %13416 = vmatprep.subr.bf16.mxu0 0
    %13417 = vmatpush1.bf16.msra.mxu0 %v13304
    %13418 = vmatprep.subr.bf16.mxu0 0
    %13419 = vmatpush1.bf16.msra.mxu0 %v13303
    %13420 = vmatprep.subr.bf16.mxu0 0
    %13421 = vmatpush1.bf16.msra.mxu0 %v13302
    %13422 = vmatprep.subr.bf16.mxu0 0
    %13423 = vmatpush2.bf16.msra.mxu0 %v13317
    %13424 = vmatprep.subr.bf16.mxu0 0
    %13425 = vmatpush2.bf16.msra.mxu0 %v13316
    %13426 = vmatprep.subr.bf16.mxu0 0
    %13427 = vmatpush2.bf16.msra.mxu0 %v13315
    %13428 = vmatprep.subr.bf16.mxu0 0
    %13429 = vmatpush2.bf16.msra.mxu0 %v13314
    %13430 = vmatprep.subr.bf16.mxu0 0
    %13431 = vmatpush2.bf16.msra.mxu0 %v13313
    %13432 = vmatprep.subr.bf16.mxu0 0
    %13433 = vmatpush2.bf16.msra.mxu0 %v13312
    %13434 = vmatprep.subr.bf16.mxu0 0
    %13435 = vmatpush2.bf16.msra.mxu0 %v13311
    %13436 = vmatprep.subr.bf16.mxu0 0
    %13437 = vmatpush2.bf16.msra.mxu0 %v13310
    %13438 = vmatprep.mubr.bf16.mxu0 %v13137
    %13439 = vmatmul.mubr.bf16.gmra.mxu0 %v13134
    %v13440 = vpop.f32.mrf.mxu0
    %v13441 = vadd.f32 %v13385, %v13440
    %v13442 = vpop.f32.mrf.mxu0
    %v13443 = vpop.f32.mrf.mxu0
    %v13444 = vadd.f32 %v13388, %v13443
    %v13445 = vpop.f32.mrf.mxu0
    %13446 = vmatprep.mubr.bf16.mxu0 %v13145
    %13447 = vmatmul.mubr.bf16.gmra.mxu0 %v13143
    %v13448 = vpop.f32.mrf.mxu0
    %v13449 = vadd.f32 %v13393, %v13448
    %v13450 = vpop.f32.mrf.mxu0
    %v13451 = vpop.f32.mrf.mxu0
    %v13452 = vadd.f32 %v13396, %v13451
    %v13453 = vpop.f32.mrf.mxu0
    %13454 = vmatprep.mubr.bf16.mxu0 %v13144
    %13455 = vmatmul.mubr.bf16.gmra.mxu0 %v13142
    %v13456 = vpop.f32.mrf.mxu0
    %v13457 = vadd.f32 %v13401, %v13456
    %v13458 = vpop.f32.mrf.mxu0
    %v13459 = vpop.f32.mrf.mxu0
    %v13460 = vpop.f32.mrf.mxu0
    %13461 = vdwg.mxu0
    %v13462 = vadd.f32 %v13012, %v13441
    %v13463 = vadd.f32 %v13015, %v13444
    %v13464 = vadd.f32 %v13020, %v13449
    %v13465 = vadd.f32 %v13023, %v13452
    %v13466 = vadd.f32 %v13028, %v13457
    %v13467 = vld [vmem:[#allocation11] sm:$0x1]
    %v13469 = vlaneseq
    %v13470 = vshrl.u32 %v13469, 7
    %v13471 = vsub.s32 0, %v13470
    %v13472 = vrot.slane %v13467, %v13471
    %v13474 = vadd.f32 %v13462, %v13472
    %v13475 = vadd.f32 %v13463, %v13472
    %v13476 = vadd.f32 %v13464, %v13472
    %v13477 = vadd.f32 %v13465, %v13472
    %v13478 = vadd.f32 %v13466, %v13472
    %13479 = vst [vmem:[%s6] sm:$0xff] %v13474
    %13480 = vst [vmem:[%s6 + $0x8] sm:$0xff] %v13475
    %s13481 = scalar_lea.vmem %s6, 16
    %13482 = vst [vmem:[%s13481 - $0x2] sm:$0xfc] %v13476
    %13483 = vst [vmem:[%s13481 + $0x6] sm:$0xff] %v13477
    %13484 = vst [vmem:[%s13481 + $0xe] sm:$0x3] %v13478
    // Predicated region
    $region46: #{classification_model_fused.1} parent=1 // pred_check
      _
    $region47: #{classification_model_fused.1} parent=1 // pred_check_branch
      %13486 = sbr.rel (0) target = $region49
    $region48: #{classification_model_fused.1} parent=1 // pred_region
      _
    $region49: #{classification_model_fused.1} parent=1 // pred_fallthru
      _
    // Predicated region
    $region50: #{classification_model_fused.1} parent=1 // pred_check
      _
    $region51: #{classification_model_fused.1} parent=1 // pred_check_branch
      %13488 = sbr.rel (0) target = $region53
    $region52: #{classification_model_fused.1} parent=1 // pred_region
      _
    $region53: #{classification_model_fused.1} parent=1 // pred_fallthru
      _
    %13489 = vsyncpa [#allocation5], 1
    %13490 = vsyncpa [#allocation7], 1
    %13491 = vsyncpa [#allocation10], 1

</llo_original>
